<compile_context>
chip_gen: v7x
topology: tpu7x:2x2x1
jax: 0.10.0
libtpu: 0.0.40
codegen_flags: <defaults>
</compile_context>

<pallas_src>
import math

import jax
import jax.numpy as jnp
from jax import lax
from jax.experimental import pallas as pl
from jax.experimental.pallas import tpu as pltpu


# ----------------------------------------------------------------------------
# Glue: PyTorch-compatible nn.Unfold for NCHW inputs (pure gather/reshape).
# Channel ordering of the output: c*k*k + (ki*k + kj); L is row-major over the
# output spatial grid (last spatial dim fastest) — matches torch.nn.Unfold.
# ----------------------------------------------------------------------------
def unfold_nchw(x, k, s, p):
    B, C, S1, S2 = x.shape
    xp = jnp.pad(x, ((0, 0), (0, 0), (p, p), (p, p)))
    O1 = (S1 + 2 * p - k) // s + 1
    O2 = (S2 + 2 * p - k) // s + 1
    cols = []
    for ki in range(k):
        for kj in range(k):
            patch = xp[:, :, ki:ki + s * (O1 - 1) + 1:s, kj:kj + s * (O2 - 1) + 1:s]
            cols.append(patch)                       # (B, C, O1, O2)
    col = jnp.stack(cols, axis=2)                    # (B, C, k*k, O1, O2)
    return col.reshape(B, C * k * k, O1 * O2)        # (B, C*k*k, L)


def _full_spec(a):
    # whole-array block, constant index map
    return pl.BlockSpec(a.shape, lambda b, _nd=a.ndim: (0,) * _nd)


# ----------------------------------------------------------------------------
# Fused Token_performer + LIE kernel (per batch element).
#   tokens (T, dim) -> LN1 -> fused kqv -> performer attention -> proj(+v)
#     -> LN2 -> MLP(tanh-GELU)(+skip) -> in-kernel 3x3 unfold -> LIE gating
#   output written as (C, T)  (lane-dense in T).
# ----------------------------------------------------------------------------
def lie_t2t_call(tokens, params, W, H):
    B, T, dim = tokens.shape
    emb = params["wsq"].shape[1]          # token_dim
    C = emb
    m = params["wprm_t"].shape[1]
    assert T == W * H

    HP = ((H + 1 + 7) // 8) * 8           # sublane-aligned halo offset
    PAD = T + 2 * HP
    inv_sqrt_m = 1.0 / math.sqrt(m)
    gelu_c = math.sqrt(2.0 / math.pi)

    def kernel(x_ref, ln1_ref, wkqv_ref, bkqv_ref, wprm_ref, wsq_ref, pvec_ref,
               wlie_ref, lvec_ref, o_ref, pad_ref):
        f32 = jnp.float32
        bf16 = jnp.bfloat16

        x = x_ref[0].astype(f32)                                   # (T, dim)

        # ---- LayerNorm1 (stats in f32) ----
        mu = jnp.mean(x, axis=-1, keepdims=True)
        var = jnp.mean(jnp.square(x - mu), axis=-1, keepdims=True)
        xn = (x - mu) * lax.rsqrt(var + 1e-5) * ln1_ref[0:1, :] + ln1_ref[1:2, :]

        # ---- fused k|q|v projection: one bf16 MXU pass instead of three ----
        kqv = jnp.dot(xn.astype(bf16), wkqv_ref[...],
                      preferred_element_type=f32) + bkqv_ref[...]  # (T, 3*emb)
        kk = kqv[:, 0:emb]
        qq = kqv[:, emb:2 * emb]
        vv = kqv[:, 2 * emb:3 * emb]

        # ---- performer positive random features; k and q share one matmul ----
        kq = jnp.concatenate([kk, qq], axis=0)                     # (2T, emb)
        zd = 0.5 * jnp.sum(kq * kq, axis=-1, keepdims=True)        # (2T, 1) f32
        wtz = jnp.dot(kq.astype(bf16), wprm_ref[...],
                      preferred_element_type=f32)                  # (2T, m)
        # NOTE: matches PyTorch prm_exp (no max-subtraction guard); relies on
        # the LayerNorm'ed inputs keeping exp() within f32 range.
        kqp = jnp.exp(wtz - zd) * inv_sqrt_m
        kp = kqp[0:T, :]
        qp = kqp[T:2 * T, :]

        # attention normalizer D stays in f32 (VPU/XLU, not MXU)
        kpsum = jnp.sum(kp, axis=0, keepdims=True)                 # (1, m)
        D = jnp.sum(qp * kpsum, axis=-1, keepdims=True)            # (T, 1)

        kptv_t = jnp.dot(kp.T.astype(bf16), vv.astype(bf16),
                         preferred_element_type=f32)               # (m, emb)
        y = jnp.dot(qp.astype(bf16), kptv_t.astype(bf16),
                    preferred_element_type=f32)                    # (T, emb)
        y = y * pl.reciprocal(D + 1e-8, approx=True)               # EUP reciprocal

        # skip connection with v (+ proj); dropout = eval-mode identity
        y = vv + jnp.dot(y.astype(bf16), wsq_ref[0],
                         preferred_element_type=f32) + pvec_ref[0:1, :]

        # ---- LayerNorm2 + MLP (tanh-GELU) + skip ----
        mu2 = jnp.mean(y, axis=-1, keepdims=True)
        var2 = jnp.mean(jnp.square(y - mu2), axis=-1, keepdims=True)
        yn = (y - mu2) * lax.rsqrt(var2 + 1e-5) * pvec_ref[1:2, :] + pvec_ref[2:3, :]
        h = jnp.dot(yn.astype(bf16), wsq_ref[1],
                    preferred_element_type=f32) + pvec_ref[3:4, :]
        # tanh-approx GELU (EUP tanh); review-approved stand-in for exact erf GELU
        h = 0.5 * h * (1.0 + jnp.tanh(gelu_c * (h + 0.044715 * h * h * h)))
        mlp = jnp.dot(h.astype(bf16), wsq_ref[2],
                      preferred_element_type=f32) + pvec_ref[4:5, :]
        a = y + mlp                                                # (T, C)

        # ---- LIE: 3x3 unfold folded into the kernel (no (T, 9C) tensor) ----
        # Zero-padded halo copy of the token grid in VMEM; each neighbor o is
        # a shifted (T, C) window of it plus a spatial-boundary mask.
        pad_ref[...] = jnp.zeros_like(pad_ref)
        pad_ref[pl.ds(HP, T), :] = a

        lif = lax.broadcasted_iota(jnp.int32, (T, 1), 0).astype(f32)
        wif = jnp.floor((lif + 0.5) * (1.0 / H))                   # W-axis index
        hif = lif - wif * H                                        # H-axis index

        def neighbor(o):
            di, dj = o // 3 - 1, o % 3 - 1
            raw = pad_ref[pl.ds(HP + di * H + dj, T), :]           # shifted window
            valid = ((wif + di >= 0) & (wif + di <= W - 1)
                     & (hif + dj >= 0) & (hif + dj <= H - 1))
            return jnp.where(valid, raw, 0.0)

        # lin1(unfold(a)) as 9 per-offset (C, C) bf16 matmuls
        acc = jnp.zeros((T, C), f32)
        for o in range(9):
            acc = acc + jnp.dot(neighbor(o).astype(bf16), wlie_ref[0, o],
                                preferred_element_type=f32)
        hlie = jnp.maximum(acc + lvec_ref[9:10, :], 0.0)           # ReLU
        hlie_bf = hlie.astype(bf16)

        # lin2 -> sigmoid -> gate -> lin3, streamed per offset
        acc = jnp.zeros((T, C), f32)
        for o in range(9):
            z = jnp.dot(hlie_bf, wlie_ref[1, o],
                        preferred_element_type=f32) + lvec_ref[o:o + 1, :]
            s = pl.reciprocal(1.0 + jnp.exp(-z), approx=True)      # sigmoid via EUP
            g = neighbor(o) * s                                    # gate in f32
            acc = acc + jnp.dot(g.astype(bf16), wlie_ref[2, o],
                                preferred_element_type=f32)
        out = acc + lvec_ref[10:11, :]                             # (T, C)

        # lane-dense (C, T) output: wrapper reshape to (B, C, W, H) is free
        o_ref[0] = out.T.astype(o_ref.dtype)

    plist = [params["ln1"], params["wkqv"], params["bkqv"], params["wprm_t"],
             params["wsq"], params["pvec"], params["wlie"], params["lvec"]]

    return pl.pallas_call(
        kernel,
        out_shape=jax.ShapeDtypeStruct((B, C, T), jnp.float32),
        grid_spec=pltpu.PrefetchScalarGridSpec(
            num_scalar_prefetch=0,
            grid=(B,),
            in_specs=[pl.BlockSpec((1, T, dim), lambda b: (b, 0, 0))]
                     + [_full_spec(a) for a in plist],
            out_specs=pl.BlockSpec((1, C, T), lambda b: (b, 0, 0)),
            scratch_shapes=[pltpu.VMEM((PAD, C), jnp.float32)],
        ),
        compiler_params=pltpu.CompilerParams(
            dimension_semantics=("parallel",),
            vmem_limit_bytes=32 * 1024 * 1024,
        ),
    )(tokens, *plist)


# ----------------------------------------------------------------------------
# Deterministic synthetic parameters (shapes follow the PyTorch __init__).
# Linear weights are stored as (in, out); LIE weights are generated in the
# PyTorch layout and re-packed per 3x3 offset (row/col c*9+o -> [o, c]).
# ----------------------------------------------------------------------------
def init_params(key, in_chans, token_dim, k=3):
    dim = in_chans * k * k
    emb = token_dim
    m = int(emb * 0.5)                       # kernel_ratio = 0.5
    C = token_dim
    keys = jax.random.split(key, 15)
    nrm = lambda kk, shape, sc=0.05: sc * jax.random.normal(kk, shape, jnp.float32)

    # performer random features: orthogonal columns scaled by sqrt(m) (= w.T)
    q, _ = jnp.linalg.qr(jax.random.normal(keys[0], (emb, m), dtype=jnp.float32))
    wprm_t = (q * jnp.sqrt(jnp.float32(m))).astype(jnp.bfloat16)

    # fused kqv, columns ordered [k | q | v] like nn.Linear(dim, 3*emb)
    wkqv = nrm(keys[1], (dim, 3 * emb)).astype(jnp.bfloat16)
    bkqv = nrm(keys[2], (1, 3 * emb))

    wsq = jnp.stack([nrm(keys[3], (emb, emb)),        # proj
                     nrm(keys[4], (emb, emb)),        # mlp fc1
                     nrm(keys[5], (emb, emb))]        # mlp fc2
                    ).astype(jnp.bfloat16)

    ln1 = jnp.concatenate([jnp.ones((1, dim), jnp.float32),
                           jnp.zeros((1, dim), jnp.float32)], axis=0)
    pvec = jnp.concatenate([nrm(keys[6], (1, emb)),                # bproj
                            jnp.ones((1, emb), jnp.float32),       # ln2 gamma
                            jnp.zeros((1, emb), jnp.float32),      # ln2 beta
                            nrm(keys[7], (1, emb)),                # bm1
                            nrm(keys[8], (1, emb))], axis=0)       # bm2

    # LIE weights: PyTorch layout -> per-offset (9, C, C) packing
    w1 = nrm(keys[9], (9 * C, C))
    w2 = nrm(keys[10], (C, 9 * C))
    w3 = nrm(keys[11], (9 * C, C))
    w1_r = jnp.transpose(w1.reshape(C, 9, C), (1, 0, 2))
    w2_r = jnp.transpose(w2.reshape(C, C, 9), (2, 0, 1))
    w3_r = jnp.transpose(w3.reshape(C, 9, C), (1, 0, 2))
    wlie = jnp.stack([w1_r, w2_r, w3_r]).astype(jnp.bfloat16)      # (3, 9, C, C)

    b1 = nrm(keys[12], (1, C))
    b2 = nrm(keys[13], (9 * C,))
    b3 = nrm(keys[14], (1, C))
    b2_r = jnp.transpose(b2.reshape(C, 9), (1, 0))                 # (9, C)
    lvec = jnp.concatenate([b2_r, b1, b3], axis=0)                 # (11, C)

    return dict(ln1=ln1, wkqv=wkqv, bkqv=bkqv, wprm_t=wprm_t, wsq=wsq,
                pvec=pvec, wlie=wlie, lvec=lvec)


# ----------------------------------------------------------------------------
# LIE_T2T forward (tokens_type='performer', lie=True), eval mode.
# ----------------------------------------------------------------------------
def lie_t2t_forward(x, W, H, params, k=3, s=2):
    B = x.shape[0]
    # soft split: unfold(k, s, pad=1) -> (B, L, in_chans*k*k) tokens
    t = jnp.transpose(unfold_nchw(x, k, s, 1), (0, 2, 1))
    W = int(math.ceil(W / s))
    H = int(math.ceil(H / s))
    y = lie_t2t_call(t, params, W, H)          # (B, C, L), lane-dense in L
    C = y.shape[1]
    out = y.reshape(B, C, W, H)                # free reshape, no XLA transpose
    # LIE's internal unfold has stride 1 -> W, H unchanged
    return out, W, H


if __name__ == "__main__":
    B, in_chans = 2, 3
    W, H = 16, 12            # non-square to exercise the W/H spatial convention
    token_dim = 64

    key = jax.random.PRNGKey(0)
    kx, kparams = jax.random.split(key)
    x = jax.random.normal(kx, (B, in_chans, W, H), dtype=jnp.float32)
    params = init_params(kparams, in_chans, token_dim)

    out, Wo, Ho = lie_t2t_forward(x, W, H, params, k=3, s=2)
    out = jax.block_until_ready(out)

    assert out.shape == (B, token_dim, Wo, Ho), out.shape
    assert (Wo, Ho) == (8, 6), (Wo, Ho)
    assert bool(jnp.all(jnp.isfinite(out)))
    print("KERNEL_OK")
</pallas_src>

<mosaic_0001>
module attributes {stable_mosaic.version = 11 : i64} {
  func.func @kernel(%arg0: i32, %arg1: memref<1x48x27xf32, #tpu.memory_space<vmem>>, %arg2: memref<2x27xf32, #tpu.memory_space<vmem>>, %arg3: memref<27x192xbf16, #tpu.memory_space<vmem>>, %arg4: memref<1x192xf32, #tpu.memory_space<vmem>>, %arg5: memref<64x32xbf16, #tpu.memory_space<vmem>>, %arg6: memref<3x64x64xbf16, #tpu.memory_space<vmem>>, %arg7: memref<5x64xf32, #tpu.memory_space<vmem>>, %arg8: memref<3x9x64x64xbf16, #tpu.memory_space<vmem>>, %arg9: memref<11x64xf32, #tpu.memory_space<vmem>>, %arg10: memref<1x64x48xf32, #tpu.memory_space<vmem>>, %arg11: memref<64x64xf32, #tpu.memory_space<vmem>>) attributes {dimension_semantics = [#tpu.dimension_semantics<parallel>], iteration_bounds = array<i64: 2>, scalar_prefetch = 0 : i64, scratch_operands = 1 : i64, tpu.core_type = #tpu.core_type<tc>, window_params = [{transform_indices = @transform_0, window_bounds = array<i64: 1, 48, 27>}, {pipeline_mode = #tpu.pipeline_mode<synchronous>, transform_indices = @transform_1, window_bounds = array<i64: 2, 27>}, {pipeline_mode = #tpu.pipeline_mode<synchronous>, transform_indices = @transform_2, window_bounds = array<i64: 27, 192>}, {pipeline_mode = #tpu.pipeline_mode<synchronous>, transform_indices = @transform_3, window_bounds = array<i64: 1, 192>}, {pipeline_mode = #tpu.pipeline_mode<synchronous>, transform_indices = @transform_4, window_bounds = array<i64: 64, 32>}, {pipeline_mode = #tpu.pipeline_mode<synchronous>, transform_indices = @transform_5, window_bounds = array<i64: 3, 64, 64>}, {pipeline_mode = #tpu.pipeline_mode<synchronous>, transform_indices = @transform_6, window_bounds = array<i64: 5, 64>}, {pipeline_mode = #tpu.pipeline_mode<synchronous>, transform_indices = @transform_7, window_bounds = array<i64: 3, 9, 64, 64>}, {pipeline_mode = #tpu.pipeline_mode<synchronous>, transform_indices = @transform_8, window_bounds = array<i64: 11, 64>}, {transform_indices = @transform_9, window_bounds = array<i64: 1, 64, 48>}]} {
    %c0 = arith.constant 0 : index
    %c0_0 = arith.constant 0 : index
    %c0_1 = arith.constant 0 : index
    %0 = vector.load %arg1[%c0, %c0_0, %c0_1] : memref<1x48x27xf32, #tpu.memory_space<vmem>>, vector<1x48x27xf32>
    %1 = vector.shape_cast %0 : vector<1x48x27xf32> to vector<48x27xf32>
    %cst = arith.constant dense<0.000000e+00> : vector<48xf32>
    %2 = vector.multi_reduction <add>, %1, %cst [1] : vector<48x27xf32> to vector<48xf32>
    %3 = vector.shape_cast %2 : vector<48xf32> to vector<48x1xf32>
    %cst_2 = arith.constant 2.700000e+01 : f32
    %4 = vector.broadcast %cst_2 : f32 to vector<48x1xf32>
    %5 = arith.divf %3, %4 : vector<48x1xf32>
    %6 = vector.broadcast %5 : vector<48x1xf32> to vector<48x27xf32>
    %7 = arith.subf %1, %6 : vector<48x27xf32>
    %8 = arith.mulf %7, %7 : vector<48x27xf32>
    %cst_3 = arith.constant dense<0.000000e+00> : vector<48xf32>
    %9 = vector.multi_reduction <add>, %8, %cst_3 [1] : vector<48x27xf32> to vector<48xf32>
    %10 = vector.shape_cast %9 : vector<48xf32> to vector<48x1xf32>
    %cst_4 = arith.constant 2.700000e+01 : f32
    %11 = vector.broadcast %cst_4 : f32 to vector<48x1xf32>
    %12 = arith.divf %10, %11 : vector<48x1xf32>
    %13 = vector.broadcast %5 : vector<48x1xf32> to vector<48x27xf32>
    %14 = arith.subf %1, %13 : vector<48x27xf32>
    %cst_5 = arith.constant 9.99999974E-6 : f32
    %15 = vector.broadcast %cst_5 : f32 to vector<48x1xf32>
    %16 = arith.addf %12, %15 : vector<48x1xf32>
    %17 = math.rsqrt %16 : vector<48x1xf32>
    %18 = vector.broadcast %17 : vector<48x1xf32> to vector<48x27xf32>
    %19 = arith.mulf %14, %18 : vector<48x27xf32>
    %c0_6 = arith.constant 0 : index
    %c0_7 = arith.constant 0 : index
    %20 = vector.load %arg2[%c0_6, %c0_7] : memref<2x27xf32, #tpu.memory_space<vmem>>, vector<1x27xf32>
    %21 = vector.broadcast %20 : vector<1x27xf32> to vector<48x27xf32>
    %22 = arith.mulf %19, %21 : vector<48x27xf32>
    %c1 = arith.constant 1 : index
    %c0_8 = arith.constant 0 : index
    %23 = vector.load %arg2[%c1, %c0_8] : memref<2x27xf32, #tpu.memory_space<vmem>>, vector<1x27xf32>
    %24 = vector.broadcast %23 : vector<1x27xf32> to vector<48x27xf32>
    %25 = arith.addf %22, %24 : vector<48x27xf32>
    %26 = arith.truncf %25 : vector<48x27xf32> to vector<48x27xbf16>
    %c0_9 = arith.constant 0 : index
    %c0_10 = arith.constant 0 : index
    %27 = vector.load %arg3[%c0_9, %c0_10] : memref<27x192xbf16, #tpu.memory_space<vmem>>, vector<27x192xbf16>
    %cst_11 = arith.constant dense<0.000000e+00> : vector<48x192xf32>
    %28 = tpu.matmul %26, %27, %cst_11 {dimension_numbers = #tpu.dot_dimension_numbers<[1], [0], [0], [1], [0, 0, 1, 1], [], []>} : vector<48x27xbf16>, vector<27x192xbf16>, vector<48x192xf32> -> vector<48x192xf32>
    %c0_12 = arith.constant 0 : index
    %c0_13 = arith.constant 0 : index
    %29 = vector.load %arg4[%c0_12, %c0_13] : memref<1x192xf32, #tpu.memory_space<vmem>>, vector<1x192xf32>
    %30 = vector.broadcast %29 : vector<1x192xf32> to vector<48x192xf32>
    %31 = arith.addf %28, %30 : vector<48x192xf32>
    %32 = vector.extract_strided_slice %31 {offsets = [0, 0], sizes = [48, 64], strides = [1, 1]} : vector<48x192xf32> to vector<48x64xf32>
    %33 = vector.extract_strided_slice %31 {offsets = [0, 64], sizes = [48, 64], strides = [1, 1]} : vector<48x192xf32> to vector<48x64xf32>
    %34 = vector.extract_strided_slice %31 {offsets = [0, 128], sizes = [48, 64], strides = [1, 1]} : vector<48x192xf32> to vector<48x64xf32>
    %35 = tpu.concatenate %32, %33 in 0 : vector<48x64xf32>, vector<48x64xf32> -> vector<96x64xf32>
    %36 = arith.mulf %35, %35 : vector<96x64xf32>
    %cst_14 = arith.constant dense<0.000000e+00> : vector<96xf32>
    %37 = vector.multi_reduction <add>, %36, %cst_14 [1] : vector<96x64xf32> to vector<96xf32>
    %38 = vector.shape_cast %37 : vector<96xf32> to vector<96x1xf32>
    %cst_15 = arith.constant 5.000000e-01 : f32
    %39 = vector.broadcast %cst_15 : f32 to vector<96x1xf32>
    %40 = arith.mulf %39, %38 : vector<96x1xf32>
    %41 = arith.truncf %35 : vector<96x64xf32> to vector<96x64xbf16>
    %c0_16 = arith.constant 0 : index
    %c0_17 = arith.constant 0 : index
    %42 = vector.load %arg5[%c0_16, %c0_17] : memref<64x32xbf16, #tpu.memory_space<vmem>>, vector<64x32xbf16>
    %cst_18 = arith.constant dense<0.000000e+00> : vector<96x32xf32>
    %43 = tpu.matmul %41, %42, %cst_18 {dimension_numbers = #tpu.dot_dimension_numbers<[1], [0], [0], [1], [0, 0, 1, 1], [], []>} : vector<96x64xbf16>, vector<64x32xbf16>, vector<96x32xf32> -> vector<96x32xf32>
    %44 = vector.broadcast %40 : vector<96x1xf32> to vector<96x32xf32>
    %45 = arith.subf %43, %44 : vector<96x32xf32>
    %46 = math.exp %45 : vector<96x32xf32>
    %cst_19 = arith.constant 0.176776692 : f32
    %47 = vector.broadcast %cst_19 : f32 to vector<96x32xf32>
    %48 = arith.mulf %46, %47 : vector<96x32xf32>
    %49 = vector.extract_strided_slice %48 {offsets = [0, 0], sizes = [48, 32], strides = [1, 1]} : vector<96x32xf32> to vector<48x32xf32>
    %50 = vector.extract_strided_slice %48 {offsets = [48, 0], sizes = [48, 32], strides = [1, 1]} : vector<96x32xf32> to vector<48x32xf32>
    %cst_20 = arith.constant dense<0.000000e+00> : vector<32xf32>
    %51 = vector.multi_reduction <add>, %49, %cst_20 [0] : vector<48x32xf32> to vector<32xf32>
    %52 = vector.shape_cast %51 : vector<32xf32> to vector<1x32xf32>
    %53 = vector.broadcast %52 : vector<1x32xf32> to vector<48x32xf32>
    %54 = arith.mulf %50, %53 : vector<48x32xf32>
    %cst_21 = arith.constant dense<0.000000e+00> : vector<48xf32>
    %55 = vector.multi_reduction <add>, %54, %cst_21 [1] : vector<48x32xf32> to vector<48xf32>
    %56 = vector.shape_cast %55 : vector<48xf32> to vector<48x1xf32>
    %57 = tpu.transpose %49, [1, 0] : vector<48x32xf32> -> vector<32x48xf32>
    %58 = arith.truncf %57 : vector<32x48xf32> to vector<32x48xbf16>
    %59 = arith.truncf %34 : vector<48x64xf32> to vector<48x64xbf16>
    %cst_22 = arith.constant dense<0.000000e+00> : vector<32x64xf32>
    %60 = tpu.matmul %58, %59, %cst_22 {dimension_numbers = #tpu.dot_dimension_numbers<[1], [0], [0], [1], [0, 0, 1, 1], [], []>} : vector<32x48xbf16>, vector<48x64xbf16>, vector<32x64xf32> -> vector<32x64xf32>
    %61 = arith.truncf %50 : vector<48x32xf32> to vector<48x32xbf16>
    %62 = arith.truncf %60 : vector<32x64xf32> to vector<32x64xbf16>
    %cst_23 = arith.constant dense<0.000000e+00> : vector<48x64xf32>
    %63 = tpu.matmul %61, %62, %cst_23 {dimension_numbers = #tpu.dot_dimension_numbers<[1], [0], [0], [1], [0, 0, 1, 1], [], []>} : vector<48x32xbf16>, vector<32x64xbf16>, vector<48x64xf32> -> vector<48x64xf32>
    %cst_24 = arith.constant 9.99999993E-9 : f32
    %64 = vector.broadcast %cst_24 : f32 to vector<48x1xf32>
    %65 = arith.addf %56, %64 : vector<48x1xf32>
    %66 = tpu.reciprocal %65 {approx = true} : vector<48x1xf32> -> vector<48x1xf32>
    %67 = vector.broadcast %66 : vector<48x1xf32> to vector<48x64xf32>
    %68 = arith.mulf %63, %67 : vector<48x64xf32>
    %69 = arith.truncf %68 : vector<48x64xf32> to vector<48x64xbf16>
    %c0_25 = arith.constant 0 : index
    %c0_26 = arith.constant 0 : index
    %c0_27 = arith.constant 0 : index
    %70 = vector.load %arg6[%c0_25, %c0_26, %c0_27] : memref<3x64x64xbf16, #tpu.memory_space<vmem>>, vector<1x64x64xbf16>
    %71 = vector.shape_cast %70 : vector<1x64x64xbf16> to vector<64x64xbf16>
    %cst_28 = arith.constant dense<0.000000e+00> : vector<48x64xf32>
    %72 = tpu.matmul %69, %71, %cst_28 {dimension_numbers = #tpu.dot_dimension_numbers<[1], [0], [0], [1], [0, 0, 1, 1], [], []>} : vector<48x64xbf16>, vector<64x64xbf16>, vector<48x64xf32> -> vector<48x64xf32>
    %73 = arith.addf %34, %72 : vector<48x64xf32>
    %c0_29 = arith.constant 0 : index
    %c0_30 = arith.constant 0 : index
    %74 = vector.load %arg7[%c0_29, %c0_30] : memref<5x64xf32, #tpu.memory_space<vmem>>, vector<1x64xf32>
    %75 = vector.broadcast %74 : vector<1x64xf32> to vector<48x64xf32>
    %76 = arith.addf %73, %75 : vector<48x64xf32>
    %cst_31 = arith.constant dense<0.000000e+00> : vector<48xf32>
    %77 = vector.multi_reduction <add>, %76, %cst_31 [1] : vector<48x64xf32> to vector<48xf32>
    %78 = vector.shape_cast %77 : vector<48xf32> to vector<48x1xf32>
    %cst_32 = arith.constant 6.400000e+01 : f32
    %79 = vector.broadcast %cst_32 : f32 to vector<48x1xf32>
    %80 = arith.divf %78, %79 : vector<48x1xf32>
    %81 = vector.broadcast %80 : vector<48x1xf32> to vector<48x64xf32>
    %82 = arith.subf %76, %81 : vector<48x64xf32>
    %83 = arith.mulf %82, %82 : vector<48x64xf32>
    %cst_33 = arith.constant dense<0.000000e+00> : vector<48xf32>
    %84 = vector.multi_reduction <add>, %83, %cst_33 [1] : vector<48x64xf32> to vector<48xf32>
    %85 = vector.shape_cast %84 : vector<48xf32> to vector<48x1xf32>
    %cst_34 = arith.constant 6.400000e+01 : f32
    %86 = vector.broadcast %cst_34 : f32 to vector<48x1xf32>
    %87 = arith.divf %85, %86 : vector<48x1xf32>
    %88 = vector.broadcast %80 : vector<48x1xf32> to vector<48x64xf32>
    %89 = arith.subf %76, %88 : vector<48x64xf32>
    %cst_35 = arith.constant 9.99999974E-6 : f32
    %90 = vector.broadcast %cst_35 : f32 to vector<48x1xf32>
    %91 = arith.addf %87, %90 : vector<48x1xf32>
    %92 = math.rsqrt %91 : vector<48x1xf32>
    %93 = vector.broadcast %92 : vector<48x1xf32> to vector<48x64xf32>
    %94 = arith.mulf %89, %93 : vector<48x64xf32>
    %c1_36 = arith.constant 1 : index
    %c0_37 = arith.constant 0 : index
    %95 = vector.load %arg7[%c1_36, %c0_37] : memref<5x64xf32, #tpu.memory_space<vmem>>, vector<1x64xf32>
    %96 = vector.broadcast %95 : vector<1x64xf32> to vector<48x64xf32>
    %97 = arith.mulf %94, %96 : vector<48x64xf32>
    %c2 = arith.constant 2 : index
    %c0_38 = arith.constant 0 : index
    %98 = vector.load %arg7[%c2, %c0_38] : memref<5x64xf32, #tpu.memory_space<vmem>>, vector<1x64xf32>
    %99 = vector.broadcast %98 : vector<1x64xf32> to vector<48x64xf32>
    %100 = arith.addf %97, %99 : vector<48x64xf32>
    %101 = arith.truncf %100 : vector<48x64xf32> to vector<48x64xbf16>
    %c1_39 = arith.constant 1 : index
    %c0_40 = arith.constant 0 : index
    %c0_41 = arith.constant 0 : index
    %102 = vector.load %arg6[%c1_39, %c0_40, %c0_41] : memref<3x64x64xbf16, #tpu.memory_space<vmem>>, vector<1x64x64xbf16>
    %103 = vector.shape_cast %102 : vector<1x64x64xbf16> to vector<64x64xbf16>
    %cst_42 = arith.constant dense<0.000000e+00> : vector<48x64xf32>
    %104 = tpu.matmul %101, %103, %cst_42 {dimension_numbers = #tpu.dot_dimension_numbers<[1], [0], [0], [1], [0, 0, 1, 1], [], []>} : vector<48x64xbf16>, vector<64x64xbf16>, vector<48x64xf32> -> vector<48x64xf32>
    %c3 = arith.constant 3 : index
    %c0_43 = arith.constant 0 : index
    %105 = vector.load %arg7[%c3, %c0_43] : memref<5x64xf32, #tpu.memory_space<vmem>>, vector<1x64xf32>
    %106 = vector.broadcast %105 : vector<1x64xf32> to vector<48x64xf32>
    %107 = arith.addf %104, %106 : vector<48x64xf32>
    %cst_44 = arith.constant 5.000000e-01 : f32
    %108 = vector.broadcast %cst_44 : f32 to vector<48x64xf32>
    %109 = arith.mulf %108, %107 : vector<48x64xf32>
    %cst_45 = arith.constant 4.471500e-02 : f32
    %110 = vector.broadcast %cst_45 : f32 to vector<48x64xf32>
    %111 = arith.mulf %110, %107 : vector<48x64xf32>
    %112 = arith.mulf %111, %107 : vector<48x64xf32>
    %113 = arith.mulf %112, %107 : vector<48x64xf32>
    %114 = arith.addf %107, %113 : vector<48x64xf32>
    %cst_46 = arith.constant 0.797884583 : f32
    %115 = vector.broadcast %cst_46 : f32 to vector<48x64xf32>
    %116 = arith.mulf %115, %114 : vector<48x64xf32>
    %117 = math.tanh %116 : vector<48x64xf32>
    %cst_47 = arith.constant 1.000000e+00 : f32
    %118 = vector.broadcast %cst_47 : f32 to vector<48x64xf32>
    %119 = arith.addf %118, %117 : vector<48x64xf32>
    %120 = arith.mulf %109, %119 : vector<48x64xf32>
    %121 = arith.truncf %120 : vector<48x64xf32> to vector<48x64xbf16>
    %c2_48 = arith.constant 2 : index
    %c0_49 = arith.constant 0 : index
    %c0_50 = arith.constant 0 : index
    %122 = vector.load %arg6[%c2_48, %c0_49, %c0_50] : memref<3x64x64xbf16, #tpu.memory_space<vmem>>, vector<1x64x64xbf16>
    %123 = vector.shape_cast %122 : vector<1x64x64xbf16> to vector<64x64xbf16>
    %cst_51 = arith.constant dense<0.000000e+00> : vector<48x64xf32>
    %124 = tpu.matmul %121, %123, %cst_51 {dimension_numbers = #tpu.dot_dimension_numbers<[1], [0], [0], [1], [0, 0, 1, 1], [], []>} : vector<48x64xbf16>, vector<64x64xbf16>, vector<48x64xf32> -> vector<48x64xf32>
    %c4 = arith.constant 4 : index
    %c0_52 = arith.constant 0 : index
    %125 = vector.load %arg7[%c4, %c0_52] : memref<5x64xf32, #tpu.memory_space<vmem>>, vector<1x64xf32>
    %126 = vector.broadcast %125 : vector<1x64xf32> to vector<48x64xf32>
    %127 = arith.addf %124, %126 : vector<48x64xf32>
    %128 = arith.addf %76, %127 : vector<48x64xf32>
    %cst_53 = arith.constant 0.000000e+00 : f32
    %129 = vector.broadcast %cst_53 : f32 to vector<64x64xf32>
    %c0_54 = arith.constant 0 : index
    %c0_55 = arith.constant 0 : index
    %130 = vector.load %arg11[%c0_54, %c0_55] : memref<64x64xf32, #tpu.memory_space<vmem>>, vector<64x64xf32>
    tpu.vector_store %arg11[%c0_54, %c0_55], %129 {strides = array<i32>} : memref<64x64xf32, #tpu.memory_space<vmem>>, vector<64x64xf32>,
    %c8 = arith.constant 8 : index
    %c0_56 = arith.constant 0 : index
    %131 = vector.load %arg11[%c8, %c0_56] : memref<64x64xf32, #tpu.memory_space<vmem>>, vector<48x64xf32>
    tpu.vector_store %arg11[%c8, %c0_56], %128 {strides = array<i32>} : memref<64x64xf32, #tpu.memory_space<vmem>>, vector<48x64xf32>,
    %132 = tpu.iota {dimensions = array<i32: 0>} : vector<48x1xi32>
    %133 = arith.sitofp %132 : vector<48x1xi32> to vector<48x1xf32>
    %cst_57 = arith.constant 5.000000e-01 : f32
    %134 = vector.broadcast %cst_57 : f32 to vector<48x1xf32>
    %135 = arith.addf %133, %134 : vector<48x1xf32>
    %cst_58 = arith.constant 0.166666672 : f32
    %136 = vector.broadcast %cst_58 : f32 to vector<48x1xf32>
    %137 = arith.mulf %135, %136 : vector<48x1xf32>
    %138 = math.floor %137 : vector<48x1xf32>
    %cst_59 = arith.constant 6.000000e+00 : f32
    %139 = vector.broadcast %cst_59 : f32 to vector<48x1xf32>
    %140 = arith.mulf %138, %139 : vector<48x1xf32>
    %141 = arith.subf %133, %140 : vector<48x1xf32>
    %cst_60 = arith.constant 0.000000e+00 : f32
    %142 = vector.broadcast %cst_60 : f32 to vector<48x64xf32>
    %c1_61 = arith.constant 1 : index
    %c0_62 = arith.constant 0 : index
    %143 = vector.load %arg11[%c1_61, %c0_62] : memref<64x64xf32, #tpu.memory_space<vmem>>, vector<48x64xf32>
    %cst_63 = arith.constant -1.000000e+00 : f32
    %144 = vector.broadcast %cst_63 : f32 to vector<48x1xf32>
    %145 = arith.addf %138, %144 : vector<48x1xf32>
    %cst_64 = arith.constant 0.000000e+00 : f32
    %146 = vector.broadcast %cst_64 : f32 to vector<48x1xf32>
    %147 = arith.cmpf oge, %145, %146 : vector<48x1xf32>
    %cst_65 = arith.constant -1.000000e+00 : f32
    %148 = vector.broadcast %cst_65 : f32 to vector<48x1xf32>
    %149 = arith.addf %138, %148 : vector<48x1xf32>
    %cst_66 = arith.constant 7.000000e+00 : f32
    %150 = vector.broadcast %cst_66 : f32 to vector<48x1xf32>
    %151 = arith.cmpf ole, %149, %150 : vector<48x1xf32>
    %152 = arith.andi %147, %151 : vector<48x1xi1>
    %cst_67 = arith.constant -1.000000e+00 : f32
    %153 = vector.broadcast %cst_67 : f32 to vector<48x1xf32>
    %154 = arith.addf %141, %153 : vector<48x1xf32>
    %cst_68 = arith.constant 0.000000e+00 : f32
    %155 = vector.broadcast %cst_68 : f32 to vector<48x1xf32>
    %156 = arith.cmpf oge, %154, %155 : vector<48x1xf32>
    %157 = arith.andi %152, %156 : vector<48x1xi1>
    %cst_69 = arith.constant -1.000000e+00 : f32
    %158 = vector.broadcast %cst_69 : f32 to vector<48x1xf32>
    %159 = arith.addf %141, %158 : vector<48x1xf32>
    %cst_70 = arith.constant 5.000000e+00 : f32
    %160 = vector.broadcast %cst_70 : f32 to vector<48x1xf32>
    %161 = arith.cmpf ole, %159, %160 : vector<48x1xf32>
    %162 = arith.andi %157, %161 : vector<48x1xi1>
    %cst_71 = arith.constant 0.000000e+00 : f32
    %163 = vector.shape_cast %162 : vector<48x1xi1> to vector<48x1xi1>
    %164 = vector.broadcast %163 : vector<48x1xi1> to vector<48x64xi1>
    %165 = vector.broadcast %cst_71 : f32 to vector<48x64xf32>
    %166 = arith.select %164, %143, %165 : vector<48x64xi1>, vector<48x64xf32>
    %167 = arith.truncf %166 : vector<48x64xf32> to vector<48x64xbf16>
    %c0_72 = arith.constant 0 : index
    %c0_73 = arith.constant 0 : index
    %c0_74 = arith.constant 0 : index
    %c0_75 = arith.constant 0 : index
    %168 = vector.load %arg8[%c0_72, %c0_73, %c0_74, %c0_75] : memref<3x9x64x64xbf16, #tpu.memory_space<vmem>>, vector<1x1x64x64xbf16>
    %169 = vector.shape_cast %168 : vector<1x1x64x64xbf16> to vector<64x64xbf16>
    %cst_76 = arith.constant dense<0.000000e+00> : vector<48x64xf32>
    %170 = tpu.matmul %167, %169, %cst_76 {dimension_numbers = #tpu.dot_dimension_numbers<[1], [0], [0], [1], [0, 0, 1, 1], [], []>} : vector<48x64xbf16>, vector<64x64xbf16>, vector<48x64xf32> -> vector<48x64xf32>
    %171 = arith.addf %142, %170 : vector<48x64xf32>
    %c2_77 = arith.constant 2 : index
    %c0_78 = arith.constant 0 : index
    %172 = vector.load %arg11[%c2_77, %c0_78] : memref<64x64xf32, #tpu.memory_space<vmem>>, vector<48x64xf32>
    %cst_79 = arith.constant -1.000000e+00 : f32
    %173 = vector.broadcast %cst_79 : f32 to vector<48x1xf32>
    %174 = arith.addf %138, %173 : vector<48x1xf32>
    %cst_80 = arith.constant 0.000000e+00 : f32
    %175 = vector.broadcast %cst_80 : f32 to vector<48x1xf32>
    %176 = arith.cmpf oge, %174, %175 : vector<48x1xf32>
    %cst_81 = arith.constant -1.000000e+00 : f32
    %177 = vector.broadcast %cst_81 : f32 to vector<48x1xf32>
    %178 = arith.addf %138, %177 : vector<48x1xf32>
    %cst_82 = arith.constant 7.000000e+00 : f32
    %179 = vector.broadcast %cst_82 : f32 to vector<48x1xf32>
    %180 = arith.cmpf ole, %178, %179 : vector<48x1xf32>
    %181 = arith.andi %176, %180 : vector<48x1xi1>
    %cst_83 = arith.constant 0.000000e+00 : f32
    %182 = vector.broadcast %cst_83 : f32 to vector<48x1xf32>
    %183 = arith.addf %141, %182 : vector<48x1xf32>
    %cst_84 = arith.constant 0.000000e+00 : f32
    %184 = vector.broadcast %cst_84 : f32 to vector<48x1xf32>
    %185 = arith.cmpf oge, %183, %184 : vector<48x1xf32>
    %186 = arith.andi %181, %185 : vector<48x1xi1>
    %cst_85 = arith.constant 0.000000e+00 : f32
    %187 = vector.broadcast %cst_85 : f32 to vector<48x1xf32>
    %188 = arith.addf %141, %187 : vector<48x1xf32>
    %cst_86 = arith.constant 5.000000e+00 : f32
    %189 = vector.broadcast %cst_86 : f32 to vector<48x1xf32>
    %190 = arith.cmpf ole, %188, %189 : vector<48x1xf32>
    %191 = arith.andi %186, %190 : vector<48x1xi1>
    %cst_87 = arith.constant 0.000000e+00 : f32
    %192 = vector.shape_cast %191 : vector<48x1xi1> to vector<48x1xi1>
    %193 = vector.broadcast %192 : vector<48x1xi1> to vector<48x64xi1>
    %194 = vector.broadcast %cst_87 : f32 to vector<48x64xf32>
    %195 = arith.select %193, %172, %194 : vector<48x64xi1>, vector<48x64xf32>
    %196 = arith.truncf %195 : vector<48x64xf32> to vector<48x64xbf16>
    %c0_88 = arith.constant 0 : index
    %c1_89 = arith.constant 1 : index
    %c0_90 = arith.constant 0 : index
    %c0_91 = arith.constant 0 : index
    %197 = vector.load %arg8[%c0_88, %c1_89, %c0_90, %c0_91] : memref<3x9x64x64xbf16, #tpu.memory_space<vmem>>, vector<1x1x64x64xbf16>
    %198 = vector.shape_cast %197 : vector<1x1x64x64xbf16> to vector<64x64xbf16>
    %cst_92 = arith.constant dense<0.000000e+00> : vector<48x64xf32>
    %199 = tpu.matmul %196, %198, %cst_92 {dimension_numbers = #tpu.dot_dimension_numbers<[1], [0], [0], [1], [0, 0, 1, 1], [], []>} : vector<48x64xbf16>, vector<64x64xbf16>, vector<48x64xf32> -> vector<48x64xf32>
    %200 = arith.addf %171, %199 : vector<48x64xf32>
    %c3_93 = arith.constant 3 : index
    %c0_94 = arith.constant 0 : index
    %201 = vector.load %arg11[%c3_93, %c0_94] : memref<64x64xf32, #tpu.memory_space<vmem>>, vector<48x64xf32>
    %cst_95 = arith.constant -1.000000e+00 : f32
    %202 = vector.broadcast %cst_95 : f32 to vector<48x1xf32>
    %203 = arith.addf %138, %202 : vector<48x1xf32>
    %cst_96 = arith.constant 0.000000e+00 : f32
    %204 = vector.broadcast %cst_96 : f32 to vector<48x1xf32>
    %205 = arith.cmpf oge, %203, %204 : vector<48x1xf32>
    %cst_97 = arith.constant -1.000000e+00 : f32
    %206 = vector.broadcast %cst_97 : f32 to vector<48x1xf32>
    %207 = arith.addf %138, %206 : vector<48x1xf32>
    %cst_98 = arith.constant 7.000000e+00 : f32
    %208 = vector.broadcast %cst_98 : f32 to vector<48x1xf32>
    %209 = arith.cmpf ole, %207, %208 : vector<48x1xf32>
    %210 = arith.andi %205, %209 : vector<48x1xi1>
    %cst_99 = arith.constant 1.000000e+00 : f32
    %211 = vector.broadcast %cst_99 : f32 to vector<48x1xf32>
    %212 = arith.addf %141, %211 : vector<48x1xf32>
    %cst_100 = arith.constant 0.000000e+00 : f32
    %213 = vector.broadcast %cst_100 : f32 to vector<48x1xf32>
    %214 = arith.cmpf oge, %212, %213 : vector<48x1xf32>
    %215 = arith.andi %210, %214 : vector<48x1xi1>
    %cst_101 = arith.constant 1.000000e+00 : f32
    %216 = vector.broadcast %cst_101 : f32 to vector<48x1xf32>
    %217 = arith.addf %141, %216 : vector<48x1xf32>
    %cst_102 = arith.constant 5.000000e+00 : f32
    %218 = vector.broadcast %cst_102 : f32 to vector<48x1xf32>
    %219 = arith.cmpf ole, %217, %218 : vector<48x1xf32>
    %220 = arith.andi %215, %219 : vector<48x1xi1>
    %cst_103 = arith.constant 0.000000e+00 : f32
    %221 = vector.shape_cast %220 : vector<48x1xi1> to vector<48x1xi1>
    %222 = vector.broadcast %221 : vector<48x1xi1> to vector<48x64xi1>
    %223 = vector.broadcast %cst_103 : f32 to vector<48x64xf32>
    %224 = arith.select %222, %201, %223 : vector<48x64xi1>, vector<48x64xf32>
    %225 = arith.truncf %224 : vector<48x64xf32> to vector<48x64xbf16>
    %c0_104 = arith.constant 0 : index
    %c2_105 = arith.constant 2 : index
    %c0_106 = arith.constant 0 : index
    %c0_107 = arith.constant 0 : index
    %226 = vector.load %arg8[%c0_104, %c2_105, %c0_106, %c0_107] : memref<3x9x64x64xbf16, #tpu.memory_space<vmem>>, vector<1x1x64x64xbf16>
    %227 = vector.shape_cast %226 : vector<1x1x64x64xbf16> to vector<64x64xbf16>
    %cst_108 = arith.constant dense<0.000000e+00> : vector<48x64xf32>
    %228 = tpu.matmul %225, %227, %cst_108 {dimension_numbers = #tpu.dot_dimension_numbers<[1], [0], [0], [1], [0, 0, 1, 1], [], []>} : vector<48x64xbf16>, vector<64x64xbf16>, vector<48x64xf32> -> vector<48x64xf32>
    %229 = arith.addf %200, %228 : vector<48x64xf32>
    %c7 = arith.constant 7 : index
    %c0_109 = arith.constant 0 : index
    %230 = vector.load %arg11[%c7, %c0_109] : memref<64x64xf32, #tpu.memory_space<vmem>>, vector<48x64xf32>
    %cst_110 = arith.constant 0.000000e+00 : f32
    %231 = vector.broadcast %cst_110 : f32 to vector<48x1xf32>
    %232 = arith.addf %138, %231 : vector<48x1xf32>
    %cst_111 = arith.constant 0.000000e+00 : f32
    %233 = vector.broadcast %cst_111 : f32 to vector<48x1xf32>
    %234 = arith.cmpf oge, %232, %233 : vector<48x1xf32>
    %cst_112 = arith.constant 0.000000e+00 : f32
    %235 = vector.broadcast %cst_112 : f32 to vector<48x1xf32>
    %236 = arith.addf %138, %235 : vector<48x1xf32>
    %cst_113 = arith.constant 7.000000e+00 : f32
    %237 = vector.broadcast %cst_113 : f32 to vector<48x1xf32>
    %238 = arith.cmpf ole, %236, %237 : vector<48x1xf32>
    %239 = arith.andi %234, %238 : vector<48x1xi1>
    %cst_114 = arith.constant -1.000000e+00 : f32
    %240 = vector.broadcast %cst_114 : f32 to vector<48x1xf32>
    %241 = arith.addf %141, %240 : vector<48x1xf32>
    %cst_115 = arith.constant 0.000000e+00 : f32
    %242 = vector.broadcast %cst_115 : f32 to vector<48x1xf32>
    %243 = arith.cmpf oge, %241, %242 : vector<48x1xf32>
    %244 = arith.andi %239, %243 : vector<48x1xi1>
    %cst_116 = arith.constant -1.000000e+00 : f32
    %245 = vector.broadcast %cst_116 : f32 to vector<48x1xf32>
    %246 = arith.addf %141, %245 : vector<48x1xf32>
    %cst_117 = arith.constant 5.000000e+00 : f32
    %247 = vector.broadcast %cst_117 : f32 to vector<48x1xf32>
    %248 = arith.cmpf ole, %246, %247 : vector<48x1xf32>
    %249 = arith.andi %244, %248 : vector<48x1xi1>
    %cst_118 = arith.constant 0.000000e+00 : f32
    %250 = vector.shape_cast %249 : vector<48x1xi1> to vector<48x1xi1>
    %251 = vector.broadcast %250 : vector<48x1xi1> to vector<48x64xi1>
    %252 = vector.broadcast %cst_118 : f32 to vector<48x64xf32>
    %253 = arith.select %251, %230, %252 : vector<48x64xi1>, vector<48x64xf32>
    %254 = arith.truncf %253 : vector<48x64xf32> to vector<48x64xbf16>
    %c0_119 = arith.constant 0 : index
    %c3_120 = arith.constant 3 : index
    %c0_121 = arith.constant 0 : index
    %c0_122 = arith.constant 0 : index
    %255 = vector.load %arg8[%c0_119, %c3_120, %c0_121, %c0_122] : memref<3x9x64x64xbf16, #tpu.memory_space<vmem>>, vector<1x1x64x64xbf16>
    %256 = vector.shape_cast %255 : vector<1x1x64x64xbf16> to vector<64x64xbf16>
    %cst_123 = arith.constant dense<0.000000e+00> : vector<48x64xf32>
    %257 = tpu.matmul %254, %256, %cst_123 {dimension_numbers = #tpu.dot_dimension_numbers<[1], [0], [0], [1], [0, 0, 1, 1], [], []>} : vector<48x64xbf16>, vector<64x64xbf16>, vector<48x64xf32> -> vector<48x64xf32>
    %258 = arith.addf %229, %257 : vector<48x64xf32>
    %c8_124 = arith.constant 8 : index
    %c0_125 = arith.constant 0 : index
    %259 = vector.load %arg11[%c8_124, %c0_125] : memref<64x64xf32, #tpu.memory_space<vmem>>, vector<48x64xf32>
    %cst_126 = arith.constant 0.000000e+00 : f32
    %260 = vector.broadcast %cst_126 : f32 to vector<48x1xf32>
    %261 = arith.addf %138, %260 : vector<48x1xf32>
    %cst_127 = arith.constant 0.000000e+00 : f32
    %262 = vector.broadcast %cst_127 : f32 to vector<48x1xf32>
    %263 = arith.cmpf oge, %261, %262 : vector<48x1xf32>
    %cst_128 = arith.constant 0.000000e+00 : f32
    %264 = vector.broadcast %cst_128 : f32 to vector<48x1xf32>
    %265 = arith.addf %138, %264 : vector<48x1xf32>
    %cst_129 = arith.constant 7.000000e+00 : f32
    %266 = vector.broadcast %cst_129 : f32 to vector<48x1xf32>
    %267 = arith.cmpf ole, %265, %266 : vector<48x1xf32>
    %268 = arith.andi %263, %267 : vector<48x1xi1>
    %cst_130 = arith.constant 0.000000e+00 : f32
    %269 = vector.broadcast %cst_130 : f32 to vector<48x1xf32>
    %270 = arith.addf %141, %269 : vector<48x1xf32>
    %cst_131 = arith.constant 0.000000e+00 : f32
    %271 = vector.broadcast %cst_131 : f32 to vector<48x1xf32>
    %272 = arith.cmpf oge, %270, %271 : vector<48x1xf32>
    %273 = arith.andi %268, %272 : vector<48x1xi1>
    %cst_132 = arith.constant 0.000000e+00 : f32
    %274 = vector.broadcast %cst_132 : f32 to vector<48x1xf32>
    %275 = arith.addf %141, %274 : vector<48x1xf32>
    %cst_133 = arith.constant 5.000000e+00 : f32
    %276 = vector.broadcast %cst_133 : f32 to vector<48x1xf32>
    %277 = arith.cmpf ole, %275, %276 : vector<48x1xf32>
    %278 = arith.andi %273, %277 : vector<48x1xi1>
    %cst_134 = arith.constant 0.000000e+00 : f32
    %279 = vector.shape_cast %278 : vector<48x1xi1> to vector<48x1xi1>
    %280 = vector.broadcast %279 : vector<48x1xi1> to vector<48x64xi1>
    %281 = vector.broadcast %cst_134 : f32 to vector<48x64xf32>
    %282 = arith.select %280, %259, %281 : vector<48x64xi1>, vector<48x64xf32>
    %283 = arith.truncf %282 : vector<48x64xf32> to vector<48x64xbf16>
    %c0_135 = arith.constant 0 : index
    %c4_136 = arith.constant 4 : index
    %c0_137 = arith.constant 0 : index
    %c0_138 = arith.constant 0 : index
    %284 = vector.load %arg8[%c0_135, %c4_136, %c0_137, %c0_138] : memref<3x9x64x64xbf16, #tpu.memory_space<vmem>>, vector<1x1x64x64xbf16>
    %285 = vector.shape_cast %284 : vector<1x1x64x64xbf16> to vector<64x64xbf16>
    %cst_139 = arith.constant dense<0.000000e+00> : vector<48x64xf32>
    %286 = tpu.matmul %283, %285, %cst_139 {dimension_numbers = #tpu.dot_dimension_numbers<[1], [0], [0], [1], [0, 0, 1, 1], [], []>} : vector<48x64xbf16>, vector<64x64xbf16>, vector<48x64xf32> -> vector<48x64xf32>
    %287 = arith.addf %258, %286 : vector<48x64xf32>
    %c9 = arith.constant 9 : index
    %c0_140 = arith.constant 0 : index
    %288 = vector.load %arg11[%c9, %c0_140] : memref<64x64xf32, #tpu.memory_space<vmem>>, vector<48x64xf32>
    %cst_141 = arith.constant 0.000000e+00 : f32
    %289 = vector.broadcast %cst_141 : f32 to vector<48x1xf32>
    %290 = arith.addf %138, %289 : vector<48x1xf32>
    %cst_142 = arith.constant 0.000000e+00 : f32
    %291 = vector.broadcast %cst_142 : f32 to vector<48x1xf32>
    %292 = arith.cmpf oge, %290, %291 : vector<48x1xf32>
    %cst_143 = arith.constant 0.000000e+00 : f32
    %293 = vector.broadcast %cst_143 : f32 to vector<48x1xf32>
    %294 = arith.addf %138, %293 : vector<48x1xf32>
    %cst_144 = arith.constant 7.000000e+00 : f32
    %295 = vector.broadcast %cst_144 : f32 to vector<48x1xf32>
    %296 = arith.cmpf ole, %294, %295 : vector<48x1xf32>
    %297 = arith.andi %292, %296 : vector<48x1xi1>
    %cst_145 = arith.constant 1.000000e+00 : f32
    %298 = vector.broadcast %cst_145 : f32 to vector<48x1xf32>
    %299 = arith.addf %141, %298 : vector<48x1xf32>
    %cst_146 = arith.constant 0.000000e+00 : f32
    %300 = vector.broadcast %cst_146 : f32 to vector<48x1xf32>
    %301 = arith.cmpf oge, %299, %300 : vector<48x1xf32>
    %302 = arith.andi %297, %301 : vector<48x1xi1>
    %cst_147 = arith.constant 1.000000e+00 : f32
    %303 = vector.broadcast %cst_147 : f32 to vector<48x1xf32>
    %304 = arith.addf %141, %303 : vector<48x1xf32>
    %cst_148 = arith.constant 5.000000e+00 : f32
    %305 = vector.broadcast %cst_148 : f32 to vector<48x1xf32>
    %306 = arith.cmpf ole, %304, %305 : vector<48x1xf32>
    %307 = arith.andi %302, %306 : vector<48x1xi1>
    %cst_149 = arith.constant 0.000000e+00 : f32
    %308 = vector.shape_cast %307 : vector<48x1xi1> to vector<48x1xi1>
    %309 = vector.broadcast %308 : vector<48x1xi1> to vector<48x64xi1>
    %310 = vector.broadcast %cst_149 : f32 to vector<48x64xf32>
    %311 = arith.select %309, %288, %310 : vector<48x64xi1>, vector<48x64xf32>
    %312 = arith.truncf %311 : vector<48x64xf32> to vector<48x64xbf16>
    %c0_150 = arith.constant 0 : index
    %c5 = arith.constant 5 : index
    %c0_151 = arith.constant 0 : index
    %c0_152 = arith.constant 0 : index
    %313 = vector.load %arg8[%c0_150, %c5, %c0_151, %c0_152] : memref<3x9x64x64xbf16, #tpu.memory_space<vmem>>, vector<1x1x64x64xbf16>
    %314 = vector.shape_cast %313 : vector<1x1x64x64xbf16> to vector<64x64xbf16>
    %cst_153 = arith.constant dense<0.000000e+00> : vector<48x64xf32>
    %315 = tpu.matmul %312, %314, %cst_153 {dimension_numbers = #tpu.dot_dimension_numbers<[1], [0], [0], [1], [0, 0, 1, 1], [], []>} : vector<48x64xbf16>, vector<64x64xbf16>, vector<48x64xf32> -> vector<48x64xf32>
    %316 = arith.addf %287, %315 : vector<48x64xf32>
    %c13 = arith.constant 13 : index
    %c0_154 = arith.constant 0 : index
    %317 = vector.load %arg11[%c13, %c0_154] : memref<64x64xf32, #tpu.memory_space<vmem>>, vector<48x64xf32>
    %cst_155 = arith.constant 1.000000e+00 : f32
    %318 = vector.broadcast %cst_155 : f32 to vector<48x1xf32>
    %319 = arith.addf %138, %318 : vector<48x1xf32>
    %cst_156 = arith.constant 0.000000e+00 : f32
    %320 = vector.broadcast %cst_156 : f32 to vector<48x1xf32>
    %321 = arith.cmpf oge, %319, %320 : vector<48x1xf32>
    %cst_157 = arith.constant 1.000000e+00 : f32
    %322 = vector.broadcast %cst_157 : f32 to vector<48x1xf32>
    %323 = arith.addf %138, %322 : vector<48x1xf32>
    %cst_158 = arith.constant 7.000000e+00 : f32
    %324 = vector.broadcast %cst_158 : f32 to vector<48x1xf32>
    %325 = arith.cmpf ole, %323, %324 : vector<48x1xf32>
    %326 = arith.andi %321, %325 : vector<48x1xi1>
    %cst_159 = arith.constant -1.000000e+00 : f32
    %327 = vector.broadcast %cst_159 : f32 to vector<48x1xf32>
    %328 = arith.addf %141, %327 : vector<48x1xf32>
    %cst_160 = arith.constant 0.000000e+00 : f32
    %329 = vector.broadcast %cst_160 : f32 to vector<48x1xf32>
    %330 = arith.cmpf oge, %328, %329 : vector<48x1xf32>
    %331 = arith.andi %326, %330 : vector<48x1xi1>
    %cst_161 = arith.constant -1.000000e+00 : f32
    %332 = vector.broadcast %cst_161 : f32 to vector<48x1xf32>
    %333 = arith.addf %141, %332 : vector<48x1xf32>
    %cst_162 = arith.constant 5.000000e+00 : f32
    %334 = vector.broadcast %cst_162 : f32 to vector<48x1xf32>
    %335 = arith.cmpf ole, %333, %334 : vector<48x1xf32>
    %336 = arith.andi %331, %335 : vector<48x1xi1>
    %cst_163 = arith.constant 0.000000e+00 : f32
    %337 = vector.shape_cast %336 : vector<48x1xi1> to vector<48x1xi1>
    %338 = vector.broadcast %337 : vector<48x1xi1> to vector<48x64xi1>
    %339 = vector.broadcast %cst_163 : f32 to vector<48x64xf32>
    %340 = arith.select %338, %317, %339 : vector<48x64xi1>, vector<48x64xf32>
    %341 = arith.truncf %340 : vector<48x64xf32> to vector<48x64xbf16>
    %c0_164 = arith.constant 0 : index
    %c6 = arith.constant 6 : index
    %c0_165 = arith.constant 0 : index
    %c0_166 = arith.constant 0 : index
    %342 = vector.load %arg8[%c0_164, %c6, %c0_165, %c0_166] : memref<3x9x64x64xbf16, #tpu.memory_space<vmem>>, vector<1x1x64x64xbf16>
    %343 = vector.shape_cast %342 : vector<1x1x64x64xbf16> to vector<64x64xbf16>
    %cst_167 = arith.constant dense<0.000000e+00> : vector<48x64xf32>
    %344 = tpu.matmul %341, %343, %cst_167 {dimension_numbers = #tpu.dot_dimension_numbers<[1], [0], [0], [1], [0, 0, 1, 1], [], []>} : vector<48x64xbf16>, vector<64x64xbf16>, vector<48x64xf32> -> vector<48x64xf32>
    %345 = arith.addf %316, %344 : vector<48x64xf32>
    %c14 = arith.constant 14 : index
    %c0_168 = arith.constant 0 : index
    %346 = vector.load %arg11[%c14, %c0_168] : memref<64x64xf32, #tpu.memory_space<vmem>>, vector<48x64xf32>
    %cst_169 = arith.constant 1.000000e+00 : f32
    %347 = vector.broadcast %cst_169 : f32 to vector<48x1xf32>
    %348 = arith.addf %138, %347 : vector<48x1xf32>
    %cst_170 = arith.constant 0.000000e+00 : f32
    %349 = vector.broadcast %cst_170 : f32 to vector<48x1xf32>
    %350 = arith.cmpf oge, %348, %349 : vector<48x1xf32>
    %cst_171 = arith.constant 1.000000e+00 : f32
    %351 = vector.broadcast %cst_171 : f32 to vector<48x1xf32>
    %352 = arith.addf %138, %351 : vector<48x1xf32>
    %cst_172 = arith.constant 7.000000e+00 : f32
    %353 = vector.broadcast %cst_172 : f32 to vector<48x1xf32>
    %354 = arith.cmpf ole, %352, %353 : vector<48x1xf32>
    %355 = arith.andi %350, %354 : vector<48x1xi1>
    %cst_173 = arith.constant 0.000000e+00 : f32
    %356 = vector.broadcast %cst_173 : f32 to vector<48x1xf32>
    %357 = arith.addf %141, %356 : vector<48x1xf32>
    %cst_174 = arith.constant 0.000000e+00 : f32
    %358 = vector.broadcast %cst_174 : f32 to vector<48x1xf32>
    %359 = arith.cmpf oge, %357, %358 : vector<48x1xf32>
    %360 = arith.andi %355, %359 : vector<48x1xi1>
    %cst_175 = arith.constant 0.000000e+00 : f32
    %361 = vector.broadcast %cst_175 : f32 to vector<48x1xf32>
    %362 = arith.addf %141, %361 : vector<48x1xf32>
    %cst_176 = arith.constant 5.000000e+00 : f32
    %363 = vector.broadcast %cst_176 : f32 to vector<48x1xf32>
    %364 = arith.cmpf ole, %362, %363 : vector<48x1xf32>
    %365 = arith.andi %360, %364 : vector<48x1xi1>
    %cst_177 = arith.constant 0.000000e+00 : f32
    %366 = vector.shape_cast %365 : vector<48x1xi1> to vector<48x1xi1>
    %367 = vector.broadcast %366 : vector<48x1xi1> to vector<48x64xi1>
    %368 = vector.broadcast %cst_177 : f32 to vector<48x64xf32>
    %369 = arith.select %367, %346, %368 : vector<48x64xi1>, vector<48x64xf32>
    %370 = arith.truncf %369 : vector<48x64xf32> to vector<48x64xbf16>
    %c0_178 = arith.constant 0 : index
    %c7_179 = arith.constant 7 : index
    %c0_180 = arith.constant 0 : index
    %c0_181 = arith.constant 0 : index
    %371 = vector.load %arg8[%c0_178, %c7_179, %c0_180, %c0_181] : memref<3x9x64x64xbf16, #tpu.memory_space<vmem>>, vector<1x1x64x64xbf16>
    %372 = vector.shape_cast %371 : vector<1x1x64x64xbf16> to vector<64x64xbf16>
    %cst_182 = arith.constant dense<0.000000e+00> : vector<48x64xf32>
    %373 = tpu.matmul %370, %372, %cst_182 {dimension_numbers = #tpu.dot_dimension_numbers<[1], [0], [0], [1], [0, 0, 1, 1], [], []>} : vector<48x64xbf16>, vector<64x64xbf16>, vector<48x64xf32> -> vector<48x64xf32>
    %374 = arith.addf %345, %373 : vector<48x64xf32>
    %c15 = arith.constant 15 : index
    %c0_183 = arith.constant 0 : index
    %375 = vector.load %arg11[%c15, %c0_183] : memref<64x64xf32, #tpu.memory_space<vmem>>, vector<48x64xf32>
    %cst_184 = arith.constant 1.000000e+00 : f32
    %376 = vector.broadcast %cst_184 : f32 to vector<48x1xf32>
    %377 = arith.addf %138, %376 : vector<48x1xf32>
    %cst_185 = arith.constant 0.000000e+00 : f32
    %378 = vector.broadcast %cst_185 : f32 to vector<48x1xf32>
    %379 = arith.cmpf oge, %377, %378 : vector<48x1xf32>
    %cst_186 = arith.constant 1.000000e+00 : f32
    %380 = vector.broadcast %cst_186 : f32 to vector<48x1xf32>
    %381 = arith.addf %138, %380 : vector<48x1xf32>
    %cst_187 = arith.constant 7.000000e+00 : f32
    %382 = vector.broadcast %cst_187 : f32 to vector<48x1xf32>
    %383 = arith.cmpf ole, %381, %382 : vector<48x1xf32>
    %384 = arith.andi %379, %383 : vector<48x1xi1>
    %cst_188 = arith.constant 1.000000e+00 : f32
    %385 = vector.broadcast %cst_188 : f32 to vector<48x1xf32>
    %386 = arith.addf %141, %385 : vector<48x1xf32>
    %cst_189 = arith.constant 0.000000e+00 : f32
    %387 = vector.broadcast %cst_189 : f32 to vector<48x1xf32>
    %388 = arith.cmpf oge, %386, %387 : vector<48x1xf32>
    %389 = arith.andi %384, %388 : vector<48x1xi1>
    %cst_190 = arith.constant 1.000000e+00 : f32
    %390 = vector.broadcast %cst_190 : f32 to vector<48x1xf32>
    %391 = arith.addf %141, %390 : vector<48x1xf32>
    %cst_191 = arith.constant 5.000000e+00 : f32
    %392 = vector.broadcast %cst_191 : f32 to vector<48x1xf32>
    %393 = arith.cmpf ole, %391, %392 : vector<48x1xf32>
    %394 = arith.andi %389, %393 : vector<48x1xi1>
    %cst_192 = arith.constant 0.000000e+00 : f32
    %395 = vector.shape_cast %394 : vector<48x1xi1> to vector<48x1xi1>
    %396 = vector.broadcast %395 : vector<48x1xi1> to vector<48x64xi1>
    %397 = vector.broadcast %cst_192 : f32 to vector<48x64xf32>
    %398 = arith.select %396, %375, %397 : vector<48x64xi1>, vector<48x64xf32>
    %399 = arith.truncf %398 : vector<48x64xf32> to vector<48x64xbf16>
    %c0_193 = arith.constant 0 : index
    %c8_194 = arith.constant 8 : index
    %c0_195 = arith.constant 0 : index
    %c0_196 = arith.constant 0 : index
    %400 = vector.load %arg8[%c0_193, %c8_194, %c0_195, %c0_196] : memref<3x9x64x64xbf16, #tpu.memory_space<vmem>>, vector<1x1x64x64xbf16>
    %401 = vector.shape_cast %400 : vector<1x1x64x64xbf16> to vector<64x64xbf16>
    %cst_197 = arith.constant dense<0.000000e+00> : vector<48x64xf32>
    %402 = tpu.matmul %399, %401, %cst_197 {dimension_numbers = #tpu.dot_dimension_numbers<[1], [0], [0], [1], [0, 0, 1, 1], [], []>} : vector<48x64xbf16>, vector<64x64xbf16>, vector<48x64xf32> -> vector<48x64xf32>
    %403 = arith.addf %374, %402 : vector<48x64xf32>
    %c9_198 = arith.constant 9 : index
    %c0_199 = arith.constant 0 : index
    %404 = vector.load %arg9[%c9_198, %c0_199] : memref<11x64xf32, #tpu.memory_space<vmem>>, vector<1x64xf32>
    %405 = vector.broadcast %404 : vector<1x64xf32> to vector<48x64xf32>
    %406 = arith.addf %403, %405 : vector<48x64xf32>
    %cst_200 = arith.constant 0.000000e+00 : f32
    %407 = vector.broadcast %cst_200 : f32 to vector<48x64xf32>
    %408 = arith.maximumf %406, %407 : vector<48x64xf32>
    %409 = arith.truncf %408 : vector<48x64xf32> to vector<48x64xbf16>
    %cst_201 = arith.constant 0.000000e+00 : f32
    %410 = vector.broadcast %cst_201 : f32 to vector<48x64xf32>
    %c1_202 = arith.constant 1 : index
    %c0_203 = arith.constant 0 : index
    %c0_204 = arith.constant 0 : index
    %c0_205 = arith.constant 0 : index
    %411 = vector.load %arg8[%c1_202, %c0_203, %c0_204, %c0_205] : memref<3x9x64x64xbf16, #tpu.memory_space<vmem>>, vector<1x1x64x64xbf16>
    %412 = vector.shape_cast %411 : vector<1x1x64x64xbf16> to vector<64x64xbf16>
    %cst_206 = arith.constant dense<0.000000e+00> : vector<48x64xf32>
    %413 = tpu.matmul %409, %412, %cst_206 {dimension_numbers = #tpu.dot_dimension_numbers<[1], [0], [0], [1], [0, 0, 1, 1], [], []>} : vector<48x64xbf16>, vector<64x64xbf16>, vector<48x64xf32> -> vector<48x64xf32>
    %c0_207 = arith.constant 0 : index
    %c0_208 = arith.constant 0 : index
    %414 = vector.load %arg9[%c0_207, %c0_208] : memref<11x64xf32, #tpu.memory_space<vmem>>, vector<1x64xf32>
    %415 = vector.broadcast %414 : vector<1x64xf32> to vector<48x64xf32>
    %416 = arith.addf %413, %415 : vector<48x64xf32>
    %cst_209 = arith.constant 0.000000e+00 : f32
    %417 = vector.broadcast %cst_209 : f32 to vector<48x64xf32>
    %418 = arith.subf %417, %416 : vector<48x64xf32>
    %419 = math.exp %418 : vector<48x64xf32>
    %cst_210 = arith.constant 1.000000e+00 : f32
    %420 = vector.broadcast %cst_210 : f32 to vector<48x64xf32>
    %421 = arith.addf %420, %419 : vector<48x64xf32>
    %422 = tpu.reciprocal %421 {approx = true} : vector<48x64xf32> -> vector<48x64xf32>
    %c1_211 = arith.constant 1 : index
    %c0_212 = arith.constant 0 : index
    %423 = vector.load %arg11[%c1_211, %c0_212] : memref<64x64xf32, #tpu.memory_space<vmem>>, vector<48x64xf32>
    %cst_213 = arith.constant -1.000000e+00 : f32
    %424 = vector.broadcast %cst_213 : f32 to vector<48x1xf32>
    %425 = arith.addf %138, %424 : vector<48x1xf32>
    %cst_214 = arith.constant 0.000000e+00 : f32
    %426 = vector.broadcast %cst_214 : f32 to vector<48x1xf32>
    %427 = arith.cmpf oge, %425, %426 : vector<48x1xf32>
    %cst_215 = arith.constant -1.000000e+00 : f32
    %428 = vector.broadcast %cst_215 : f32 to vector<48x1xf32>
    %429 = arith.addf %138, %428 : vector<48x1xf32>
    %cst_216 = arith.constant 7.000000e+00 : f32
    %430 = vector.broadcast %cst_216 : f32 to vector<48x1xf32>
    %431 = arith.cmpf ole, %429, %430 : vector<48x1xf32>
    %432 = arith.andi %427, %431 : vector<48x1xi1>
    %cst_217 = arith.constant -1.000000e+00 : f32
    %433 = vector.broadcast %cst_217 : f32 to vector<48x1xf32>
    %434 = arith.addf %141, %433 : vector<48x1xf32>
    %cst_218 = arith.constant 0.000000e+00 : f32
    %435 = vector.broadcast %cst_218 : f32 to vector<48x1xf32>
    %436 = arith.cmpf oge, %434, %435 : vector<48x1xf32>
    %437 = arith.andi %432, %436 : vector<48x1xi1>
    %cst_219 = arith.constant -1.000000e+00 : f32
    %438 = vector.broadcast %cst_219 : f32 to vector<48x1xf32>
    %439 = arith.addf %141, %438 : vector<48x1xf32>
    %cst_220 = arith.constant 5.000000e+00 : f32
    %440 = vector.broadcast %cst_220 : f32 to vector<48x1xf32>
    %441 = arith.cmpf ole, %439, %440 : vector<48x1xf32>
    %442 = arith.andi %437, %441 : vector<48x1xi1>
    %cst_221 = arith.constant 0.000000e+00 : f32
    %443 = vector.shape_cast %442 : vector<48x1xi1> to vector<48x1xi1>
    %444 = vector.broadcast %443 : vector<48x1xi1> to vector<48x64xi1>
    %445 = vector.broadcast %cst_221 : f32 to vector<48x64xf32>
    %446 = arith.select %444, %423, %445 : vector<48x64xi1>, vector<48x64xf32>
    %447 = arith.mulf %446, %422 : vector<48x64xf32>
    %448 = arith.truncf %447 : vector<48x64xf32> to vector<48x64xbf16>
    %c2_222 = arith.constant 2 : index
    %c0_223 = arith.constant 0 : index
    %c0_224 = arith.constant 0 : index
    %c0_225 = arith.constant 0 : index
    %449 = vector.load %arg8[%c2_222, %c0_223, %c0_224, %c0_225] : memref<3x9x64x64xbf16, #tpu.memory_space<vmem>>, vector<1x1x64x64xbf16>
    %450 = vector.shape_cast %449 : vector<1x1x64x64xbf16> to vector<64x64xbf16>
    %cst_226 = arith.constant dense<0.000000e+00> : vector<48x64xf32>
    %451 = tpu.matmul %448, %450, %cst_226 {dimension_numbers = #tpu.dot_dimension_numbers<[1], [0], [0], [1], [0, 0, 1, 1], [], []>} : vector<48x64xbf16>, vector<64x64xbf16>, vector<48x64xf32> -> vector<48x64xf32>
    %452 = arith.addf %410, %451 : vector<48x64xf32>
    %c1_227 = arith.constant 1 : index
    %c1_228 = arith.constant 1 : index
    %c0_229 = arith.constant 0 : index
    %c0_230 = arith.constant 0 : index
    %453 = vector.load %arg8[%c1_227, %c1_228, %c0_229, %c0_230] : memref<3x9x64x64xbf16, #tpu.memory_space<vmem>>, vector<1x1x64x64xbf16>
    %454 = vector.shape_cast %453 : vector<1x1x64x64xbf16> to vector<64x64xbf16>
    %cst_231 = arith.constant dense<0.000000e+00> : vector<48x64xf32>
    %455 = tpu.matmul %409, %454, %cst_231 {dimension_numbers = #tpu.dot_dimension_numbers<[1], [0], [0], [1], [0, 0, 1, 1], [], []>} : vector<48x64xbf16>, vector<64x64xbf16>, vector<48x64xf32> -> vector<48x64xf32>
    %c1_232 = arith.constant 1 : index
    %c0_233 = arith.constant 0 : index
    %456 = vector.load %arg9[%c1_232, %c0_233] : memref<11x64xf32, #tpu.memory_space<vmem>>, vector<1x64xf32>
    %457 = vector.broadcast %456 : vector<1x64xf32> to vector<48x64xf32>
    %458 = arith.addf %455, %457 : vector<48x64xf32>
    %cst_234 = arith.constant 0.000000e+00 : f32
    %459 = vector.broadcast %cst_234 : f32 to vector<48x64xf32>
    %460 = arith.subf %459, %458 : vector<48x64xf32>
    %461 = math.exp %460 : vector<48x64xf32>
    %cst_235 = arith.constant 1.000000e+00 : f32
    %462 = vector.broadcast %cst_235 : f32 to vector<48x64xf32>
    %463 = arith.addf %462, %461 : vector<48x64xf32>
    %464 = tpu.reciprocal %463 {approx = true} : vector<48x64xf32> -> vector<48x64xf32>
    %c2_236 = arith.constant 2 : index
    %c0_237 = arith.constant 0 : index
    %465 = vector.load %arg11[%c2_236, %c0_237] : memref<64x64xf32, #tpu.memory_space<vmem>>, vector<48x64xf32>
    %cst_238 = arith.constant -1.000000e+00 : f32
    %466 = vector.broadcast %cst_238 : f32 to vector<48x1xf32>
    %467 = arith.addf %138, %466 : vector<48x1xf32>
    %cst_239 = arith.constant 0.000000e+00 : f32
    %468 = vector.broadcast %cst_239 : f32 to vector<48x1xf32>
    %469 = arith.cmpf oge, %467, %468 : vector<48x1xf32>
    %cst_240 = arith.constant -1.000000e+00 : f32
    %470 = vector.broadcast %cst_240 : f32 to vector<48x1xf32>
    %471 = arith.addf %138, %470 : vector<48x1xf32>
    %cst_241 = arith.constant 7.000000e+00 : f32
    %472 = vector.broadcast %cst_241 : f32 to vector<48x1xf32>
    %473 = arith.cmpf ole, %471, %472 : vector<48x1xf32>
    %474 = arith.andi %469, %473 : vector<48x1xi1>
    %cst_242 = arith.constant 0.000000e+00 : f32
    %475 = vector.broadcast %cst_242 : f32 to vector<48x1xf32>
    %476 = arith.addf %141, %475 : vector<48x1xf32>
    %cst_243 = arith.constant 0.000000e+00 : f32
    %477 = vector.broadcast %cst_243 : f32 to vector<48x1xf32>
    %478 = arith.cmpf oge, %476, %477 : vector<48x1xf32>
    %479 = arith.andi %474, %478 : vector<48x1xi1>
    %cst_244 = arith.constant 0.000000e+00 : f32
    %480 = vector.broadcast %cst_244 : f32 to vector<48x1xf32>
    %481 = arith.addf %141, %480 : vector<48x1xf32>
    %cst_245 = arith.constant 5.000000e+00 : f32
    %482 = vector.broadcast %cst_245 : f32 to vector<48x1xf32>
    %483 = arith.cmpf ole, %481, %482 : vector<48x1xf32>
    %484 = arith.andi %479, %483 : vector<48x1xi1>
    %cst_246 = arith.constant 0.000000e+00 : f32
    %485 = vector.shape_cast %484 : vector<48x1xi1> to vector<48x1xi1>
    %486 = vector.broadcast %485 : vector<48x1xi1> to vector<48x64xi1>
    %487 = vector.broadcast %cst_246 : f32 to vector<48x64xf32>
    %488 = arith.select %486, %465, %487 : vector<48x64xi1>, vector<48x64xf32>
    %489 = arith.mulf %488, %464 : vector<48x64xf32>
    %490 = arith.truncf %489 : vector<48x64xf32> to vector<48x64xbf16>
    %c2_247 = arith.constant 2 : index
    %c1_248 = arith.constant 1 : index
    %c0_249 = arith.constant 0 : index
    %c0_250 = arith.constant 0 : index
    %491 = vector.load %arg8[%c2_247, %c1_248, %c0_249, %c0_250] : memref<3x9x64x64xbf16, #tpu.memory_space<vmem>>, vector<1x1x64x64xbf16>
    %492 = vector.shape_cast %491 : vector<1x1x64x64xbf16> to vector<64x64xbf16>
    %cst_251 = arith.constant dense<0.000000e+00> : vector<48x64xf32>
    %493 = tpu.matmul %490, %492, %cst_251 {dimension_numbers = #tpu.dot_dimension_numbers<[1], [0], [0], [1], [0, 0, 1, 1], [], []>} : vector<48x64xbf16>, vector<64x64xbf16>, vector<48x64xf32> -> vector<48x64xf32>
    %494 = arith.addf %452, %493 : vector<48x64xf32>
    %c1_252 = arith.constant 1 : index
    %c2_253 = arith.constant 2 : index
    %c0_254 = arith.constant 0 : index
    %c0_255 = arith.constant 0 : index
    %495 = vector.load %arg8[%c1_252, %c2_253, %c0_254, %c0_255] : memref<3x9x64x64xbf16, #tpu.memory_space<vmem>>, vector<1x1x64x64xbf16>
    %496 = vector.shape_cast %495 : vector<1x1x64x64xbf16> to vector<64x64xbf16>
    %cst_256 = arith.constant dense<0.000000e+00> : vector<48x64xf32>
    %497 = tpu.matmul %409, %496, %cst_256 {dimension_numbers = #tpu.dot_dimension_numbers<[1], [0], [0], [1], [0, 0, 1, 1], [], []>} : vector<48x64xbf16>, vector<64x64xbf16>, vector<48x64xf32> -> vector<48x64xf32>
    %c2_257 = arith.constant 2 : index
    %c0_258 = arith.constant 0 : index
    %498 = vector.load %arg9[%c2_257, %c0_258] : memref<11x64xf32, #tpu.memory_space<vmem>>, vector<1x64xf32>
    %499 = vector.broadcast %498 : vector<1x64xf32> to vector<48x64xf32>
    %500 = arith.addf %497, %499 : vector<48x64xf32>
    %cst_259 = arith.constant 0.000000e+00 : f32
    %501 = vector.broadcast %cst_259 : f32 to vector<48x64xf32>
    %502 = arith.subf %501, %500 : vector<48x64xf32>
    %503 = math.exp %502 : vector<48x64xf32>
    %cst_260 = arith.constant 1.000000e+00 : f32
    %504 = vector.broadcast %cst_260 : f32 to vector<48x64xf32>
    %505 = arith.addf %504, %503 : vector<48x64xf32>
    %506 = tpu.reciprocal %505 {approx = true} : vector<48x64xf32> -> vector<48x64xf32>
    %c3_261 = arith.constant 3 : index
    %c0_262 = arith.constant 0 : index
    %507 = vector.load %arg11[%c3_261, %c0_262] : memref<64x64xf32, #tpu.memory_space<vmem>>, vector<48x64xf32>
    %cst_263 = arith.constant -1.000000e+00 : f32
    %508 = vector.broadcast %cst_263 : f32 to vector<48x1xf32>
    %509 = arith.addf %138, %508 : vector<48x1xf32>
    %cst_264 = arith.constant 0.000000e+00 : f32
    %510 = vector.broadcast %cst_264 : f32 to vector<48x1xf32>
    %511 = arith.cmpf oge, %509, %510 : vector<48x1xf32>
    %cst_265 = arith.constant -1.000000e+00 : f32
    %512 = vector.broadcast %cst_265 : f32 to vector<48x1xf32>
    %513 = arith.addf %138, %512 : vector<48x1xf32>
    %cst_266 = arith.constant 7.000000e+00 : f32
    %514 = vector.broadcast %cst_266 : f32 to vector<48x1xf32>
    %515 = arith.cmpf ole, %513, %514 : vector<48x1xf32>
    %516 = arith.andi %511, %515 : vector<48x1xi1>
    %cst_267 = arith.constant 1.000000e+00 : f32
    %517 = vector.broadcast %cst_267 : f32 to vector<48x1xf32>
    %518 = arith.addf %141, %517 : vector<48x1xf32>
    %cst_268 = arith.constant 0.000000e+00 : f32
    %519 = vector.broadcast %cst_268 : f32 to vector<48x1xf32>
    %520 = arith.cmpf oge, %518, %519 : vector<48x1xf32>
    %521 = arith.andi %516, %520 : vector<48x1xi1>
    %cst_269 = arith.constant 1.000000e+00 : f32
    %522 = vector.broadcast %cst_269 : f32 to vector<48x1xf32>
    %523 = arith.addf %141, %522 : vector<48x1xf32>
    %cst_270 = arith.constant 5.000000e+00 : f32
    %524 = vector.broadcast %cst_270 : f32 to vector<48x1xf32>
    %525 = arith.cmpf ole, %523, %524 : vector<48x1xf32>
    %526 = arith.andi %521, %525 : vector<48x1xi1>
    %cst_271 = arith.constant 0.000000e+00 : f32
    %527 = vector.shape_cast %526 : vector<48x1xi1> to vector<48x1xi1>
    %528 = vector.broadcast %527 : vector<48x1xi1> to vector<48x64xi1>
    %529 = vector.broadcast %cst_271 : f32 to vector<48x64xf32>
    %530 = arith.select %528, %507, %529 : vector<48x64xi1>, vector<48x64xf32>
    %531 = arith.mulf %530, %506 : vector<48x64xf32>
    %532 = arith.truncf %531 : vector<48x64xf32> to vector<48x64xbf16>
    %c2_272 = arith.constant 2 : index
    %c2_273 = arith.constant 2 : index
    %c0_274 = arith.constant 0 : index
    %c0_275 = arith.constant 0 : index
    %533 = vector.load %arg8[%c2_272, %c2_273, %c0_274, %c0_275] : memref<3x9x64x64xbf16, #tpu.memory_space<vmem>>, vector<1x1x64x64xbf16>
    %534 = vector.shape_cast %533 : vector<1x1x64x64xbf16> to vector<64x64xbf16>
    %cst_276 = arith.constant dense<0.000000e+00> : vector<48x64xf32>
    %535 = tpu.matmul %532, %534, %cst_276 {dimension_numbers = #tpu.dot_dimension_numbers<[1], [0], [0], [1], [0, 0, 1, 1], [], []>} : vector<48x64xbf16>, vector<64x64xbf16>, vector<48x64xf32> -> vector<48x64xf32>
    %536 = arith.addf %494, %535 : vector<48x64xf32>
    %c1_277 = arith.constant 1 : index
    %c3_278 = arith.constant 3 : index
    %c0_279 = arith.constant 0 : index
    %c0_280 = arith.constant 0 : index
    %537 = vector.load %arg8[%c1_277, %c3_278, %c0_279, %c0_280] : memref<3x9x64x64xbf16, #tpu.memory_space<vmem>>, vector<1x1x64x64xbf16>
    %538 = vector.shape_cast %537 : vector<1x1x64x64xbf16> to vector<64x64xbf16>
    %cst_281 = arith.constant dense<0.000000e+00> : vector<48x64xf32>
    %539 = tpu.matmul %409, %538, %cst_281 {dimension_numbers = #tpu.dot_dimension_numbers<[1], [0], [0], [1], [0, 0, 1, 1], [], []>} : vector<48x64xbf16>, vector<64x64xbf16>, vector<48x64xf32> -> vector<48x64xf32>
    %c3_282 = arith.constant 3 : index
    %c0_283 = arith.constant 0 : index
    %540 = vector.load %arg9[%c3_282, %c0_283] : memref<11x64xf32, #tpu.memory_space<vmem>>, vector<1x64xf32>
    %541 = vector.broadcast %540 : vector<1x64xf32> to vector<48x64xf32>
    %542 = arith.addf %539, %541 : vector<48x64xf32>
    %cst_284 = arith.constant 0.000000e+00 : f32
    %543 = vector.broadcast %cst_284 : f32 to vector<48x64xf32>
    %544 = arith.subf %543, %542 : vector<48x64xf32>
    %545 = math.exp %544 : vector<48x64xf32>
    %cst_285 = arith.constant 1.000000e+00 : f32
    %546 = vector.broadcast %cst_285 : f32 to vector<48x64xf32>
    %547 = arith.addf %546, %545 : vector<48x64xf32>
    %548 = tpu.reciprocal %547 {approx = true} : vector<48x64xf32> -> vector<48x64xf32>
    %c7_286 = arith.constant 7 : index
    %c0_287 = arith.constant 0 : index
    %549 = vector.load %arg11[%c7_286, %c0_287] : memref<64x64xf32, #tpu.memory_space<vmem>>, vector<48x64xf32>
    %cst_288 = arith.constant 0.000000e+00 : f32
    %550 = vector.broadcast %cst_288 : f32 to vector<48x1xf32>
    %551 = arith.addf %138, %550 : vector<48x1xf32>
    %cst_289 = arith.constant 0.000000e+00 : f32
    %552 = vector.broadcast %cst_289 : f32 to vector<48x1xf32>
    %553 = arith.cmpf oge, %551, %552 : vector<48x1xf32>
    %cst_290 = arith.constant 0.000000e+00 : f32
    %554 = vector.broadcast %cst_290 : f32 to vector<48x1xf32>
    %555 = arith.addf %138, %554 : vector<48x1xf32>
    %cst_291 = arith.constant 7.000000e+00 : f32
    %556 = vector.broadcast %cst_291 : f32 to vector<48x1xf32>
    %557 = arith.cmpf ole, %555, %556 : vector<48x1xf32>
    %558 = arith.andi %553, %557 : vector<48x1xi1>
    %cst_292 = arith.constant -1.000000e+00 : f32
    %559 = vector.broadcast %cst_292 : f32 to vector<48x1xf32>
    %560 = arith.addf %141, %559 : vector<48x1xf32>
    %cst_293 = arith.constant 0.000000e+00 : f32
    %561 = vector.broadcast %cst_293 : f32 to vector<48x1xf32>
    %562 = arith.cmpf oge, %560, %561 : vector<48x1xf32>
    %563 = arith.andi %558, %562 : vector<48x1xi1>
    %cst_294 = arith.constant -1.000000e+00 : f32
    %564 = vector.broadcast %cst_294 : f32 to vector<48x1xf32>
    %565 = arith.addf %141, %564 : vector<48x1xf32>
    %cst_295 = arith.constant 5.000000e+00 : f32
    %566 = vector.broadcast %cst_295 : f32 to vector<48x1xf32>
    %567 = arith.cmpf ole, %565, %566 : vector<48x1xf32>
    %568 = arith.andi %563, %567 : vector<48x1xi1>
    %cst_296 = arith.constant 0.000000e+00 : f32
    %569 = vector.shape_cast %568 : vector<48x1xi1> to vector<48x1xi1>
    %570 = vector.broadcast %569 : vector<48x1xi1> to vector<48x64xi1>
    %571 = vector.broadcast %cst_296 : f32 to vector<48x64xf32>
    %572 = arith.select %570, %549, %571 : vector<48x64xi1>, vector<48x64xf32>
    %573 = arith.mulf %572, %548 : vector<48x64xf32>
    %574 = arith.truncf %573 : vector<48x64xf32> to vector<48x64xbf16>
    %c2_297 = arith.constant 2 : index
    %c3_298 = arith.constant 3 : index
    %c0_299 = arith.constant 0 : index
    %c0_300 = arith.constant 0 : index
    %575 = vector.load %arg8[%c2_297, %c3_298, %c0_299, %c0_300] : memref<3x9x64x64xbf16, #tpu.memory_space<vmem>>, vector<1x1x64x64xbf16>
    %576 = vector.shape_cast %575 : vector<1x1x64x64xbf16> to vector<64x64xbf16>
    %cst_301 = arith.constant dense<0.000000e+00> : vector<48x64xf32>
    %577 = tpu.matmul %574, %576, %cst_301 {dimension_numbers = #tpu.dot_dimension_numbers<[1], [0], [0], [1], [0, 0, 1, 1], [], []>} : vector<48x64xbf16>, vector<64x64xbf16>, vector<48x64xf32> -> vector<48x64xf32>
    %578 = arith.addf %536, %577 : vector<48x64xf32>
    %c1_302 = arith.constant 1 : index
    %c4_303 = arith.constant 4 : index
    %c0_304 = arith.constant 0 : index
    %c0_305 = arith.constant 0 : index
    %579 = vector.load %arg8[%c1_302, %c4_303, %c0_304, %c0_305] : memref<3x9x64x64xbf16, #tpu.memory_space<vmem>>, vector<1x1x64x64xbf16>
    %580 = vector.shape_cast %579 : vector<1x1x64x64xbf16> to vector<64x64xbf16>
    %cst_306 = arith.constant dense<0.000000e+00> : vector<48x64xf32>
    %581 = tpu.matmul %409, %580, %cst_306 {dimension_numbers = #tpu.dot_dimension_numbers<[1], [0], [0], [1], [0, 0, 1, 1], [], []>} : vector<48x64xbf16>, vector<64x64xbf16>, vector<48x64xf32> -> vector<48x64xf32>
    %c4_307 = arith.constant 4 : index
    %c0_308 = arith.constant 0 : index
    %582 = vector.load %arg9[%c4_307, %c0_308] : memref<11x64xf32, #tpu.memory_space<vmem>>, vector<1x64xf32>
    %583 = vector.broadcast %582 : vector<1x64xf32> to vector<48x64xf32>
    %584 = arith.addf %581, %583 : vector<48x64xf32>
    %cst_309 = arith.constant 0.000000e+00 : f32
    %585 = vector.broadcast %cst_309 : f32 to vector<48x64xf32>
    %586 = arith.subf %585, %584 : vector<48x64xf32>
    %587 = math.exp %586 : vector<48x64xf32>
    %cst_310 = arith.constant 1.000000e+00 : f32
    %588 = vector.broadcast %cst_310 : f32 to vector<48x64xf32>
    %589 = arith.addf %588, %587 : vector<48x64xf32>
    %590 = tpu.reciprocal %589 {approx = true} : vector<48x64xf32> -> vector<48x64xf32>
    %c8_311 = arith.constant 8 : index
    %c0_312 = arith.constant 0 : index
    %591 = vector.load %arg11[%c8_311, %c0_312] : memref<64x64xf32, #tpu.memory_space<vmem>>, vector<48x64xf32>
    %cst_313 = arith.constant 0.000000e+00 : f32
    %592 = vector.broadcast %cst_313 : f32 to vector<48x1xf32>
    %593 = arith.addf %138, %592 : vector<48x1xf32>
    %cst_314 = arith.constant 0.000000e+00 : f32
    %594 = vector.broadcast %cst_314 : f32 to vector<48x1xf32>
    %595 = arith.cmpf oge, %593, %594 : vector<48x1xf32>
    %cst_315 = arith.constant 0.000000e+00 : f32
    %596 = vector.broadcast %cst_315 : f32 to vector<48x1xf32>
    %597 = arith.addf %138, %596 : vector<48x1xf32>
    %cst_316 = arith.constant 7.000000e+00 : f32
    %598 = vector.broadcast %cst_316 : f32 to vector<48x1xf32>
    %599 = arith.cmpf ole, %597, %598 : vector<48x1xf32>
    %600 = arith.andi %595, %599 : vector<48x1xi1>
    %cst_317 = arith.constant 0.000000e+00 : f32
    %601 = vector.broadcast %cst_317 : f32 to vector<48x1xf32>
    %602 = arith.addf %141, %601 : vector<48x1xf32>
    %cst_318 = arith.constant 0.000000e+00 : f32
    %603 = vector.broadcast %cst_318 : f32 to vector<48x1xf32>
    %604 = arith.cmpf oge, %602, %603 : vector<48x1xf32>
    %605 = arith.andi %600, %604 : vector<48x1xi1>
    %cst_319 = arith.constant 0.000000e+00 : f32
    %606 = vector.broadcast %cst_319 : f32 to vector<48x1xf32>
    %607 = arith.addf %141, %606 : vector<48x1xf32>
    %cst_320 = arith.constant 5.000000e+00 : f32
    %608 = vector.broadcast %cst_320 : f32 to vector<48x1xf32>
    %609 = arith.cmpf ole, %607, %608 : vector<48x1xf32>
    %610 = arith.andi %605, %609 : vector<48x1xi1>
    %cst_321 = arith.constant 0.000000e+00 : f32
    %611 = vector.shape_cast %610 : vector<48x1xi1> to vector<48x1xi1>
    %612 = vector.broadcast %611 : vector<48x1xi1> to vector<48x64xi1>
    %613 = vector.broadcast %cst_321 : f32 to vector<48x64xf32>
    %614 = arith.select %612, %591, %613 : vector<48x64xi1>, vector<48x64xf32>
    %615 = arith.mulf %614, %590 : vector<48x64xf32>
    %616 = arith.truncf %615 : vector<48x64xf32> to vector<48x64xbf16>
    %c2_322 = arith.constant 2 : index
    %c4_323 = arith.constant 4 : index
    %c0_324 = arith.constant 0 : index
    %c0_325 = arith.constant 0 : index
    %617 = vector.load %arg8[%c2_322, %c4_323, %c0_324, %c0_325] : memref<3x9x64x64xbf16, #tpu.memory_space<vmem>>, vector<1x1x64x64xbf16>
    %618 = vector.shape_cast %617 : vector<1x1x64x64xbf16> to vector<64x64xbf16>
    %cst_326 = arith.constant dense<0.000000e+00> : vector<48x64xf32>
    %619 = tpu.matmul %616, %618, %cst_326 {dimension_numbers = #tpu.dot_dimension_numbers<[1], [0], [0], [1], [0, 0, 1, 1], [], []>} : vector<48x64xbf16>, vector<64x64xbf16>, vector<48x64xf32> -> vector<48x64xf32>
    %620 = arith.addf %578, %619 : vector<48x64xf32>
    %c1_327 = arith.constant 1 : index
    %c5_328 = arith.constant 5 : index
    %c0_329 = arith.constant 0 : index
    %c0_330 = arith.constant 0 : index
    %621 = vector.load %arg8[%c1_327, %c5_328, %c0_329, %c0_330] : memref<3x9x64x64xbf16, #tpu.memory_space<vmem>>, vector<1x1x64x64xbf16>
    %622 = vector.shape_cast %621 : vector<1x1x64x64xbf16> to vector<64x64xbf16>
    %cst_331 = arith.constant dense<0.000000e+00> : vector<48x64xf32>
    %623 = tpu.matmul %409, %622, %cst_331 {dimension_numbers = #tpu.dot_dimension_numbers<[1], [0], [0], [1], [0, 0, 1, 1], [], []>} : vector<48x64xbf16>, vector<64x64xbf16>, vector<48x64xf32> -> vector<48x64xf32>
    %c5_332 = arith.constant 5 : index
    %c0_333 = arith.constant 0 : index
    %624 = vector.load %arg9[%c5_332, %c0_333] : memref<11x64xf32, #tpu.memory_space<vmem>>, vector<1x64xf32>
    %625 = vector.broadcast %624 : vector<1x64xf32> to vector<48x64xf32>
    %626 = arith.addf %623, %625 : vector<48x64xf32>
    %cst_334 = arith.constant 0.000000e+00 : f32
    %627 = vector.broadcast %cst_334 : f32 to vector<48x64xf32>
    %628 = arith.subf %627, %626 : vector<48x64xf32>
    %629 = math.exp %628 : vector<48x64xf32>
    %cst_335 = arith.constant 1.000000e+00 : f32
    %630 = vector.broadcast %cst_335 : f32 to vector<48x64xf32>
    %631 = arith.addf %630, %629 : vector<48x64xf32>
    %632 = tpu.reciprocal %631 {approx = true} : vector<48x64xf32> -> vector<48x64xf32>
    %c9_336 = arith.constant 9 : index
    %c0_337 = arith.constant 0 : index
    %633 = vector.load %arg11[%c9_336, %c0_337] : memref<64x64xf32, #tpu.memory_space<vmem>>, vector<48x64xf32>
    %cst_338 = arith.constant 0.000000e+00 : f32
    %634 = vector.broadcast %cst_338 : f32 to vector<48x1xf32>
    %635 = arith.addf %138, %634 : vector<48x1xf32>
    %cst_339 = arith.constant 0.000000e+00 : f32
    %636 = vector.broadcast %cst_339 : f32 to vector<48x1xf32>
    %637 = arith.cmpf oge, %635, %636 : vector<48x1xf32>
    %cst_340 = arith.constant 0.000000e+00 : f32
    %638 = vector.broadcast %cst_340 : f32 to vector<48x1xf32>
    %639 = arith.addf %138, %638 : vector<48x1xf32>
    %cst_341 = arith.constant 7.000000e+00 : f32
    %640 = vector.broadcast %cst_341 : f32 to vector<48x1xf32>
    %641 = arith.cmpf ole, %639, %640 : vector<48x1xf32>
    %642 = arith.andi %637, %641 : vector<48x1xi1>
    %cst_342 = arith.constant 1.000000e+00 : f32
    %643 = vector.broadcast %cst_342 : f32 to vector<48x1xf32>
    %644 = arith.addf %141, %643 : vector<48x1xf32>
    %cst_343 = arith.constant 0.000000e+00 : f32
    %645 = vector.broadcast %cst_343 : f32 to vector<48x1xf32>
    %646 = arith.cmpf oge, %644, %645 : vector<48x1xf32>
    %647 = arith.andi %642, %646 : vector<48x1xi1>
    %cst_344 = arith.constant 1.000000e+00 : f32
    %648 = vector.broadcast %cst_344 : f32 to vector<48x1xf32>
    %649 = arith.addf %141, %648 : vector<48x1xf32>
    %cst_345 = arith.constant 5.000000e+00 : f32
    %650 = vector.broadcast %cst_345 : f32 to vector<48x1xf32>
    %651 = arith.cmpf ole, %649, %650 : vector<48x1xf32>
    %652 = arith.andi %647, %651 : vector<48x1xi1>
    %cst_346 = arith.constant 0.000000e+00 : f32
    %653 = vector.shape_cast %652 : vector<48x1xi1> to vector<48x1xi1>
    %654 = vector.broadcast %653 : vector<48x1xi1> to vector<48x64xi1>
    %655 = vector.broadcast %cst_346 : f32 to vector<48x64xf32>
    %656 = arith.select %654, %633, %655 : vector<48x64xi1>, vector<48x64xf32>
    %657 = arith.mulf %656, %632 : vector<48x64xf32>
    %658 = arith.truncf %657 : vector<48x64xf32> to vector<48x64xbf16>
    %c2_347 = arith.constant 2 : index
    %c5_348 = arith.constant 5 : index
    %c0_349 = arith.constant 0 : index
    %c0_350 = arith.constant 0 : index
    %659 = vector.load %arg8[%c2_347, %c5_348, %c0_349, %c0_350] : memref<3x9x64x64xbf16, #tpu.memory_space<vmem>>, vector<1x1x64x64xbf16>
    %660 = vector.shape_cast %659 : vector<1x1x64x64xbf16> to vector<64x64xbf16>
    %cst_351 = arith.constant dense<0.000000e+00> : vector<48x64xf32>
    %661 = tpu.matmul %658, %660, %cst_351 {dimension_numbers = #tpu.dot_dimension_numbers<[1], [0], [0], [1], [0, 0, 1, 1], [], []>} : vector<48x64xbf16>, vector<64x64xbf16>, vector<48x64xf32> -> vector<48x64xf32>
    %662 = arith.addf %620, %661 : vector<48x64xf32>
    %c1_352 = arith.constant 1 : index
    %c6_353 = arith.constant 6 : index
    %c0_354 = arith.constant 0 : index
    %c0_355 = arith.constant 0 : index
    %663 = vector.load %arg8[%c1_352, %c6_353, %c0_354, %c0_355] : memref<3x9x64x64xbf16, #tpu.memory_space<vmem>>, vector<1x1x64x64xbf16>
    %664 = vector.shape_cast %663 : vector<1x1x64x64xbf16> to vector<64x64xbf16>
    %cst_356 = arith.constant dense<0.000000e+00> : vector<48x64xf32>
    %665 = tpu.matmul %409, %664, %cst_356 {dimension_numbers = #tpu.dot_dimension_numbers<[1], [0], [0], [1], [0, 0, 1, 1], [], []>} : vector<48x64xbf16>, vector<64x64xbf16>, vector<48x64xf32> -> vector<48x64xf32>
    %c6_357 = arith.constant 6 : index
    %c0_358 = arith.constant 0 : index
    %666 = vector.load %arg9[%c6_357, %c0_358] : memref<11x64xf32, #tpu.memory_space<vmem>>, vector<1x64xf32>
    %667 = vector.broadcast %666 : vector<1x64xf32> to vector<48x64xf32>
    %668 = arith.addf %665, %667 : vector<48x64xf32>
    %cst_359 = arith.constant 0.000000e+00 : f32
    %669 = vector.broadcast %cst_359 : f32 to vector<48x64xf32>
    %670 = arith.subf %669, %668 : vector<48x64xf32>
    %671 = math.exp %670 : vector<48x64xf32>
    %cst_360 = arith.constant 1.000000e+00 : f32
    %672 = vector.broadcast %cst_360 : f32 to vector<48x64xf32>
    %673 = arith.addf %672, %671 : vector<48x64xf32>
    %674 = tpu.reciprocal %673 {approx = true} : vector<48x64xf32> -> vector<48x64xf32>
    %c13_361 = arith.constant 13 : index
    %c0_362 = arith.constant 0 : index
    %675 = vector.load %arg11[%c13_361, %c0_362] : memref<64x64xf32, #tpu.memory_space<vmem>>, vector<48x64xf32>
    %cst_363 = arith.constant 1.000000e+00 : f32
    %676 = vector.broadcast %cst_363 : f32 to vector<48x1xf32>
    %677 = arith.addf %138, %676 : vector<48x1xf32>
    %cst_364 = arith.constant 0.000000e+00 : f32
    %678 = vector.broadcast %cst_364 : f32 to vector<48x1xf32>
    %679 = arith.cmpf oge, %677, %678 : vector<48x1xf32>
    %cst_365 = arith.constant 1.000000e+00 : f32
    %680 = vector.broadcast %cst_365 : f32 to vector<48x1xf32>
    %681 = arith.addf %138, %680 : vector<48x1xf32>
    %cst_366 = arith.constant 7.000000e+00 : f32
    %682 = vector.broadcast %cst_366 : f32 to vector<48x1xf32>
    %683 = arith.cmpf ole, %681, %682 : vector<48x1xf32>
    %684 = arith.andi %679, %683 : vector<48x1xi1>
    %cst_367 = arith.constant -1.000000e+00 : f32
    %685 = vector.broadcast %cst_367 : f32 to vector<48x1xf32>
    %686 = arith.addf %141, %685 : vector<48x1xf32>
    %cst_368 = arith.constant 0.000000e+00 : f32
    %687 = vector.broadcast %cst_368 : f32 to vector<48x1xf32>
    %688 = arith.cmpf oge, %686, %687 : vector<48x1xf32>
    %689 = arith.andi %684, %688 : vector<48x1xi1>
    %cst_369 = arith.constant -1.000000e+00 : f32
    %690 = vector.broadcast %cst_369 : f32 to vector<48x1xf32>
    %691 = arith.addf %141, %690 : vector<48x1xf32>
    %cst_370 = arith.constant 5.000000e+00 : f32
    %692 = vector.broadcast %cst_370 : f32 to vector<48x1xf32>
    %693 = arith.cmpf ole, %691, %692 : vector<48x1xf32>
    %694 = arith.andi %689, %693 : vector<48x1xi1>
    %cst_371 = arith.constant 0.000000e+00 : f32
    %695 = vector.shape_cast %694 : vector<48x1xi1> to vector<48x1xi1>
    %696 = vector.broadcast %695 : vector<48x1xi1> to vector<48x64xi1>
    %697 = vector.broadcast %cst_371 : f32 to vector<48x64xf32>
    %698 = arith.select %696, %675, %697 : vector<48x64xi1>, vector<48x64xf32>
    %699 = arith.mulf %698, %674 : vector<48x64xf32>
    %700 = arith.truncf %699 : vector<48x64xf32> to vector<48x64xbf16>
    %c2_372 = arith.constant 2 : index
    %c6_373 = arith.constant 6 : index
    %c0_374 = arith.constant 0 : index
    %c0_375 = arith.constant 0 : index
    %701 = vector.load %arg8[%c2_372, %c6_373, %c0_374, %c0_375] : memref<3x9x64x64xbf16, #tpu.memory_space<vmem>>, vector<1x1x64x64xbf16>
    %702 = vector.shape_cast %701 : vector<1x1x64x64xbf16> to vector<64x64xbf16>
    %cst_376 = arith.constant dense<0.000000e+00> : vector<48x64xf32>
    %703 = tpu.matmul %700, %702, %cst_376 {dimension_numbers = #tpu.dot_dimension_numbers<[1], [0], [0], [1], [0, 0, 1, 1], [], []>} : vector<48x64xbf16>, vector<64x64xbf16>, vector<48x64xf32> -> vector<48x64xf32>
    %704 = arith.addf %662, %703 : vector<48x64xf32>
    %c1_377 = arith.constant 1 : index
    %c7_378 = arith.constant 7 : index
    %c0_379 = arith.constant 0 : index
    %c0_380 = arith.constant 0 : index
    %705 = vector.load %arg8[%c1_377, %c7_378, %c0_379, %c0_380] : memref<3x9x64x64xbf16, #tpu.memory_space<vmem>>, vector<1x1x64x64xbf16>
    %706 = vector.shape_cast %705 : vector<1x1x64x64xbf16> to vector<64x64xbf16>
    %cst_381 = arith.constant dense<0.000000e+00> : vector<48x64xf32>
    %707 = tpu.matmul %409, %706, %cst_381 {dimension_numbers = #tpu.dot_dimension_numbers<[1], [0], [0], [1], [0, 0, 1, 1], [], []>} : vector<48x64xbf16>, vector<64x64xbf16>, vector<48x64xf32> -> vector<48x64xf32>
    %c7_382 = arith.constant 7 : index
    %c0_383 = arith.constant 0 : index
    %708 = vector.load %arg9[%c7_382, %c0_383] : memref<11x64xf32, #tpu.memory_space<vmem>>, vector<1x64xf32>
    %709 = vector.broadcast %708 : vector<1x64xf32> to vector<48x64xf32>
    %710 = arith.addf %707, %709 : vector<48x64xf32>
    %cst_384 = arith.constant 0.000000e+00 : f32
    %711 = vector.broadcast %cst_384 : f32 to vector<48x64xf32>
    %712 = arith.subf %711, %710 : vector<48x64xf32>
    %713 = math.exp %712 : vector<48x64xf32>
    %cst_385 = arith.constant 1.000000e+00 : f32
    %714 = vector.broadcast %cst_385 : f32 to vector<48x64xf32>
    %715 = arith.addf %714, %713 : vector<48x64xf32>
    %716 = tpu.reciprocal %715 {approx = true} : vector<48x64xf32> -> vector<48x64xf32>
    %c14_386 = arith.constant 14 : index
    %c0_387 = arith.constant 0 : index
    %717 = vector.load %arg11[%c14_386, %c0_387] : memref<64x64xf32, #tpu.memory_space<vmem>>, vector<48x64xf32>
    %cst_388 = arith.constant 1.000000e+00 : f32
    %718 = vector.broadcast %cst_388 : f32 to vector<48x1xf32>
    %719 = arith.addf %138, %718 : vector<48x1xf32>
    %cst_389 = arith.constant 0.000000e+00 : f32
    %720 = vector.broadcast %cst_389 : f32 to vector<48x1xf32>
    %721 = arith.cmpf oge, %719, %720 : vector<48x1xf32>
    %cst_390 = arith.constant 1.000000e+00 : f32
    %722 = vector.broadcast %cst_390 : f32 to vector<48x1xf32>
    %723 = arith.addf %138, %722 : vector<48x1xf32>
    %cst_391 = arith.constant 7.000000e+00 : f32
    %724 = vector.broadcast %cst_391 : f32 to vector<48x1xf32>
    %725 = arith.cmpf ole, %723, %724 : vector<48x1xf32>
    %726 = arith.andi %721, %725 : vector<48x1xi1>
    %cst_392 = arith.constant 0.000000e+00 : f32
    %727 = vector.broadcast %cst_392 : f32 to vector<48x1xf32>
    %728 = arith.addf %141, %727 : vector<48x1xf32>
    %cst_393 = arith.constant 0.000000e+00 : f32
    %729 = vector.broadcast %cst_393 : f32 to vector<48x1xf32>
    %730 = arith.cmpf oge, %728, %729 : vector<48x1xf32>
    %731 = arith.andi %726, %730 : vector<48x1xi1>
    %cst_394 = arith.constant 0.000000e+00 : f32
    %732 = vector.broadcast %cst_394 : f32 to vector<48x1xf32>
    %733 = arith.addf %141, %732 : vector<48x1xf32>
    %cst_395 = arith.constant 5.000000e+00 : f32
    %734 = vector.broadcast %cst_395 : f32 to vector<48x1xf32>
    %735 = arith.cmpf ole, %733, %734 : vector<48x1xf32>
    %736 = arith.andi %731, %735 : vector<48x1xi1>
    %cst_396 = arith.constant 0.000000e+00 : f32
    %737 = vector.shape_cast %736 : vector<48x1xi1> to vector<48x1xi1>
    %738 = vector.broadcast %737 : vector<48x1xi1> to vector<48x64xi1>
    %739 = vector.broadcast %cst_396 : f32 to vector<48x64xf32>
    %740 = arith.select %738, %717, %739 : vector<48x64xi1>, vector<48x64xf32>
    %741 = arith.mulf %740, %716 : vector<48x64xf32>
    %742 = arith.truncf %741 : vector<48x64xf32> to vector<48x64xbf16>
    %c2_397 = arith.constant 2 : index
    %c7_398 = arith.constant 7 : index
    %c0_399 = arith.constant 0 : index
    %c0_400 = arith.constant 0 : index
    %743 = vector.load %arg8[%c2_397, %c7_398, %c0_399, %c0_400] : memref<3x9x64x64xbf16, #tpu.memory_space<vmem>>, vector<1x1x64x64xbf16>
    %744 = vector.shape_cast %743 : vector<1x1x64x64xbf16> to vector<64x64xbf16>
    %cst_401 = arith.constant dense<0.000000e+00> : vector<48x64xf32>
    %745 = tpu.matmul %742, %744, %cst_401 {dimension_numbers = #tpu.dot_dimension_numbers<[1], [0], [0], [1], [0, 0, 1, 1], [], []>} : vector<48x64xbf16>, vector<64x64xbf16>, vector<48x64xf32> -> vector<48x64xf32>
    %746 = arith.addf %704, %745 : vector<48x64xf32>
    %c1_402 = arith.constant 1 : index
    %c8_403 = arith.constant 8 : index
    %c0_404 = arith.constant 0 : index
    %c0_405 = arith.constant 0 : index
    %747 = vector.load %arg8[%c1_402, %c8_403, %c0_404, %c0_405] : memref<3x9x64x64xbf16, #tpu.memory_space<vmem>>, vector<1x1x64x64xbf16>
    %748 = vector.shape_cast %747 : vector<1x1x64x64xbf16> to vector<64x64xbf16>
    %cst_406 = arith.constant dense<0.000000e+00> : vector<48x64xf32>
    %749 = tpu.matmul %409, %748, %cst_406 {dimension_numbers = #tpu.dot_dimension_numbers<[1], [0], [0], [1], [0, 0, 1, 1], [], []>} : vector<48x64xbf16>, vector<64x64xbf16>, vector<48x64xf32> -> vector<48x64xf32>
    %c8_407 = arith.constant 8 : index
    %c0_408 = arith.constant 0 : index
    %750 = vector.load %arg9[%c8_407, %c0_408] : memref<11x64xf32, #tpu.memory_space<vmem>>, vector<1x64xf32>
    %751 = vector.broadcast %750 : vector<1x64xf32> to vector<48x64xf32>
    %752 = arith.addf %749, %751 : vector<48x64xf32>
    %cst_409 = arith.constant 0.000000e+00 : f32
    %753 = vector.broadcast %cst_409 : f32 to vector<48x64xf32>
    %754 = arith.subf %753, %752 : vector<48x64xf32>
    %755 = math.exp %754 : vector<48x64xf32>
    %cst_410 = arith.constant 1.000000e+00 : f32
    %756 = vector.broadcast %cst_410 : f32 to vector<48x64xf32>
    %757 = arith.addf %756, %755 : vector<48x64xf32>
    %758 = tpu.reciprocal %757 {approx = true} : vector<48x64xf32> -> vector<48x64xf32>
    %c15_411 = arith.constant 15 : index
    %c0_412 = arith.constant 0 : index
    %759 = vector.load %arg11[%c15_411, %c0_412] : memref<64x64xf32, #tpu.memory_space<vmem>>, vector<48x64xf32>
    %cst_413 = arith.constant 1.000000e+00 : f32
    %760 = vector.broadcast %cst_413 : f32 to vector<48x1xf32>
    %761 = arith.addf %138, %760 : vector<48x1xf32>
    %cst_414 = arith.constant 0.000000e+00 : f32
    %762 = vector.broadcast %cst_414 : f32 to vector<48x1xf32>
    %763 = arith.cmpf oge, %761, %762 : vector<48x1xf32>
    %cst_415 = arith.constant 1.000000e+00 : f32
    %764 = vector.broadcast %cst_415 : f32 to vector<48x1xf32>
    %765 = arith.addf %138, %764 : vector<48x1xf32>
    %cst_416 = arith.constant 7.000000e+00 : f32
    %766 = vector.broadcast %cst_416 : f32 to vector<48x1xf32>
    %767 = arith.cmpf ole, %765, %766 : vector<48x1xf32>
    %768 = arith.andi %763, %767 : vector<48x1xi1>
    %cst_417 = arith.constant 1.000000e+00 : f32
    %769 = vector.broadcast %cst_417 : f32 to vector<48x1xf32>
    %770 = arith.addf %141, %769 : vector<48x1xf32>
    %cst_418 = arith.constant 0.000000e+00 : f32
    %771 = vector.broadcast %cst_418 : f32 to vector<48x1xf32>
    %772 = arith.cmpf oge, %770, %771 : vector<48x1xf32>
    %773 = arith.andi %768, %772 : vector<48x1xi1>
    %cst_419 = arith.constant 1.000000e+00 : f32
    %774 = vector.broadcast %cst_419 : f32 to vector<48x1xf32>
    %775 = arith.addf %141, %774 : vector<48x1xf32>
    %cst_420 = arith.constant 5.000000e+00 : f32
    %776 = vector.broadcast %cst_420 : f32 to vector<48x1xf32>
    %777 = arith.cmpf ole, %775, %776 : vector<48x1xf32>
    %778 = arith.andi %773, %777 : vector<48x1xi1>
    %cst_421 = arith.constant 0.000000e+00 : f32
    %779 = vector.shape_cast %778 : vector<48x1xi1> to vector<48x1xi1>
    %780 = vector.broadcast %779 : vector<48x1xi1> to vector<48x64xi1>
    %781 = vector.broadcast %cst_421 : f32 to vector<48x64xf32>
    %782 = arith.select %780, %759, %781 : vector<48x64xi1>, vector<48x64xf32>
    %783 = arith.mulf %782, %758 : vector<48x64xf32>
    %784 = arith.truncf %783 : vector<48x64xf32> to vector<48x64xbf16>
    %c2_422 = arith.constant 2 : index
    %c8_423 = arith.constant 8 : index
    %c0_424 = arith.constant 0 : index
    %c0_425 = arith.constant 0 : index
    %785 = vector.load %arg8[%c2_422, %c8_423, %c0_424, %c0_425] : memref<3x9x64x64xbf16, #tpu.memory_space<vmem>>, vector<1x1x64x64xbf16>
    %786 = vector.shape_cast %785 : vector<1x1x64x64xbf16> to vector<64x64xbf16>
    %cst_426 = arith.constant dense<0.000000e+00> : vector<48x64xf32>
    %787 = tpu.matmul %784, %786, %cst_426 {dimension_numbers = #tpu.dot_dimension_numbers<[1], [0], [0], [1], [0, 0, 1, 1], [], []>} : vector<48x64xbf16>, vector<64x64xbf16>, vector<48x64xf32> -> vector<48x64xf32>
    %788 = arith.addf %746, %787 : vector<48x64xf32>
    %c10 = arith.constant 10 : index
    %c0_427 = arith.constant 0 : index
    %789 = vector.load %arg9[%c10, %c0_427] : memref<11x64xf32, #tpu.memory_space<vmem>>, vector<1x64xf32>
    %790 = vector.broadcast %789 : vector<1x64xf32> to vector<48x64xf32>
    %791 = arith.addf %788, %790 : vector<48x64xf32>
    %792 = tpu.transpose %791, [1, 0] : vector<48x64xf32> -> vector<64x48xf32>
    %c0_428 = arith.constant 0 : index
    %c0_429 = arith.constant 0 : index
    %c0_430 = arith.constant 0 : index
    %793 = vector.load %arg10[%c0_428, %c0_429, %c0_430] : memref<1x64x48xf32, #tpu.memory_space<vmem>>, vector<1x64x48xf32>
    %794 = vector.shape_cast %793 : vector<1x64x48xf32> to vector<64x48xf32>
    %795 = vector.shape_cast %792 : vector<64x48xf32> to vector<1x64x48xf32>
    tpu.vector_store %arg10[%c0_428, %c0_429, %c0_430], %795 {strides = array<i32>} : memref<1x64x48xf32, #tpu.memory_space<vmem>>, vector<1x64x48xf32>,
    return
  }
  func.func @transform_0(%arg0: i32) -> (i32, i32, i32) {
    %c0_i32 = arith.constant 0 : i32
    %c0_i32_0 = arith.constant 0 : i32
    %c0_i32_1 = arith.constant 0 : i32
    return %arg0, %c0_i32, %c0_i32_0 : i32, i32, i32
  }
  func.func @transform_1(%arg0: i32) -> (i32, i32) {
    %c0_i32 = arith.constant 0 : i32
    %c0_i32_0 = arith.constant 0 : i32
    %c0_i32_1 = arith.constant 0 : i32
    return %c0_i32, %c0_i32_0 : i32, i32
  }
  func.func @transform_2(%arg0: i32) -> (i32, i32) {
    %c0_i32 = arith.constant 0 : i32
    %c0_i32_0 = arith.constant 0 : i32
    %c0_i32_1 = arith.constant 0 : i32
    return %c0_i32, %c0_i32_0 : i32, i32
  }
  func.func @transform_3(%arg0: i32) -> (i32, i32) {
    %c0_i32 = arith.constant 0 : i32
    %c0_i32_0 = arith.constant 0 : i32
    %c0_i32_1 = arith.constant 0 : i32
    return %c0_i32, %c0_i32_0 : i32, i32
  }
  func.func @transform_4(%arg0: i32) -> (i32, i32) {
    %c0_i32 = arith.constant 0 : i32
    %c0_i32_0 = arith.constant 0 : i32
    %c0_i32_1 = arith.constant 0 : i32
    return %c0_i32, %c0_i32_0 : i32, i32
  }
  func.func @transform_5(%arg0: i32) -> (i32, i32, i32) {
    %c0_i32 = arith.constant 0 : i32
    %c0_i32_0 = arith.constant 0 : i32
    %c0_i32_1 = arith.constant 0 : i32
    %c0_i32_2 = arith.constant 0 : i32
    return %c0_i32, %c0_i32_0, %c0_i32_1 : i32, i32, i32
  }
  func.func @transform_6(%arg0: i32) -> (i32, i32) {
    %c0_i32 = arith.constant 0 : i32
    %c0_i32_0 = arith.constant 0 : i32
    %c0_i32_1 = arith.constant 0 : i32
    return %c0_i32, %c0_i32_0 : i32, i32
  }
  func.func @transform_7(%arg0: i32) -> (i32, i32, i32, i32) {
    %c0_i32 = arith.constant 0 : i32
    %c0_i32_0 = arith.constant 0 : i32
    %c0_i32_1 = arith.constant 0 : i32
    %c0_i32_2 = arith.constant 0 : i32
    %c0_i32_3 = arith.constant 0 : i32
    return %c0_i32, %c0_i32_0, %c0_i32_1, %c0_i32_2 : i32, i32, i32, i32
  }
  func.func @transform_8(%arg0: i32) -> (i32, i32) {
    %c0_i32 = arith.constant 0 : i32
    %c0_i32_0 = arith.constant 0 : i32
    %c0_i32_1 = arith.constant 0 : i32
    return %c0_i32, %c0_i32_0 : i32, i32
  }
  func.func @transform_9(%arg0: i32) -> (i32, i32, i32) {
    %c0_i32 = arith.constant 0 : i32
    %c0_i32_0 = arith.constant 0 : i32
    %c0_i32_1 = arith.constant 0 : i32
    return %arg0, %c0_i32, %c0_i32_0 : i32, i32, i32
  }
}

</mosaic_0001>

<llo_original>
// kernel: tpu_custom_call.1
$region0: #{tpu_custom_call.1}
  #allocation0 [shape = 'u32[]', space=smem, size = 0x4, offset = 0x4, fixed_abs, tag = 'smem constant byte address 0x4 - core index']
  #allocation1 [shape = 'u32[144,128]{1,0:T(1,128)}', space=vmem, size = 0x12000, scoped, tag = 'internal scratch']
  #allocation2 [shape = 'f32[64,64]{1,0:T(8,128)}', space=vmem, size = 0x8000, scoped, tag = 'scratch operand']
  %s0 = inlined_call_operand.vmem [shape: f32[2,48,27], index: 0, kind: input, shape index: {}]
  %s1 = inlined_call_operand.vmem [shape: f32[2,27], index: 1, kind: input, shape index: {}]
  %s2 = inlined_call_operand.vmem [shape: bf16[27,192], index: 2, kind: input, shape index: {}]
  %s3 = inlined_call_operand.vmem [shape: f32[1,192], index: 3, kind: input, shape index: {}]
  %s4 = inlined_call_operand.vmem [shape: bf16[64,32], index: 4, kind: input, shape index: {}]
  %s5 = inlined_call_operand.vmem [shape: bf16[3,64,64], index: 5, kind: input, shape index: {}]
  %s6 = inlined_call_operand.vmem [shape: f32[5,64], index: 6, kind: input, shape index: {}]
  %s7 = inlined_call_operand.hbm [shape: bf16[3,9,64,64], index: 7, kind: input, shape index: {}]
  %s8 = inlined_call_operand.vmem [shape: f32[11,64], index: 8, kind: input, shape index: {}]
  %s9 = inlined_call_operand.vmem [shape: f32[2,64,48], index: 9, kind: output, shape index: {}]
  %s10 = sld [smem:[#allocation0]]
  $region73: #{tpu_custom_call.1} parent=0
    _
  %s12 = ssub.s32 1, %s10
  %s13 = scalar_select 0, %s12, %s10
  $region1: #{tpu_custom_call.1} parent=0
    #allocation3 [shape = 'u8[442368]{0}', space=vmem, size = 0x6c000, scoped, tag = 'input window, operand 7, single buffered']
    #allocation4 [shape = 's32[2]{0}', space=sflag, size = 0x8, scoped, tag = 'scoped memory for tpu_custom_call.1']
    %14 = vsyncpa [#allocation4], 0
    loop: start=0, step=1, limit=4
    $region2: #{tpu_custom_call.1} parent=1 // loop_pre_header
      _
    $region3: #{tpu_custom_call.1} parent=1 // loop_header
      %s16 = sphi 0, %s20
      %p17 = scmp.ge.s32.totalorder %s16, 4
      %s26 = sphi 0, %s28
      %s29 = sphi 0, %s26
      %s30 = sphi 0, %s29
      %s46 = sphi 0, %s30
      %s50 = sphi 0, %s50
      %s52 = sphi 0, %s50
      %s53 = sphi 0, %s52
      %s67 = sphi 0, %s53
      %s71 = sphi 0, %s71
      %s73 = sphi 0, %s71
      %s74 = sphi 0, %s73
      %s88 = sphi 0, %s74
      %s92 = sphi 0, %s92
      %s94 = sphi 0, %s92
      %s95 = sphi 0, %s94
      %s109 = sphi 0, %s95
      %s113 = sphi 0, %s113
      %s115 = sphi 0, %s113
      %s116 = sphi 0, %s115
      %s130 = sphi 0, %s116
      %s134 = sphi 0, %s134
      %s136 = sphi 0, %s134
      %s137 = sphi 0, %s136
      %s151 = sphi 0, %s137
      %s155 = sphi 0, %s155
      %s157 = sphi 0, %s155
      %s158 = sphi 0, %s157
      %s172 = sphi 0, %s158
      %s176 = sphi 0, %s176
      %s178 = sphi 0, %s176
      %s179 = sphi 0, %s178
      %s193 = sphi 0, %s179
      %s197 = sphi 0, %s197
      %s199 = sphi 0, %s197
      %s200 = sphi 0, %s199
      %s214 = sphi 0, %s200
      %s220 = sphi 0, %s222
      %s223 = sphi 0, %s220
      %s224 = sphi 0, %s223
      %s240 = sphi 0, %s224
    $region4: #{tpu_custom_call.1} parent=1 // loop_header_branch
      %19 = sbr.rel (%p17) target = $region8
    $region5: #{tpu_custom_call.1} parent=1 // loop_body
      %s21 = ssub.s32 %s16, 1
      %s22 = ssub.s32 %s16, 2
      %s23 = sadd.s32 %s16, 1
      %s24 = ssub.s32 %s16, %s23
      %p25 = scmp.eq.s32.totalorder %s24, 0
      %s27 = sadd.s32 %s26, 1
      %s28 = scalar_select %p25, %s26, %s27
      %p31 = pneg %p25
      %p32 = scmp.eq.s32.totalorder %s16, 1
      %p33 = por %p31, %p32
      %p34 = scmp.ne.s32.totalorder %s26, %s29
      %p35 = scmp.eq.s32.totalorder %s16, 0
      %p36 = por %p34, %p35
      %p37 = scmp.ne.s32.totalorder %s26, %s29
      %p38 = scmp.eq.s32.totalorder %s21, 1
      %p39 = por %p37, %p38
      %p40 = scmp.ne.s32.totalorder %s29, %s30
      %p41 = scmp.eq.s32.totalorder %s21, 0
      %p42 = por %p40, %p41
      %p43 = scmp.ne.s32.totalorder %s29, %s30
      %p44 = scmp.eq.s32.totalorder %s22, 1
      %p45 = por %p43, %p44
      %p47 = scmp.ne.s32.totalorder %s30, %s46
      %p48 = scmp.eq.s32.totalorder %s22, 0
      %p49 = por %p47, %p48
      %s51 = sadd.s32 %s50, 1
      %p54 = scmp.eq.s32.totalorder %s16, 1
      %p55 = scmp.ne.s32.totalorder %s50, %s52
      %p56 = scmp.eq.s32.totalorder %s16, 0
      %p57 = por %p55, %p56
      %p58 = scmp.ne.s32.totalorder %s50, %s52
      %p59 = scmp.eq.s32.totalorder %s21, 1
      %p60 = por %p58, %p59
      %p61 = scmp.ne.s32.totalorder %s52, %s53
      %p62 = scmp.eq.s32.totalorder %s21, 0
      %p63 = por %p61, %p62
      %p64 = scmp.ne.s32.totalorder %s52, %s53
      %p65 = scmp.eq.s32.totalorder %s22, 1
      %p66 = por %p64, %p65
      %p68 = scmp.ne.s32.totalorder %s53, %s67
      %p69 = scmp.eq.s32.totalorder %s22, 0
      %p70 = por %p68, %p69
      %s72 = sadd.s32 %s71, 1
      %p75 = scmp.eq.s32.totalorder %s16, 1
      %p76 = scmp.ne.s32.totalorder %s71, %s73
      %p77 = scmp.eq.s32.totalorder %s16, 0
      %p78 = por %p76, %p77
      %p79 = scmp.ne.s32.totalorder %s71, %s73
      %p80 = scmp.eq.s32.totalorder %s21, 1
      %p81 = por %p79, %p80
      %p82 = scmp.ne.s32.totalorder %s73, %s74
      %p83 = scmp.eq.s32.totalorder %s21, 0
      %p84 = por %p82, %p83
      %p85 = scmp.ne.s32.totalorder %s73, %s74
      %p86 = scmp.eq.s32.totalorder %s22, 1
      %p87 = por %p85, %p86
      %p89 = scmp.ne.s32.totalorder %s74, %s88
      %p90 = scmp.eq.s32.totalorder %s22, 0
      %p91 = por %p89, %p90
      %s93 = sadd.s32 %s92, 1
      %p96 = scmp.eq.s32.totalorder %s16, 1
      %p97 = scmp.ne.s32.totalorder %s92, %s94
      %p98 = scmp.eq.s32.totalorder %s16, 0
      %p99 = por %p97, %p98
      %p100 = scmp.ne.s32.totalorder %s92, %s94
      %p101 = scmp.eq.s32.totalorder %s21, 1
      %p102 = por %p100, %p101
      %p103 = scmp.ne.s32.totalorder %s94, %s95
      %p104 = scmp.eq.s32.totalorder %s21, 0
      %p105 = por %p103, %p104
      %p106 = scmp.ne.s32.totalorder %s94, %s95
      %p107 = scmp.eq.s32.totalorder %s22, 1
      %p108 = por %p106, %p107
      %p110 = scmp.ne.s32.totalorder %s95, %s109
      %p111 = scmp.eq.s32.totalorder %s22, 0
      %p112 = por %p110, %p111
      %s114 = sadd.s32 %s113, 1
      %p117 = scmp.eq.s32.totalorder %s16, 1
      %p118 = scmp.ne.s32.totalorder %s113, %s115
      %p119 = scmp.eq.s32.totalorder %s16, 0
      %p120 = por %p118, %p119
      %p121 = scmp.ne.s32.totalorder %s113, %s115
      %p122 = scmp.eq.s32.totalorder %s21, 1
      %p123 = por %p121, %p122
      %p124 = scmp.ne.s32.totalorder %s115, %s116
      %p125 = scmp.eq.s32.totalorder %s21, 0
      %p126 = por %p124, %p125
      %p127 = scmp.ne.s32.totalorder %s115, %s116
      %p128 = scmp.eq.s32.totalorder %s22, 1
      %p129 = por %p127, %p128
      %p131 = scmp.ne.s32.totalorder %s116, %s130
      %p132 = scmp.eq.s32.totalorder %s22, 0
      %p133 = por %p131, %p132
      %s135 = sadd.s32 %s134, 1
      %p138 = scmp.eq.s32.totalorder %s16, 1
      %p139 = scmp.ne.s32.totalorder %s134, %s136
      %p140 = scmp.eq.s32.totalorder %s16, 0
      %p141 = por %p139, %p140
      %p142 = scmp.ne.s32.totalorder %s134, %s136
      %p143 = scmp.eq.s32.totalorder %s21, 1
      %p144 = por %p142, %p143
      %p145 = scmp.ne.s32.totalorder %s136, %s137
      %p146 = scmp.eq.s32.totalorder %s21, 0
      %p147 = por %p145, %p146
      %p148 = scmp.ne.s32.totalorder %s136, %s137
      %p149 = scmp.eq.s32.totalorder %s22, 1
      %p150 = por %p148, %p149
      %p152 = scmp.ne.s32.totalorder %s137, %s151
      %p153 = scmp.eq.s32.totalorder %s22, 0
      %p154 = por %p152, %p153
      %s156 = sadd.s32 %s155, 1
      %p159 = scmp.eq.s32.totalorder %s16, 1
      %p160 = scmp.ne.s32.totalorder %s155, %s157
      %p161 = scmp.eq.s32.totalorder %s16, 0
      %p162 = por %p160, %p161
      %p163 = scmp.ne.s32.totalorder %s155, %s157
      %p164 = scmp.eq.s32.totalorder %s21, 1
      %p165 = por %p163, %p164
      %p166 = scmp.ne.s32.totalorder %s157, %s158
      %p167 = scmp.eq.s32.totalorder %s21, 0
      %p168 = por %p166, %p167
      %p169 = scmp.ne.s32.totalorder %s157, %s158
      %p170 = scmp.eq.s32.totalorder %s22, 1
      %p171 = por %p169, %p170
      %p173 = scmp.ne.s32.totalorder %s158, %s172
      %p174 = scmp.eq.s32.totalorder %s22, 0
      %p175 = por %p173, %p174
      %s177 = sadd.s32 %s176, 1
      %p180 = scmp.eq.s32.totalorder %s16, 1
      %p181 = scmp.ne.s32.totalorder %s176, %s178
      %p182 = scmp.eq.s32.totalorder %s16, 0
      %p183 = por %p181, %p182
      %p184 = scmp.ne.s32.totalorder %s176, %s178
      %p185 = scmp.eq.s32.totalorder %s21, 1
      %p186 = por %p184, %p185
      %p187 = scmp.ne.s32.totalorder %s178, %s179
      %p188 = scmp.eq.s32.totalorder %s21, 0
      %p189 = por %p187, %p188
      %p190 = scmp.ne.s32.totalorder %s178, %s179
      %p191 = scmp.eq.s32.totalorder %s22, 1
      %p192 = por %p190, %p191
      %p194 = scmp.ne.s32.totalorder %s179, %s193
      %p195 = scmp.eq.s32.totalorder %s22, 0
      %p196 = por %p194, %p195
      %s198 = sadd.s32 %s197, 1
      %p201 = scmp.eq.s32.totalorder %s16, 1
      %p202 = scmp.ne.s32.totalorder %s197, %s199
      %p203 = scmp.eq.s32.totalorder %s16, 0
      %p204 = por %p202, %p203
      %p205 = scmp.ne.s32.totalorder %s197, %s199
      %p206 = scmp.eq.s32.totalorder %s21, 1
      %p207 = por %p205, %p206
      %p208 = scmp.ne.s32.totalorder %s199, %s200
      %p209 = scmp.eq.s32.totalorder %s21, 0
      %p210 = por %p208, %p209
      %p211 = scmp.ne.s32.totalorder %s199, %s200
      %p212 = scmp.eq.s32.totalorder %s22, 1
      %p213 = por %p211, %p212
      %p215 = scmp.ne.s32.totalorder %s200, %s214
      %p216 = scmp.eq.s32.totalorder %s22, 0
      %p217 = por %p215, %p216
      %s218 = ssub.s32 %s16, %s23
      %p219 = scmp.eq.s32.totalorder %s218, 0
      %s221 = sadd.s32 %s220, 1
      %s222 = scalar_select %p219, %s220, %s221
      %p225 = pneg %p219
      %p226 = scmp.eq.s32.totalorder %s16, 1
      %p227 = por %p225, %p226
      %p228 = scmp.ne.s32.totalorder %s220, %s223
      %p229 = scmp.eq.s32.totalorder %s16, 0
      %p230 = por %p228, %p229
      %p231 = scmp.ne.s32.totalorder %s220, %s223
      %p232 = scmp.eq.s32.totalorder %s21, 1
      %p233 = por %p231, %p232
      %p234 = scmp.ne.s32.totalorder %s223, %s224
      %p235 = scmp.eq.s32.totalorder %s21, 0
      %p236 = por %p234, %p235
      %p237 = scmp.ne.s32.totalorder %s223, %s224
      %p238 = scmp.eq.s32.totalorder %s22, 1
      %p239 = por %p237, %p238
      %p241 = scmp.ne.s32.totalorder %s224, %s240
      %p242 = scmp.eq.s32.totalorder %s22, 0
      %p243 = por %p241, %p242
      %p244 = scmp.le.s32.totalorder 1, %s16
      %p245 = scmp.lt.s32.totalorder %s16, 3
      %p246 = pnand %p244, %p245
      %p247 = pneg %p246
      // Predicated region
      $region9: #{tpu_custom_call.1} parent=5 // pred_check
        _
      $region10: #{tpu_custom_call.1} parent=5 // pred_check_branch
        %249 = sbr.rel (%p246) target = $region12
      $region11: #{tpu_custom_call.1} parent=5 // pred_region
        %s250 = ssub.s32 %s16, 1
        // Predicated region
        $region13: #{tpu_custom_call.1} parent=11 // pred_check
          %p251 = pneg %p63
        $region14: #{tpu_custom_call.1} parent=11 // pred_check_branch
          %253 = sbr.rel (%p251) target = $region16
        $region15: #{tpu_custom_call.1} parent=11 // pred_region
          _
        $region16: #{tpu_custom_call.1} parent=11 // pred_fallthru
          _
        // Predicated region
        $region17: #{tpu_custom_call.1} parent=11 // pred_check
          %p254 = pneg %p84
        $region18: #{tpu_custom_call.1} parent=11 // pred_check_branch
          %256 = sbr.rel (%p254) target = $region20
        $region19: #{tpu_custom_call.1} parent=11 // pred_region
          _
        $region20: #{tpu_custom_call.1} parent=11 // pred_fallthru
          _
        // Predicated region
        $region21: #{tpu_custom_call.1} parent=11 // pred_check
          %p257 = pneg %p105
        $region22: #{tpu_custom_call.1} parent=11 // pred_check_branch
          %259 = sbr.rel (%p257) target = $region24
        $region23: #{tpu_custom_call.1} parent=11 // pred_region
          _
        $region24: #{tpu_custom_call.1} parent=11 // pred_fallthru
          _
        // Predicated region
        $region25: #{tpu_custom_call.1} parent=11 // pred_check
          %p260 = pneg %p126
        $region26: #{tpu_custom_call.1} parent=11 // pred_check_branch
          %262 = sbr.rel (%p260) target = $region28
        $region27: #{tpu_custom_call.1} parent=11 // pred_region
          _
        $region28: #{tpu_custom_call.1} parent=11 // pred_fallthru
          _
        // Predicated region
        $region29: #{tpu_custom_call.1} parent=11 // pred_check
          %p263 = pneg %p147
        $region30: #{tpu_custom_call.1} parent=11 // pred_check_branch
          %265 = sbr.rel (%p263) target = $region32
        $region31: #{tpu_custom_call.1} parent=11 // pred_region
          _
        $region32: #{tpu_custom_call.1} parent=11 // pred_fallthru
          _
        // Predicated region
        $region33: #{tpu_custom_call.1} parent=11 // pred_check
          %p266 = pneg %p168
        $region34: #{tpu_custom_call.1} parent=11 // pred_check_branch
          %268 = sbr.rel (%p266) target = $region36
        $region35: #{tpu_custom_call.1} parent=11 // pred_region
          _
        $region36: #{tpu_custom_call.1} parent=11 // pred_fallthru
          _
        // Predicated region
        $region37: #{tpu_custom_call.1} parent=11 // pred_check
          %p269 = pneg %p189
        $region38: #{tpu_custom_call.1} parent=11 // pred_check_branch
          %271 = sbr.rel (%p269) target = $region40
        $region39: #{tpu_custom_call.1} parent=11 // pred_region
          %s273 = ssub.s32 13824, 13824
          %274 = vsyncadd [#allocation4], %s273
          %s275 = sshll.u32 [#allocation3], 4
          %s276 = int_to_ptr.vmem [resolvable:$true] %s275
          %281 = dma.hbm_to_vmem [thread:$0]  %s7, 13824, %s276, [#allocation4], 64, 64, 4
        $region40: #{tpu_custom_call.1} parent=11 // pred_fallthru
          _
        // Predicated region
        $region41: #{tpu_custom_call.1} parent=11 // pred_check
          %p282 = pneg %p210
        $region42: #{tpu_custom_call.1} parent=11 // pred_check_branch
          %284 = sbr.rel (%p282) target = $region44
        $region43: #{tpu_custom_call.1} parent=11 // pred_region
          _
        $region44: #{tpu_custom_call.1} parent=11 // pred_fallthru
          _
      $region12: #{tpu_custom_call.1} parent=5 // pred_fallthru
        _
      %p285 = scmp.lt.s32.totalorder %s16, 2
      // Predicated region
      $region45: #{tpu_custom_call.1} parent=5 // pred_check
        %p286 = pneg %p285
      $region46: #{tpu_custom_call.1} parent=5 // pred_check_branch
        %288 = sbr.rel (%p286) target = $region48
      $region47: #{tpu_custom_call.1} parent=5 // pred_region
        // Predicated region
        $region49: #{tpu_custom_call.1} parent=47 // pred_check
          %p289 = pneg %p36
        $region50: #{tpu_custom_call.1} parent=47 // pred_check_branch
          %291 = sbr.rel (%p289) target = $region52
        $region51: #{tpu_custom_call.1} parent=47 // pred_region
          %p292 = scmp.lt.s32.totalorder %s16, 1
          %s293 = scalar_select %p292, %s16, 1
          %s294 = smul.addr %s293, 6
          %s295 = smul.addr %s294, 8
          %s296 = scalar_lea.vmem %s0, %s295
        $region52: #{tpu_custom_call.1} parent=47 // pred_fallthru
          _
      $region48: #{tpu_custom_call.1} parent=5 // pred_fallthru
        _
      %p297 = scmp.le.s32.totalorder 1, %s16
      %p298 = scmp.lt.s32.totalorder %s16, 3
      %p299 = pnand %p297, %p298
      %p300 = pneg %p299
      // Predicated region
      $region53: #{tpu_custom_call.1} parent=5 // pred_check
        _
      $region54: #{tpu_custom_call.1} parent=5 // pred_check_branch
        %302 = sbr.rel (%p299) target = $region56
      $region55: #{tpu_custom_call.1} parent=5 // pred_region
        %s303 = ssub.s32 %s16, 1
        // Predicated region
        $region57: #{tpu_custom_call.1} parent=55 // pred_check
          %p304 = pneg %p189
        $region58: #{tpu_custom_call.1} parent=55 // pred_check_branch
          %306 = sbr.rel (%p304) target = $region60
        $region59: #{tpu_custom_call.1} parent=55 // pred_region
          %307 = dma.done [#allocation4], 13824
        $region60: #{tpu_custom_call.1} parent=55 // pred_fallthru
          _
        %p308 = scmp.lt.s32.totalorder %s21, 1
        %s309 = scalar_select %p308, %s21, 1
        %s310 = smul.addr %s309, 6
        %s311 = smul.addr %s310, 8
        %s312 = scalar_lea.vmem %s0, %s311
        %p313 = pneg %p42
        %p314 = pneg %p39
        %p315 = pneg %p63
        %p316 = pneg %p60
        %p317 = pneg %p84
        %p318 = pneg %p81
        %p319 = pneg %p105
        %p320 = pneg %p102
        %p321 = pneg %p126
        %p322 = pneg %p123
        %p323 = pneg %p147
        %p324 = pneg %p144
        %p325 = pneg %p168
        %p326 = pneg %p165
        %p327 = pneg %p189
        %p328 = pneg %p186
        %p329 = pneg %p210
        %p330 = pneg %p207
        %p331 = pneg %p236
        %p332 = pneg %p233
        %p333 = scmp.lt.s32.totalorder %s21, 1
        %s334 = scalar_select %p333, %s21, 1
        %s335 = smul.addr %s334, 8
        %s336 = smul.addr %s335, 8
        %s337 = scalar_lea.vmem %s9, %s336
        %p338 = scmp.lt.s32.totalorder %s21, 1
        %s339 = scalar_select %p338, %s21, 1
        %s340 = smul.addr %s339, 6
        %s341 = smul.addr %s340, 8
        %s342 = scalar_lea.vmem %s0, %s341
        %p343 = scmp.lt.s32.totalorder %s21, 1
        %s344 = scalar_select %p343, %s21, 1
        %s345 = smul.addr %s344, 8
        %s346 = smul.addr %s345, 8
        %s347 = scalar_lea.vmem %s9, %s346
        %v349 = vld [vmem:[%s342] sm:$0xff]
        %v350 = vld [vmem:[%s342 + $0x8] sm:$0xff]
        %v351 = vld [vmem:[%s342 + $0x10] sm:$0xff]
        %v352 = vld [vmem:[%s342 + $0x18] sm:$0xff]
        %v353 = vld [vmem:[%s342 + $0x20] sm:$0xff]
        %v354 = vld [vmem:[%s342 + $0x28] sm:$0xff]
        %vm355 = vcmask 220160
        %v356 = vsel %vm355, %v349, 0.0
        %357 = vadd.xlane.f32.xlu0 %v356
        %v358 = vpop.xlane.xlu0 %357
        %v359 = vsel %vm355, %v350, 0.0
        %360 = vadd.xlane.f32.xlu0 %v359
        %v361 = vpop.xlane.xlu0 %360
        %v362 = vsel %vm355, %v351, 0.0
        %363 = vadd.xlane.f32.xlu0 %v362
        %v364 = vpop.xlane.xlu0 %363
        %v365 = vsel %vm355, %v352, 0.0
        %366 = vadd.xlane.f32.xlu0 %v365
        %v367 = vpop.xlane.xlu0 %366
        %v368 = vsel %vm355, %v353, 0.0
        %369 = vadd.xlane.f32.xlu0 %v368
        %v370 = vpop.xlane.xlu0 %369
        %v371 = vsel %vm355, %v354, 0.0
        %372 = vadd.xlane.f32.xlu0 %v371
        %v373 = vpop.xlane.xlu0 %372
        %v374 = vrcp.pop 27.0
        %v375 = vmul.f32 %v358, %v374
        %v376 = vmul.f32 %v361, %v374
        %v377 = vmul.f32 %v364, %v374
        %v378 = vmul.f32 %v367, %v374
        %v379 = vmul.f32 %v370, %v374
        %v380 = vmul.f32 %v373, %v374
        %v381 = vsub.f32 %v349, %v375
        %v382 = vsub.f32 %v350, %v376
        %v383 = vsub.f32 %v351, %v377
        %v384 = vsub.f32 %v352, %v378
        %v385 = vsub.f32 %v353, %v379
        %v386 = vsub.f32 %v354, %v380
        %v387 = vmul.f32 %v381, %v381
        %v388 = vmul.f32 %v382, %v382
        %v389 = vmul.f32 %v383, %v383
        %v390 = vmul.f32 %v384, %v384
        %v391 = vmul.f32 %v385, %v385
        %v392 = vmul.f32 %v386, %v386
        %v393 = vsel %vm355, %v387, 0.0
        %394 = vadd.xlane.f32.xlu0 %v393
        %v395 = vpop.xlane.xlu0 %394
        %v396 = vsel %vm355, %v388, 0.0
        %397 = vadd.xlane.f32.xlu0 %v396
        %v398 = vpop.xlane.xlu0 %397
        %v399 = vsel %vm355, %v389, 0.0
        %400 = vadd.xlane.f32.xlu0 %v399
        %v401 = vpop.xlane.xlu0 %400
        %v402 = vsel %vm355, %v390, 0.0
        %403 = vadd.xlane.f32.xlu0 %v402
        %v404 = vpop.xlane.xlu0 %403
        %v405 = vsel %vm355, %v391, 0.0
        %406 = vadd.xlane.f32.xlu0 %v405
        %v407 = vpop.xlane.xlu0 %406
        %v408 = vsel %vm355, %v392, 0.0
        %409 = vadd.xlane.f32.xlu0 %v408
        %v410 = vpop.xlane.xlu0 %409
        %v411 = vmul.f32 %v395, %v374
        %v412 = vmul.f32 %v398, %v374
        %v413 = vmul.f32 %v401, %v374
        %v414 = vmul.f32 %v404, %v374
        %v415 = vmul.f32 %v407, %v374
        %v416 = vmul.f32 %v410, %v374
        %v417 = vadd.f32 %v411, 1e-05
        %v418 = vadd.f32 %v412, 1e-05
        %v419 = vadd.f32 %v413, 1e-05
        %v420 = vadd.f32 %v414, 1e-05
        %v421 = vadd.f32 %v415, 1e-05
        %v422 = vadd.f32 %v416, 1e-05
        %v423 = vrsqrt.pop %v417
        %v424 = vrsqrt.pop %v418
        %v425 = vrsqrt.pop %v419
        %v426 = vrsqrt.pop %v420
        %v427 = vrsqrt.pop %v421
        %v428 = vrsqrt.pop %v422
        %v429 = vmul.f32 %v381, %v423
        %v430 = vmul.f32 %v382, %v424
        %v431 = vmul.f32 %v383, %v425
        %v432 = vmul.f32 %v384, %v426
        %v433 = vmul.f32 %v385, %v427
        %v434 = vmul.f32 %v386, %v428
        %v435 = vld [vmem:[%s1] sm:$0x1]
        %v436 = vlaneseq
        %v437 = vshrl.u32 %v436, 7
        %v438 = vsub.s32 0, %v437
        %v439 = vrot.slane %v435, %v438
        %v440 = vmul.f32 %v429, %v439
        %v441 = vmul.f32 %v430, %v439
        %v442 = vmul.f32 %v431, %v439
        %v443 = vmul.f32 %v432, %v439
        %v444 = vmul.f32 %v433, %v439
        %v445 = vmul.f32 %v434, %v439
        %v446 = vld [vmem:[%s1 + $0x1] sm:$0x1]
        %v447 = vlaneseq
        %v448 = vshrl.u32 %v447, 7
        %v449 = vsub.s32 0, %v448
        %v450 = vrot.slane %v446, %v449
        %v451 = vadd.f32 %v440, %v450
        %v452 = vadd.f32 %v441, %v450
        %v453 = vadd.f32 %v442, %v450
        %v454 = vadd.f32 %v443, %v450
        %v455 = vadd.f32 %v444, %v450
        %v456 = vadd.f32 %v445, %v450
        %v457 = vpack.c.bf16 %v452, %v451
        %v458 = vpack.c.bf16 %v454, %v453
        %v459 = vpack.c.bf16 %v456, %v455
        %v460 = vld [vmem:[%s2] sm:$0xff]
        %v461 = vld [vmem:[%s2 + $0x8] sm:$0xff]
        %v462 = vld [vmem:[%s2 + $0x10] sm:$0xff]
        %v463 = vld [vmem:[%s2 + $0x18] sm:$0x33]
        %v464 = vld [vmem:[%s3] sm:$0x3]
        %v466 = vlaneseq
        %v467 = vshrl.u32 %v466, 7
        %v468 = vsub.s32 0, %v467
        %v469 = vrot.slane %v464, %v468
        %v470 = vlaneseq
        %v471 = vshrl.u32 %v470, 7
        %v472 = vsub.s32 1, %v471
        %v473 = vrot.slane %v464, %v472
        %v480 = vunpack.c.l.b16 %v460
        %v481 = vunpack.c.h.b16 %v460
        %v482 = vunpack.c.l.b16 %v461
        %v483 = vunpack.c.h.b16 %v461
        %v484 = vunpack.c.l.b16 %v462
        %v485 = vunpack.c.h.b16 %v462
        %v486 = vunpack.c.l.b16 %v463
        %v487 = vunpack.c.h.b16 %v463
        %v488 = vpack.c.b16 %v482, %v480
        %v489 = vpack.c.b16 %v483, %v481
        %v490 = vpack.c.b16 %v486, %v484
        %v491 = vpack.c.b16 %v487, %v485
        %v495 = vsel %vm355, %v457, 0
        %v498 = vsel %vm355, %v458, 0
        %v501 = vsel %vm355, %v459, 0
        %vm503 = vcmask 1044480
        %vm504 = vcmask 1045504
        %v505 = vsel %vm503, 4294967295, 65535
        %v506 = vsel %vm504, %v505, 0
        %v508 = vand.u32 %v490, %v506
        %v511 = vand.u32 %v491, %v506
        %513 = vmatprep.subr.bf16.mxu0 %v489
        %514 = vmatpush1.bf16.msra.mxu0 %v488
        %515 = vmatprep.subr.bf16.mxu0 %v511
        %516 = vmatpush1.bf16.msra.mxu0 %v508
        %517 = vmatprep.subr.bf16.mxu0 0
        %518 = vmatpush1.bf16.msra.mxu0 0
        %519 = vmatprep.subr.bf16.mxu0 0
        %520 = vmatpush1.bf16.msra.mxu0 0
        %521 = vmatprep.subr.bf16.mxu0 0
        %522 = vmatpush1.bf16.msra.mxu0 0
        %523 = vmatprep.subr.bf16.mxu0 0
        %524 = vmatpush1.bf16.msra.mxu0 0
        %525 = vmatprep.subr.bf16.mxu0 0
        %526 = vmatpush1.bf16.msra.mxu0 0
        %527 = vmatprep.subr.bf16.mxu0 0
        %528 = vmatpush1.bf16.msra.mxu0 0
        %529 = vmatprep.subr.bf16.mxu0 0
        %530 = vmatpush1.bf16.msra.mxu0 0
        %531 = vmatprep.subr.bf16.mxu0 0
        %532 = vmatpush1.bf16.msra.mxu0 0
        %533 = vmatprep.subr.bf16.mxu0 0
        %534 = vmatpush1.bf16.msra.mxu0 0
        %535 = vmatprep.subr.bf16.mxu0 0
        %536 = vmatpush1.bf16.msra.mxu0 0
        %537 = vmatprep.subr.bf16.mxu0 0
        %538 = vmatpush1.bf16.msra.mxu0 0
        %539 = vmatprep.subr.bf16.mxu0 0
        %540 = vmatpush1.bf16.msra.mxu0 0
        %541 = vmatprep.subr.bf16.mxu0 0
        %542 = vmatpush1.bf16.msra.mxu0 0
        %543 = vmatprep.subr.bf16.mxu0 0
        %544 = vmatpush1.bf16.msra.mxu0 0
        %545 = vmatprep.mubr.bf16.mxu0 0
        %546 = vmatmul.mubr.bf16.gmra.mrb[0].mxu0 %v495
        %v547 = vpop.f32.mrb[0].mxu0
        %v548 = vadd.f32 %v469, %v547
        %v549 = vpop.f32.mrb[0].mxu0
        %v550 = vadd.f32 %v473, %v549
        %v551 = vpop.f32.mrb[0].mxu0
        %v552 = vadd.f32 %v469, %v551
        %v553 = vpop.f32.mrb[0].mxu0
        %v554 = vadd.f32 %v473, %v553
        %555 = vmatprep.mubr.bf16.mxu0 0
        %556 = vmatmul.mubr.bf16.gmra.mrb[0].mxu0 %v498
        %v557 = vpop.f32.mrb[0].mxu0
        %v558 = vadd.f32 %v469, %v557
        %v559 = vpop.f32.mrb[0].mxu0
        %v560 = vadd.f32 %v473, %v559
        %v561 = vpop.f32.mrb[0].mxu0
        %v562 = vadd.f32 %v469, %v561
        %v563 = vpop.f32.mrb[0].mxu0
        %v564 = vadd.f32 %v473, %v563
        %565 = vmatprep.mubr.bf16.mxu0 0
        %566 = vmatmul.mubr.bf16.gmra.mrb[0].mxu0 %v501
        %v567 = vpop.f32.mrb[0].mxu0
        %v568 = vadd.f32 %v469, %v567
        %v569 = vpop.f32.mrb[0].mxu0
        %v570 = vadd.f32 %v473, %v569
        %v571 = vpop.f32.mrb[0].mxu0
        %v572 = vadd.f32 %v469, %v571
        %v573 = vpop.f32.mrb[0].mxu0
        %v574 = vadd.f32 %v473, %v573
        %575 = vdwg.mxu0
        %582 = vrot.lane.b32.xlu0 %v548, 64
        %v583 = vpop.permute.xlu0 %582
        %584 = vrot.lane.b32.xlu0 %v552, 64
        %v585 = vpop.permute.xlu0 %584
        %586 = vrot.lane.b32.xlu0 %v558, 64
        %v587 = vpop.permute.xlu0 %586
        %588 = vrot.lane.b32.xlu0 %v562, 64
        %v589 = vpop.permute.xlu0 %588
        %590 = vrot.lane.b32.xlu0 %v568, 64
        %v591 = vpop.permute.xlu0 %590
        %592 = vrot.lane.b32.xlu0 %v572, 64
        %v593 = vpop.permute.xlu0 %592
        %v600 = vmul.f32 %v548, %v548
        %v601 = vmul.f32 %v552, %v552
        %v602 = vmul.f32 %v558, %v558
        %v603 = vmul.f32 %v562, %v562
        %v604 = vmul.f32 %v568, %v568
        %v605 = vmul.f32 %v572, %v572
        %v606 = vmul.f32 %v583, %v583
        %v607 = vmul.f32 %v585, %v585
        %v608 = vmul.f32 %v587, %v587
        %v609 = vmul.f32 %v589, %v589
        %v610 = vmul.f32 %v591, %v591
        %v611 = vmul.f32 %v593, %v593
        %vm612 = vcmask 523264
        %v613 = vsel %vm612, %v600, 0.0
        %614 = vadd.xlane.f32.xlu0 %v613
        %v615 = vpop.xlane.xlu0 %614
        %v616 = vsel %vm612, %v601, 0.0
        %617 = vadd.xlane.f32.xlu0 %v616
        %v618 = vpop.xlane.xlu0 %617
        %v619 = vsel %vm612, %v602, 0.0
        %620 = vadd.xlane.f32.xlu0 %v619
        %v621 = vpop.xlane.xlu0 %620
        %v622 = vsel %vm612, %v603, 0.0
        %623 = vadd.xlane.f32.xlu0 %v622
        %v624 = vpop.xlane.xlu0 %623
        %v625 = vsel %vm612, %v604, 0.0
        %626 = vadd.xlane.f32.xlu0 %v625
        %v627 = vpop.xlane.xlu0 %626
        %v628 = vsel %vm612, %v605, 0.0
        %629 = vadd.xlane.f32.xlu0 %v628
        %v630 = vpop.xlane.xlu0 %629
        %v631 = vsel %vm612, %v606, 0.0
        %632 = vadd.xlane.f32.xlu0 %v631
        %v633 = vpop.xlane.xlu0 %632
        %v634 = vsel %vm612, %v607, 0.0
        %635 = vadd.xlane.f32.xlu0 %v634
        %v636 = vpop.xlane.xlu0 %635
        %v637 = vsel %vm612, %v608, 0.0
        %638 = vadd.xlane.f32.xlu0 %v637
        %v639 = vpop.xlane.xlu0 %638
        %v640 = vsel %vm612, %v609, 0.0
        %641 = vadd.xlane.f32.xlu0 %v640
        %v642 = vpop.xlane.xlu0 %641
        %v643 = vsel %vm612, %v610, 0.0
        %644 = vadd.xlane.f32.xlu0 %v643
        %v645 = vpop.xlane.xlu0 %644
        %v646 = vsel %vm612, %v611, 0.0
        %647 = vadd.xlane.f32.xlu0 %v646
        %v648 = vpop.xlane.xlu0 %647
        %v649 = vmul.f32 %v615, 0.5
        %v650 = vmul.f32 %v618, 0.5
        %v651 = vmul.f32 %v621, 0.5
        %v652 = vmul.f32 %v624, 0.5
        %v653 = vmul.f32 %v627, 0.5
        %v654 = vmul.f32 %v630, 0.5
        %v655 = vmul.f32 %v633, 0.5
        %v656 = vmul.f32 %v636, 0.5
        %v657 = vmul.f32 %v639, 0.5
        %v658 = vmul.f32 %v642, 0.5
        %v659 = vmul.f32 %v645, 0.5
        %v660 = vmul.f32 %v648, 0.5
        %v661 = vpack.c.bf16 %v552, %v548
        %v662 = vpack.c.bf16 %v562, %v558
        %v663 = vpack.c.bf16 %v572, %v568
        %v664 = vpack.c.bf16 %v585, %v583
        %v665 = vpack.c.bf16 %v589, %v587
        %v666 = vpack.c.bf16 %v593, %v591
        %v667 = vld [vmem:[%s4] sm:$0xf]
        %v668 = vld [vmem:[%s4 + $0x4] sm:$0xf]
        %v669 = vld [vmem:[%s4 + $0x8] sm:$0xf]
        %v670 = vld [vmem:[%s4 + $0xc] sm:$0xf]
        %v671 = vld [vmem:[%s4 + $0x10] sm:$0xf]
        %v672 = vld [vmem:[%s4 + $0x14] sm:$0xf]
        %v673 = vld [vmem:[%s4 + $0x18] sm:$0xf]
        %v674 = vld [vmem:[%s4 + $0x1c] sm:$0xf]
        %v683 = vunpack.c.l.b16 %v667
        %v684 = vunpack.c.l.b16 %v668
        %v685 = vunpack.c.l.b16 %v669
        %v686 = vunpack.c.l.b16 %v670
        %v687 = vunpack.c.l.b16 %v671
        %v688 = vunpack.c.l.b16 %v672
        %v689 = vunpack.c.l.b16 %v673
        %v690 = vunpack.c.l.b16 %v674
        %v691 = vpack.c.b16 %v684, %v683
        %v692 = vpack.c.b16 %v686, %v685
        %v693 = vpack.c.b16 %v688, %v687
        %v694 = vpack.c.b16 %v690, %v689
        %v700 = vsel %vm612, %v661, 0
        %v703 = vsel %vm612, %v662, 0
        %v706 = vsel %vm612, %v663, 0
        %v709 = vsel %vm612, %v664, 0
        %v712 = vsel %vm612, %v665, 0
        %v715 = vsel %vm612, %v666, 0
        %717 = vmatprep.subr.bf16.mxu0 0
        %718 = vmatpush1.bf16.msra.mxu0 %v691
        %719 = vmatprep.subr.bf16.mxu0 0
        %720 = vmatpush1.bf16.msra.mxu0 %v692
        %721 = vmatprep.subr.bf16.mxu0 0
        %722 = vmatpush1.bf16.msra.mxu0 %v693
        %723 = vmatprep.subr.bf16.mxu0 0
        %724 = vmatpush1.bf16.msra.mxu0 %v694
        %725 = vmatprep.subr.bf16.mxu0 0
        %726 = vmatpush1.bf16.msra.mxu0 0
        %727 = vmatprep.subr.bf16.mxu0 0
        %728 = vmatpush1.bf16.msra.mxu0 0
        %729 = vmatprep.subr.bf16.mxu0 0
        %730 = vmatpush1.bf16.msra.mxu0 0
        %731 = vmatprep.subr.bf16.mxu0 0
        %732 = vmatpush1.bf16.msra.mxu0 0
        %733 = vmatprep.subr.bf16.mxu0 0
        %734 = vmatpush1.bf16.msra.mxu0 0
        %735 = vmatprep.subr.bf16.mxu0 0
        %736 = vmatpush1.bf16.msra.mxu0 0
        %737 = vmatprep.subr.bf16.mxu0 0
        %738 = vmatpush1.bf16.msra.mxu0 0
        %739 = vmatprep.subr.bf16.mxu0 0
        %740 = vmatpush1.bf16.msra.mxu0 0
        %741 = vmatprep.subr.bf16.mxu0 0
        %742 = vmatpush1.bf16.msra.mxu0 0
        %743 = vmatprep.subr.bf16.mxu0 0
        %744 = vmatpush1.bf16.msra.mxu0 0
        %745 = vmatprep.subr.bf16.mxu0 0
        %746 = vmatpush1.bf16.msra.mxu0 0
        %747 = vmatprep.subr.bf16.mxu0 0
        %748 = vmatpush1.bf16.msra.mxu0 0
        %749 = vmatprep.mubr.bf16.mxu0 0
        %750 = vmatmul.mubr.bf16.gmra.mrb[0].mxu0 %v700
        %v751 = vpop.f32.mrb[0].mxu0
        %v752 = vadd.f32 0.0, %v751
        %v753 = vpop.f32.mrb[0].mxu0
        %v754 = vpop.f32.mrb[0].mxu0
        %v755 = vadd.f32 0.0, %v754
        %v756 = vpop.f32.mrb[0].mxu0
        %757 = vmatprep.mubr.bf16.mxu0 0
        %758 = vmatmul.mubr.bf16.gmra.mrb[0].mxu0 %v703
        %v759 = vpop.f32.mrb[0].mxu0
        %v760 = vadd.f32 0.0, %v759
        %v761 = vpop.f32.mrb[0].mxu0
        %v762 = vpop.f32.mrb[0].mxu0
        %v763 = vadd.f32 0.0, %v762
        %v764 = vpop.f32.mrb[0].mxu0
        %765 = vmatprep.mubr.bf16.mxu0 0
        %766 = vmatmul.mubr.bf16.gmra.mrb[0].mxu0 %v706
        %v767 = vpop.f32.mrb[0].mxu0
        %v768 = vadd.f32 0.0, %v767
        %v769 = vpop.f32.mrb[0].mxu0
        %v770 = vpop.f32.mrb[0].mxu0
        %v771 = vadd.f32 0.0, %v770
        %v772 = vpop.f32.mrb[0].mxu0
        %773 = vmatprep.mubr.bf16.mxu0 0
        %774 = vmatmul.mubr.bf16.gmra.mrb[0].mxu0 %v709
        %v775 = vpop.f32.mrb[0].mxu0
        %v776 = vadd.f32 0.0, %v775
        %v777 = vpop.f32.mrb[0].mxu0
        %v778 = vpop.f32.mrb[0].mxu0
        %v779 = vadd.f32 0.0, %v778
        %v780 = vpop.f32.mrb[0].mxu0
        %781 = vmatprep.mubr.bf16.mxu0 0
        %782 = vmatmul.mubr.bf16.gmra.mrb[0].mxu0 %v712
        %v783 = vpop.f32.mrb[0].mxu0
        %v784 = vadd.f32 0.0, %v783
        %v785 = vpop.f32.mrb[0].mxu0
        %v786 = vpop.f32.mrb[0].mxu0
        %v787 = vadd.f32 0.0, %v786
        %v788 = vpop.f32.mrb[0].mxu0
        %789 = vmatprep.mubr.bf16.mxu0 0
        %790 = vmatmul.mubr.bf16.gmra.mrb[0].mxu0 %v715
        %v791 = vpop.f32.mrb[0].mxu0
        %v792 = vadd.f32 0.0, %v791
        %v793 = vpop.f32.mrb[0].mxu0
        %v794 = vpop.f32.mrb[0].mxu0
        %v795 = vadd.f32 0.0, %v794
        %v796 = vpop.f32.mrb[0].mxu0
        %797 = vdwg.mxu0
        %v798 = vsub.f32 %v752, %v649
        %v799 = vsub.f32 %v755, %v650
        %v800 = vsub.f32 %v760, %v651
        %v801 = vsub.f32 %v763, %v652
        %v802 = vsub.f32 %v768, %v653
        %v803 = vsub.f32 %v771, %v654
        %v804 = vsub.f32 %v776, %v655
        %v805 = vsub.f32 %v779, %v656
        %v806 = vsub.f32 %v784, %v657
        %v807 = vsub.f32 %v787, %v658
        %v808 = vsub.f32 %v792, %v659
        %v809 = vsub.f32 %v795, %v660
        %v810 = vmul.f32 %v798, 1.442695
        %v811 = vpow.pop %v810
        %v812 = vmul.f32 %v799, 1.442695
        %v813 = vpow.pop %v812
        %v814 = vmul.f32 %v800, 1.442695
        %v815 = vpow.pop %v814
        %v816 = vmul.f32 %v801, 1.442695
        %v817 = vpow.pop %v816
        %v818 = vmul.f32 %v802, 1.442695
        %v819 = vpow.pop %v818
        %v820 = vmul.f32 %v803, 1.442695
        %v821 = vpow.pop %v820
        %v822 = vmul.f32 %v804, 1.442695
        %v823 = vpow.pop %v822
        %v824 = vmul.f32 %v805, 1.442695
        %v825 = vpow.pop %v824
        %v826 = vmul.f32 %v806, 1.442695
        %v827 = vpow.pop %v826
        %v828 = vmul.f32 %v807, 1.442695
        %v829 = vpow.pop %v828
        %v830 = vmul.f32 %v808, 1.442695
        %v831 = vpow.pop %v830
        %v832 = vmul.f32 %v809, 1.442695
        %v833 = vpow.pop %v832
        %v834 = vmul.f32 %v811, 0.17677669
        %v835 = vmul.f32 %v813, 0.17677669
        %v836 = vmul.f32 %v815, 0.17677669
        %v837 = vmul.f32 %v817, 0.17677669
        %v838 = vmul.f32 %v819, 0.17677669
        %v839 = vmul.f32 %v821, 0.17677669
        %v840 = vmul.f32 %v823, 0.17677669
        %v841 = vmul.f32 %v825, 0.17677669
        %v842 = vmul.f32 %v827, 0.17677669
        %v843 = vmul.f32 %v829, 0.17677669
        %v844 = vmul.f32 %v831, 0.17677669
        %v845 = vmul.f32 %v833, 0.17677669
        %vm846 = vcmask 261120
        %v847 = vsel %vm846, %v834, 0.0
        %v848 = vsel %vm846, %v835, 0.0
        %v849 = vadd.f32 %v847, %v848
        %v850 = vsel %vm846, %v836, 0.0
        %v851 = vadd.f32 %v849, %v850
        %v852 = vsel %vm846, %v837, 0.0
        %v853 = vadd.f32 %v851, %v852
        %v854 = vsel %vm846, %v838, 0.0
        %v855 = vadd.f32 %v853, %v854
        %v856 = vsel %vm846, %v839, 0.0
        %v857 = vadd.f32 %v855, %v856
        %v858 = vrot.slane %v857, 4
        %v859 = vadd.f32 %v857, %v858
        %v860 = vrot.slane %v859, 2
        %v861 = vadd.f32 %v859, %v860
        %v862 = vrot.slane %v861, 1
        %v863 = vadd.f32 %v861, %v862
        %v864 = vmul.f32 %v840, %v863
        %v865 = vmul.f32 %v841, %v863
        %v866 = vmul.f32 %v842, %v863
        %v867 = vmul.f32 %v843, %v863
        %v868 = vmul.f32 %v844, %v863
        %v869 = vmul.f32 %v845, %v863
        %v870 = vsel %vm846, %v864, 0.0
        %871 = vadd.xlane.f32.xlu0 %v870
        %v872 = vpop.xlane.xlu0 %871
        %v873 = vsel %vm846, %v865, 0.0
        %874 = vadd.xlane.f32.xlu0 %v873
        %v875 = vpop.xlane.xlu0 %874
        %v876 = vsel %vm846, %v866, 0.0
        %877 = vadd.xlane.f32.xlu0 %v876
        %v878 = vpop.xlane.xlu0 %877
        %v879 = vsel %vm846, %v867, 0.0
        %880 = vadd.xlane.f32.xlu0 %v879
        %v881 = vpop.xlane.xlu0 %880
        %v882 = vsel %vm846, %v868, 0.0
        %883 = vadd.xlane.f32.xlu0 %v882
        %v884 = vpop.xlane.xlu0 %883
        %v885 = vsel %vm846, %v869, 0.0
        %886 = vadd.xlane.f32.xlu0 %v885
        %v887 = vpop.xlane.xlu0 %886
        %888 = vxpose.xlu0.b32.start [1/16] %v834, 128
        %889 = vxpose.xlu0.b32.cont [2/16] %v835, 128
        %890 = vxpose.xlu0.b32.cont [3/16] %v836, 128
        %891 = vxpose.xlu0.b32.cont [4/16] %v837, 128
        %892 = vxpose.xlu0.b32.cont [5/16] %v838, 128
        %893 = vxpose.xlu0.b32.cont [6/16] %v839, 128
        %894 = vxpose.xlu0.b32.cont [7/16] 0.0, 128
        %895 = vxpose.xlu0.b32.cont [8/16] 0.0, 128
        %896 = vxpose.xlu0.b32.cont [9/16] 0.0, 128
        %897 = vxpose.xlu0.b32.cont [10/16] 0.0, 128
        %898 = vxpose.xlu0.b32.cont [11/16] 0.0, 128
        %899 = vxpose.xlu0.b32.cont [12/16] 0.0, 128
        %900 = vxpose.xlu0.b32.cont [13/16] 0.0, 128
        %901 = vxpose.xlu0.b32.cont [14/16] 0.0, 128
        %902 = vxpose.xlu0.b32.cont [15/16] 0.0, 128
        %903 = vxpose.xlu0.b32.end [16/16] 0.0, 128
        %v904 = vpop.trf.xlu0
        %v905 = vpop.trf.xlu0
        %v906 = vpop.trf.xlu0
        %v907 = vpop.trf.xlu0
        %v908 = vpop.trf.xlu0
        %v909 = vpop.trf.xlu0
        %v910 = vpop.trf.xlu0
        %v911 = vpop.trf.xlu0
        %v912 = vpop.trf.xlu0
        %v913 = vpop.trf.xlu0
        %v914 = vpop.trf.xlu0
        %v915 = vpop.trf.xlu0
        %v916 = vpop.trf.xlu0
        %v917 = vpop.trf.xlu0
        %v918 = vpop.trf.xlu0
        %v919 = vpop.trf.xlu0
        %v920 = vpack.c.bf16 %v905, %v904
        %v921 = vpack.c.bf16 %v907, %v906
        %v922 = vpack.c.bf16 %v554, %v550
        %v923 = vpack.c.bf16 %v564, %v560
        %v924 = vpack.c.bf16 %v574, %v570
        %vm925 = vcmask 392192
        %v927 = vsel %vm925, %v920, 0
        %v930 = vsel %vm925, %v921, 0
        %932 = vmatprep.subr.bf16.mxu0 0
        %933 = vmatpush1.bf16.msra.mxu0 %v922
        %934 = vmatprep.subr.bf16.mxu0 0
        %935 = vmatpush1.bf16.msra.mxu0 %v923
        %936 = vmatprep.subr.bf16.mxu0 0
        %937 = vmatpush1.bf16.msra.mxu0 %v924
        %938 = vmatprep.subr.bf16.mxu0 0
        %939 = vmatpush1.bf16.msra.mxu0 0
        %940 = vmatprep.subr.bf16.mxu0 0
        %941 = vmatpush1.bf16.msra.mxu0 0
        %942 = vmatprep.subr.bf16.mxu0 0
        %943 = vmatpush1.bf16.msra.mxu0 0
        %944 = vmatprep.subr.bf16.mxu0 0
        %945 = vmatpush1.bf16.msra.mxu0 0
        %946 = vmatprep.subr.bf16.mxu0 0
        %947 = vmatpush1.bf16.msra.mxu0 0
        %948 = vmatprep.subr.bf16.mxu0 0
        %949 = vmatpush1.bf16.msra.mxu0 0
        %950 = vmatprep.subr.bf16.mxu0 0
        %951 = vmatpush1.bf16.msra.mxu0 0
        %952 = vmatprep.subr.bf16.mxu0 0
        %953 = vmatpush1.bf16.msra.mxu0 0
        %954 = vmatprep.subr.bf16.mxu0 0
        %955 = vmatpush1.bf16.msra.mxu0 0
        %956 = vmatprep.subr.bf16.mxu0 0
        %957 = vmatpush1.bf16.msra.mxu0 0
        %958 = vmatprep.subr.bf16.mxu0 0
        %959 = vmatpush1.bf16.msra.mxu0 0
        %960 = vmatprep.subr.bf16.mxu0 0
        %961 = vmatpush1.bf16.msra.mxu0 0
        %962 = vmatprep.subr.bf16.mxu0 0
        %963 = vmatpush1.bf16.msra.mxu0 0
        %964 = vmatprep.mubr.bf16.mxu0 0
        %965 = vmatmul.mubr.bf16.gmra.mrb[0].mxu0 %v927
        %v966 = vpop.f32.mrb[0].mxu0
        %v967 = vadd.f32 0.0, %v966
        %v968 = vpop.f32.mrb[0].mxu0
        %v969 = vpop.f32.mrb[0].mxu0
        %v970 = vadd.f32 0.0, %v969
        %v971 = vpop.f32.mrb[0].mxu0
        %972 = vmatprep.mubr.bf16.mxu0 0
        %973 = vmatmul.mubr.bf16.gmra.mrb[0].mxu0 %v930
        %v974 = vpop.f32.mrb[0].mxu0
        %v975 = vadd.f32 0.0, %v974
        %v976 = vpop.f32.mrb[0].mxu0
        %v977 = vpop.f32.mrb[0].mxu0
        %v978 = vadd.f32 0.0, %v977
        %v979 = vpop.f32.mrb[0].mxu0
        %980 = vdwg.mxu0
        %v981 = vpack.c.bf16 %v841, %v840
        %v982 = vpack.c.bf16 %v843, %v842
        %v983 = vpack.c.bf16 %v845, %v844
        %v984 = vpack.c.bf16 %v970, %v967
        %v985 = vpack.c.bf16 %v978, %v975
        %v987 = vsel %vm846, %v981, 0
        %v990 = vsel %vm846, %v982, 0
        %v993 = vsel %vm846, %v983, 0
        %995 = vmatprep.subr.bf16.mxu0 0
        %996 = vmatpush1.bf16.msra.mxu0 %v984
        %997 = vmatprep.subr.bf16.mxu0 0
        %998 = vmatpush1.bf16.msra.mxu0 %v985
        %999 = vmatprep.subr.bf16.mxu0 0
        %1000 = vmatpush1.bf16.msra.mxu0 0
        %1001 = vmatprep.subr.bf16.mxu0 0
        %1002 = vmatpush1.bf16.msra.mxu0 0
        %1003 = vmatprep.subr.bf16.mxu0 0
        %1004 = vmatpush1.bf16.msra.mxu0 0
        %1005 = vmatprep.subr.bf16.mxu0 0
        %1006 = vmatpush1.bf16.msra.mxu0 0
        %1007 = vmatprep.subr.bf16.mxu0 0
        %1008 = vmatpush1.bf16.msra.mxu0 0
        %1009 = vmatprep.subr.bf16.mxu0 0
        %1010 = vmatpush1.bf16.msra.mxu0 0
        %1011 = vmatprep.subr.bf16.mxu0 0
        %1012 = vmatpush1.bf16.msra.mxu0 0
        %1013 = vmatprep.subr.bf16.mxu0 0
        %1014 = vmatpush1.bf16.msra.mxu0 0
        %1015 = vmatprep.subr.bf16.mxu0 0
        %1016 = vmatpush1.bf16.msra.mxu0 0
        %1017 = vmatprep.subr.bf16.mxu0 0
        %1018 = vmatpush1.bf16.msra.mxu0 0
        %1019 = vmatprep.subr.bf16.mxu0 0
        %1020 = vmatpush1.bf16.msra.mxu0 0
        %1021 = vmatprep.subr.bf16.mxu0 0
        %1022 = vmatpush1.bf16.msra.mxu0 0
        %1023 = vmatprep.subr.bf16.mxu0 0
        %1024 = vmatpush1.bf16.msra.mxu0 0
        %1025 = vmatprep.subr.bf16.mxu0 0
        %1026 = vmatpush1.bf16.msra.mxu0 0
        %1027 = vmatprep.mubr.bf16.mxu0 0
        %1028 = vmatmul.mubr.bf16.gmra.mrb[0].mxu0 %v987
        %v1029 = vpop.f32.mrb[0].mxu0
        %v1030 = vadd.f32 0.0, %v1029
        %v1031 = vpop.f32.mrb[0].mxu0
        %v1032 = vpop.f32.mrb[0].mxu0
        %v1033 = vadd.f32 0.0, %v1032
        %v1034 = vpop.f32.mrb[0].mxu0
        %1035 = vmatprep.mubr.bf16.mxu0 0
        %1036 = vmatmul.mubr.bf16.gmra.mrb[0].mxu0 %v990
        %v1037 = vpop.f32.mrb[0].mxu0
        %v1038 = vadd.f32 0.0, %v1037
        %v1039 = vpop.f32.mrb[0].mxu0
        %v1040 = vpop.f32.mrb[0].mxu0
        %v1041 = vadd.f32 0.0, %v1040
        %v1042 = vpop.f32.mrb[0].mxu0
        %1043 = vmatprep.mubr.bf16.mxu0 0
        %1044 = vmatmul.mubr.bf16.gmra.mrb[0].mxu0 %v993
        %v1045 = vpop.f32.mrb[0].mxu0
        %v1046 = vadd.f32 0.0, %v1045
        %v1047 = vpop.f32.mrb[0].mxu0
        %v1048 = vpop.f32.mrb[0].mxu0
        %v1049 = vadd.f32 0.0, %v1048
        %v1050 = vpop.f32.mrb[0].mxu0
        %1051 = vdwg.mxu0
        %v1052 = vadd.f32 %v872, 1e-08
        %v1053 = vadd.f32 %v875, 1e-08
        %v1054 = vadd.f32 %v878, 1e-08
        %v1055 = vadd.f32 %v881, 1e-08
        %v1056 = vadd.f32 %v884, 1e-08
        %v1057 = vadd.f32 %v887, 1e-08
        %v1058 = vrcp.pop %v1052
        %v1059 = vrcp.pop %v1053
        %v1060 = vrcp.pop %v1054
        %v1061 = vrcp.pop %v1055
        %v1062 = vrcp.pop %v1056
        %v1063 = vrcp.pop %v1057
        %v1064 = vmul.f32 %v1030, %v1058
        %v1065 = vmul.f32 %v1033, %v1059
        %v1066 = vmul.f32 %v1038, %v1060
        %v1067 = vmul.f32 %v1041, %v1061
        %v1068 = vmul.f32 %v1046, %v1062
        %v1069 = vmul.f32 %v1049, %v1063
        %v1070 = vpack.c.bf16 %v1065, %v1064
        %v1071 = vpack.c.bf16 %v1067, %v1066
        %v1072 = vpack.c.bf16 %v1069, %v1068
        %v1073 = vld [vmem:[%s5] sm:$0xf]
        %v1074 = vld [vmem:[%s5 + $0x4] sm:$0xf]
        %v1075 = vld [vmem:[%s5 + $0x8] sm:$0xf]
        %v1076 = vld [vmem:[%s5 + $0xc] sm:$0xf]
        %v1077 = vld [vmem:[%s5 + $0x10] sm:$0xf]
        %v1078 = vld [vmem:[%s5 + $0x14] sm:$0xf]
        %v1079 = vld [vmem:[%s5 + $0x18] sm:$0xf]
        %v1080 = vld [vmem:[%s5 + $0x1c] sm:$0xf]
        %v1089 = vunpack.c.l.b16 %v1073
        %v1090 = vunpack.c.l.b16 %v1074
        %v1091 = vunpack.c.l.b16 %v1075
        %v1092 = vunpack.c.l.b16 %v1076
        %v1093 = vunpack.c.l.b16 %v1077
        %v1094 = vunpack.c.l.b16 %v1078
        %v1095 = vunpack.c.l.b16 %v1079
        %v1096 = vunpack.c.l.b16 %v1080
        %v1097 = vpack.c.b16 %v1090, %v1089
        %v1098 = vpack.c.b16 %v1092, %v1091
        %v1099 = vpack.c.b16 %v1094, %v1093
        %v1100 = vpack.c.b16 %v1096, %v1095
        %v1106 = vsel %vm612, %v1070, 0
        %v1109 = vsel %vm612, %v1071, 0
        %v1112 = vsel %vm612, %v1072, 0
        %1114 = vmatprep.subr.bf16.mxu0 0
        %1115 = vmatpush1.bf16.msra.mxu0 %v1097
        %1116 = vmatprep.subr.bf16.mxu0 0
        %1117 = vmatpush1.bf16.msra.mxu0 %v1098
        %1118 = vmatprep.subr.bf16.mxu0 0
        %1119 = vmatpush1.bf16.msra.mxu0 %v1099
        %1120 = vmatprep.subr.bf16.mxu0 0
        %1121 = vmatpush1.bf16.msra.mxu0 %v1100
        %1122 = vmatprep.subr.bf16.mxu0 0
        %1123 = vmatpush1.bf16.msra.mxu0 0
        %1124 = vmatprep.subr.bf16.mxu0 0
        %1125 = vmatpush1.bf16.msra.mxu0 0
        %1126 = vmatprep.subr.bf16.mxu0 0
        %1127 = vmatpush1.bf16.msra.mxu0 0
        %1128 = vmatprep.subr.bf16.mxu0 0
        %1129 = vmatpush1.bf16.msra.mxu0 0
        %1130 = vmatprep.subr.bf16.mxu0 0
        %1131 = vmatpush1.bf16.msra.mxu0 0
        %1132 = vmatprep.subr.bf16.mxu0 0
        %1133 = vmatpush1.bf16.msra.mxu0 0
        %1134 = vmatprep.subr.bf16.mxu0 0
        %1135 = vmatpush1.bf16.msra.mxu0 0
        %1136 = vmatprep.subr.bf16.mxu0 0
        %1137 = vmatpush1.bf16.msra.mxu0 0
        %1138 = vmatprep.subr.bf16.mxu0 0
        %1139 = vmatpush1.bf16.msra.mxu0 0
        %1140 = vmatprep.subr.bf16.mxu0 0
        %1141 = vmatpush1.bf16.msra.mxu0 0
        %1142 = vmatprep.subr.bf16.mxu0 0
        %1143 = vmatpush1.bf16.msra.mxu0 0
        %1144 = vmatprep.subr.bf16.mxu0 0
        %1145 = vmatpush1.bf16.msra.mxu0 0
        %1146 = vmatprep.mubr.bf16.mxu0 0
        %1147 = vmatmul.mubr.bf16.gmra.mrb[0].mxu0 %v1106
        %v1148 = vpop.f32.mrb[0].mxu0
        %v1149 = vadd.f32 0.0, %v1148
        %v1150 = vpop.f32.mrb[0].mxu0
        %v1151 = vpop.f32.mrb[0].mxu0
        %v1152 = vadd.f32 0.0, %v1151
        %v1153 = vpop.f32.mrb[0].mxu0
        %1154 = vmatprep.mubr.bf16.mxu0 0
        %1155 = vmatmul.mubr.bf16.gmra.mrb[0].mxu0 %v1109
        %v1156 = vpop.f32.mrb[0].mxu0
        %v1157 = vadd.f32 0.0, %v1156
        %v1158 = vpop.f32.mrb[0].mxu0
        %v1159 = vpop.f32.mrb[0].mxu0
        %v1160 = vadd.f32 0.0, %v1159
        %v1161 = vpop.f32.mrb[0].mxu0
        %1162 = vmatprep.mubr.bf16.mxu0 0
        %1163 = vmatmul.mubr.bf16.gmra.mrb[0].mxu0 %v1112
        %v1164 = vpop.f32.mrb[0].mxu0
        %v1165 = vadd.f32 0.0, %v1164
        %v1166 = vpop.f32.mrb[0].mxu0
        %v1167 = vpop.f32.mrb[0].mxu0
        %v1168 = vadd.f32 0.0, %v1167
        %v1169 = vpop.f32.mrb[0].mxu0
        %1170 = vdwg.mxu0
        %v1171 = vadd.f32 %v550, %v1149
        %v1172 = vadd.f32 %v554, %v1152
        %v1173 = vadd.f32 %v560, %v1157
        %v1174 = vadd.f32 %v564, %v1160
        %v1175 = vadd.f32 %v570, %v1165
        %v1176 = vadd.f32 %v574, %v1168
        %v1177 = vld [vmem:[%s6] sm:$0x1]
        %v1178 = vlaneseq
        %v1179 = vshrl.u32 %v1178, 7
        %v1180 = vsub.s32 0, %v1179
        %v1181 = vrot.slane %v1177, %v1180
        %v1182 = vadd.f32 %v1171, %v1181
        %v1183 = vadd.f32 %v1172, %v1181
        %v1184 = vadd.f32 %v1173, %v1181
        %v1185 = vadd.f32 %v1174, %v1181
        %v1186 = vadd.f32 %v1175, %v1181
        %v1187 = vadd.f32 %v1176, %v1181
        %v1188 = vsel %vm612, %v1182, 0.0
        %1189 = vadd.xlane.f32.xlu0 %v1188
        %v1190 = vpop.xlane.xlu0 %1189
        %v1191 = vsel %vm612, %v1183, 0.0
        %1192 = vadd.xlane.f32.xlu0 %v1191
        %v1193 = vpop.xlane.xlu0 %1192
        %v1194 = vsel %vm612, %v1184, 0.0
        %1195 = vadd.xlane.f32.xlu0 %v1194
        %v1196 = vpop.xlane.xlu0 %1195
        %v1197 = vsel %vm612, %v1185, 0.0
        %1198 = vadd.xlane.f32.xlu0 %v1197
        %v1199 = vpop.xlane.xlu0 %1198
        %v1200 = vsel %vm612, %v1186, 0.0
        %1201 = vadd.xlane.f32.xlu0 %v1200
        %v1202 = vpop.xlane.xlu0 %1201
        %v1203 = vsel %vm612, %v1187, 0.0
        %1204 = vadd.xlane.f32.xlu0 %v1203
        %v1205 = vpop.xlane.xlu0 %1204
        %v1206 = vrcp.pop 64.0
        %v1207 = vmul.f32 %v1190, %v1206
        %v1208 = vmul.f32 %v1193, %v1206
        %v1209 = vmul.f32 %v1196, %v1206
        %v1210 = vmul.f32 %v1199, %v1206
        %v1211 = vmul.f32 %v1202, %v1206
        %v1212 = vmul.f32 %v1205, %v1206
        %v1213 = vsub.f32 %v1182, %v1207
        %v1214 = vsub.f32 %v1183, %v1208
        %v1215 = vsub.f32 %v1184, %v1209
        %v1216 = vsub.f32 %v1185, %v1210
        %v1217 = vsub.f32 %v1186, %v1211
        %v1218 = vsub.f32 %v1187, %v1212
        %v1219 = vmul.f32 %v1213, %v1213
        %v1220 = vmul.f32 %v1214, %v1214
        %v1221 = vmul.f32 %v1215, %v1215
        %v1222 = vmul.f32 %v1216, %v1216
        %v1223 = vmul.f32 %v1217, %v1217
        %v1224 = vmul.f32 %v1218, %v1218
        %v1225 = vsel %vm612, %v1219, 0.0
        %1226 = vadd.xlane.f32.xlu0 %v1225
        %v1227 = vpop.xlane.xlu0 %1226
        %v1228 = vsel %vm612, %v1220, 0.0
        %1229 = vadd.xlane.f32.xlu0 %v1228
        %v1230 = vpop.xlane.xlu0 %1229
        %v1231 = vsel %vm612, %v1221, 0.0
        %1232 = vadd.xlane.f32.xlu0 %v1231
        %v1233 = vpop.xlane.xlu0 %1232
        %v1234 = vsel %vm612, %v1222, 0.0
        %1235 = vadd.xlane.f32.xlu0 %v1234
        %v1236 = vpop.xlane.xlu0 %1235
        %v1237 = vsel %vm612, %v1223, 0.0
        %1238 = vadd.xlane.f32.xlu0 %v1237
        %v1239 = vpop.xlane.xlu0 %1238
        %v1240 = vsel %vm612, %v1224, 0.0
        %1241 = vadd.xlane.f32.xlu0 %v1240
        %v1242 = vpop.xlane.xlu0 %1241
        %v1243 = vmul.f32 %v1227, %v1206
        %v1244 = vmul.f32 %v1230, %v1206
        %v1245 = vmul.f32 %v1233, %v1206
        %v1246 = vmul.f32 %v1236, %v1206
        %v1247 = vmul.f32 %v1239, %v1206
        %v1248 = vmul.f32 %v1242, %v1206
        %v1249 = vadd.f32 %v1243, 1e-05
        %v1250 = vadd.f32 %v1244, 1e-05
        %v1251 = vadd.f32 %v1245, 1e-05
        %v1252 = vadd.f32 %v1246, 1e-05
        %v1253 = vadd.f32 %v1247, 1e-05
        %v1254 = vadd.f32 %v1248, 1e-05
        %v1255 = vrsqrt.pop %v1249
        %v1256 = vrsqrt.pop %v1250
        %v1257 = vrsqrt.pop %v1251
        %v1258 = vrsqrt.pop %v1252
        %v1259 = vrsqrt.pop %v1253
        %v1260 = vrsqrt.pop %v1254
        %v1261 = vmul.f32 %v1213, %v1255
        %v1262 = vmul.f32 %v1214, %v1256
        %v1263 = vmul.f32 %v1215, %v1257
        %v1264 = vmul.f32 %v1216, %v1258
        %v1265 = vmul.f32 %v1217, %v1259
        %v1266 = vmul.f32 %v1218, %v1260
        %v1267 = vld [vmem:[%s6 + $0x1] sm:$0x1]
        %v1268 = vlaneseq
        %v1269 = vshrl.u32 %v1268, 7
        %v1270 = vsub.s32 0, %v1269
        %v1271 = vrot.slane %v1267, %v1270
        %v1272 = vmul.f32 %v1261, %v1271
        %v1273 = vmul.f32 %v1262, %v1271
        %v1274 = vmul.f32 %v1263, %v1271
        %v1275 = vmul.f32 %v1264, %v1271
        %v1276 = vmul.f32 %v1265, %v1271
        %v1277 = vmul.f32 %v1266, %v1271
        %v1278 = vld [vmem:[%s6 + $0x2] sm:$0x1]
        %v1279 = vlaneseq
        %v1280 = vshrl.u32 %v1279, 7
        %v1281 = vsub.s32 0, %v1280
        %v1282 = vrot.slane %v1278, %v1281
        %v1283 = vadd.f32 %v1272, %v1282
        %v1284 = vadd.f32 %v1273, %v1282
        %v1285 = vadd.f32 %v1274, %v1282
        %v1286 = vadd.f32 %v1275, %v1282
        %v1287 = vadd.f32 %v1276, %v1282
        %v1288 = vadd.f32 %v1277, %v1282
        %v1289 = vpack.c.bf16 %v1284, %v1283
        %v1290 = vpack.c.bf16 %v1286, %v1285
        %v1291 = vpack.c.bf16 %v1288, %v1287
        %s1292 = scalar_lea.vmem %s5, 32
        %v1293 = vld [vmem:[%s1292] sm:$0xf]
        %v1294 = vld [vmem:[%s1292 + $0x4] sm:$0xf]
        %v1295 = vld [vmem:[%s1292 + $0x8] sm:$0xf]
        %v1296 = vld [vmem:[%s1292 + $0xc] sm:$0xf]
        %v1297 = vld [vmem:[%s1292 + $0x10] sm:$0xf]
        %v1298 = vld [vmem:[%s1292 + $0x14] sm:$0xf]
        %v1299 = vld [vmem:[%s1292 + $0x18] sm:$0xf]
        %v1300 = vld [vmem:[%s1292 + $0x1c] sm:$0xf]
        %v1301 = vld [vmem:[%s6 + $0x3] sm:$0x1]
        %v1302 = vlaneseq
        %v1303 = vshrl.u32 %v1302, 7
        %v1304 = vsub.s32 0, %v1303
        %v1305 = vrot.slane %v1301, %v1304
        %v1314 = vunpack.c.l.b16 %v1293
        %v1315 = vunpack.c.l.b16 %v1294
        %v1316 = vunpack.c.l.b16 %v1295
        %v1317 = vunpack.c.l.b16 %v1296
        %v1318 = vunpack.c.l.b16 %v1297
        %v1319 = vunpack.c.l.b16 %v1298
        %v1320 = vunpack.c.l.b16 %v1299
        %v1321 = vunpack.c.l.b16 %v1300
        %v1322 = vpack.c.b16 %v1315, %v1314
        %v1323 = vpack.c.b16 %v1317, %v1316
        %v1324 = vpack.c.b16 %v1319, %v1318
        %v1325 = vpack.c.b16 %v1321, %v1320
        %v1331 = vsel %vm612, %v1289, 0
        %v1334 = vsel %vm612, %v1290, 0
        %v1337 = vsel %vm612, %v1291, 0
        %1339 = vmatprep.subr.bf16.mxu0 0
        %1340 = vmatpush1.bf16.msra.mxu0 %v1322
        %1341 = vmatprep.subr.bf16.mxu0 0
        %1342 = vmatpush1.bf16.msra.mxu0 %v1323
        %1343 = vmatprep.subr.bf16.mxu0 0
        %1344 = vmatpush1.bf16.msra.mxu0 %v1324
        %1345 = vmatprep.subr.bf16.mxu0 0
        %1346 = vmatpush1.bf16.msra.mxu0 %v1325
        %1347 = vmatprep.subr.bf16.mxu0 0
        %1348 = vmatpush1.bf16.msra.mxu0 0
        %1349 = vmatprep.subr.bf16.mxu0 0
        %1350 = vmatpush1.bf16.msra.mxu0 0
        %1351 = vmatprep.subr.bf16.mxu0 0
        %1352 = vmatpush1.bf16.msra.mxu0 0
        %1353 = vmatprep.subr.bf16.mxu0 0
        %1354 = vmatpush1.bf16.msra.mxu0 0
        %1355 = vmatprep.subr.bf16.mxu0 0
        %1356 = vmatpush1.bf16.msra.mxu0 0
        %1357 = vmatprep.subr.bf16.mxu0 0
        %1358 = vmatpush1.bf16.msra.mxu0 0
        %1359 = vmatprep.subr.bf16.mxu0 0
        %1360 = vmatpush1.bf16.msra.mxu0 0
        %1361 = vmatprep.subr.bf16.mxu0 0
        %1362 = vmatpush1.bf16.msra.mxu0 0
        %1363 = vmatprep.subr.bf16.mxu0 0
        %1364 = vmatpush1.bf16.msra.mxu0 0
        %1365 = vmatprep.subr.bf16.mxu0 0
        %1366 = vmatpush1.bf16.msra.mxu0 0
        %1367 = vmatprep.subr.bf16.mxu0 0
        %1368 = vmatpush1.bf16.msra.mxu0 0
        %1369 = vmatprep.subr.bf16.mxu0 0
        %1370 = vmatpush1.bf16.msra.mxu0 0
        %1371 = vmatprep.mubr.bf16.mxu0 0
        %1372 = vmatmul.mubr.bf16.gmra.mrb[0].mxu0 %v1331
        %v1373 = vpop.f32.mrb[0].mxu0
        %v1374 = vadd.f32 %v1305, %v1373
        %v1375 = vpop.f32.mrb[0].mxu0
        %v1376 = vpop.f32.mrb[0].mxu0
        %v1377 = vadd.f32 %v1305, %v1376
        %v1378 = vpop.f32.mrb[0].mxu0
        %1379 = vmatprep.mubr.bf16.mxu0 0
        %1380 = vmatmul.mubr.bf16.gmra.mrb[0].mxu0 %v1334
        %v1381 = vpop.f32.mrb[0].mxu0
        %v1382 = vadd.f32 %v1305, %v1381
        %v1383 = vpop.f32.mrb[0].mxu0
        %v1384 = vpop.f32.mrb[0].mxu0
        %v1385 = vadd.f32 %v1305, %v1384
        %v1386 = vpop.f32.mrb[0].mxu0
        %1387 = vmatprep.mubr.bf16.mxu0 0
        %1388 = vmatmul.mubr.bf16.gmra.mrb[0].mxu0 %v1337
        %v1389 = vpop.f32.mrb[0].mxu0
        %v1390 = vadd.f32 %v1305, %v1389
        %v1391 = vpop.f32.mrb[0].mxu0
        %v1392 = vpop.f32.mrb[0].mxu0
        %v1393 = vadd.f32 %v1305, %v1392
        %v1394 = vpop.f32.mrb[0].mxu0
        %1395 = vdwg.mxu0
        %v1396 = vmul.f32 %v1374, 0.5
        %v1397 = vmul.f32 %v1377, 0.5
        %v1398 = vmul.f32 %v1382, 0.5
        %v1399 = vmul.f32 %v1385, 0.5
        %v1400 = vmul.f32 %v1390, 0.5
        %v1401 = vmul.f32 %v1393, 0.5
        %v1402 = vmul.f32 %v1374, 0.044715
        %v1403 = vmul.f32 %v1377, 0.044715
        %v1404 = vmul.f32 %v1382, 0.044715
        %v1405 = vmul.f32 %v1385, 0.044715
        %v1406 = vmul.f32 %v1390, 0.044715
        %v1407 = vmul.f32 %v1393, 0.044715
        %v1408 = vmul.f32 %v1402, %v1374
        %v1409 = vmul.f32 %v1403, %v1377
        %v1410 = vmul.f32 %v1404, %v1382
        %v1411 = vmul.f32 %v1405, %v1385
        %v1412 = vmul.f32 %v1406, %v1390
        %v1413 = vmul.f32 %v1407, %v1393
        %v1414 = vmul.f32 %v1408, %v1374
        %v1415 = vmul.f32 %v1409, %v1377
        %v1416 = vmul.f32 %v1410, %v1382
        %v1417 = vmul.f32 %v1411, %v1385
        %v1418 = vmul.f32 %v1412, %v1390
        %v1419 = vmul.f32 %v1413, %v1393
        %v1420 = vadd.f32 %v1374, %v1414
        %v1421 = vadd.f32 %v1377, %v1415
        %v1422 = vadd.f32 %v1382, %v1416
        %v1423 = vadd.f32 %v1385, %v1417
        %v1424 = vadd.f32 %v1390, %v1418
        %v1425 = vadd.f32 %v1393, %v1419
        %v1426 = vmul.f32 %v1420, 0.7978846
        %v1427 = vmul.f32 %v1421, 0.7978846
        %v1428 = vmul.f32 %v1422, 0.7978846
        %v1429 = vmul.f32 %v1423, 0.7978846
        %v1430 = vmul.f32 %v1424, 0.7978846
        %v1431 = vmul.f32 %v1425, 0.7978846
        %v1432 = vtanh.pop %v1426
        %v1433 = vtanh.pop %v1427
        %v1434 = vtanh.pop %v1428
        %v1435 = vtanh.pop %v1429
        %v1436 = vtanh.pop %v1430
        %v1437 = vtanh.pop %v1431
        %v1438 = vadd.f32 %v1432, 1.0
        %v1439 = vadd.f32 %v1433, 1.0
        %v1440 = vadd.f32 %v1434, 1.0
        %v1441 = vadd.f32 %v1435, 1.0
        %v1442 = vadd.f32 %v1436, 1.0
        %v1443 = vadd.f32 %v1437, 1.0
        %v1444 = vmul.f32 %v1396, %v1438
        %v1445 = vmul.f32 %v1397, %v1439
        %v1446 = vmul.f32 %v1398, %v1440
        %v1447 = vmul.f32 %v1399, %v1441
        %v1448 = vmul.f32 %v1400, %v1442
        %v1449 = vmul.f32 %v1401, %v1443
        %v1450 = vpack.c.bf16 %v1445, %v1444
        %v1451 = vpack.c.bf16 %v1447, %v1446
        %v1452 = vpack.c.bf16 %v1449, %v1448
        %s1453 = scalar_lea.vmem %s5, 64
        %v1454 = vld [vmem:[%s1453] sm:$0xf]
        %v1455 = vld [vmem:[%s1453 + $0x4] sm:$0xf]
        %v1456 = vld [vmem:[%s1453 + $0x8] sm:$0xf]
        %v1457 = vld [vmem:[%s1453 + $0xc] sm:$0xf]
        %v1458 = vld [vmem:[%s1453 + $0x10] sm:$0xf]
        %v1459 = vld [vmem:[%s1453 + $0x14] sm:$0xf]
        %v1460 = vld [vmem:[%s1453 + $0x18] sm:$0xf]
        %v1461 = vld [vmem:[%s1453 + $0x1c] sm:$0xf]
        %v1462 = vld [vmem:[%s6 + $0x4] sm:$0x1]
        %v1463 = vlaneseq
        %v1464 = vshrl.u32 %v1463, 7
        %v1465 = vsub.s32 0, %v1464
        %v1466 = vrot.slane %v1462, %v1465
        %v1475 = vunpack.c.l.b16 %v1454
        %v1476 = vunpack.c.l.b16 %v1455
        %v1477 = vunpack.c.l.b16 %v1456
        %v1478 = vunpack.c.l.b16 %v1457
        %v1479 = vunpack.c.l.b16 %v1458
        %v1480 = vunpack.c.l.b16 %v1459
        %v1481 = vunpack.c.l.b16 %v1460
        %v1482 = vunpack.c.l.b16 %v1461
        %v1483 = vpack.c.b16 %v1476, %v1475
        %v1484 = vpack.c.b16 %v1478, %v1477
        %v1485 = vpack.c.b16 %v1480, %v1479
        %v1486 = vpack.c.b16 %v1482, %v1481
        %v1492 = vsel %vm612, %v1450, 0
        %v1495 = vsel %vm612, %v1451, 0
        %v1498 = vsel %vm612, %v1452, 0
        %1500 = vmatprep.subr.bf16.mxu0 0
        %1501 = vmatpush1.bf16.msra.mxu0 %v1483
        %1502 = vmatprep.subr.bf16.mxu0 0
        %1503 = vmatpush1.bf16.msra.mxu0 %v1484
        %1504 = vmatprep.subr.bf16.mxu0 0
        %1505 = vmatpush1.bf16.msra.mxu0 %v1485
        %1506 = vmatprep.subr.bf16.mxu0 0
        %1507 = vmatpush1.bf16.msra.mxu0 %v1486
        %1508 = vmatprep.subr.bf16.mxu0 0
        %1509 = vmatpush1.bf16.msra.mxu0 0
        %1510 = vmatprep.subr.bf16.mxu0 0
        %1511 = vmatpush1.bf16.msra.mxu0 0
        %1512 = vmatprep.subr.bf16.mxu0 0
        %1513 = vmatpush1.bf16.msra.mxu0 0
        %1514 = vmatprep.subr.bf16.mxu0 0
        %1515 = vmatpush1.bf16.msra.mxu0 0
        %1516 = vmatprep.subr.bf16.mxu0 0
        %1517 = vmatpush1.bf16.msra.mxu0 0
        %1518 = vmatprep.subr.bf16.mxu0 0
        %1519 = vmatpush1.bf16.msra.mxu0 0
        %1520 = vmatprep.subr.bf16.mxu0 0
        %1521 = vmatpush1.bf16.msra.mxu0 0
        %1522 = vmatprep.subr.bf16.mxu0 0
        %1523 = vmatpush1.bf16.msra.mxu0 0
        %1524 = vmatprep.subr.bf16.mxu0 0
        %1525 = vmatpush1.bf16.msra.mxu0 0
        %1526 = vmatprep.subr.bf16.mxu0 0
        %1527 = vmatpush1.bf16.msra.mxu0 0
        %1528 = vmatprep.subr.bf16.mxu0 0
        %1529 = vmatpush1.bf16.msra.mxu0 0
        %1530 = vmatprep.subr.bf16.mxu0 0
        %1531 = vmatpush1.bf16.msra.mxu0 0
        %1532 = vmatprep.mubr.bf16.mxu0 0
        %1533 = vmatmul.mubr.bf16.gmra.mrb[0].mxu0 %v1492
        %v1534 = vpop.f32.mrb[0].mxu0
        %v1535 = vadd.f32 %v1466, %v1534
        %v1536 = vpop.f32.mrb[0].mxu0
        %v1537 = vpop.f32.mrb[0].mxu0
        %v1538 = vadd.f32 %v1466, %v1537
        %v1539 = vpop.f32.mrb[0].mxu0
        %1540 = vmatprep.mubr.bf16.mxu0 0
        %1541 = vmatmul.mubr.bf16.gmra.mrb[0].mxu0 %v1495
        %v1542 = vpop.f32.mrb[0].mxu0
        %v1543 = vadd.f32 %v1466, %v1542
        %v1544 = vpop.f32.mrb[0].mxu0
        %v1545 = vpop.f32.mrb[0].mxu0
        %v1546 = vadd.f32 %v1466, %v1545
        %v1547 = vpop.f32.mrb[0].mxu0
        %1548 = vmatprep.mubr.bf16.mxu0 0
        %1549 = vmatmul.mubr.bf16.gmra.mrb[0].mxu0 %v1498
        %v1550 = vpop.f32.mrb[0].mxu0
        %v1551 = vadd.f32 %v1466, %v1550
        %v1552 = vpop.f32.mrb[0].mxu0
        %v1553 = vpop.f32.mrb[0].mxu0
        %v1554 = vadd.f32 %v1466, %v1553
        %v1555 = vpop.f32.mrb[0].mxu0
        %1556 = vdwg.mxu0
        %v1557 = vadd.f32 %v1182, %v1535
        %v1558 = vadd.f32 %v1183, %v1538
        %v1559 = vadd.f32 %v1184, %v1543
        %v1560 = vadd.f32 %v1185, %v1546
        %v1561 = vadd.f32 %v1186, %v1551
        %v1562 = vadd.f32 %v1187, %v1554
        %1563 = vst.msk [vmem:[#allocation2] sm:$0xff] %vm612, 0.0
        %1564 = vst.msk [vmem:[#allocation2 + $0x8] sm:$0xff] %vm612, 0.0
        %1565 = vst.msk [vmem:[#allocation2 + $0x10] sm:$0xff] %vm612, 0.0
        %1566 = vst.msk [vmem:[#allocation2 + $0x18] sm:$0xff] %vm612, 0.0
        %1567 = vst.msk [vmem:[#allocation2 + $0x20] sm:$0xff] %vm612, 0.0
        %1568 = vst.msk [vmem:[#allocation2 + $0x28] sm:$0xff] %vm612, 0.0
        %1569 = vst.msk [vmem:[#allocation2 + $0x30] sm:$0xff] %vm612, 0.0
        %1570 = vst.msk [vmem:[#allocation2 + $0x38] sm:$0xff] %vm612, 0.0
        %1571 = vst.msk [vmem:[#allocation2 + $0x8] sm:$0xff] %vm612, %v1557
        %1572 = vst.msk [vmem:[#allocation2 + $0x10] sm:$0xff] %vm612, %v1558
        %1573 = vst.msk [vmem:[#allocation2 + $0x18] sm:$0xff] %vm612, %v1559
        %1574 = vst.msk [vmem:[#allocation2 + $0x20] sm:$0xff] %vm612, %v1560
        %1575 = vst.msk [vmem:[#allocation2 + $0x28] sm:$0xff] %vm612, %v1561
        %1576 = vst.msk [vmem:[#allocation2 + $0x30] sm:$0xff] %vm612, %v1562
        %v1577 = vlaneseq
        %v1578 = vshrl.u32 %v1577, 7
        %v1579 = vadd.s32 %v1578, 8
        %v1580 = vadd.s32 %v1578, 16
        %v1581 = vadd.s32 %v1578, 24
        %v1582 = vadd.s32 %v1578, 32
        %v1583 = vadd.s32 %v1578, 40
        %v1584 = vcvt.s32.f32 %v1578
        %v1585 = vcvt.s32.f32 %v1579
        %v1586 = vcvt.s32.f32 %v1580
        %v1587 = vcvt.s32.f32 %v1581
        %v1588 = vcvt.s32.f32 %v1582
        %v1589 = vcvt.s32.f32 %v1583
        %v1590 = vadd.f32 %v1584, 0.5
        %v1591 = vadd.f32 %v1585, 0.5
        %v1592 = vadd.f32 %v1586, 0.5
        %v1593 = vadd.f32 %v1587, 0.5
        %v1594 = vadd.f32 %v1588, 0.5
        %v1595 = vadd.f32 %v1589, 0.5
        %v1596 = vmul.f32 %v1590, 0.16666667
        %v1597 = vmul.f32 %v1591, 0.16666667
        %v1598 = vmul.f32 %v1592, 0.16666667
        %v1599 = vmul.f32 %v1593, 0.16666667
        %v1600 = vmul.f32 %v1594, 0.16666667
        %v1601 = vmul.f32 %v1595, 0.16666667
        %v1602 = vfloor.f32 %v1596
        %v1603 = vfloor.f32 %v1597
        %v1604 = vfloor.f32 %v1598
        %v1605 = vfloor.f32 %v1599
        %v1606 = vfloor.f32 %v1600
        %v1607 = vfloor.f32 %v1601
        %v1608 = vmul.f32 %v1602, 6.0
        %v1609 = vmul.f32 %v1603, 6.0
        %v1610 = vmul.f32 %v1604, 6.0
        %v1611 = vmul.f32 %v1605, 6.0
        %v1612 = vmul.f32 %v1606, 6.0
        %v1613 = vmul.f32 %v1607, 6.0
        %v1614 = vsub.f32 %v1584, %v1608
        %v1615 = vsub.f32 %v1585, %v1609
        %v1616 = vsub.f32 %v1586, %v1610
        %v1617 = vsub.f32 %v1587, %v1611
        %v1618 = vsub.f32 %v1588, %v1612
        %v1619 = vsub.f32 %v1589, %v1613
        %v1620 = vld [vmem:[#allocation2 + $0x1] sm:$0xff]
        %v1621 = vld [vmem:[#allocation2 + $0x9] sm:$0xff]
        %v1622 = vld [vmem:[#allocation2 + $0x11] sm:$0xff]
        %v1623 = vld [vmem:[#allocation2 + $0x19] sm:$0xff]
        %v1624 = vld [vmem:[#allocation2 + $0x21] sm:$0xff]
        %v1625 = vld [vmem:[#allocation2 + $0x29] sm:$0xff]
        %v1626 = vadd.f32 %v1602, -1.0
        %v1627 = vadd.f32 %v1603, -1.0
        %v1628 = vadd.f32 %v1604, -1.0
        %v1629 = vadd.f32 %v1605, -1.0
        %v1630 = vadd.f32 %v1606, -1.0
        %v1631 = vadd.f32 %v1607, -1.0
        %vm1632 = vcmp.ge.f32.partialorder %v1626, 0.0
        %vm1633 = vcmp.ge.f32.partialorder %v1627, 0.0
        %vm1634 = vcmp.ge.f32.partialorder %v1628, 0.0
        %vm1635 = vcmp.ge.f32.partialorder %v1629, 0.0
        %vm1636 = vcmp.ge.f32.partialorder %v1630, 0.0
        %vm1637 = vcmp.ge.f32.partialorder %v1631, 0.0
        %vm1638 = vcmp.le.f32.partialorder %v1626, 7.0
        %vm1639 = vcmp.le.f32.partialorder %v1627, 7.0
        %vm1640 = vcmp.le.f32.partialorder %v1628, 7.0
        %vm1641 = vcmp.le.f32.partialorder %v1629, 7.0
        %vm1642 = vcmp.le.f32.partialorder %v1630, 7.0
        %vm1643 = vcmp.le.f32.partialorder %v1631, 7.0
        %vm1644 = vmand %vm1632, %vm1638
        %vm1645 = vmand %vm1633, %vm1639
        %vm1646 = vmand %vm1634, %vm1640
        %vm1647 = vmand %vm1635, %vm1641
        %vm1648 = vmand %vm1636, %vm1642
        %vm1649 = vmand %vm1637, %vm1643
        %v1650 = vadd.f32 %v1614, -1.0
        %v1651 = vadd.f32 %v1615, -1.0
        %v1652 = vadd.f32 %v1616, -1.0
        %v1653 = vadd.f32 %v1617, -1.0
        %v1654 = vadd.f32 %v1618, -1.0
        %v1655 = vadd.f32 %v1619, -1.0
        %vm1656 = vcmp.ge.f32.partialorder %v1650, 0.0
        %vm1657 = vcmp.ge.f32.partialorder %v1651, 0.0
        %vm1658 = vcmp.ge.f32.partialorder %v1652, 0.0
        %vm1659 = vcmp.ge.f32.partialorder %v1653, 0.0
        %vm1660 = vcmp.ge.f32.partialorder %v1654, 0.0
        %vm1661 = vcmp.ge.f32.partialorder %v1655, 0.0
        %vm1662 = vmand %vm1644, %vm1656
        %vm1663 = vmand %vm1645, %vm1657
        %vm1664 = vmand %vm1646, %vm1658
        %vm1665 = vmand %vm1647, %vm1659
        %vm1666 = vmand %vm1648, %vm1660
        %vm1667 = vmand %vm1649, %vm1661
        %vm1668 = vcmp.le.f32.partialorder %v1650, 5.0
        %vm1669 = vcmp.le.f32.partialorder %v1651, 5.0
        %vm1670 = vcmp.le.f32.partialorder %v1652, 5.0
        %vm1671 = vcmp.le.f32.partialorder %v1653, 5.0
        %vm1672 = vcmp.le.f32.partialorder %v1654, 5.0
        %vm1673 = vcmp.le.f32.partialorder %v1655, 5.0
        %vm1674 = vmand %vm1662, %vm1668
        %vm1675 = vmand %vm1663, %vm1669
        %vm1676 = vmand %vm1664, %vm1670
        %vm1677 = vmand %vm1665, %vm1671
        %vm1678 = vmand %vm1666, %vm1672
        %vm1679 = vmand %vm1667, %vm1673
        %v1680 = vsel %vm1674, 1, 0
        %v1681 = vsel %vm1675, 1, 0
        %v1682 = vsel %vm1676, 1, 0
        %v1683 = vsel %vm1677, 1, 0
        %v1684 = vsel %vm1678, 1, 0
        %v1685 = vsel %vm1679, 1, 0
        %vm1686 = vcmp.eq.s32.totalorder %v1680, 1
        %vm1687 = vcmp.eq.s32.totalorder %v1681, 1
        %vm1688 = vcmp.eq.s32.totalorder %v1682, 1
        %vm1689 = vcmp.eq.s32.totalorder %v1683, 1
        %vm1690 = vcmp.eq.s32.totalorder %v1684, 1
        %vm1691 = vcmp.eq.s32.totalorder %v1685, 1
        %v1692 = vsel %vm1686, %v1620, 0.0
        %v1693 = vsel %vm1687, %v1621, 0.0
        %v1694 = vsel %vm1688, %v1622, 0.0
        %v1695 = vsel %vm1689, %v1623, 0.0
        %v1696 = vsel %vm1690, %v1624, 0.0
        %v1697 = vsel %vm1691, %v1625, 0.0
        %v1698 = vpack.c.bf16 %v1693, %v1692
        %v1699 = vpack.c.bf16 %v1695, %v1694
        %v1700 = vpack.c.bf16 %v1697, %v1696
        %v1701 = vld [vmem:[#allocation3] sm:$0xf]
        %v1702 = vld [vmem:[#allocation3 + $0x4] sm:$0xf]
        %v1703 = vld [vmem:[#allocation3 + $0x8] sm:$0xf]
        %v1704 = vld [vmem:[#allocation3 + $0xc] sm:$0xf]
        %v1705 = vld [vmem:[#allocation3 + $0x10] sm:$0xf]
        %v1706 = vld [vmem:[#allocation3 + $0x14] sm:$0xf]
        %v1707 = vld [vmem:[#allocation3 + $0x18] sm:$0xf]
        %v1708 = vld [vmem:[#allocation3 + $0x1c] sm:$0xf]
        %v1709 = vld [vmem:[#allocation2 + $0x2] sm:$0xff]
        %v1710 = vld [vmem:[#allocation2 + $0xa] sm:$0xff]
        %v1711 = vld [vmem:[#allocation2 + $0x12] sm:$0xff]
        %v1712 = vld [vmem:[#allocation2 + $0x1a] sm:$0xff]
        %v1713 = vld [vmem:[#allocation2 + $0x22] sm:$0xff]
        %v1714 = vld [vmem:[#allocation2 + $0x2a] sm:$0xff]
        %v1715 = vadd.f32 %v1614, 0.0
        %v1716 = vadd.f32 %v1615, 0.0
        %v1717 = vadd.f32 %v1616, 0.0
        %v1718 = vadd.f32 %v1617, 0.0
        %v1719 = vadd.f32 %v1618, 0.0
        %v1720 = vadd.f32 %v1619, 0.0
        %vm1721 = vcmp.ge.f32.partialorder %v1715, 0.0
        %vm1722 = vcmp.ge.f32.partialorder %v1716, 0.0
        %vm1723 = vcmp.ge.f32.partialorder %v1717, 0.0
        %vm1724 = vcmp.ge.f32.partialorder %v1718, 0.0
        %vm1725 = vcmp.ge.f32.partialorder %v1719, 0.0
        %vm1726 = vcmp.ge.f32.partialorder %v1720, 0.0
        %vm1727 = vmand %vm1644, %vm1721
        %vm1728 = vmand %vm1645, %vm1722
        %vm1729 = vmand %vm1646, %vm1723
        %vm1730 = vmand %vm1647, %vm1724
        %vm1731 = vmand %vm1648, %vm1725
        %vm1732 = vmand %vm1649, %vm1726
        %vm1733 = vcmp.le.f32.partialorder %v1715, 5.0
        %vm1734 = vcmp.le.f32.partialorder %v1716, 5.0
        %vm1735 = vcmp.le.f32.partialorder %v1717, 5.0
        %vm1736 = vcmp.le.f32.partialorder %v1718, 5.0
        %vm1737 = vcmp.le.f32.partialorder %v1719, 5.0
        %vm1738 = vcmp.le.f32.partialorder %v1720, 5.0
        %vm1739 = vmand %vm1727, %vm1733
        %vm1740 = vmand %vm1728, %vm1734
        %vm1741 = vmand %vm1729, %vm1735
        %vm1742 = vmand %vm1730, %vm1736
        %vm1743 = vmand %vm1731, %vm1737
        %vm1744 = vmand %vm1732, %vm1738
        %v1745 = vsel %vm1739, 1, 0
        %v1746 = vsel %vm1740, 1, 0
        %v1747 = vsel %vm1741, 1, 0
        %v1748 = vsel %vm1742, 1, 0
        %v1749 = vsel %vm1743, 1, 0
        %v1750 = vsel %vm1744, 1, 0
        %vm1751 = vcmp.eq.s32.totalorder %v1745, 1
        %vm1752 = vcmp.eq.s32.totalorder %v1746, 1
        %vm1753 = vcmp.eq.s32.totalorder %v1747, 1
        %vm1754 = vcmp.eq.s32.totalorder %v1748, 1
        %vm1755 = vcmp.eq.s32.totalorder %v1749, 1
        %vm1756 = vcmp.eq.s32.totalorder %v1750, 1
        %v1757 = vsel %vm1751, %v1709, 0.0
        %v1758 = vsel %vm1752, %v1710, 0.0
        %v1759 = vsel %vm1753, %v1711, 0.0
        %v1760 = vsel %vm1754, %v1712, 0.0
        %v1761 = vsel %vm1755, %v1713, 0.0
        %v1762 = vsel %vm1756, %v1714, 0.0
        %v1763 = vpack.c.bf16 %v1758, %v1757
        %v1764 = vpack.c.bf16 %v1760, %v1759
        %v1765 = vpack.c.bf16 %v1762, %v1761
        %s1766 = scalar_lea.vmem [#allocation3], 32
        %v1767 = vld [vmem:[%s1766] sm:$0xf]
        %v1768 = vld [vmem:[%s1766 + $0x4] sm:$0xf]
        %v1769 = vld [vmem:[%s1766 + $0x8] sm:$0xf]
        %v1770 = vld [vmem:[%s1766 + $0xc] sm:$0xf]
        %v1771 = vld [vmem:[%s1766 + $0x10] sm:$0xf]
        %v1772 = vld [vmem:[%s1766 + $0x14] sm:$0xf]
        %v1773 = vld [vmem:[%s1766 + $0x18] sm:$0xf]
        %v1774 = vld [vmem:[%s1766 + $0x1c] sm:$0xf]
        %v1783 = vunpack.c.l.b16 %v1767
        %v1784 = vunpack.c.l.b16 %v1768
        %v1785 = vunpack.c.l.b16 %v1769
        %v1786 = vunpack.c.l.b16 %v1770
        %v1787 = vunpack.c.l.b16 %v1771
        %v1788 = vunpack.c.l.b16 %v1772
        %v1789 = vunpack.c.l.b16 %v1773
        %v1790 = vunpack.c.l.b16 %v1774
        %v1791 = vpack.c.b16 %v1784, %v1783
        %v1792 = vpack.c.b16 %v1786, %v1785
        %v1793 = vpack.c.b16 %v1788, %v1787
        %v1794 = vpack.c.b16 %v1790, %v1789
        %v1800 = vsel %vm612, %v1763, 0
        %v1803 = vsel %vm612, %v1764, 0
        %v1806 = vsel %vm612, %v1765, 0
        %1808 = vmatprep.subr.bf16.mxu0 0
        %1809 = vmatpush1.bf16.msra.mxu0 %v1791
        %1810 = vmatprep.subr.bf16.mxu0 0
        %1811 = vmatpush1.bf16.msra.mxu0 %v1792
        %1812 = vmatprep.subr.bf16.mxu0 0
        %1813 = vmatpush1.bf16.msra.mxu0 %v1793
        %1814 = vmatprep.subr.bf16.mxu0 0
        %1815 = vmatpush1.bf16.msra.mxu0 %v1794
        %1816 = vmatprep.subr.bf16.mxu0 0
        %1817 = vmatpush1.bf16.msra.mxu0 0
        %1818 = vmatprep.subr.bf16.mxu0 0
        %1819 = vmatpush1.bf16.msra.mxu0 0
        %1820 = vmatprep.subr.bf16.mxu0 0
        %1821 = vmatpush1.bf16.msra.mxu0 0
        %1822 = vmatprep.subr.bf16.mxu0 0
        %1823 = vmatpush1.bf16.msra.mxu0 0
        %1824 = vmatprep.subr.bf16.mxu0 0
        %1825 = vmatpush1.bf16.msra.mxu0 0
        %1826 = vmatprep.subr.bf16.mxu0 0
        %1827 = vmatpush1.bf16.msra.mxu0 0
        %1828 = vmatprep.subr.bf16.mxu0 0
        %1829 = vmatpush1.bf16.msra.mxu0 0
        %1830 = vmatprep.subr.bf16.mxu0 0
        %1831 = vmatpush1.bf16.msra.mxu0 0
        %1832 = vmatprep.subr.bf16.mxu0 0
        %1833 = vmatpush1.bf16.msra.mxu0 0
        %1834 = vmatprep.subr.bf16.mxu0 0
        %1835 = vmatpush1.bf16.msra.mxu0 0
        %1836 = vmatprep.subr.bf16.mxu0 0
        %1837 = vmatpush1.bf16.msra.mxu0 0
        %1838 = vmatprep.subr.bf16.mxu0 0
        %1839 = vmatpush1.bf16.msra.mxu0 0
        %1840 = vmatprep.mubr.bf16.mxu0 0
        %1841 = vmatmul.mubr.bf16.gmra.mrb[0].mxu0 %v1800
        %v1842 = vpop.f32.mrb[0].mxu0
        %v1843 = vadd.f32 0.0, %v1842
        %v1844 = vpop.f32.mrb[0].mxu0
        %v1845 = vpop.f32.mrb[0].mxu0
        %v1846 = vadd.f32 0.0, %v1845
        %v1847 = vpop.f32.mrb[0].mxu0
        %1848 = vmatprep.mubr.bf16.mxu0 0
        %1849 = vmatmul.mubr.bf16.gmra.mrb[0].mxu0 %v1803
        %v1850 = vpop.f32.mrb[0].mxu0
        %v1851 = vadd.f32 0.0, %v1850
        %v1852 = vpop.f32.mrb[0].mxu0
        %v1853 = vpop.f32.mrb[0].mxu0
        %v1854 = vadd.f32 0.0, %v1853
        %v1855 = vpop.f32.mrb[0].mxu0
        %1856 = vmatprep.mubr.bf16.mxu0 0
        %1857 = vmatmul.mubr.bf16.gmra.mrb[0].mxu0 %v1806
        %v1858 = vpop.f32.mrb[0].mxu0
        %v1859 = vadd.f32 0.0, %v1858
        %v1860 = vpop.f32.mrb[0].mxu0
        %v1861 = vpop.f32.mrb[0].mxu0
        %v1862 = vadd.f32 0.0, %v1861
        %v1863 = vpop.f32.mrb[0].mxu0
        %1864 = vdwg.mxu0
        %v1873 = vunpack.c.l.b16 %v1701
        %v1874 = vunpack.c.l.b16 %v1702
        %v1875 = vunpack.c.l.b16 %v1703
        %v1876 = vunpack.c.l.b16 %v1704
        %v1877 = vunpack.c.l.b16 %v1705
        %v1878 = vunpack.c.l.b16 %v1706
        %v1879 = vunpack.c.l.b16 %v1707
        %v1880 = vunpack.c.l.b16 %v1708
        %v1881 = vpack.c.b16 %v1874, %v1873
        %v1882 = vpack.c.b16 %v1876, %v1875
        %v1883 = vpack.c.b16 %v1878, %v1877
        %v1884 = vpack.c.b16 %v1880, %v1879
        %v1890 = vsel %vm612, %v1698, 0
        %v1893 = vsel %vm612, %v1699, 0
        %v1896 = vsel %vm612, %v1700, 0
        %1898 = vmatprep.subr.bf16.mxu0 0
        %1899 = vmatpush1.bf16.msra.mxu0 %v1881
        %1900 = vmatprep.subr.bf16.mxu0 0
        %1901 = vmatpush1.bf16.msra.mxu0 %v1882
        %1902 = vmatprep.subr.bf16.mxu0 0
        %1903 = vmatpush1.bf16.msra.mxu0 %v1883
        %1904 = vmatprep.subr.bf16.mxu0 0
        %1905 = vmatpush1.bf16.msra.mxu0 %v1884
        %1906 = vmatprep.subr.bf16.mxu0 0
        %1907 = vmatpush1.bf16.msra.mxu0 0
        %1908 = vmatprep.subr.bf16.mxu0 0
        %1909 = vmatpush1.bf16.msra.mxu0 0
        %1910 = vmatprep.subr.bf16.mxu0 0
        %1911 = vmatpush1.bf16.msra.mxu0 0
        %1912 = vmatprep.subr.bf16.mxu0 0
        %1913 = vmatpush1.bf16.msra.mxu0 0
        %1914 = vmatprep.subr.bf16.mxu0 0
        %1915 = vmatpush1.bf16.msra.mxu0 0
        %1916 = vmatprep.subr.bf16.mxu0 0
        %1917 = vmatpush1.bf16.msra.mxu0 0
        %1918 = vmatprep.subr.bf16.mxu0 0
        %1919 = vmatpush1.bf16.msra.mxu0 0
        %1920 = vmatprep.subr.bf16.mxu0 0
        %1921 = vmatpush1.bf16.msra.mxu0 0
        %1922 = vmatprep.subr.bf16.mxu0 0
        %1923 = vmatpush1.bf16.msra.mxu0 0
        %1924 = vmatprep.subr.bf16.mxu0 0
        %1925 = vmatpush1.bf16.msra.mxu0 0
        %1926 = vmatprep.subr.bf16.mxu0 0
        %1927 = vmatpush1.bf16.msra.mxu0 0
        %1928 = vmatprep.subr.bf16.mxu0 0
        %1929 = vmatpush1.bf16.msra.mxu0 0
        %1930 = vmatprep.mubr.bf16.mxu0 0
        %1931 = vmatmul.mubr.bf16.gmra.mrb[0].mxu0 %v1890
        %v1932 = vpop.f32.mrb[0].mxu0
        %v1933 = vadd.f32 %v1843, %v1932
        %v1934 = vpop.f32.mrb[0].mxu0
        %v1935 = vpop.f32.mrb[0].mxu0
        %v1936 = vadd.f32 %v1846, %v1935
        %v1937 = vpop.f32.mrb[0].mxu0
        %1938 = vmatprep.mubr.bf16.mxu0 0
        %1939 = vmatmul.mubr.bf16.gmra.mrb[0].mxu0 %v1893
        %v1940 = vpop.f32.mrb[0].mxu0
        %v1941 = vadd.f32 %v1851, %v1940
        %v1942 = vpop.f32.mrb[0].mxu0
        %v1943 = vpop.f32.mrb[0].mxu0
        %v1944 = vadd.f32 %v1854, %v1943
        %v1945 = vpop.f32.mrb[0].mxu0
        %1946 = vmatprep.mubr.bf16.mxu0 0
        %1947 = vmatmul.mubr.bf16.gmra.mrb[0].mxu0 %v1896
        %v1948 = vpop.f32.mrb[0].mxu0
        %v1949 = vadd.f32 %v1859, %v1948
        %v1950 = vpop.f32.mrb[0].mxu0
        %v1951 = vpop.f32.mrb[0].mxu0
        %v1952 = vadd.f32 %v1862, %v1951
        %v1953 = vpop.f32.mrb[0].mxu0
        %1954 = vdwg.mxu0
        %v1955 = vld [vmem:[#allocation2 + $0x3] sm:$0xff]
        %v1956 = vld [vmem:[#allocation2 + $0xb] sm:$0xff]
        %v1957 = vld [vmem:[#allocation2 + $0x13] sm:$0xff]
        %v1958 = vld [vmem:[#allocation2 + $0x1b] sm:$0xff]
        %v1959 = vld [vmem:[#allocation2 + $0x23] sm:$0xff]
        %v1960 = vld [vmem:[#allocation2 + $0x2b] sm:$0xff]
        %v1961 = vadd.f32 %v1614, 1.0
        %v1962 = vadd.f32 %v1615, 1.0
        %v1963 = vadd.f32 %v1616, 1.0
        %v1964 = vadd.f32 %v1617, 1.0
        %v1965 = vadd.f32 %v1618, 1.0
        %v1966 = vadd.f32 %v1619, 1.0
        %vm1967 = vcmp.ge.f32.partialorder %v1961, 0.0
        %vm1968 = vcmp.ge.f32.partialorder %v1962, 0.0
        %vm1969 = vcmp.ge.f32.partialorder %v1963, 0.0
        %vm1970 = vcmp.ge.f32.partialorder %v1964, 0.0
        %vm1971 = vcmp.ge.f32.partialorder %v1965, 0.0
        %vm1972 = vcmp.ge.f32.partialorder %v1966, 0.0
        %vm1973 = vmand %vm1644, %vm1967
        %vm1974 = vmand %vm1645, %vm1968
        %vm1975 = vmand %vm1646, %vm1969
        %vm1976 = vmand %vm1647, %vm1970
        %vm1977 = vmand %vm1648, %vm1971
        %vm1978 = vmand %vm1649, %vm1972
        %vm1979 = vcmp.le.f32.partialorder %v1961, 5.0
        %vm1980 = vcmp.le.f32.partialorder %v1962, 5.0
        %vm1981 = vcmp.le.f32.partialorder %v1963, 5.0
        %vm1982 = vcmp.le.f32.partialorder %v1964, 5.0
        %vm1983 = vcmp.le.f32.partialorder %v1965, 5.0
        %vm1984 = vcmp.le.f32.partialorder %v1966, 5.0
        %vm1985 = vmand %vm1973, %vm1979
        %vm1986 = vmand %vm1974, %vm1980
        %vm1987 = vmand %vm1975, %vm1981
        %vm1988 = vmand %vm1976, %vm1982
        %vm1989 = vmand %vm1977, %vm1983
        %vm1990 = vmand %vm1978, %vm1984
        %v1991 = vsel %vm1985, 1, 0
        %v1992 = vsel %vm1986, 1, 0
        %v1993 = vsel %vm1987, 1, 0
        %v1994 = vsel %vm1988, 1, 0
        %v1995 = vsel %vm1989, 1, 0
        %v1996 = vsel %vm1990, 1, 0
        %vm1997 = vcmp.eq.s32.totalorder %v1991, 1
        %vm1998 = vcmp.eq.s32.totalorder %v1992, 1
        %vm1999 = vcmp.eq.s32.totalorder %v1993, 1
        %vm2000 = vcmp.eq.s32.totalorder %v1994, 1
        %vm2001 = vcmp.eq.s32.totalorder %v1995, 1
        %vm2002 = vcmp.eq.s32.totalorder %v1996, 1
        %v2003 = vsel %vm1997, %v1955, 0.0
        %v2004 = vsel %vm1998, %v1956, 0.0
        %v2005 = vsel %vm1999, %v1957, 0.0
        %v2006 = vsel %vm2000, %v1958, 0.0
        %v2007 = vsel %vm2001, %v1959, 0.0
        %v2008 = vsel %vm2002, %v1960, 0.0
        %v2009 = vpack.c.bf16 %v2004, %v2003
        %v2010 = vpack.c.bf16 %v2006, %v2005
        %v2011 = vpack.c.bf16 %v2008, %v2007
        %s2012 = scalar_lea.vmem [#allocation3], 64
        %v2013 = vld [vmem:[%s2012] sm:$0xf]
        %v2014 = vld [vmem:[%s2012 + $0x4] sm:$0xf]
        %v2015 = vld [vmem:[%s2012 + $0x8] sm:$0xf]
        %v2016 = vld [vmem:[%s2012 + $0xc] sm:$0xf]
        %v2017 = vld [vmem:[%s2012 + $0x10] sm:$0xf]
        %v2018 = vld [vmem:[%s2012 + $0x14] sm:$0xf]
        %v2019 = vld [vmem:[%s2012 + $0x18] sm:$0xf]
        %v2020 = vld [vmem:[%s2012 + $0x1c] sm:$0xf]
        %v2029 = vunpack.c.l.b16 %v2013
        %v2030 = vunpack.c.l.b16 %v2014
        %v2031 = vunpack.c.l.b16 %v2015
        %v2032 = vunpack.c.l.b16 %v2016
        %v2033 = vunpack.c.l.b16 %v2017
        %v2034 = vunpack.c.l.b16 %v2018
        %v2035 = vunpack.c.l.b16 %v2019
        %v2036 = vunpack.c.l.b16 %v2020
        %v2037 = vpack.c.b16 %v2030, %v2029
        %v2038 = vpack.c.b16 %v2032, %v2031
        %v2039 = vpack.c.b16 %v2034, %v2033
        %v2040 = vpack.c.b16 %v2036, %v2035
        %v2046 = vsel %vm612, %v2009, 0
        %v2049 = vsel %vm612, %v2010, 0
        %v2052 = vsel %vm612, %v2011, 0
        %2054 = vmatprep.subr.bf16.mxu0 0
        %2055 = vmatpush1.bf16.msra.mxu0 %v2037
        %2056 = vmatprep.subr.bf16.mxu0 0
        %2057 = vmatpush1.bf16.msra.mxu0 %v2038
        %2058 = vmatprep.subr.bf16.mxu0 0
        %2059 = vmatpush1.bf16.msra.mxu0 %v2039
        %2060 = vmatprep.subr.bf16.mxu0 0
        %2061 = vmatpush1.bf16.msra.mxu0 %v2040
        %2062 = vmatprep.subr.bf16.mxu0 0
        %2063 = vmatpush1.bf16.msra.mxu0 0
        %2064 = vmatprep.subr.bf16.mxu0 0
        %2065 = vmatpush1.bf16.msra.mxu0 0
        %2066 = vmatprep.subr.bf16.mxu0 0
        %2067 = vmatpush1.bf16.msra.mxu0 0
        %2068 = vmatprep.subr.bf16.mxu0 0
        %2069 = vmatpush1.bf16.msra.mxu0 0
        %2070 = vmatprep.subr.bf16.mxu0 0
        %2071 = vmatpush1.bf16.msra.mxu0 0
        %2072 = vmatprep.subr.bf16.mxu0 0
        %2073 = vmatpush1.bf16.msra.mxu0 0
        %2074 = vmatprep.subr.bf16.mxu0 0
        %2075 = vmatpush1.bf16.msra.mxu0 0
        %2076 = vmatprep.subr.bf16.mxu0 0
        %2077 = vmatpush1.bf16.msra.mxu0 0
        %2078 = vmatprep.subr.bf16.mxu0 0
        %2079 = vmatpush1.bf16.msra.mxu0 0
        %2080 = vmatprep.subr.bf16.mxu0 0
        %2081 = vmatpush1.bf16.msra.mxu0 0
        %2082 = vmatprep.subr.bf16.mxu0 0
        %2083 = vmatpush1.bf16.msra.mxu0 0
        %2084 = vmatprep.subr.bf16.mxu0 0
        %2085 = vmatpush1.bf16.msra.mxu0 0
        %2086 = vmatprep.mubr.bf16.mxu0 0
        %2087 = vmatmul.mubr.bf16.gmra.mrb[0].mxu0 %v2046
        %v2088 = vpop.f32.mrb[0].mxu0
        %v2089 = vadd.f32 0.0, %v2088
        %v2090 = vpop.f32.mrb[0].mxu0
        %v2091 = vpop.f32.mrb[0].mxu0
        %v2092 = vadd.f32 0.0, %v2091
        %v2093 = vpop.f32.mrb[0].mxu0
        %2094 = vmatprep.mubr.bf16.mxu0 0
        %2095 = vmatmul.mubr.bf16.gmra.mrb[0].mxu0 %v2049
        %v2096 = vpop.f32.mrb[0].mxu0
        %v2097 = vadd.f32 0.0, %v2096
        %v2098 = vpop.f32.mrb[0].mxu0
        %v2099 = vpop.f32.mrb[0].mxu0
        %v2100 = vadd.f32 0.0, %v2099
        %v2101 = vpop.f32.mrb[0].mxu0
        %2102 = vmatprep.mubr.bf16.mxu0 0
        %2103 = vmatmul.mubr.bf16.gmra.mrb[0].mxu0 %v2052
        %v2104 = vpop.f32.mrb[0].mxu0
        %v2105 = vadd.f32 0.0, %v2104
        %v2106 = vpop.f32.mrb[0].mxu0
        %v2107 = vpop.f32.mrb[0].mxu0
        %v2108 = vadd.f32 0.0, %v2107
        %v2109 = vpop.f32.mrb[0].mxu0
        %2110 = vdwg.mxu0
        %v2111 = vadd.f32 %v1933, %v2089
        %v2112 = vadd.f32 %v1936, %v2092
        %v2113 = vadd.f32 %v1941, %v2097
        %v2114 = vadd.f32 %v1944, %v2100
        %v2115 = vadd.f32 %v1949, %v2105
        %v2116 = vadd.f32 %v1952, %v2108
        %v2117 = vld [vmem:[#allocation2 + $0x7] sm:$0xff]
        %v2118 = vld [vmem:[#allocation2 + $0xf] sm:$0xff]
        %v2119 = vld [vmem:[#allocation2 + $0x17] sm:$0xff]
        %v2120 = vld [vmem:[#allocation2 + $0x1f] sm:$0xff]
        %v2121 = vld [vmem:[#allocation2 + $0x27] sm:$0xff]
        %v2122 = vld [vmem:[#allocation2 + $0x2f] sm:$0xff]
        %v2123 = vadd.f32 %v1602, 0.0
        %v2124 = vadd.f32 %v1603, 0.0
        %v2125 = vadd.f32 %v1604, 0.0
        %v2126 = vadd.f32 %v1605, 0.0
        %v2127 = vadd.f32 %v1606, 0.0
        %v2128 = vadd.f32 %v1607, 0.0
        %vm2129 = vcmp.ge.f32.partialorder %v2123, 0.0
        %vm2130 = vcmp.ge.f32.partialorder %v2124, 0.0
        %vm2131 = vcmp.ge.f32.partialorder %v2125, 0.0
        %vm2132 = vcmp.ge.f32.partialorder %v2126, 0.0
        %vm2133 = vcmp.ge.f32.partialorder %v2127, 0.0
        %vm2134 = vcmp.ge.f32.partialorder %v2128, 0.0
        %vm2135 = vcmp.le.f32.partialorder %v2123, 7.0
        %vm2136 = vcmp.le.f32.partialorder %v2124, 7.0
        %vm2137 = vcmp.le.f32.partialorder %v2125, 7.0
        %vm2138 = vcmp.le.f32.partialorder %v2126, 7.0
        %vm2139 = vcmp.le.f32.partialorder %v2127, 7.0
        %vm2140 = vcmp.le.f32.partialorder %v2128, 7.0
        %vm2141 = vmand %vm2129, %vm2135
        %vm2142 = vmand %vm2130, %vm2136
        %vm2143 = vmand %vm2131, %vm2137
        %vm2144 = vmand %vm2132, %vm2138
        %vm2145 = vmand %vm2133, %vm2139
        %vm2146 = vmand %vm2134, %vm2140
        %vm2147 = vmand %vm2141, %vm1656
        %vm2148 = vmand %vm2142, %vm1657
        %vm2149 = vmand %vm2143, %vm1658
        %vm2150 = vmand %vm2144, %vm1659
        %vm2151 = vmand %vm2145, %vm1660
        %vm2152 = vmand %vm2146, %vm1661
        %vm2153 = vmand %vm2147, %vm1668
        %vm2154 = vmand %vm2148, %vm1669
        %vm2155 = vmand %vm2149, %vm1670
        %vm2156 = vmand %vm2150, %vm1671
        %vm2157 = vmand %vm2151, %vm1672
        %vm2158 = vmand %vm2152, %vm1673
        %v2159 = vsel %vm2153, 1, 0
        %v2160 = vsel %vm2154, 1, 0
        %v2161 = vsel %vm2155, 1, 0
        %v2162 = vsel %vm2156, 1, 0
        %v2163 = vsel %vm2157, 1, 0
        %v2164 = vsel %vm2158, 1, 0
        %vm2165 = vcmp.eq.s32.totalorder %v2159, 1
        %vm2166 = vcmp.eq.s32.totalorder %v2160, 1
        %vm2167 = vcmp.eq.s32.totalorder %v2161, 1
        %vm2168 = vcmp.eq.s32.totalorder %v2162, 1
        %vm2169 = vcmp.eq.s32.totalorder %v2163, 1
        %vm2170 = vcmp.eq.s32.totalorder %v2164, 1
        %v2171 = vsel %vm2165, %v2117, 0.0
        %v2172 = vsel %vm2166, %v2118, 0.0
        %v2173 = vsel %vm2167, %v2119, 0.0
        %v2174 = vsel %vm2168, %v2120, 0.0
        %v2175 = vsel %vm2169, %v2121, 0.0
        %v2176 = vsel %vm2170, %v2122, 0.0
        %v2177 = vpack.c.bf16 %v2172, %v2171
        %v2178 = vpack.c.bf16 %v2174, %v2173
        %v2179 = vpack.c.bf16 %v2176, %v2175
        %s2180 = scalar_lea.vmem [#allocation3], 96
        %v2181 = vld [vmem:[%s2180] sm:$0xf]
        %v2182 = vld [vmem:[%s2180 + $0x4] sm:$0xf]
        %v2183 = vld [vmem:[%s2180 + $0x8] sm:$0xf]
        %v2184 = vld [vmem:[%s2180 + $0xc] sm:$0xf]
        %v2185 = vld [vmem:[%s2180 + $0x10] sm:$0xf]
        %v2186 = vld [vmem:[%s2180 + $0x14] sm:$0xf]
        %v2187 = vld [vmem:[%s2180 + $0x18] sm:$0xf]
        %v2188 = vld [vmem:[%s2180 + $0x1c] sm:$0xf]
        %v2197 = vunpack.c.l.b16 %v2181
        %v2198 = vunpack.c.l.b16 %v2182
        %v2199 = vunpack.c.l.b16 %v2183
        %v2200 = vunpack.c.l.b16 %v2184
        %v2201 = vunpack.c.l.b16 %v2185
        %v2202 = vunpack.c.l.b16 %v2186
        %v2203 = vunpack.c.l.b16 %v2187
        %v2204 = vunpack.c.l.b16 %v2188
        %v2205 = vpack.c.b16 %v2198, %v2197
        %v2206 = vpack.c.b16 %v2200, %v2199
        %v2207 = vpack.c.b16 %v2202, %v2201
        %v2208 = vpack.c.b16 %v2204, %v2203
        %v2214 = vsel %vm612, %v2177, 0
        %v2217 = vsel %vm612, %v2178, 0
        %v2220 = vsel %vm612, %v2179, 0
        %2222 = vmatprep.subr.bf16.mxu0 0
        %2223 = vmatpush1.bf16.msra.mxu0 %v2205
        %2224 = vmatprep.subr.bf16.mxu0 0
        %2225 = vmatpush1.bf16.msra.mxu0 %v2206
        %2226 = vmatprep.subr.bf16.mxu0 0
        %2227 = vmatpush1.bf16.msra.mxu0 %v2207
        %2228 = vmatprep.subr.bf16.mxu0 0
        %2229 = vmatpush1.bf16.msra.mxu0 %v2208
        %2230 = vmatprep.subr.bf16.mxu0 0
        %2231 = vmatpush1.bf16.msra.mxu0 0
        %2232 = vmatprep.subr.bf16.mxu0 0
        %2233 = vmatpush1.bf16.msra.mxu0 0
        %2234 = vmatprep.subr.bf16.mxu0 0
        %2235 = vmatpush1.bf16.msra.mxu0 0
        %2236 = vmatprep.subr.bf16.mxu0 0
        %2237 = vmatpush1.bf16.msra.mxu0 0
        %2238 = vmatprep.subr.bf16.mxu0 0
        %2239 = vmatpush1.bf16.msra.mxu0 0
        %2240 = vmatprep.subr.bf16.mxu0 0
        %2241 = vmatpush1.bf16.msra.mxu0 0
        %2242 = vmatprep.subr.bf16.mxu0 0
        %2243 = vmatpush1.bf16.msra.mxu0 0
        %2244 = vmatprep.subr.bf16.mxu0 0
        %2245 = vmatpush1.bf16.msra.mxu0 0
        %2246 = vmatprep.subr.bf16.mxu0 0
        %2247 = vmatpush1.bf16.msra.mxu0 0
        %2248 = vmatprep.subr.bf16.mxu0 0
        %2249 = vmatpush1.bf16.msra.mxu0 0
        %2250 = vmatprep.subr.bf16.mxu0 0
        %2251 = vmatpush1.bf16.msra.mxu0 0
        %2252 = vmatprep.subr.bf16.mxu0 0
        %2253 = vmatpush1.bf16.msra.mxu0 0
        %2254 = vmatprep.mubr.bf16.mxu0 0
        %2255 = vmatmul.mubr.bf16.gmra.mrb[0].mxu0 %v2214
        %v2256 = vpop.f32.mrb[0].mxu0
        %v2257 = vadd.f32 0.0, %v2256
        %v2258 = vpop.f32.mrb[0].mxu0
        %v2259 = vpop.f32.mrb[0].mxu0
        %v2260 = vadd.f32 0.0, %v2259
        %v2261 = vpop.f32.mrb[0].mxu0
        %2262 = vmatprep.mubr.bf16.mxu0 0
        %2263 = vmatmul.mubr.bf16.gmra.mrb[0].mxu0 %v2217
        %v2264 = vpop.f32.mrb[0].mxu0
        %v2265 = vadd.f32 0.0, %v2264
        %v2266 = vpop.f32.mrb[0].mxu0
        %v2267 = vpop.f32.mrb[0].mxu0
        %v2268 = vadd.f32 0.0, %v2267
        %v2269 = vpop.f32.mrb[0].mxu0
        %2270 = vmatprep.mubr.bf16.mxu0 0
        %2271 = vmatmul.mubr.bf16.gmra.mrb[0].mxu0 %v2220
        %v2272 = vpop.f32.mrb[0].mxu0
        %v2273 = vadd.f32 0.0, %v2272
        %v2274 = vpop.f32.mrb[0].mxu0
        %v2275 = vpop.f32.mrb[0].mxu0
        %v2276 = vadd.f32 0.0, %v2275
        %v2277 = vpop.f32.mrb[0].mxu0
        %2278 = vdwg.mxu0
        %v2279 = vadd.f32 %v2111, %v2257
        %v2280 = vadd.f32 %v2112, %v2260
        %v2281 = vadd.f32 %v2113, %v2265
        %v2282 = vadd.f32 %v2114, %v2268
        %v2283 = vadd.f32 %v2115, %v2273
        %v2284 = vadd.f32 %v2116, %v2276
        %v2285 = vld [vmem:[#allocation2 + $0x8] sm:$0xff]
        %v2286 = vld [vmem:[#allocation2 + $0x10] sm:$0xff]
        %v2287 = vld [vmem:[#allocation2 + $0x18] sm:$0xff]
        %v2288 = vld [vmem:[#allocation2 + $0x20] sm:$0xff]
        %v2289 = vld [vmem:[#allocation2 + $0x28] sm:$0xff]
        %v2290 = vld [vmem:[#allocation2 + $0x30] sm:$0xff]
        %vm2291 = vmand %vm2141, %vm1721
        %vm2292 = vmand %vm2142, %vm1722
        %vm2293 = vmand %vm2143, %vm1723
        %vm2294 = vmand %vm2144, %vm1724
        %vm2295 = vmand %vm2145, %vm1725
        %vm2296 = vmand %vm2146, %vm1726
        %vm2297 = vmand %vm2291, %vm1733
        %vm2298 = vmand %vm2292, %vm1734
        %vm2299 = vmand %vm2293, %vm1735
        %vm2300 = vmand %vm2294, %vm1736
        %vm2301 = vmand %vm2295, %vm1737
        %vm2302 = vmand %vm2296, %vm1738
        %v2303 = vsel %vm2297, 1, 0
        %v2304 = vsel %vm2298, 1, 0
        %v2305 = vsel %vm2299, 1, 0
        %v2306 = vsel %vm2300, 1, 0
        %v2307 = vsel %vm2301, 1, 0
        %v2308 = vsel %vm2302, 1, 0
        %vm2309 = vcmp.eq.s32.totalorder %v2303, 1
        %vm2310 = vcmp.eq.s32.totalorder %v2304, 1
        %vm2311 = vcmp.eq.s32.totalorder %v2305, 1
        %vm2312 = vcmp.eq.s32.totalorder %v2306, 1
        %vm2313 = vcmp.eq.s32.totalorder %v2307, 1
        %vm2314 = vcmp.eq.s32.totalorder %v2308, 1
        %v2315 = vsel %vm2309, %v2285, 0.0
        %v2316 = vsel %vm2310, %v2286, 0.0
        %v2317 = vsel %vm2311, %v2287, 0.0
        %v2318 = vsel %vm2312, %v2288, 0.0
        %v2319 = vsel %vm2313, %v2289, 0.0
        %v2320 = vsel %vm2314, %v2290, 0.0
        %v2321 = vpack.c.bf16 %v2316, %v2315
        %v2322 = vpack.c.bf16 %v2318, %v2317
        %v2323 = vpack.c.bf16 %v2320, %v2319
        %s2324 = scalar_lea.vmem [#allocation3], 128
        %v2325 = vld [vmem:[%s2324] sm:$0xf]
        %v2326 = vld [vmem:[%s2324 + $0x4] sm:$0xf]
        %v2327 = vld [vmem:[%s2324 + $0x8] sm:$0xf]
        %v2328 = vld [vmem:[%s2324 + $0xc] sm:$0xf]
        %v2329 = vld [vmem:[%s2324 + $0x10] sm:$0xf]
        %v2330 = vld [vmem:[%s2324 + $0x14] sm:$0xf]
        %v2331 = vld [vmem:[%s2324 + $0x18] sm:$0xf]
        %v2332 = vld [vmem:[%s2324 + $0x1c] sm:$0xf]
        %v2341 = vunpack.c.l.b16 %v2325
        %v2342 = vunpack.c.l.b16 %v2326
        %v2343 = vunpack.c.l.b16 %v2327
        %v2344 = vunpack.c.l.b16 %v2328
        %v2345 = vunpack.c.l.b16 %v2329
        %v2346 = vunpack.c.l.b16 %v2330
        %v2347 = vunpack.c.l.b16 %v2331
        %v2348 = vunpack.c.l.b16 %v2332
        %v2349 = vpack.c.b16 %v2342, %v2341
        %v2350 = vpack.c.b16 %v2344, %v2343
        %v2351 = vpack.c.b16 %v2346, %v2345
        %v2352 = vpack.c.b16 %v2348, %v2347
        %v2358 = vsel %vm612, %v2321, 0
        %v2361 = vsel %vm612, %v2322, 0
        %v2364 = vsel %vm612, %v2323, 0
        %2366 = vmatprep.subr.bf16.mxu0 0
        %2367 = vmatpush1.bf16.msra.mxu0 %v2349
        %2368 = vmatprep.subr.bf16.mxu0 0
        %2369 = vmatpush1.bf16.msra.mxu0 %v2350
        %2370 = vmatprep.subr.bf16.mxu0 0
        %2371 = vmatpush1.bf16.msra.mxu0 %v2351
        %2372 = vmatprep.subr.bf16.mxu0 0
        %2373 = vmatpush1.bf16.msra.mxu0 %v2352
        %2374 = vmatprep.subr.bf16.mxu0 0
        %2375 = vmatpush1.bf16.msra.mxu0 0
        %2376 = vmatprep.subr.bf16.mxu0 0
        %2377 = vmatpush1.bf16.msra.mxu0 0
        %2378 = vmatprep.subr.bf16.mxu0 0
        %2379 = vmatpush1.bf16.msra.mxu0 0
        %2380 = vmatprep.subr.bf16.mxu0 0
        %2381 = vmatpush1.bf16.msra.mxu0 0
        %2382 = vmatprep.subr.bf16.mxu0 0
        %2383 = vmatpush1.bf16.msra.mxu0 0
        %2384 = vmatprep.subr.bf16.mxu0 0
        %2385 = vmatpush1.bf16.msra.mxu0 0
        %2386 = vmatprep.subr.bf16.mxu0 0
        %2387 = vmatpush1.bf16.msra.mxu0 0
        %2388 = vmatprep.subr.bf16.mxu0 0
        %2389 = vmatpush1.bf16.msra.mxu0 0
        %2390 = vmatprep.subr.bf16.mxu0 0
        %2391 = vmatpush1.bf16.msra.mxu0 0
        %2392 = vmatprep.subr.bf16.mxu0 0
        %2393 = vmatpush1.bf16.msra.mxu0 0
        %2394 = vmatprep.subr.bf16.mxu0 0
        %2395 = vmatpush1.bf16.msra.mxu0 0
        %2396 = vmatprep.subr.bf16.mxu0 0
        %2397 = vmatpush1.bf16.msra.mxu0 0
        %2398 = vmatprep.mubr.bf16.mxu0 0
        %2399 = vmatmul.mubr.bf16.gmra.mrb[0].mxu0 %v2358
        %v2400 = vpop.f32.mrb[0].mxu0
        %v2401 = vadd.f32 0.0, %v2400
        %v2402 = vpop.f32.mrb[0].mxu0
        %v2403 = vpop.f32.mrb[0].mxu0
        %v2404 = vadd.f32 0.0, %v2403
        %v2405 = vpop.f32.mrb[0].mxu0
        %2406 = vmatprep.mubr.bf16.mxu0 0
        %2407 = vmatmul.mubr.bf16.gmra.mrb[0].mxu0 %v2361
        %v2408 = vpop.f32.mrb[0].mxu0
        %v2409 = vadd.f32 0.0, %v2408
        %v2410 = vpop.f32.mrb[0].mxu0
        %v2411 = vpop.f32.mrb[0].mxu0
        %v2412 = vadd.f32 0.0, %v2411
        %v2413 = vpop.f32.mrb[0].mxu0
        %2414 = vmatprep.mubr.bf16.mxu0 0
        %2415 = vmatmul.mubr.bf16.gmra.mrb[0].mxu0 %v2364
        %v2416 = vpop.f32.mrb[0].mxu0
        %v2417 = vadd.f32 0.0, %v2416
        %v2418 = vpop.f32.mrb[0].mxu0
        %v2419 = vpop.f32.mrb[0].mxu0
        %v2420 = vadd.f32 0.0, %v2419
        %v2421 = vpop.f32.mrb[0].mxu0
        %2422 = vdwg.mxu0
        %v2423 = vadd.f32 %v2279, %v2401
        %v2424 = vadd.f32 %v2280, %v2404
        %v2425 = vadd.f32 %v2281, %v2409
        %v2426 = vadd.f32 %v2282, %v2412
        %v2427 = vadd.f32 %v2283, %v2417
        %v2428 = vadd.f32 %v2284, %v2420
        %v2429 = vld [vmem:[#allocation2 + $0x9] sm:$0xff]
        %v2430 = vld [vmem:[#allocation2 + $0x11] sm:$0xff]
        %v2431 = vld [vmem:[#allocation2 + $0x19] sm:$0xff]
        %v2432 = vld [vmem:[#allocation2 + $0x21] sm:$0xff]
        %v2433 = vld [vmem:[#allocation2 + $0x29] sm:$0xff]
        %v2434 = vld [vmem:[#allocation2 + $0x31] sm:$0xff]
        %vm2435 = vmand %vm2141, %vm1967
        %vm2436 = vmand %vm2142, %vm1968
        %vm2437 = vmand %vm2143, %vm1969
        %vm2438 = vmand %vm2144, %vm1970
        %vm2439 = vmand %vm2145, %vm1971
        %vm2440 = vmand %vm2146, %vm1972
        %vm2441 = vmand %vm2435, %vm1979
        %vm2442 = vmand %vm2436, %vm1980
        %vm2443 = vmand %vm2437, %vm1981
        %vm2444 = vmand %vm2438, %vm1982
        %vm2445 = vmand %vm2439, %vm1983
        %vm2446 = vmand %vm2440, %vm1984
        %v2447 = vsel %vm2441, 1, 0
        %v2448 = vsel %vm2442, 1, 0
        %v2449 = vsel %vm2443, 1, 0
        %v2450 = vsel %vm2444, 1, 0
        %v2451 = vsel %vm2445, 1, 0
        %v2452 = vsel %vm2446, 1, 0
        %vm2453 = vcmp.eq.s32.totalorder %v2447, 1
        %vm2454 = vcmp.eq.s32.totalorder %v2448, 1
        %vm2455 = vcmp.eq.s32.totalorder %v2449, 1
        %vm2456 = vcmp.eq.s32.totalorder %v2450, 1
        %vm2457 = vcmp.eq.s32.totalorder %v2451, 1
        %vm2458 = vcmp.eq.s32.totalorder %v2452, 1
        %v2459 = vsel %vm2453, %v2429, 0.0
        %v2460 = vsel %vm2454, %v2430, 0.0
        %v2461 = vsel %vm2455, %v2431, 0.0
        %v2462 = vsel %vm2456, %v2432, 0.0
        %v2463 = vsel %vm2457, %v2433, 0.0
        %v2464 = vsel %vm2458, %v2434, 0.0
        %v2465 = vpack.c.bf16 %v2460, %v2459
        %v2466 = vpack.c.bf16 %v2462, %v2461
        %v2467 = vpack.c.bf16 %v2464, %v2463
        %s2468 = scalar_lea.vmem [#allocation3], 160
        %v2469 = vld [vmem:[%s2468] sm:$0xf]
        %v2470 = vld [vmem:[%s2468 + $0x4] sm:$0xf]
        %v2471 = vld [vmem:[%s2468 + $0x8] sm:$0xf]
        %v2472 = vld [vmem:[%s2468 + $0xc] sm:$0xf]
        %v2473 = vld [vmem:[%s2468 + $0x10] sm:$0xf]
        %v2474 = vld [vmem:[%s2468 + $0x14] sm:$0xf]
        %v2475 = vld [vmem:[%s2468 + $0x18] sm:$0xf]
        %v2476 = vld [vmem:[%s2468 + $0x1c] sm:$0xf]
        %v2485 = vunpack.c.l.b16 %v2469
        %v2486 = vunpack.c.l.b16 %v2470
        %v2487 = vunpack.c.l.b16 %v2471
        %v2488 = vunpack.c.l.b16 %v2472
        %v2489 = vunpack.c.l.b16 %v2473
        %v2490 = vunpack.c.l.b16 %v2474
        %v2491 = vunpack.c.l.b16 %v2475
        %v2492 = vunpack.c.l.b16 %v2476
        %v2493 = vpack.c.b16 %v2486, %v2485
        %v2494 = vpack.c.b16 %v2488, %v2487
        %v2495 = vpack.c.b16 %v2490, %v2489
        %v2496 = vpack.c.b16 %v2492, %v2491
        %v2502 = vsel %vm612, %v2465, 0
        %v2505 = vsel %vm612, %v2466, 0
        %v2508 = vsel %vm612, %v2467, 0
        %2510 = vmatprep.subr.bf16.mxu0 0
        %2511 = vmatpush1.bf16.msra.mxu0 %v2493
        %2512 = vmatprep.subr.bf16.mxu0 0
        %2513 = vmatpush1.bf16.msra.mxu0 %v2494
        %2514 = vmatprep.subr.bf16.mxu0 0
        %2515 = vmatpush1.bf16.msra.mxu0 %v2495
        %2516 = vmatprep.subr.bf16.mxu0 0
        %2517 = vmatpush1.bf16.msra.mxu0 %v2496
        %2518 = vmatprep.subr.bf16.mxu0 0
        %2519 = vmatpush1.bf16.msra.mxu0 0
        %2520 = vmatprep.subr.bf16.mxu0 0
        %2521 = vmatpush1.bf16.msra.mxu0 0
        %2522 = vmatprep.subr.bf16.mxu0 0
        %2523 = vmatpush1.bf16.msra.mxu0 0
        %2524 = vmatprep.subr.bf16.mxu0 0
        %2525 = vmatpush1.bf16.msra.mxu0 0
        %2526 = vmatprep.subr.bf16.mxu0 0
        %2527 = vmatpush1.bf16.msra.mxu0 0
        %2528 = vmatprep.subr.bf16.mxu0 0
        %2529 = vmatpush1.bf16.msra.mxu0 0
        %2530 = vmatprep.subr.bf16.mxu0 0
        %2531 = vmatpush1.bf16.msra.mxu0 0
        %2532 = vmatprep.subr.bf16.mxu0 0
        %2533 = vmatpush1.bf16.msra.mxu0 0
        %2534 = vmatprep.subr.bf16.mxu0 0
        %2535 = vmatpush1.bf16.msra.mxu0 0
        %2536 = vmatprep.subr.bf16.mxu0 0
        %2537 = vmatpush1.bf16.msra.mxu0 0
        %2538 = vmatprep.subr.bf16.mxu0 0
        %2539 = vmatpush1.bf16.msra.mxu0 0
        %2540 = vmatprep.subr.bf16.mxu0 0
        %2541 = vmatpush1.bf16.msra.mxu0 0
        %2542 = vmatprep.mubr.bf16.mxu0 0
        %2543 = vmatmul.mubr.bf16.gmra.mrb[0].mxu0 %v2502
        %v2544 = vpop.f32.mrb[0].mxu0
        %v2545 = vadd.f32 0.0, %v2544
        %v2546 = vpop.f32.mrb[0].mxu0
        %v2547 = vpop.f32.mrb[0].mxu0
        %v2548 = vadd.f32 0.0, %v2547
        %v2549 = vpop.f32.mrb[0].mxu0
        %2550 = vmatprep.mubr.bf16.mxu0 0
        %2551 = vmatmul.mubr.bf16.gmra.mrb[0].mxu0 %v2505
        %v2552 = vpop.f32.mrb[0].mxu0
        %v2553 = vadd.f32 0.0, %v2552
        %v2554 = vpop.f32.mrb[0].mxu0
        %v2555 = vpop.f32.mrb[0].mxu0
        %v2556 = vadd.f32 0.0, %v2555
        %v2557 = vpop.f32.mrb[0].mxu0
        %2558 = vmatprep.mubr.bf16.mxu0 0
        %2559 = vmatmul.mubr.bf16.gmra.mrb[0].mxu0 %v2508
        %v2560 = vpop.f32.mrb[0].mxu0
        %v2561 = vadd.f32 0.0, %v2560
        %v2562 = vpop.f32.mrb[0].mxu0
        %v2563 = vpop.f32.mrb[0].mxu0
        %v2564 = vadd.f32 0.0, %v2563
        %v2565 = vpop.f32.mrb[0].mxu0
        %2566 = vdwg.mxu0
        %v2567 = vadd.f32 %v2423, %v2545
        %v2568 = vadd.f32 %v2424, %v2548
        %v2569 = vadd.f32 %v2425, %v2553
        %v2570 = vadd.f32 %v2426, %v2556
        %v2571 = vadd.f32 %v2427, %v2561
        %v2572 = vadd.f32 %v2428, %v2564
        %v2573 = vld [vmem:[#allocation2 + $0xd] sm:$0xff]
        %v2574 = vld [vmem:[#allocation2 + $0x15] sm:$0xff]
        %v2575 = vld [vmem:[#allocation2 + $0x1d] sm:$0xff]
        %v2576 = vld [vmem:[#allocation2 + $0x25] sm:$0xff]
        %v2577 = vld [vmem:[#allocation2 + $0x2d] sm:$0xff]
        %v2578 = vld [vmem:[#allocation2 + $0x35] sm:$0xff]
        %v2579 = vadd.f32 %v1602, 1.0
        %v2580 = vadd.f32 %v1603, 1.0
        %v2581 = vadd.f32 %v1604, 1.0
        %v2582 = vadd.f32 %v1605, 1.0
        %v2583 = vadd.f32 %v1606, 1.0
        %v2584 = vadd.f32 %v1607, 1.0
        %vm2585 = vcmp.ge.f32.partialorder %v2579, 0.0
        %vm2586 = vcmp.ge.f32.partialorder %v2580, 0.0
        %vm2587 = vcmp.ge.f32.partialorder %v2581, 0.0
        %vm2588 = vcmp.ge.f32.partialorder %v2582, 0.0
        %vm2589 = vcmp.ge.f32.partialorder %v2583, 0.0
        %vm2590 = vcmp.ge.f32.partialorder %v2584, 0.0
        %vm2591 = vcmp.le.f32.partialorder %v2579, 7.0
        %vm2592 = vcmp.le.f32.partialorder %v2580, 7.0
        %vm2593 = vcmp.le.f32.partialorder %v2581, 7.0
        %vm2594 = vcmp.le.f32.partialorder %v2582, 7.0
        %vm2595 = vcmp.le.f32.partialorder %v2583, 7.0
        %vm2596 = vcmp.le.f32.partialorder %v2584, 7.0
        %vm2597 = vmand %vm2585, %vm2591
        %vm2598 = vmand %vm2586, %vm2592
        %vm2599 = vmand %vm2587, %vm2593
        %vm2600 = vmand %vm2588, %vm2594
        %vm2601 = vmand %vm2589, %vm2595
        %vm2602 = vmand %vm2590, %vm2596
        %vm2603 = vmand %vm2597, %vm1656
        %vm2604 = vmand %vm2598, %vm1657
        %vm2605 = vmand %vm2599, %vm1658
        %vm2606 = vmand %vm2600, %vm1659
        %vm2607 = vmand %vm2601, %vm1660
        %vm2608 = vmand %vm2602, %vm1661
        %vm2609 = vmand %vm2603, %vm1668
        %vm2610 = vmand %vm2604, %vm1669
        %vm2611 = vmand %vm2605, %vm1670
        %vm2612 = vmand %vm2606, %vm1671
        %vm2613 = vmand %vm2607, %vm1672
        %vm2614 = vmand %vm2608, %vm1673
        %v2615 = vsel %vm2609, 1, 0
        %v2616 = vsel %vm2610, 1, 0
        %v2617 = vsel %vm2611, 1, 0
        %v2618 = vsel %vm2612, 1, 0
        %v2619 = vsel %vm2613, 1, 0
        %v2620 = vsel %vm2614, 1, 0
        %vm2621 = vcmp.eq.s32.totalorder %v2615, 1
        %vm2622 = vcmp.eq.s32.totalorder %v2616, 1
        %vm2623 = vcmp.eq.s32.totalorder %v2617, 1
        %vm2624 = vcmp.eq.s32.totalorder %v2618, 1
        %vm2625 = vcmp.eq.s32.totalorder %v2619, 1
        %vm2626 = vcmp.eq.s32.totalorder %v2620, 1
        %v2627 = vsel %vm2621, %v2573, 0.0
        %v2628 = vsel %vm2622, %v2574, 0.0
        %v2629 = vsel %vm2623, %v2575, 0.0
        %v2630 = vsel %vm2624, %v2576, 0.0
        %v2631 = vsel %vm2625, %v2577, 0.0
        %v2632 = vsel %vm2626, %v2578, 0.0
        %v2633 = vpack.c.bf16 %v2628, %v2627
        %v2634 = vpack.c.bf16 %v2630, %v2629
        %v2635 = vpack.c.bf16 %v2632, %v2631
        %s2636 = scalar_lea.vmem [#allocation3], 192
        %v2637 = vld [vmem:[%s2636] sm:$0xf]
        %v2638 = vld [vmem:[%s2636 + $0x4] sm:$0xf]
        %v2639 = vld [vmem:[%s2636 + $0x8] sm:$0xf]
        %v2640 = vld [vmem:[%s2636 + $0xc] sm:$0xf]
        %v2641 = vld [vmem:[%s2636 + $0x10] sm:$0xf]
        %v2642 = vld [vmem:[%s2636 + $0x14] sm:$0xf]
        %v2643 = vld [vmem:[%s2636 + $0x18] sm:$0xf]
        %v2644 = vld [vmem:[%s2636 + $0x1c] sm:$0xf]
        %v2653 = vunpack.c.l.b16 %v2637
        %v2654 = vunpack.c.l.b16 %v2638
        %v2655 = vunpack.c.l.b16 %v2639
        %v2656 = vunpack.c.l.b16 %v2640
        %v2657 = vunpack.c.l.b16 %v2641
        %v2658 = vunpack.c.l.b16 %v2642
        %v2659 = vunpack.c.l.b16 %v2643
        %v2660 = vunpack.c.l.b16 %v2644
        %v2661 = vpack.c.b16 %v2654, %v2653
        %v2662 = vpack.c.b16 %v2656, %v2655
        %v2663 = vpack.c.b16 %v2658, %v2657
        %v2664 = vpack.c.b16 %v2660, %v2659
        %v2670 = vsel %vm612, %v2633, 0
        %v2673 = vsel %vm612, %v2634, 0
        %v2676 = vsel %vm612, %v2635, 0
        %2678 = vmatprep.subr.bf16.mxu0 0
        %2679 = vmatpush1.bf16.msra.mxu0 %v2661
        %2680 = vmatprep.subr.bf16.mxu0 0
        %2681 = vmatpush1.bf16.msra.mxu0 %v2662
        %2682 = vmatprep.subr.bf16.mxu0 0
        %2683 = vmatpush1.bf16.msra.mxu0 %v2663
        %2684 = vmatprep.subr.bf16.mxu0 0
        %2685 = vmatpush1.bf16.msra.mxu0 %v2664
        %2686 = vmatprep.subr.bf16.mxu0 0
        %2687 = vmatpush1.bf16.msra.mxu0 0
        %2688 = vmatprep.subr.bf16.mxu0 0
        %2689 = vmatpush1.bf16.msra.mxu0 0
        %2690 = vmatprep.subr.bf16.mxu0 0
        %2691 = vmatpush1.bf16.msra.mxu0 0
        %2692 = vmatprep.subr.bf16.mxu0 0
        %2693 = vmatpush1.bf16.msra.mxu0 0
        %2694 = vmatprep.subr.bf16.mxu0 0
        %2695 = vmatpush1.bf16.msra.mxu0 0
        %2696 = vmatprep.subr.bf16.mxu0 0
        %2697 = vmatpush1.bf16.msra.mxu0 0
        %2698 = vmatprep.subr.bf16.mxu0 0
        %2699 = vmatpush1.bf16.msra.mxu0 0
        %2700 = vmatprep.subr.bf16.mxu0 0
        %2701 = vmatpush1.bf16.msra.mxu0 0
        %2702 = vmatprep.subr.bf16.mxu0 0
        %2703 = vmatpush1.bf16.msra.mxu0 0
        %2704 = vmatprep.subr.bf16.mxu0 0
        %2705 = vmatpush1.bf16.msra.mxu0 0
        %2706 = vmatprep.subr.bf16.mxu0 0
        %2707 = vmatpush1.bf16.msra.mxu0 0
        %2708 = vmatprep.subr.bf16.mxu0 0
        %2709 = vmatpush1.bf16.msra.mxu0 0
        %2710 = vmatprep.mubr.bf16.mxu0 0
        %2711 = vmatmul.mubr.bf16.gmra.mrb[0].mxu0 %v2670
        %v2712 = vpop.f32.mrb[0].mxu0
        %v2713 = vadd.f32 0.0, %v2712
        %v2714 = vpop.f32.mrb[0].mxu0
        %v2715 = vpop.f32.mrb[0].mxu0
        %v2716 = vadd.f32 0.0, %v2715
        %v2717 = vpop.f32.mrb[0].mxu0
        %2718 = vmatprep.mubr.bf16.mxu0 0
        %2719 = vmatmul.mubr.bf16.gmra.mrb[0].mxu0 %v2673
        %v2720 = vpop.f32.mrb[0].mxu0
        %v2721 = vadd.f32 0.0, %v2720
        %v2722 = vpop.f32.mrb[0].mxu0
        %v2723 = vpop.f32.mrb[0].mxu0
        %v2724 = vadd.f32 0.0, %v2723
        %v2725 = vpop.f32.mrb[0].mxu0
        %2726 = vmatprep.mubr.bf16.mxu0 0
        %2727 = vmatmul.mubr.bf16.gmra.mrb[0].mxu0 %v2676
        %v2728 = vpop.f32.mrb[0].mxu0
        %v2729 = vadd.f32 0.0, %v2728
        %v2730 = vpop.f32.mrb[0].mxu0
        %v2731 = vpop.f32.mrb[0].mxu0
        %v2732 = vadd.f32 0.0, %v2731
        %v2733 = vpop.f32.mrb[0].mxu0
        %2734 = vdwg.mxu0
        %v2735 = vadd.f32 %v2567, %v2713
        %v2736 = vadd.f32 %v2568, %v2716
        %v2737 = vadd.f32 %v2569, %v2721
        %v2738 = vadd.f32 %v2570, %v2724
        %v2739 = vadd.f32 %v2571, %v2729
        %v2740 = vadd.f32 %v2572, %v2732
        %v2741 = vld [vmem:[#allocation2 + $0xe] sm:$0xff]
        %v2742 = vld [vmem:[#allocation2 + $0x16] sm:$0xff]
        %v2743 = vld [vmem:[#allocation2 + $0x1e] sm:$0xff]
        %v2744 = vld [vmem:[#allocation2 + $0x26] sm:$0xff]
        %v2745 = vld [vmem:[#allocation2 + $0x2e] sm:$0xff]
        %v2746 = vld [vmem:[#allocation2 + $0x36] sm:$0xff]
        %vm2747 = vmand %vm2597, %vm1721
        %vm2748 = vmand %vm2598, %vm1722
        %vm2749 = vmand %vm2599, %vm1723
        %vm2750 = vmand %vm2600, %vm1724
        %vm2751 = vmand %vm2601, %vm1725
        %vm2752 = vmand %vm2602, %vm1726
        %vm2753 = vmand %vm2747, %vm1733
        %vm2754 = vmand %vm2748, %vm1734
        %vm2755 = vmand %vm2749, %vm1735
        %vm2756 = vmand %vm2750, %vm1736
        %vm2757 = vmand %vm2751, %vm1737
        %vm2758 = vmand %vm2752, %vm1738
        %v2759 = vsel %vm2753, 1, 0
        %v2760 = vsel %vm2754, 1, 0
        %v2761 = vsel %vm2755, 1, 0
        %v2762 = vsel %vm2756, 1, 0
        %v2763 = vsel %vm2757, 1, 0
        %v2764 = vsel %vm2758, 1, 0
        %vm2765 = vcmp.eq.s32.totalorder %v2759, 1
        %vm2766 = vcmp.eq.s32.totalorder %v2760, 1
        %vm2767 = vcmp.eq.s32.totalorder %v2761, 1
        %vm2768 = vcmp.eq.s32.totalorder %v2762, 1
        %vm2769 = vcmp.eq.s32.totalorder %v2763, 1
        %vm2770 = vcmp.eq.s32.totalorder %v2764, 1
        %v2771 = vsel %vm2765, %v2741, 0.0
        %v2772 = vsel %vm2766, %v2742, 0.0
        %v2773 = vsel %vm2767, %v2743, 0.0
        %v2774 = vsel %vm2768, %v2744, 0.0
        %v2775 = vsel %vm2769, %v2745, 0.0
        %v2776 = vsel %vm2770, %v2746, 0.0
        %v2777 = vpack.c.bf16 %v2772, %v2771
        %v2778 = vpack.c.bf16 %v2774, %v2773
        %v2779 = vpack.c.bf16 %v2776, %v2775
        %s2780 = scalar_lea.vmem [#allocation3], 224
        %v2781 = vld [vmem:[%s2780] sm:$0xf]
        %v2782 = vld [vmem:[%s2780 + $0x4] sm:$0xf]
        %v2783 = vld [vmem:[%s2780 + $0x8] sm:$0xf]
        %v2784 = vld [vmem:[%s2780 + $0xc] sm:$0xf]
        %v2785 = vld [vmem:[%s2780 + $0x10] sm:$0xf]
        %v2786 = vld [vmem:[%s2780 + $0x14] sm:$0xf]
        %v2787 = vld [vmem:[%s2780 + $0x18] sm:$0xf]
        %v2788 = vld [vmem:[%s2780 + $0x1c] sm:$0xf]
        %v2797 = vunpack.c.l.b16 %v2781
        %v2798 = vunpack.c.l.b16 %v2782
        %v2799 = vunpack.c.l.b16 %v2783
        %v2800 = vunpack.c.l.b16 %v2784
        %v2801 = vunpack.c.l.b16 %v2785
        %v2802 = vunpack.c.l.b16 %v2786
        %v2803 = vunpack.c.l.b16 %v2787
        %v2804 = vunpack.c.l.b16 %v2788
        %v2805 = vpack.c.b16 %v2798, %v2797
        %v2806 = vpack.c.b16 %v2800, %v2799
        %v2807 = vpack.c.b16 %v2802, %v2801
        %v2808 = vpack.c.b16 %v2804, %v2803
        %v2814 = vsel %vm612, %v2777, 0
        %v2817 = vsel %vm612, %v2778, 0
        %v2820 = vsel %vm612, %v2779, 0
        %2822 = vmatprep.subr.bf16.mxu0 0
        %2823 = vmatpush1.bf16.msra.mxu0 %v2805
        %2824 = vmatprep.subr.bf16.mxu0 0
        %2825 = vmatpush1.bf16.msra.mxu0 %v2806
        %2826 = vmatprep.subr.bf16.mxu0 0
        %2827 = vmatpush1.bf16.msra.mxu0 %v2807
        %2828 = vmatprep.subr.bf16.mxu0 0
        %2829 = vmatpush1.bf16.msra.mxu0 %v2808
        %2830 = vmatprep.subr.bf16.mxu0 0
        %2831 = vmatpush1.bf16.msra.mxu0 0
        %2832 = vmatprep.subr.bf16.mxu0 0
        %2833 = vmatpush1.bf16.msra.mxu0 0
        %2834 = vmatprep.subr.bf16.mxu0 0
        %2835 = vmatpush1.bf16.msra.mxu0 0
        %2836 = vmatprep.subr.bf16.mxu0 0
        %2837 = vmatpush1.bf16.msra.mxu0 0
        %2838 = vmatprep.subr.bf16.mxu0 0
        %2839 = vmatpush1.bf16.msra.mxu0 0
        %2840 = vmatprep.subr.bf16.mxu0 0
        %2841 = vmatpush1.bf16.msra.mxu0 0
        %2842 = vmatprep.subr.bf16.mxu0 0
        %2843 = vmatpush1.bf16.msra.mxu0 0
        %2844 = vmatprep.subr.bf16.mxu0 0
        %2845 = vmatpush1.bf16.msra.mxu0 0
        %2846 = vmatprep.subr.bf16.mxu0 0
        %2847 = vmatpush1.bf16.msra.mxu0 0
        %2848 = vmatprep.subr.bf16.mxu0 0
        %2849 = vmatpush1.bf16.msra.mxu0 0
        %2850 = vmatprep.subr.bf16.mxu0 0
        %2851 = vmatpush1.bf16.msra.mxu0 0
        %2852 = vmatprep.subr.bf16.mxu0 0
        %2853 = vmatpush1.bf16.msra.mxu0 0
        %2854 = vmatprep.mubr.bf16.mxu0 0
        %2855 = vmatmul.mubr.bf16.gmra.mrb[0].mxu0 %v2814
        %v2856 = vpop.f32.mrb[0].mxu0
        %v2857 = vadd.f32 0.0, %v2856
        %v2858 = vpop.f32.mrb[0].mxu0
        %v2859 = vpop.f32.mrb[0].mxu0
        %v2860 = vadd.f32 0.0, %v2859
        %v2861 = vpop.f32.mrb[0].mxu0
        %2862 = vmatprep.mubr.bf16.mxu0 0
        %2863 = vmatmul.mubr.bf16.gmra.mrb[0].mxu0 %v2817
        %v2864 = vpop.f32.mrb[0].mxu0
        %v2865 = vadd.f32 0.0, %v2864
        %v2866 = vpop.f32.mrb[0].mxu0
        %v2867 = vpop.f32.mrb[0].mxu0
        %v2868 = vadd.f32 0.0, %v2867
        %v2869 = vpop.f32.mrb[0].mxu0
        %2870 = vmatprep.mubr.bf16.mxu0 0
        %2871 = vmatmul.mubr.bf16.gmra.mrb[0].mxu0 %v2820
        %v2872 = vpop.f32.mrb[0].mxu0
        %v2873 = vadd.f32 0.0, %v2872
        %v2874 = vpop.f32.mrb[0].mxu0
        %v2875 = vpop.f32.mrb[0].mxu0
        %v2876 = vadd.f32 0.0, %v2875
        %v2877 = vpop.f32.mrb[0].mxu0
        %2878 = vdwg.mxu0
        %v2879 = vadd.f32 %v2735, %v2857
        %v2880 = vadd.f32 %v2736, %v2860
        %v2881 = vadd.f32 %v2737, %v2865
        %v2882 = vadd.f32 %v2738, %v2868
        %v2883 = vadd.f32 %v2739, %v2873
        %v2884 = vadd.f32 %v2740, %v2876
        %v2885 = vld [vmem:[#allocation2 + $0xf] sm:$0xff]
        %v2886 = vld [vmem:[#allocation2 + $0x17] sm:$0xff]
        %v2887 = vld [vmem:[#allocation2 + $0x1f] sm:$0xff]
        %v2888 = vld [vmem:[#allocation2 + $0x27] sm:$0xff]
        %v2889 = vld [vmem:[#allocation2 + $0x2f] sm:$0xff]
        %v2890 = vld [vmem:[#allocation2 + $0x37] sm:$0xff]
        %vm2891 = vmand %vm2597, %vm1967
        %vm2892 = vmand %vm2598, %vm1968
        %vm2893 = vmand %vm2599, %vm1969
        %vm2894 = vmand %vm2600, %vm1970
        %vm2895 = vmand %vm2601, %vm1971
        %vm2896 = vmand %vm2602, %vm1972
        %vm2897 = vmand %vm2891, %vm1979
        %vm2898 = vmand %vm2892, %vm1980
        %vm2899 = vmand %vm2893, %vm1981
        %vm2900 = vmand %vm2894, %vm1982
        %vm2901 = vmand %vm2895, %vm1983
        %vm2902 = vmand %vm2896, %vm1984
        %v2903 = vsel %vm2897, 1, 0
        %v2904 = vsel %vm2898, 1, 0
        %v2905 = vsel %vm2899, 1, 0
        %v2906 = vsel %vm2900, 1, 0
        %v2907 = vsel %vm2901, 1, 0
        %v2908 = vsel %vm2902, 1, 0
        %vm2909 = vcmp.eq.s32.totalorder %v2903, 1
        %vm2910 = vcmp.eq.s32.totalorder %v2904, 1
        %vm2911 = vcmp.eq.s32.totalorder %v2905, 1
        %vm2912 = vcmp.eq.s32.totalorder %v2906, 1
        %vm2913 = vcmp.eq.s32.totalorder %v2907, 1
        %vm2914 = vcmp.eq.s32.totalorder %v2908, 1
        %v2915 = vsel %vm2909, %v2885, 0.0
        %v2916 = vsel %vm2910, %v2886, 0.0
        %v2917 = vsel %vm2911, %v2887, 0.0
        %v2918 = vsel %vm2912, %v2888, 0.0
        %v2919 = vsel %vm2913, %v2889, 0.0
        %v2920 = vsel %vm2914, %v2890, 0.0
        %v2921 = vpack.c.bf16 %v2916, %v2915
        %v2922 = vpack.c.bf16 %v2918, %v2917
        %v2923 = vpack.c.bf16 %v2920, %v2919
        %s2924 = scalar_lea.vmem [#allocation3], 256
        %v2925 = vld [vmem:[%s2924] sm:$0xf]
        %v2926 = vld [vmem:[%s2924 + $0x4] sm:$0xf]
        %v2927 = vld [vmem:[%s2924 + $0x8] sm:$0xf]
        %v2928 = vld [vmem:[%s2924 + $0xc] sm:$0xf]
        %v2929 = vld [vmem:[%s2924 + $0x10] sm:$0xf]
        %v2930 = vld [vmem:[%s2924 + $0x14] sm:$0xf]
        %v2931 = vld [vmem:[%s2924 + $0x18] sm:$0xf]
        %v2932 = vld [vmem:[%s2924 + $0x1c] sm:$0xf]
        %v2941 = vunpack.c.l.b16 %v2925
        %v2942 = vunpack.c.l.b16 %v2926
        %v2943 = vunpack.c.l.b16 %v2927
        %v2944 = vunpack.c.l.b16 %v2928
        %v2945 = vunpack.c.l.b16 %v2929
        %v2946 = vunpack.c.l.b16 %v2930
        %v2947 = vunpack.c.l.b16 %v2931
        %v2948 = vunpack.c.l.b16 %v2932
        %v2949 = vpack.c.b16 %v2942, %v2941
        %v2950 = vpack.c.b16 %v2944, %v2943
        %v2951 = vpack.c.b16 %v2946, %v2945
        %v2952 = vpack.c.b16 %v2948, %v2947
        %v2958 = vsel %vm612, %v2921, 0
        %v2961 = vsel %vm612, %v2922, 0
        %v2964 = vsel %vm612, %v2923, 0
        %2966 = vmatprep.subr.bf16.mxu0 0
        %2967 = vmatpush1.bf16.msra.mxu0 %v2949
        %2968 = vmatprep.subr.bf16.mxu0 0
        %2969 = vmatpush1.bf16.msra.mxu0 %v2950
        %2970 = vmatprep.subr.bf16.mxu0 0
        %2971 = vmatpush1.bf16.msra.mxu0 %v2951
        %2972 = vmatprep.subr.bf16.mxu0 0
        %2973 = vmatpush1.bf16.msra.mxu0 %v2952
        %2974 = vmatprep.subr.bf16.mxu0 0
        %2975 = vmatpush1.bf16.msra.mxu0 0
        %2976 = vmatprep.subr.bf16.mxu0 0
        %2977 = vmatpush1.bf16.msra.mxu0 0
        %2978 = vmatprep.subr.bf16.mxu0 0
        %2979 = vmatpush1.bf16.msra.mxu0 0
        %2980 = vmatprep.subr.bf16.mxu0 0
        %2981 = vmatpush1.bf16.msra.mxu0 0
        %2982 = vmatprep.subr.bf16.mxu0 0
        %2983 = vmatpush1.bf16.msra.mxu0 0
        %2984 = vmatprep.subr.bf16.mxu0 0
        %2985 = vmatpush1.bf16.msra.mxu0 0
        %2986 = vmatprep.subr.bf16.mxu0 0
        %2987 = vmatpush1.bf16.msra.mxu0 0
        %2988 = vmatprep.subr.bf16.mxu0 0
        %2989 = vmatpush1.bf16.msra.mxu0 0
        %2990 = vmatprep.subr.bf16.mxu0 0
        %2991 = vmatpush1.bf16.msra.mxu0 0
        %2992 = vmatprep.subr.bf16.mxu0 0
        %2993 = vmatpush1.bf16.msra.mxu0 0
        %2994 = vmatprep.subr.bf16.mxu0 0
        %2995 = vmatpush1.bf16.msra.mxu0 0
        %2996 = vmatprep.subr.bf16.mxu0 0
        %2997 = vmatpush1.bf16.msra.mxu0 0
        %2998 = vmatprep.mubr.bf16.mxu0 0
        %2999 = vmatmul.mubr.bf16.gmra.mrb[0].mxu0 %v2958
        %v3000 = vpop.f32.mrb[0].mxu0
        %v3001 = vadd.f32 0.0, %v3000
        %v3002 = vpop.f32.mrb[0].mxu0
        %v3003 = vpop.f32.mrb[0].mxu0
        %v3004 = vadd.f32 0.0, %v3003
        %v3005 = vpop.f32.mrb[0].mxu0
        %3006 = vmatprep.mubr.bf16.mxu0 0
        %3007 = vmatmul.mubr.bf16.gmra.mrb[0].mxu0 %v2961
        %v3008 = vpop.f32.mrb[0].mxu0
        %v3009 = vadd.f32 0.0, %v3008
        %v3010 = vpop.f32.mrb[0].mxu0
        %v3011 = vpop.f32.mrb[0].mxu0
        %v3012 = vadd.f32 0.0, %v3011
        %v3013 = vpop.f32.mrb[0].mxu0
        %3014 = vmatprep.mubr.bf16.mxu0 0
        %3015 = vmatmul.mubr.bf16.gmra.mrb[0].mxu0 %v2964
        %v3016 = vpop.f32.mrb[0].mxu0
        %v3017 = vadd.f32 0.0, %v3016
        %v3018 = vpop.f32.mrb[0].mxu0
        %v3019 = vpop.f32.mrb[0].mxu0
        %v3020 = vadd.f32 0.0, %v3019
        %v3021 = vpop.f32.mrb[0].mxu0
        %3022 = vdwg.mxu0
        %v3023 = vadd.f32 %v2879, %v3001
        %v3024 = vadd.f32 %v2880, %v3004
        %v3025 = vadd.f32 %v2881, %v3009
        %v3026 = vadd.f32 %v2882, %v3012
        %v3027 = vadd.f32 %v2883, %v3017
        %v3028 = vadd.f32 %v2884, %v3020
        %v3029 = vld [vmem:[%s8 + $0x9] sm:$0x1]
        %v3030 = vlaneseq
        %v3031 = vshrl.u32 %v3030, 7
        %v3032 = vsub.s32 0, %v3031
        %v3033 = vrot.slane %v3029, %v3032
        %v3034 = vadd.f32 %v3023, %v3033
        %v3035 = vadd.f32 %v3024, %v3033
        %v3036 = vadd.f32 %v3025, %v3033
        %v3037 = vadd.f32 %v3026, %v3033
        %v3038 = vadd.f32 %v3027, %v3033
        %v3039 = vadd.f32 %v3028, %v3033
        %v3040 = vmax.f32 %v3034, 0.0
        %v3041 = vmax.f32 %v3035, 0.0
        %v3042 = vmax.f32 %v3036, 0.0
        %v3043 = vmax.f32 %v3037, 0.0
        %v3044 = vmax.f32 %v3038, 0.0
        %v3045 = vmax.f32 %v3039, 0.0
        %v3046 = vpack.c.bf16 %v3041, %v3040
        %v3047 = vpack.c.bf16 %v3043, %v3042
        %v3048 = vpack.c.bf16 %v3045, %v3044
        %s3049 = scalar_lea.vmem [#allocation3], 288
        %v3050 = vld [vmem:[%s3049] sm:$0xf]
        %v3051 = vld [vmem:[%s3049 + $0x4] sm:$0xf]
        %v3052 = vld [vmem:[%s3049 + $0x8] sm:$0xf]
        %v3053 = vld [vmem:[%s3049 + $0xc] sm:$0xf]
        %v3054 = vld [vmem:[%s3049 + $0x10] sm:$0xf]
        %v3055 = vld [vmem:[%s3049 + $0x14] sm:$0xf]
        %v3056 = vld [vmem:[%s3049 + $0x18] sm:$0xf]
        %v3057 = vld [vmem:[%s3049 + $0x1c] sm:$0xf]
        %v3058 = vld [vmem:[%s8] sm:$0x1]
        %v3059 = vlaneseq
        %v3060 = vshrl.u32 %v3059, 7
        %v3061 = vsub.s32 0, %v3060
        %v3062 = vrot.slane %v3058, %v3061
        %v3071 = vunpack.c.l.b16 %v3050
        %v3072 = vunpack.c.l.b16 %v3051
        %v3073 = vunpack.c.l.b16 %v3052
        %v3074 = vunpack.c.l.b16 %v3053
        %v3075 = vunpack.c.l.b16 %v3054
        %v3076 = vunpack.c.l.b16 %v3055
        %v3077 = vunpack.c.l.b16 %v3056
        %v3078 = vunpack.c.l.b16 %v3057
        %v3079 = vpack.c.b16 %v3072, %v3071
        %v3080 = vpack.c.b16 %v3074, %v3073
        %v3081 = vpack.c.b16 %v3076, %v3075
        %v3082 = vpack.c.b16 %v3078, %v3077
        %v3088 = vsel %vm612, %v3046, 0
        %v3091 = vsel %vm612, %v3047, 0
        %v3094 = vsel %vm612, %v3048, 0
        %3096 = vmatprep.subr.bf16.mxu0 0
        %3097 = vmatpush1.bf16.msra.mxu0 %v3079
        %3098 = vmatprep.subr.bf16.mxu0 0
        %3099 = vmatpush1.bf16.msra.mxu0 %v3080
        %3100 = vmatprep.subr.bf16.mxu0 0
        %3101 = vmatpush1.bf16.msra.mxu0 %v3081
        %3102 = vmatprep.subr.bf16.mxu0 0
        %3103 = vmatpush1.bf16.msra.mxu0 %v3082
        %3104 = vmatprep.subr.bf16.mxu0 0
        %3105 = vmatpush1.bf16.msra.mxu0 0
        %3106 = vmatprep.subr.bf16.mxu0 0
        %3107 = vmatpush1.bf16.msra.mxu0 0
        %3108 = vmatprep.subr.bf16.mxu0 0
        %3109 = vmatpush1.bf16.msra.mxu0 0
        %3110 = vmatprep.subr.bf16.mxu0 0
        %3111 = vmatpush1.bf16.msra.mxu0 0
        %3112 = vmatprep.subr.bf16.mxu0 0
        %3113 = vmatpush1.bf16.msra.mxu0 0
        %3114 = vmatprep.subr.bf16.mxu0 0
        %3115 = vmatpush1.bf16.msra.mxu0 0
        %3116 = vmatprep.subr.bf16.mxu0 0
        %3117 = vmatpush1.bf16.msra.mxu0 0
        %3118 = vmatprep.subr.bf16.mxu0 0
        %3119 = vmatpush1.bf16.msra.mxu0 0
        %3120 = vmatprep.subr.bf16.mxu0 0
        %3121 = vmatpush1.bf16.msra.mxu0 0
        %3122 = vmatprep.subr.bf16.mxu0 0
        %3123 = vmatpush1.bf16.msra.mxu0 0
        %3124 = vmatprep.subr.bf16.mxu0 0
        %3125 = vmatpush1.bf16.msra.mxu0 0
        %3126 = vmatprep.subr.bf16.mxu0 0
        %3127 = vmatpush1.bf16.msra.mxu0 0
        %3128 = vmatprep.mubr.bf16.mxu0 0
        %3129 = vmatmul.mubr.bf16.gmra.mrb[0].mxu0 %v3088
        %v3130 = vpop.f32.mrb[0].mxu0
        %v3131 = vadd.f32 %v3062, %v3130
        %v3132 = vpop.f32.mrb[0].mxu0
        %v3133 = vpop.f32.mrb[0].mxu0
        %v3134 = vadd.f32 %v3062, %v3133
        %v3135 = vpop.f32.mrb[0].mxu0
        %3136 = vmatprep.mubr.bf16.mxu0 0
        %3137 = vmatmul.mubr.bf16.gmra.mrb[0].mxu0 %v3091
        %v3138 = vpop.f32.mrb[0].mxu0
        %v3139 = vadd.f32 %v3062, %v3138
        %v3140 = vpop.f32.mrb[0].mxu0
        %v3141 = vpop.f32.mrb[0].mxu0
        %v3142 = vadd.f32 %v3062, %v3141
        %v3143 = vpop.f32.mrb[0].mxu0
        %3144 = vmatprep.mubr.bf16.mxu0 0
        %3145 = vmatmul.mubr.bf16.gmra.mrb[0].mxu0 %v3094
        %v3146 = vpop.f32.mrb[0].mxu0
        %v3147 = vadd.f32 %v3062, %v3146
        %v3148 = vpop.f32.mrb[0].mxu0
        %v3149 = vpop.f32.mrb[0].mxu0
        %v3150 = vadd.f32 %v3062, %v3149
        %v3151 = vpop.f32.mrb[0].mxu0
        %3152 = vdwg.mxu0
        %v3153 = vsub.f32 0.0, %v3131
        %v3154 = vsub.f32 0.0, %v3134
        %v3155 = vsub.f32 0.0, %v3139
        %v3156 = vsub.f32 0.0, %v3142
        %v3157 = vsub.f32 0.0, %v3147
        %v3158 = vsub.f32 0.0, %v3150
        %v3159 = vmul.f32 %v3153, 1.442695
        %v3160 = vpow.pop %v3159
        %v3161 = vmul.f32 %v3154, 1.442695
        %v3162 = vpow.pop %v3161
        %v3163 = vmul.f32 %v3155, 1.442695
        %v3164 = vpow.pop %v3163
        %v3165 = vmul.f32 %v3156, 1.442695
        %v3166 = vpow.pop %v3165
        %v3167 = vmul.f32 %v3157, 1.442695
        %v3168 = vpow.pop %v3167
        %v3169 = vmul.f32 %v3158, 1.442695
        %v3170 = vpow.pop %v3169
        %v3171 = vadd.f32 %v3160, 1.0
        %v3172 = vadd.f32 %v3162, 1.0
        %v3173 = vadd.f32 %v3164, 1.0
        %v3174 = vadd.f32 %v3166, 1.0
        %v3175 = vadd.f32 %v3168, 1.0
        %v3176 = vadd.f32 %v3170, 1.0
        %v3177 = vrcp.pop %v3171
        %v3178 = vrcp.pop %v3172
        %v3179 = vrcp.pop %v3173
        %v3180 = vrcp.pop %v3174
        %v3181 = vrcp.pop %v3175
        %v3182 = vrcp.pop %v3176
        %v3183 = vmul.f32 %v1692, %v3177
        %v3184 = vmul.f32 %v1693, %v3178
        %v3185 = vmul.f32 %v1694, %v3179
        %v3186 = vmul.f32 %v1695, %v3180
        %v3187 = vmul.f32 %v1696, %v3181
        %v3188 = vmul.f32 %v1697, %v3182
        %v3189 = vpack.c.bf16 %v3184, %v3183
        %v3190 = vpack.c.bf16 %v3186, %v3185
        %v3191 = vpack.c.bf16 %v3188, %v3187
        %s3192 = scalar_lea.vmem [#allocation3], 576
        %v3193 = vld [vmem:[%s3192] sm:$0xf]
        %v3194 = vld [vmem:[%s3192 + $0x4] sm:$0xf]
        %v3195 = vld [vmem:[%s3192 + $0x8] sm:$0xf]
        %v3196 = vld [vmem:[%s3192 + $0xc] sm:$0xf]
        %v3197 = vld [vmem:[%s3192 + $0x10] sm:$0xf]
        %v3198 = vld [vmem:[%s3192 + $0x14] sm:$0xf]
        %v3199 = vld [vmem:[%s3192 + $0x18] sm:$0xf]
        %v3200 = vld [vmem:[%s3192 + $0x1c] sm:$0xf]
        %s3201 = scalar_lea.vmem [#allocation3], 320
        %v3202 = vld [vmem:[%s3201] sm:$0xf]
        %v3203 = vld [vmem:[%s3201 + $0x4] sm:$0xf]
        %v3204 = vld [vmem:[%s3201 + $0x8] sm:$0xf]
        %v3205 = vld [vmem:[%s3201 + $0xc] sm:$0xf]
        %v3206 = vld [vmem:[%s3201 + $0x10] sm:$0xf]
        %v3207 = vld [vmem:[%s3201 + $0x14] sm:$0xf]
        %v3208 = vld [vmem:[%s3201 + $0x18] sm:$0xf]
        %v3209 = vld [vmem:[%s3201 + $0x1c] sm:$0xf]
        %v3210 = vld [vmem:[%s8 + $0x1] sm:$0x1]
        %v3211 = vlaneseq
        %v3212 = vshrl.u32 %v3211, 7
        %v3213 = vsub.s32 0, %v3212
        %v3214 = vrot.slane %v3210, %v3213
        %v3223 = vunpack.c.l.b16 %v3202
        %v3224 = vunpack.c.l.b16 %v3203
        %v3225 = vunpack.c.l.b16 %v3204
        %v3226 = vunpack.c.l.b16 %v3205
        %v3227 = vunpack.c.l.b16 %v3206
        %v3228 = vunpack.c.l.b16 %v3207
        %v3229 = vunpack.c.l.b16 %v3208
        %v3230 = vunpack.c.l.b16 %v3209
        %v3231 = vpack.c.b16 %v3224, %v3223
        %v3232 = vpack.c.b16 %v3226, %v3225
        %v3233 = vpack.c.b16 %v3228, %v3227
        %v3234 = vpack.c.b16 %v3230, %v3229
        %3239 = vmatprep.subr.bf16.mxu0 0
        %3240 = vmatpush1.bf16.msra.mxu0 %v3231
        %3241 = vmatprep.subr.bf16.mxu0 0
        %3242 = vmatpush1.bf16.msra.mxu0 %v3232
        %3243 = vmatprep.subr.bf16.mxu0 0
        %3244 = vmatpush1.bf16.msra.mxu0 %v3233
        %3245 = vmatprep.subr.bf16.mxu0 0
        %3246 = vmatpush1.bf16.msra.mxu0 %v3234
        %3247 = vmatprep.subr.bf16.mxu0 0
        %3248 = vmatpush1.bf16.msra.mxu0 0
        %3249 = vmatprep.subr.bf16.mxu0 0
        %3250 = vmatpush1.bf16.msra.mxu0 0
        %3251 = vmatprep.subr.bf16.mxu0 0
        %3252 = vmatpush1.bf16.msra.mxu0 0
        %3253 = vmatprep.subr.bf16.mxu0 0
        %3254 = vmatpush1.bf16.msra.mxu0 0
        %3255 = vmatprep.subr.bf16.mxu0 0
        %3256 = vmatpush1.bf16.msra.mxu0 0
        %3257 = vmatprep.subr.bf16.mxu0 0
        %3258 = vmatpush1.bf16.msra.mxu0 0
        %3259 = vmatprep.subr.bf16.mxu0 0
        %3260 = vmatpush1.bf16.msra.mxu0 0
        %3261 = vmatprep.subr.bf16.mxu0 0
        %3262 = vmatpush1.bf16.msra.mxu0 0
        %3263 = vmatprep.subr.bf16.mxu0 0
        %3264 = vmatpush1.bf16.msra.mxu0 0
        %3265 = vmatprep.subr.bf16.mxu0 0
        %3266 = vmatpush1.bf16.msra.mxu0 0
        %3267 = vmatprep.subr.bf16.mxu0 0
        %3268 = vmatpush1.bf16.msra.mxu0 0
        %3269 = vmatprep.subr.bf16.mxu0 0
        %3270 = vmatpush1.bf16.msra.mxu0 0
        %3271 = vmatprep.mubr.bf16.mxu0 0
        %3272 = vmatmul.mubr.bf16.gmra.mrb[0].mxu0 %v3088
        %v3273 = vpop.f32.mrb[0].mxu0
        %v3274 = vadd.f32 %v3214, %v3273
        %v3275 = vpop.f32.mrb[0].mxu0
        %v3276 = vpop.f32.mrb[0].mxu0
        %v3277 = vadd.f32 %v3214, %v3276
        %v3278 = vpop.f32.mrb[0].mxu0
        %3279 = vmatprep.mubr.bf16.mxu0 0
        %3280 = vmatmul.mubr.bf16.gmra.mrb[0].mxu0 %v3091
        %v3281 = vpop.f32.mrb[0].mxu0
        %v3282 = vadd.f32 %v3214, %v3281
        %v3283 = vpop.f32.mrb[0].mxu0
        %v3284 = vpop.f32.mrb[0].mxu0
        %v3285 = vadd.f32 %v3214, %v3284
        %v3286 = vpop.f32.mrb[0].mxu0
        %3287 = vmatprep.mubr.bf16.mxu0 0
        %3288 = vmatmul.mubr.bf16.gmra.mrb[0].mxu0 %v3094
        %v3289 = vpop.f32.mrb[0].mxu0
        %v3290 = vadd.f32 %v3214, %v3289
        %v3291 = vpop.f32.mrb[0].mxu0
        %v3292 = vpop.f32.mrb[0].mxu0
        %v3293 = vadd.f32 %v3214, %v3292
        %v3294 = vpop.f32.mrb[0].mxu0
        %3295 = vdwg.mxu0
        %v3296 = vsub.f32 0.0, %v3274
        %v3297 = vsub.f32 0.0, %v3277
        %v3298 = vsub.f32 0.0, %v3282
        %v3299 = vsub.f32 0.0, %v3285
        %v3300 = vsub.f32 0.0, %v3290
        %v3301 = vsub.f32 0.0, %v3293
        %v3302 = vmul.f32 %v3296, 1.442695
        %v3303 = vpow.pop %v3302
        %v3304 = vmul.f32 %v3297, 1.442695
        %v3305 = vpow.pop %v3304
        %v3306 = vmul.f32 %v3298, 1.442695
        %v3307 = vpow.pop %v3306
        %v3308 = vmul.f32 %v3299, 1.442695
        %v3309 = vpow.pop %v3308
        %v3310 = vmul.f32 %v3300, 1.442695
        %v3311 = vpow.pop %v3310
        %v3312 = vmul.f32 %v3301, 1.442695
        %v3313 = vpow.pop %v3312
        %v3314 = vadd.f32 %v3303, 1.0
        %v3315 = vadd.f32 %v3305, 1.0
        %v3316 = vadd.f32 %v3307, 1.0
        %v3317 = vadd.f32 %v3309, 1.0
        %v3318 = vadd.f32 %v3311, 1.0
        %v3319 = vadd.f32 %v3313, 1.0
        %v3320 = vrcp.pop %v3314
        %v3321 = vrcp.pop %v3315
        %v3322 = vrcp.pop %v3316
        %v3323 = vrcp.pop %v3317
        %v3324 = vrcp.pop %v3318
        %v3325 = vrcp.pop %v3319
        %v3326 = vmul.f32 %v1757, %v3320
        %v3327 = vmul.f32 %v1758, %v3321
        %v3328 = vmul.f32 %v1759, %v3322
        %v3329 = vmul.f32 %v1760, %v3323
        %v3330 = vmul.f32 %v1761, %v3324
        %v3331 = vmul.f32 %v1762, %v3325
        %v3332 = vpack.c.bf16 %v3327, %v3326
        %v3333 = vpack.c.bf16 %v3329, %v3328
        %v3334 = vpack.c.bf16 %v3331, %v3330
        %s3335 = scalar_lea.vmem [#allocation3], 608
        %v3336 = vld [vmem:[%s3335] sm:$0xf]
        %v3337 = vld [vmem:[%s3335 + $0x4] sm:$0xf]
        %v3338 = vld [vmem:[%s3335 + $0x8] sm:$0xf]
        %v3339 = vld [vmem:[%s3335 + $0xc] sm:$0xf]
        %v3340 = vld [vmem:[%s3335 + $0x10] sm:$0xf]
        %v3341 = vld [vmem:[%s3335 + $0x14] sm:$0xf]
        %v3342 = vld [vmem:[%s3335 + $0x18] sm:$0xf]
        %v3343 = vld [vmem:[%s3335 + $0x1c] sm:$0xf]
        %v3352 = vunpack.c.l.b16 %v3336
        %v3353 = vunpack.c.l.b16 %v3337
        %v3354 = vunpack.c.l.b16 %v3338
        %v3355 = vunpack.c.l.b16 %v3339
        %v3356 = vunpack.c.l.b16 %v3340
        %v3357 = vunpack.c.l.b16 %v3341
        %v3358 = vunpack.c.l.b16 %v3342
        %v3359 = vunpack.c.l.b16 %v3343
        %v3360 = vpack.c.b16 %v3353, %v3352
        %v3361 = vpack.c.b16 %v3355, %v3354
        %v3362 = vpack.c.b16 %v3357, %v3356
        %v3363 = vpack.c.b16 %v3359, %v3358
        %v3369 = vsel %vm612, %v3332, 0
        %v3372 = vsel %vm612, %v3333, 0
        %v3375 = vsel %vm612, %v3334, 0
        %3377 = vmatprep.subr.bf16.mxu0 0
        %3378 = vmatpush1.bf16.msra.mxu0 %v3360
        %3379 = vmatprep.subr.bf16.mxu0 0
        %3380 = vmatpush1.bf16.msra.mxu0 %v3361
        %3381 = vmatprep.subr.bf16.mxu0 0
        %3382 = vmatpush1.bf16.msra.mxu0 %v3362
        %3383 = vmatprep.subr.bf16.mxu0 0
        %3384 = vmatpush1.bf16.msra.mxu0 %v3363
        %3385 = vmatprep.subr.bf16.mxu0 0
        %3386 = vmatpush1.bf16.msra.mxu0 0
        %3387 = vmatprep.subr.bf16.mxu0 0
        %3388 = vmatpush1.bf16.msra.mxu0 0
        %3389 = vmatprep.subr.bf16.mxu0 0
        %3390 = vmatpush1.bf16.msra.mxu0 0
        %3391 = vmatprep.subr.bf16.mxu0 0
        %3392 = vmatpush1.bf16.msra.mxu0 0
        %3393 = vmatprep.subr.bf16.mxu0 0
        %3394 = vmatpush1.bf16.msra.mxu0 0
        %3395 = vmatprep.subr.bf16.mxu0 0
        %3396 = vmatpush1.bf16.msra.mxu0 0
        %3397 = vmatprep.subr.bf16.mxu0 0
        %3398 = vmatpush1.bf16.msra.mxu0 0
        %3399 = vmatprep.subr.bf16.mxu0 0
        %3400 = vmatpush1.bf16.msra.mxu0 0
        %3401 = vmatprep.subr.bf16.mxu0 0
        %3402 = vmatpush1.bf16.msra.mxu0 0
        %3403 = vmatprep.subr.bf16.mxu0 0
        %3404 = vmatpush1.bf16.msra.mxu0 0
        %3405 = vmatprep.subr.bf16.mxu0 0
        %3406 = vmatpush1.bf16.msra.mxu0 0
        %3407 = vmatprep.subr.bf16.mxu0 0
        %3408 = vmatpush1.bf16.msra.mxu0 0
        %3409 = vmatprep.mubr.bf16.mxu0 0
        %3410 = vmatmul.mubr.bf16.gmra.mrb[0].mxu0 %v3369
        %v3411 = vpop.f32.mrb[0].mxu0
        %v3412 = vadd.f32 0.0, %v3411
        %v3413 = vpop.f32.mrb[0].mxu0
        %v3414 = vpop.f32.mrb[0].mxu0
        %v3415 = vadd.f32 0.0, %v3414
        %v3416 = vpop.f32.mrb[0].mxu0
        %3417 = vmatprep.mubr.bf16.mxu0 0
        %3418 = vmatmul.mubr.bf16.gmra.mrb[0].mxu0 %v3372
        %v3419 = vpop.f32.mrb[0].mxu0
        %v3420 = vadd.f32 0.0, %v3419
        %v3421 = vpop.f32.mrb[0].mxu0
        %v3422 = vpop.f32.mrb[0].mxu0
        %v3423 = vadd.f32 0.0, %v3422
        %v3424 = vpop.f32.mrb[0].mxu0
        %3425 = vmatprep.mubr.bf16.mxu0 0
        %3426 = vmatmul.mubr.bf16.gmra.mrb[0].mxu0 %v3375
        %v3427 = vpop.f32.mrb[0].mxu0
        %v3428 = vadd.f32 0.0, %v3427
        %v3429 = vpop.f32.mrb[0].mxu0
        %v3430 = vpop.f32.mrb[0].mxu0
        %v3431 = vadd.f32 0.0, %v3430
        %v3432 = vpop.f32.mrb[0].mxu0
        %3433 = vdwg.mxu0
        %v3442 = vunpack.c.l.b16 %v3193
        %v3443 = vunpack.c.l.b16 %v3194
        %v3444 = vunpack.c.l.b16 %v3195
        %v3445 = vunpack.c.l.b16 %v3196
        %v3446 = vunpack.c.l.b16 %v3197
        %v3447 = vunpack.c.l.b16 %v3198
        %v3448 = vunpack.c.l.b16 %v3199
        %v3449 = vunpack.c.l.b16 %v3200
        %v3450 = vpack.c.b16 %v3443, %v3442
        %v3451 = vpack.c.b16 %v3445, %v3444
        %v3452 = vpack.c.b16 %v3447, %v3446
        %v3453 = vpack.c.b16 %v3449, %v3448
        %v3459 = vsel %vm612, %v3189, 0
        %v3462 = vsel %vm612, %v3190, 0
        %v3465 = vsel %vm612, %v3191, 0
        %3467 = vmatprep.subr.bf16.mxu0 0
        %3468 = vmatpush1.bf16.msra.mxu0 %v3450
        %3469 = vmatprep.subr.bf16.mxu0 0
        %3470 = vmatpush1.bf16.msra.mxu0 %v3451
        %3471 = vmatprep.subr.bf16.mxu0 0
        %3472 = vmatpush1.bf16.msra.mxu0 %v3452
        %3473 = vmatprep.subr.bf16.mxu0 0
        %3474 = vmatpush1.bf16.msra.mxu0 %v3453
        %3475 = vmatprep.subr.bf16.mxu0 0
        %3476 = vmatpush1.bf16.msra.mxu0 0
        %3477 = vmatprep.subr.bf16.mxu0 0
        %3478 = vmatpush1.bf16.msra.mxu0 0
        %3479 = vmatprep.subr.bf16.mxu0 0
        %3480 = vmatpush1.bf16.msra.mxu0 0
        %3481 = vmatprep.subr.bf16.mxu0 0
        %3482 = vmatpush1.bf16.msra.mxu0 0
        %3483 = vmatprep.subr.bf16.mxu0 0
        %3484 = vmatpush1.bf16.msra.mxu0 0
        %3485 = vmatprep.subr.bf16.mxu0 0
        %3486 = vmatpush1.bf16.msra.mxu0 0
        %3487 = vmatprep.subr.bf16.mxu0 0
        %3488 = vmatpush1.bf16.msra.mxu0 0
        %3489 = vmatprep.subr.bf16.mxu0 0
        %3490 = vmatpush1.bf16.msra.mxu0 0
        %3491 = vmatprep.subr.bf16.mxu0 0
        %3492 = vmatpush1.bf16.msra.mxu0 0
        %3493 = vmatprep.subr.bf16.mxu0 0
        %3494 = vmatpush1.bf16.msra.mxu0 0
        %3495 = vmatprep.subr.bf16.mxu0 0
        %3496 = vmatpush1.bf16.msra.mxu0 0
        %3497 = vmatprep.subr.bf16.mxu0 0
        %3498 = vmatpush1.bf16.msra.mxu0 0
        %3499 = vmatprep.mubr.bf16.mxu0 0
        %3500 = vmatmul.mubr.bf16.gmra.mrb[0].mxu0 %v3459
        %v3501 = vpop.f32.mrb[0].mxu0
        %v3502 = vadd.f32 %v3412, %v3501
        %v3503 = vpop.f32.mrb[0].mxu0
        %v3504 = vpop.f32.mrb[0].mxu0
        %v3505 = vadd.f32 %v3415, %v3504
        %v3506 = vpop.f32.mrb[0].mxu0
        %3507 = vmatprep.mubr.bf16.mxu0 0
        %3508 = vmatmul.mubr.bf16.gmra.mrb[0].mxu0 %v3462
        %v3509 = vpop.f32.mrb[0].mxu0
        %v3510 = vadd.f32 %v3420, %v3509
        %v3511 = vpop.f32.mrb[0].mxu0
        %v3512 = vpop.f32.mrb[0].mxu0
        %v3513 = vadd.f32 %v3423, %v3512
        %v3514 = vpop.f32.mrb[0].mxu0
        %3515 = vmatprep.mubr.bf16.mxu0 0
        %3516 = vmatmul.mubr.bf16.gmra.mrb[0].mxu0 %v3465
        %v3517 = vpop.f32.mrb[0].mxu0
        %v3518 = vadd.f32 %v3428, %v3517
        %v3519 = vpop.f32.mrb[0].mxu0
        %v3520 = vpop.f32.mrb[0].mxu0
        %v3521 = vadd.f32 %v3431, %v3520
        %v3522 = vpop.f32.mrb[0].mxu0
        %3523 = vdwg.mxu0
        %s3524 = scalar_lea.vmem [#allocation3], 352
        %v3525 = vld [vmem:[%s3524] sm:$0xf]
        %v3526 = vld [vmem:[%s3524 + $0x4] sm:$0xf]
        %v3527 = vld [vmem:[%s3524 + $0x8] sm:$0xf]
        %v3528 = vld [vmem:[%s3524 + $0xc] sm:$0xf]
        %v3529 = vld [vmem:[%s3524 + $0x10] sm:$0xf]
        %v3530 = vld [vmem:[%s3524 + $0x14] sm:$0xf]
        %v3531 = vld [vmem:[%s3524 + $0x18] sm:$0xf]
        %v3532 = vld [vmem:[%s3524 + $0x1c] sm:$0xf]
        %v3533 = vld [vmem:[%s8 + $0x2] sm:$0x1]
        %v3534 = vlaneseq
        %v3535 = vshrl.u32 %v3534, 7
        %v3536 = vsub.s32 0, %v3535
        %v3537 = vrot.slane %v3533, %v3536
        %v3546 = vunpack.c.l.b16 %v3525
        %v3547 = vunpack.c.l.b16 %v3526
        %v3548 = vunpack.c.l.b16 %v3527
        %v3549 = vunpack.c.l.b16 %v3528
        %v3550 = vunpack.c.l.b16 %v3529
        %v3551 = vunpack.c.l.b16 %v3530
        %v3552 = vunpack.c.l.b16 %v3531
        %v3553 = vunpack.c.l.b16 %v3532
        %v3554 = vpack.c.b16 %v3547, %v3546
        %v3555 = vpack.c.b16 %v3549, %v3548
        %v3556 = vpack.c.b16 %v3551, %v3550
        %v3557 = vpack.c.b16 %v3553, %v3552
        %3562 = vmatprep.subr.bf16.mxu0 0
        %3563 = vmatpush1.bf16.msra.mxu0 %v3554
        %3564 = vmatprep.subr.bf16.mxu0 0
        %3565 = vmatpush1.bf16.msra.mxu0 %v3555
        %3566 = vmatprep.subr.bf16.mxu0 0
        %3567 = vmatpush1.bf16.msra.mxu0 %v3556
        %3568 = vmatprep.subr.bf16.mxu0 0
        %3569 = vmatpush1.bf16.msra.mxu0 %v3557
        %3570 = vmatprep.subr.bf16.mxu0 0
        %3571 = vmatpush1.bf16.msra.mxu0 0
        %3572 = vmatprep.subr.bf16.mxu0 0
        %3573 = vmatpush1.bf16.msra.mxu0 0
        %3574 = vmatprep.subr.bf16.mxu0 0
        %3575 = vmatpush1.bf16.msra.mxu0 0
        %3576 = vmatprep.subr.bf16.mxu0 0
        %3577 = vmatpush1.bf16.msra.mxu0 0
        %3578 = vmatprep.subr.bf16.mxu0 0
        %3579 = vmatpush1.bf16.msra.mxu0 0
        %3580 = vmatprep.subr.bf16.mxu0 0
        %3581 = vmatpush1.bf16.msra.mxu0 0
        %3582 = vmatprep.subr.bf16.mxu0 0
        %3583 = vmatpush1.bf16.msra.mxu0 0
        %3584 = vmatprep.subr.bf16.mxu0 0
        %3585 = vmatpush1.bf16.msra.mxu0 0
        %3586 = vmatprep.subr.bf16.mxu0 0
        %3587 = vmatpush1.bf16.msra.mxu0 0
        %3588 = vmatprep.subr.bf16.mxu0 0
        %3589 = vmatpush1.bf16.msra.mxu0 0
        %3590 = vmatprep.subr.bf16.mxu0 0
        %3591 = vmatpush1.bf16.msra.mxu0 0
        %3592 = vmatprep.subr.bf16.mxu0 0
        %3593 = vmatpush1.bf16.msra.mxu0 0
        %3594 = vmatprep.mubr.bf16.mxu0 0
        %3595 = vmatmul.mubr.bf16.gmra.mrb[0].mxu0 %v3088
        %v3596 = vpop.f32.mrb[0].mxu0
        %v3597 = vadd.f32 %v3537, %v3596
        %v3598 = vpop.f32.mrb[0].mxu0
        %v3599 = vpop.f32.mrb[0].mxu0
        %v3600 = vadd.f32 %v3537, %v3599
        %v3601 = vpop.f32.mrb[0].mxu0
        %3602 = vmatprep.mubr.bf16.mxu0 0
        %3603 = vmatmul.mubr.bf16.gmra.mrb[0].mxu0 %v3091
        %v3604 = vpop.f32.mrb[0].mxu0
        %v3605 = vadd.f32 %v3537, %v3604
        %v3606 = vpop.f32.mrb[0].mxu0
        %v3607 = vpop.f32.mrb[0].mxu0
        %v3608 = vadd.f32 %v3537, %v3607
        %v3609 = vpop.f32.mrb[0].mxu0
        %3610 = vmatprep.mubr.bf16.mxu0 0
        %3611 = vmatmul.mubr.bf16.gmra.mrb[0].mxu0 %v3094
        %v3612 = vpop.f32.mrb[0].mxu0
        %v3613 = vadd.f32 %v3537, %v3612
        %v3614 = vpop.f32.mrb[0].mxu0
        %v3615 = vpop.f32.mrb[0].mxu0
        %v3616 = vadd.f32 %v3537, %v3615
        %v3617 = vpop.f32.mrb[0].mxu0
        %3618 = vdwg.mxu0
        %v3619 = vsub.f32 0.0, %v3597
        %v3620 = vsub.f32 0.0, %v3600
        %v3621 = vsub.f32 0.0, %v3605
        %v3622 = vsub.f32 0.0, %v3608
        %v3623 = vsub.f32 0.0, %v3613
        %v3624 = vsub.f32 0.0, %v3616
        %v3625 = vmul.f32 %v3619, 1.442695
        %v3626 = vpow.pop %v3625
        %v3627 = vmul.f32 %v3620, 1.442695
        %v3628 = vpow.pop %v3627
        %v3629 = vmul.f32 %v3621, 1.442695
        %v3630 = vpow.pop %v3629
        %v3631 = vmul.f32 %v3622, 1.442695
        %v3632 = vpow.pop %v3631
        %v3633 = vmul.f32 %v3623, 1.442695
        %v3634 = vpow.pop %v3633
        %v3635 = vmul.f32 %v3624, 1.442695
        %v3636 = vpow.pop %v3635
        %v3637 = vadd.f32 %v3626, 1.0
        %v3638 = vadd.f32 %v3628, 1.0
        %v3639 = vadd.f32 %v3630, 1.0
        %v3640 = vadd.f32 %v3632, 1.0
        %v3641 = vadd.f32 %v3634, 1.0
        %v3642 = vadd.f32 %v3636, 1.0
        %v3643 = vrcp.pop %v3637
        %v3644 = vrcp.pop %v3638
        %v3645 = vrcp.pop %v3639
        %v3646 = vrcp.pop %v3640
        %v3647 = vrcp.pop %v3641
        %v3648 = vrcp.pop %v3642
        %v3649 = vmul.f32 %v2003, %v3643
        %v3650 = vmul.f32 %v2004, %v3644
        %v3651 = vmul.f32 %v2005, %v3645
        %v3652 = vmul.f32 %v2006, %v3646
        %v3653 = vmul.f32 %v2007, %v3647
        %v3654 = vmul.f32 %v2008, %v3648
        %v3655 = vpack.c.bf16 %v3650, %v3649
        %v3656 = vpack.c.bf16 %v3652, %v3651
        %v3657 = vpack.c.bf16 %v3654, %v3653
        %s3658 = scalar_lea.vmem [#allocation3], 640
        %v3659 = vld [vmem:[%s3658] sm:$0xf]
        %v3660 = vld [vmem:[%s3658 + $0x4] sm:$0xf]
        %v3661 = vld [vmem:[%s3658 + $0x8] sm:$0xf]
        %v3662 = vld [vmem:[%s3658 + $0xc] sm:$0xf]
        %v3663 = vld [vmem:[%s3658 + $0x10] sm:$0xf]
        %v3664 = vld [vmem:[%s3658 + $0x14] sm:$0xf]
        %v3665 = vld [vmem:[%s3658 + $0x18] sm:$0xf]
        %v3666 = vld [vmem:[%s3658 + $0x1c] sm:$0xf]
        %v3675 = vunpack.c.l.b16 %v3659
        %v3676 = vunpack.c.l.b16 %v3660
        %v3677 = vunpack.c.l.b16 %v3661
        %v3678 = vunpack.c.l.b16 %v3662
        %v3679 = vunpack.c.l.b16 %v3663
        %v3680 = vunpack.c.l.b16 %v3664
        %v3681 = vunpack.c.l.b16 %v3665
        %v3682 = vunpack.c.l.b16 %v3666
        %v3683 = vpack.c.b16 %v3676, %v3675
        %v3684 = vpack.c.b16 %v3678, %v3677
        %v3685 = vpack.c.b16 %v3680, %v3679
        %v3686 = vpack.c.b16 %v3682, %v3681
        %v3692 = vsel %vm612, %v3655, 0
        %v3695 = vsel %vm612, %v3656, 0
        %v3698 = vsel %vm612, %v3657, 0
        %3700 = vmatprep.subr.bf16.mxu0 0
        %3701 = vmatpush1.bf16.msra.mxu0 %v3683
        %3702 = vmatprep.subr.bf16.mxu0 0
        %3703 = vmatpush1.bf16.msra.mxu0 %v3684
        %3704 = vmatprep.subr.bf16.mxu0 0
        %3705 = vmatpush1.bf16.msra.mxu0 %v3685
        %3706 = vmatprep.subr.bf16.mxu0 0
        %3707 = vmatpush1.bf16.msra.mxu0 %v3686
        %3708 = vmatprep.subr.bf16.mxu0 0
        %3709 = vmatpush1.bf16.msra.mxu0 0
        %3710 = vmatprep.subr.bf16.mxu0 0
        %3711 = vmatpush1.bf16.msra.mxu0 0
        %3712 = vmatprep.subr.bf16.mxu0 0
        %3713 = vmatpush1.bf16.msra.mxu0 0
        %3714 = vmatprep.subr.bf16.mxu0 0
        %3715 = vmatpush1.bf16.msra.mxu0 0
        %3716 = vmatprep.subr.bf16.mxu0 0
        %3717 = vmatpush1.bf16.msra.mxu0 0
        %3718 = vmatprep.subr.bf16.mxu0 0
        %3719 = vmatpush1.bf16.msra.mxu0 0
        %3720 = vmatprep.subr.bf16.mxu0 0
        %3721 = vmatpush1.bf16.msra.mxu0 0
        %3722 = vmatprep.subr.bf16.mxu0 0
        %3723 = vmatpush1.bf16.msra.mxu0 0
        %3724 = vmatprep.subr.bf16.mxu0 0
        %3725 = vmatpush1.bf16.msra.mxu0 0
        %3726 = vmatprep.subr.bf16.mxu0 0
        %3727 = vmatpush1.bf16.msra.mxu0 0
        %3728 = vmatprep.subr.bf16.mxu0 0
        %3729 = vmatpush1.bf16.msra.mxu0 0
        %3730 = vmatprep.subr.bf16.mxu0 0
        %3731 = vmatpush1.bf16.msra.mxu0 0
        %3732 = vmatprep.mubr.bf16.mxu0 0
        %3733 = vmatmul.mubr.bf16.gmra.mrb[0].mxu0 %v3692
        %v3734 = vpop.f32.mrb[0].mxu0
        %v3735 = vadd.f32 0.0, %v3734
        %v3736 = vpop.f32.mrb[0].mxu0
        %v3737 = vpop.f32.mrb[0].mxu0
        %v3738 = vadd.f32 0.0, %v3737
        %v3739 = vpop.f32.mrb[0].mxu0
        %3740 = vmatprep.mubr.bf16.mxu0 0
        %3741 = vmatmul.mubr.bf16.gmra.mrb[0].mxu0 %v3695
        %v3742 = vpop.f32.mrb[0].mxu0
        %v3743 = vadd.f32 0.0, %v3742
        %v3744 = vpop.f32.mrb[0].mxu0
        %v3745 = vpop.f32.mrb[0].mxu0
        %v3746 = vadd.f32 0.0, %v3745
        %v3747 = vpop.f32.mrb[0].mxu0
        %3748 = vmatprep.mubr.bf16.mxu0 0
        %3749 = vmatmul.mubr.bf16.gmra.mrb[0].mxu0 %v3698
        %v3750 = vpop.f32.mrb[0].mxu0
        %v3751 = vadd.f32 0.0, %v3750
        %v3752 = vpop.f32.mrb[0].mxu0
        %v3753 = vpop.f32.mrb[0].mxu0
        %v3754 = vadd.f32 0.0, %v3753
        %v3755 = vpop.f32.mrb[0].mxu0
        %3756 = vdwg.mxu0
        %v3757 = vadd.f32 %v3502, %v3735
        %v3758 = vadd.f32 %v3505, %v3738
        %v3759 = vadd.f32 %v3510, %v3743
        %v3760 = vadd.f32 %v3513, %v3746
        %v3761 = vadd.f32 %v3518, %v3751
        %v3762 = vadd.f32 %v3521, %v3754
        %s3763 = scalar_lea.vmem [#allocation3], 384
        %v3764 = vld [vmem:[%s3763] sm:$0xf]
        %v3765 = vld [vmem:[%s3763 + $0x4] sm:$0xf]
        %v3766 = vld [vmem:[%s3763 + $0x8] sm:$0xf]
        %v3767 = vld [vmem:[%s3763 + $0xc] sm:$0xf]
        %v3768 = vld [vmem:[%s3763 + $0x10] sm:$0xf]
        %v3769 = vld [vmem:[%s3763 + $0x14] sm:$0xf]
        %v3770 = vld [vmem:[%s3763 + $0x18] sm:$0xf]
        %v3771 = vld [vmem:[%s3763 + $0x1c] sm:$0xf]
        %v3772 = vld [vmem:[%s8 + $0x3] sm:$0x1]
        %v3773 = vlaneseq
        %v3774 = vshrl.u32 %v3773, 7
        %v3775 = vsub.s32 0, %v3774
        %v3776 = vrot.slane %v3772, %v3775
        %v3785 = vunpack.c.l.b16 %v3764
        %v3786 = vunpack.c.l.b16 %v3765
        %v3787 = vunpack.c.l.b16 %v3766
        %v3788 = vunpack.c.l.b16 %v3767
        %v3789 = vunpack.c.l.b16 %v3768
        %v3790 = vunpack.c.l.b16 %v3769
        %v3791 = vunpack.c.l.b16 %v3770
        %v3792 = vunpack.c.l.b16 %v3771
        %v3793 = vpack.c.b16 %v3786, %v3785
        %v3794 = vpack.c.b16 %v3788, %v3787
        %v3795 = vpack.c.b16 %v3790, %v3789
        %v3796 = vpack.c.b16 %v3792, %v3791
        %3801 = vmatprep.subr.bf16.mxu0 0
        %3802 = vmatpush1.bf16.msra.mxu0 %v3793
        %3803 = vmatprep.subr.bf16.mxu0 0
        %3804 = vmatpush1.bf16.msra.mxu0 %v3794
        %3805 = vmatprep.subr.bf16.mxu0 0
        %3806 = vmatpush1.bf16.msra.mxu0 %v3795
        %3807 = vmatprep.subr.bf16.mxu0 0
        %3808 = vmatpush1.bf16.msra.mxu0 %v3796
        %3809 = vmatprep.subr.bf16.mxu0 0
        %3810 = vmatpush1.bf16.msra.mxu0 0
        %3811 = vmatprep.subr.bf16.mxu0 0
        %3812 = vmatpush1.bf16.msra.mxu0 0
        %3813 = vmatprep.subr.bf16.mxu0 0
        %3814 = vmatpush1.bf16.msra.mxu0 0
        %3815 = vmatprep.subr.bf16.mxu0 0
        %3816 = vmatpush1.bf16.msra.mxu0 0
        %3817 = vmatprep.subr.bf16.mxu0 0
        %3818 = vmatpush1.bf16.msra.mxu0 0
        %3819 = vmatprep.subr.bf16.mxu0 0
        %3820 = vmatpush1.bf16.msra.mxu0 0
        %3821 = vmatprep.subr.bf16.mxu0 0
        %3822 = vmatpush1.bf16.msra.mxu0 0
        %3823 = vmatprep.subr.bf16.mxu0 0
        %3824 = vmatpush1.bf16.msra.mxu0 0
        %3825 = vmatprep.subr.bf16.mxu0 0
        %3826 = vmatpush1.bf16.msra.mxu0 0
        %3827 = vmatprep.subr.bf16.mxu0 0
        %3828 = vmatpush1.bf16.msra.mxu0 0
        %3829 = vmatprep.subr.bf16.mxu0 0
        %3830 = vmatpush1.bf16.msra.mxu0 0
        %3831 = vmatprep.subr.bf16.mxu0 0
        %3832 = vmatpush1.bf16.msra.mxu0 0
        %3833 = vmatprep.mubr.bf16.mxu0 0
        %3834 = vmatmul.mubr.bf16.gmra.mrb[0].mxu0 %v3088
        %v3835 = vpop.f32.mrb[0].mxu0
        %v3836 = vadd.f32 %v3776, %v3835
        %v3837 = vpop.f32.mrb[0].mxu0
        %v3838 = vpop.f32.mrb[0].mxu0
        %v3839 = vadd.f32 %v3776, %v3838
        %v3840 = vpop.f32.mrb[0].mxu0
        %3841 = vmatprep.mubr.bf16.mxu0 0
        %3842 = vmatmul.mubr.bf16.gmra.mrb[0].mxu0 %v3091
        %v3843 = vpop.f32.mrb[0].mxu0
        %v3844 = vadd.f32 %v3776, %v3843
        %v3845 = vpop.f32.mrb[0].mxu0
        %v3846 = vpop.f32.mrb[0].mxu0
        %v3847 = vadd.f32 %v3776, %v3846
        %v3848 = vpop.f32.mrb[0].mxu0
        %3849 = vmatprep.mubr.bf16.mxu0 0
        %3850 = vmatmul.mubr.bf16.gmra.mrb[0].mxu0 %v3094
        %v3851 = vpop.f32.mrb[0].mxu0
        %v3852 = vadd.f32 %v3776, %v3851
        %v3853 = vpop.f32.mrb[0].mxu0
        %v3854 = vpop.f32.mrb[0].mxu0
        %v3855 = vadd.f32 %v3776, %v3854
        %v3856 = vpop.f32.mrb[0].mxu0
        %3857 = vdwg.mxu0
        %v3858 = vsub.f32 0.0, %v3836
        %v3859 = vsub.f32 0.0, %v3839
        %v3860 = vsub.f32 0.0, %v3844
        %v3861 = vsub.f32 0.0, %v3847
        %v3862 = vsub.f32 0.0, %v3852
        %v3863 = vsub.f32 0.0, %v3855
        %v3864 = vmul.f32 %v3858, 1.442695
        %v3865 = vpow.pop %v3864
        %v3866 = vmul.f32 %v3859, 1.442695
        %v3867 = vpow.pop %v3866
        %v3868 = vmul.f32 %v3860, 1.442695
        %v3869 = vpow.pop %v3868
        %v3870 = vmul.f32 %v3861, 1.442695
        %v3871 = vpow.pop %v3870
        %v3872 = vmul.f32 %v3862, 1.442695
        %v3873 = vpow.pop %v3872
        %v3874 = vmul.f32 %v3863, 1.442695
        %v3875 = vpow.pop %v3874
        %v3876 = vadd.f32 %v3865, 1.0
        %v3877 = vadd.f32 %v3867, 1.0
        %v3878 = vadd.f32 %v3869, 1.0
        %v3879 = vadd.f32 %v3871, 1.0
        %v3880 = vadd.f32 %v3873, 1.0
        %v3881 = vadd.f32 %v3875, 1.0
        %v3882 = vrcp.pop %v3876
        %v3883 = vrcp.pop %v3877
        %v3884 = vrcp.pop %v3878
        %v3885 = vrcp.pop %v3879
        %v3886 = vrcp.pop %v3880
        %v3887 = vrcp.pop %v3881
        %v3888 = vmul.f32 %v2171, %v3882
        %v3889 = vmul.f32 %v2172, %v3883
        %v3890 = vmul.f32 %v2173, %v3884
        %v3891 = vmul.f32 %v2174, %v3885
        %v3892 = vmul.f32 %v2175, %v3886
        %v3893 = vmul.f32 %v2176, %v3887
        %v3894 = vpack.c.bf16 %v3889, %v3888
        %v3895 = vpack.c.bf16 %v3891, %v3890
        %v3896 = vpack.c.bf16 %v3893, %v3892
        %s3897 = scalar_lea.vmem [#allocation3], 672
        %v3898 = vld [vmem:[%s3897] sm:$0xf]
        %v3899 = vld [vmem:[%s3897 + $0x4] sm:$0xf]
        %v3900 = vld [vmem:[%s3897 + $0x8] sm:$0xf]
        %v3901 = vld [vmem:[%s3897 + $0xc] sm:$0xf]
        %v3902 = vld [vmem:[%s3897 + $0x10] sm:$0xf]
        %v3903 = vld [vmem:[%s3897 + $0x14] sm:$0xf]
        %v3904 = vld [vmem:[%s3897 + $0x18] sm:$0xf]
        %v3905 = vld [vmem:[%s3897 + $0x1c] sm:$0xf]
        %v3914 = vunpack.c.l.b16 %v3898
        %v3915 = vunpack.c.l.b16 %v3899
        %v3916 = vunpack.c.l.b16 %v3900
        %v3917 = vunpack.c.l.b16 %v3901
        %v3918 = vunpack.c.l.b16 %v3902
        %v3919 = vunpack.c.l.b16 %v3903
        %v3920 = vunpack.c.l.b16 %v3904
        %v3921 = vunpack.c.l.b16 %v3905
        %v3922 = vpack.c.b16 %v3915, %v3914
        %v3923 = vpack.c.b16 %v3917, %v3916
        %v3924 = vpack.c.b16 %v3919, %v3918
        %v3925 = vpack.c.b16 %v3921, %v3920
        %v3931 = vsel %vm612, %v3894, 0
        %v3934 = vsel %vm612, %v3895, 0
        %v3937 = vsel %vm612, %v3896, 0
        %3939 = vmatprep.subr.bf16.mxu0 0
        %3940 = vmatpush1.bf16.msra.mxu0 %v3922
        %3941 = vmatprep.subr.bf16.mxu0 0
        %3942 = vmatpush1.bf16.msra.mxu0 %v3923
        %3943 = vmatprep.subr.bf16.mxu0 0
        %3944 = vmatpush1.bf16.msra.mxu0 %v3924
        %3945 = vmatprep.subr.bf16.mxu0 0
        %3946 = vmatpush1.bf16.msra.mxu0 %v3925
        %3947 = vmatprep.subr.bf16.mxu0 0
        %3948 = vmatpush1.bf16.msra.mxu0 0
        %3949 = vmatprep.subr.bf16.mxu0 0
        %3950 = vmatpush1.bf16.msra.mxu0 0
        %3951 = vmatprep.subr.bf16.mxu0 0
        %3952 = vmatpush1.bf16.msra.mxu0 0
        %3953 = vmatprep.subr.bf16.mxu0 0
        %3954 = vmatpush1.bf16.msra.mxu0 0
        %3955 = vmatprep.subr.bf16.mxu0 0
        %3956 = vmatpush1.bf16.msra.mxu0 0
        %3957 = vmatprep.subr.bf16.mxu0 0
        %3958 = vmatpush1.bf16.msra.mxu0 0
        %3959 = vmatprep.subr.bf16.mxu0 0
        %3960 = vmatpush1.bf16.msra.mxu0 0
        %3961 = vmatprep.subr.bf16.mxu0 0
        %3962 = vmatpush1.bf16.msra.mxu0 0
        %3963 = vmatprep.subr.bf16.mxu0 0
        %3964 = vmatpush1.bf16.msra.mxu0 0
        %3965 = vmatprep.subr.bf16.mxu0 0
        %3966 = vmatpush1.bf16.msra.mxu0 0
        %3967 = vmatprep.subr.bf16.mxu0 0
        %3968 = vmatpush1.bf16.msra.mxu0 0
        %3969 = vmatprep.subr.bf16.mxu0 0
        %3970 = vmatpush1.bf16.msra.mxu0 0
        %3971 = vmatprep.mubr.bf16.mxu0 0
        %3972 = vmatmul.mubr.bf16.gmra.mrb[0].mxu0 %v3931
        %v3973 = vpop.f32.mrb[0].mxu0
        %v3974 = vadd.f32 0.0, %v3973
        %v3975 = vpop.f32.mrb[0].mxu0
        %v3976 = vpop.f32.mrb[0].mxu0
        %v3977 = vadd.f32 0.0, %v3976
        %v3978 = vpop.f32.mrb[0].mxu0
        %3979 = vmatprep.mubr.bf16.mxu0 0
        %3980 = vmatmul.mubr.bf16.gmra.mrb[0].mxu0 %v3934
        %v3981 = vpop.f32.mrb[0].mxu0
        %v3982 = vadd.f32 0.0, %v3981
        %v3983 = vpop.f32.mrb[0].mxu0
        %v3984 = vpop.f32.mrb[0].mxu0
        %v3985 = vadd.f32 0.0, %v3984
        %v3986 = vpop.f32.mrb[0].mxu0
        %3987 = vmatprep.mubr.bf16.mxu0 0
        %3988 = vmatmul.mubr.bf16.gmra.mrb[0].mxu0 %v3937
        %v3989 = vpop.f32.mrb[0].mxu0
        %v3990 = vadd.f32 0.0, %v3989
        %v3991 = vpop.f32.mrb[0].mxu0
        %v3992 = vpop.f32.mrb[0].mxu0
        %v3993 = vadd.f32 0.0, %v3992
        %v3994 = vpop.f32.mrb[0].mxu0
        %3995 = vdwg.mxu0
        %v3996 = vadd.f32 %v3757, %v3974
        %v3997 = vadd.f32 %v3758, %v3977
        %v3998 = vadd.f32 %v3759, %v3982
        %v3999 = vadd.f32 %v3760, %v3985
        %v4000 = vadd.f32 %v3761, %v3990
        %v4001 = vadd.f32 %v3762, %v3993
        %s4002 = scalar_lea.vmem [#allocation3], 416
        %v4003 = vld [vmem:[%s4002] sm:$0xf]
        %v4004 = vld [vmem:[%s4002 + $0x4] sm:$0xf]
        %v4005 = vld [vmem:[%s4002 + $0x8] sm:$0xf]
        %v4006 = vld [vmem:[%s4002 + $0xc] sm:$0xf]
        %v4007 = vld [vmem:[%s4002 + $0x10] sm:$0xf]
        %v4008 = vld [vmem:[%s4002 + $0x14] sm:$0xf]
        %v4009 = vld [vmem:[%s4002 + $0x18] sm:$0xf]
        %v4010 = vld [vmem:[%s4002 + $0x1c] sm:$0xf]
        %v4011 = vld [vmem:[%s8 + $0x4] sm:$0x1]
        %v4012 = vlaneseq
        %v4013 = vshrl.u32 %v4012, 7
        %v4014 = vsub.s32 0, %v4013
        %v4015 = vrot.slane %v4011, %v4014
        %v4024 = vunpack.c.l.b16 %v4003
        %v4025 = vunpack.c.l.b16 %v4004
        %v4026 = vunpack.c.l.b16 %v4005
        %v4027 = vunpack.c.l.b16 %v4006
        %v4028 = vunpack.c.l.b16 %v4007
        %v4029 = vunpack.c.l.b16 %v4008
        %v4030 = vunpack.c.l.b16 %v4009
        %v4031 = vunpack.c.l.b16 %v4010
        %v4032 = vpack.c.b16 %v4025, %v4024
        %v4033 = vpack.c.b16 %v4027, %v4026
        %v4034 = vpack.c.b16 %v4029, %v4028
        %v4035 = vpack.c.b16 %v4031, %v4030
        %4040 = vmatprep.subr.bf16.mxu0 0
        %4041 = vmatpush1.bf16.msra.mxu0 %v4032
        %4042 = vmatprep.subr.bf16.mxu0 0
        %4043 = vmatpush1.bf16.msra.mxu0 %v4033
        %4044 = vmatprep.subr.bf16.mxu0 0
        %4045 = vmatpush1.bf16.msra.mxu0 %v4034
        %4046 = vmatprep.subr.bf16.mxu0 0
        %4047 = vmatpush1.bf16.msra.mxu0 %v4035
        %4048 = vmatprep.subr.bf16.mxu0 0
        %4049 = vmatpush1.bf16.msra.mxu0 0
        %4050 = vmatprep.subr.bf16.mxu0 0
        %4051 = vmatpush1.bf16.msra.mxu0 0
        %4052 = vmatprep.subr.bf16.mxu0 0
        %4053 = vmatpush1.bf16.msra.mxu0 0
        %4054 = vmatprep.subr.bf16.mxu0 0
        %4055 = vmatpush1.bf16.msra.mxu0 0
        %4056 = vmatprep.subr.bf16.mxu0 0
        %4057 = vmatpush1.bf16.msra.mxu0 0
        %4058 = vmatprep.subr.bf16.mxu0 0
        %4059 = vmatpush1.bf16.msra.mxu0 0
        %4060 = vmatprep.subr.bf16.mxu0 0
        %4061 = vmatpush1.bf16.msra.mxu0 0
        %4062 = vmatprep.subr.bf16.mxu0 0
        %4063 = vmatpush1.bf16.msra.mxu0 0
        %4064 = vmatprep.subr.bf16.mxu0 0
        %4065 = vmatpush1.bf16.msra.mxu0 0
        %4066 = vmatprep.subr.bf16.mxu0 0
        %4067 = vmatpush1.bf16.msra.mxu0 0
        %4068 = vmatprep.subr.bf16.mxu0 0
        %4069 = vmatpush1.bf16.msra.mxu0 0
        %4070 = vmatprep.subr.bf16.mxu0 0
        %4071 = vmatpush1.bf16.msra.mxu0 0
        %4072 = vmatprep.mubr.bf16.mxu0 0
        %4073 = vmatmul.mubr.bf16.gmra.mrb[0].mxu0 %v3088
        %v4074 = vpop.f32.mrb[0].mxu0
        %v4075 = vadd.f32 %v4015, %v4074
        %v4076 = vpop.f32.mrb[0].mxu0
        %v4077 = vpop.f32.mrb[0].mxu0
        %v4078 = vadd.f32 %v4015, %v4077
        %v4079 = vpop.f32.mrb[0].mxu0
        %4080 = vmatprep.mubr.bf16.mxu0 0
        %4081 = vmatmul.mubr.bf16.gmra.mrb[0].mxu0 %v3091
        %v4082 = vpop.f32.mrb[0].mxu0
        %v4083 = vadd.f32 %v4015, %v4082
        %v4084 = vpop.f32.mrb[0].mxu0
        %v4085 = vpop.f32.mrb[0].mxu0
        %v4086 = vadd.f32 %v4015, %v4085
        %v4087 = vpop.f32.mrb[0].mxu0
        %4088 = vmatprep.mubr.bf16.mxu0 0
        %4089 = vmatmul.mubr.bf16.gmra.mrb[0].mxu0 %v3094
        %v4090 = vpop.f32.mrb[0].mxu0
        %v4091 = vadd.f32 %v4015, %v4090
        %v4092 = vpop.f32.mrb[0].mxu0
        %v4093 = vpop.f32.mrb[0].mxu0
        %v4094 = vadd.f32 %v4015, %v4093
        %v4095 = vpop.f32.mrb[0].mxu0
        %4096 = vdwg.mxu0
        %v4097 = vsub.f32 0.0, %v4075
        %v4098 = vsub.f32 0.0, %v4078
        %v4099 = vsub.f32 0.0, %v4083
        %v4100 = vsub.f32 0.0, %v4086
        %v4101 = vsub.f32 0.0, %v4091
        %v4102 = vsub.f32 0.0, %v4094
        %v4103 = vmul.f32 %v4097, 1.442695
        %v4104 = vpow.pop %v4103
        %v4105 = vmul.f32 %v4098, 1.442695
        %v4106 = vpow.pop %v4105
        %v4107 = vmul.f32 %v4099, 1.442695
        %v4108 = vpow.pop %v4107
        %v4109 = vmul.f32 %v4100, 1.442695
        %v4110 = vpow.pop %v4109
        %v4111 = vmul.f32 %v4101, 1.442695
        %v4112 = vpow.pop %v4111
        %v4113 = vmul.f32 %v4102, 1.442695
        %v4114 = vpow.pop %v4113
        %v4115 = vadd.f32 %v4104, 1.0
        %v4116 = vadd.f32 %v4106, 1.0
        %v4117 = vadd.f32 %v4108, 1.0
        %v4118 = vadd.f32 %v4110, 1.0
        %v4119 = vadd.f32 %v4112, 1.0
        %v4120 = vadd.f32 %v4114, 1.0
        %v4121 = vrcp.pop %v4115
        %v4122 = vrcp.pop %v4116
        %v4123 = vrcp.pop %v4117
        %v4124 = vrcp.pop %v4118
        %v4125 = vrcp.pop %v4119
        %v4126 = vrcp.pop %v4120
        %v4127 = vmul.f32 %v2315, %v4121
        %v4128 = vmul.f32 %v2316, %v4122
        %v4129 = vmul.f32 %v2317, %v4123
        %v4130 = vmul.f32 %v2318, %v4124
        %v4131 = vmul.f32 %v2319, %v4125
        %v4132 = vmul.f32 %v2320, %v4126
        %v4133 = vpack.c.bf16 %v4128, %v4127
        %v4134 = vpack.c.bf16 %v4130, %v4129
        %v4135 = vpack.c.bf16 %v4132, %v4131
        %s4136 = scalar_lea.vmem [#allocation3], 704
        %v4137 = vld [vmem:[%s4136] sm:$0xf]
        %v4138 = vld [vmem:[%s4136 + $0x4] sm:$0xf]
        %v4139 = vld [vmem:[%s4136 + $0x8] sm:$0xf]
        %v4140 = vld [vmem:[%s4136 + $0xc] sm:$0xf]
        %v4141 = vld [vmem:[%s4136 + $0x10] sm:$0xf]
        %v4142 = vld [vmem:[%s4136 + $0x14] sm:$0xf]
        %v4143 = vld [vmem:[%s4136 + $0x18] sm:$0xf]
        %v4144 = vld [vmem:[%s4136 + $0x1c] sm:$0xf]
        %v4153 = vunpack.c.l.b16 %v4137
        %v4154 = vunpack.c.l.b16 %v4138
        %v4155 = vunpack.c.l.b16 %v4139
        %v4156 = vunpack.c.l.b16 %v4140
        %v4157 = vunpack.c.l.b16 %v4141
        %v4158 = vunpack.c.l.b16 %v4142
        %v4159 = vunpack.c.l.b16 %v4143
        %v4160 = vunpack.c.l.b16 %v4144
        %v4161 = vpack.c.b16 %v4154, %v4153
        %v4162 = vpack.c.b16 %v4156, %v4155
        %v4163 = vpack.c.b16 %v4158, %v4157
        %v4164 = vpack.c.b16 %v4160, %v4159
        %v4170 = vsel %vm612, %v4133, 0
        %v4173 = vsel %vm612, %v4134, 0
        %v4176 = vsel %vm612, %v4135, 0
        %4178 = vmatprep.subr.bf16.mxu0 0
        %4179 = vmatpush1.bf16.msra.mxu0 %v4161
        %4180 = vmatprep.subr.bf16.mxu0 0
        %4181 = vmatpush1.bf16.msra.mxu0 %v4162
        %4182 = vmatprep.subr.bf16.mxu0 0
        %4183 = vmatpush1.bf16.msra.mxu0 %v4163
        %4184 = vmatprep.subr.bf16.mxu0 0
        %4185 = vmatpush1.bf16.msra.mxu0 %v4164
        %4186 = vmatprep.subr.bf16.mxu0 0
        %4187 = vmatpush1.bf16.msra.mxu0 0
        %4188 = vmatprep.subr.bf16.mxu0 0
        %4189 = vmatpush1.bf16.msra.mxu0 0
        %4190 = vmatprep.subr.bf16.mxu0 0
        %4191 = vmatpush1.bf16.msra.mxu0 0
        %4192 = vmatprep.subr.bf16.mxu0 0
        %4193 = vmatpush1.bf16.msra.mxu0 0
        %4194 = vmatprep.subr.bf16.mxu0 0
        %4195 = vmatpush1.bf16.msra.mxu0 0
        %4196 = vmatprep.subr.bf16.mxu0 0
        %4197 = vmatpush1.bf16.msra.mxu0 0
        %4198 = vmatprep.subr.bf16.mxu0 0
        %4199 = vmatpush1.bf16.msra.mxu0 0
        %4200 = vmatprep.subr.bf16.mxu0 0
        %4201 = vmatpush1.bf16.msra.mxu0 0
        %4202 = vmatprep.subr.bf16.mxu0 0
        %4203 = vmatpush1.bf16.msra.mxu0 0
        %4204 = vmatprep.subr.bf16.mxu0 0
        %4205 = vmatpush1.bf16.msra.mxu0 0
        %4206 = vmatprep.subr.bf16.mxu0 0
        %4207 = vmatpush1.bf16.msra.mxu0 0
        %4208 = vmatprep.subr.bf16.mxu0 0
        %4209 = vmatpush1.bf16.msra.mxu0 0
        %4210 = vmatprep.mubr.bf16.mxu0 0
        %4211 = vmatmul.mubr.bf16.gmra.mrb[0].mxu0 %v4170
        %v4212 = vpop.f32.mrb[0].mxu0
        %v4213 = vadd.f32 0.0, %v4212
        %v4214 = vpop.f32.mrb[0].mxu0
        %v4215 = vpop.f32.mrb[0].mxu0
        %v4216 = vadd.f32 0.0, %v4215
        %v4217 = vpop.f32.mrb[0].mxu0
        %4218 = vmatprep.mubr.bf16.mxu0 0
        %4219 = vmatmul.mubr.bf16.gmra.mrb[0].mxu0 %v4173
        %v4220 = vpop.f32.mrb[0].mxu0
        %v4221 = vadd.f32 0.0, %v4220
        %v4222 = vpop.f32.mrb[0].mxu0
        %v4223 = vpop.f32.mrb[0].mxu0
        %v4224 = vadd.f32 0.0, %v4223
        %v4225 = vpop.f32.mrb[0].mxu0
        %4226 = vmatprep.mubr.bf16.mxu0 0
        %4227 = vmatmul.mubr.bf16.gmra.mrb[0].mxu0 %v4176
        %v4228 = vpop.f32.mrb[0].mxu0
        %v4229 = vadd.f32 0.0, %v4228
        %v4230 = vpop.f32.mrb[0].mxu0
        %v4231 = vpop.f32.mrb[0].mxu0
        %v4232 = vadd.f32 0.0, %v4231
        %v4233 = vpop.f32.mrb[0].mxu0
        %4234 = vdwg.mxu0
        %v4235 = vadd.f32 %v3996, %v4213
        %v4236 = vadd.f32 %v3997, %v4216
        %v4237 = vadd.f32 %v3998, %v4221
        %v4238 = vadd.f32 %v3999, %v4224
        %v4239 = vadd.f32 %v4000, %v4229
        %v4240 = vadd.f32 %v4001, %v4232
        %s4241 = scalar_lea.vmem [#allocation3], 448
        %v4242 = vld [vmem:[%s4241] sm:$0xf]
        %v4243 = vld [vmem:[%s4241 + $0x4] sm:$0xf]
        %v4244 = vld [vmem:[%s4241 + $0x8] sm:$0xf]
        %v4245 = vld [vmem:[%s4241 + $0xc] sm:$0xf]
        %v4246 = vld [vmem:[%s4241 + $0x10] sm:$0xf]
        %v4247 = vld [vmem:[%s4241 + $0x14] sm:$0xf]
        %v4248 = vld [vmem:[%s4241 + $0x18] sm:$0xf]
        %v4249 = vld [vmem:[%s4241 + $0x1c] sm:$0xf]
        %v4250 = vld [vmem:[%s8 + $0x5] sm:$0x1]
        %v4251 = vlaneseq
        %v4252 = vshrl.u32 %v4251, 7
        %v4253 = vsub.s32 0, %v4252
        %v4254 = vrot.slane %v4250, %v4253
        %v4263 = vunpack.c.l.b16 %v4242
        %v4264 = vunpack.c.l.b16 %v4243
        %v4265 = vunpack.c.l.b16 %v4244
        %v4266 = vunpack.c.l.b16 %v4245
        %v4267 = vunpack.c.l.b16 %v4246
        %v4268 = vunpack.c.l.b16 %v4247
        %v4269 = vunpack.c.l.b16 %v4248
        %v4270 = vunpack.c.l.b16 %v4249
        %v4271 = vpack.c.b16 %v4264, %v4263
        %v4272 = vpack.c.b16 %v4266, %v4265
        %v4273 = vpack.c.b16 %v4268, %v4267
        %v4274 = vpack.c.b16 %v4270, %v4269
        %4279 = vmatprep.subr.bf16.mxu0 0
        %4280 = vmatpush1.bf16.msra.mxu0 %v4271
        %4281 = vmatprep.subr.bf16.mxu0 0
        %4282 = vmatpush1.bf16.msra.mxu0 %v4272
        %4283 = vmatprep.subr.bf16.mxu0 0
        %4284 = vmatpush1.bf16.msra.mxu0 %v4273
        %4285 = vmatprep.subr.bf16.mxu0 0
        %4286 = vmatpush1.bf16.msra.mxu0 %v4274
        %4287 = vmatprep.subr.bf16.mxu0 0
        %4288 = vmatpush1.bf16.msra.mxu0 0
        %4289 = vmatprep.subr.bf16.mxu0 0
        %4290 = vmatpush1.bf16.msra.mxu0 0
        %4291 = vmatprep.subr.bf16.mxu0 0
        %4292 = vmatpush1.bf16.msra.mxu0 0
        %4293 = vmatprep.subr.bf16.mxu0 0
        %4294 = vmatpush1.bf16.msra.mxu0 0
        %4295 = vmatprep.subr.bf16.mxu0 0
        %4296 = vmatpush1.bf16.msra.mxu0 0
        %4297 = vmatprep.subr.bf16.mxu0 0
        %4298 = vmatpush1.bf16.msra.mxu0 0
        %4299 = vmatprep.subr.bf16.mxu0 0
        %4300 = vmatpush1.bf16.msra.mxu0 0
        %4301 = vmatprep.subr.bf16.mxu0 0
        %4302 = vmatpush1.bf16.msra.mxu0 0
        %4303 = vmatprep.subr.bf16.mxu0 0
        %4304 = vmatpush1.bf16.msra.mxu0 0
        %4305 = vmatprep.subr.bf16.mxu0 0
        %4306 = vmatpush1.bf16.msra.mxu0 0
        %4307 = vmatprep.subr.bf16.mxu0 0
        %4308 = vmatpush1.bf16.msra.mxu0 0
        %4309 = vmatprep.subr.bf16.mxu0 0
        %4310 = vmatpush1.bf16.msra.mxu0 0
        %4311 = vmatprep.mubr.bf16.mxu0 0
        %4312 = vmatmul.mubr.bf16.gmra.mrb[0].mxu0 %v3088
        %v4313 = vpop.f32.mrb[0].mxu0
        %v4314 = vadd.f32 %v4254, %v4313
        %v4315 = vpop.f32.mrb[0].mxu0
        %v4316 = vpop.f32.mrb[0].mxu0
        %v4317 = vadd.f32 %v4254, %v4316
        %v4318 = vpop.f32.mrb[0].mxu0
        %4319 = vmatprep.mubr.bf16.mxu0 0
        %4320 = vmatmul.mubr.bf16.gmra.mrb[0].mxu0 %v3091
        %v4321 = vpop.f32.mrb[0].mxu0
        %v4322 = vadd.f32 %v4254, %v4321
        %v4323 = vpop.f32.mrb[0].mxu0
        %v4324 = vpop.f32.mrb[0].mxu0
        %v4325 = vadd.f32 %v4254, %v4324
        %v4326 = vpop.f32.mrb[0].mxu0
        %4327 = vmatprep.mubr.bf16.mxu0 0
        %4328 = vmatmul.mubr.bf16.gmra.mrb[0].mxu0 %v3094
        %v4329 = vpop.f32.mrb[0].mxu0
        %v4330 = vadd.f32 %v4254, %v4329
        %v4331 = vpop.f32.mrb[0].mxu0
        %v4332 = vpop.f32.mrb[0].mxu0
        %v4333 = vadd.f32 %v4254, %v4332
        %v4334 = vpop.f32.mrb[0].mxu0
        %4335 = vdwg.mxu0
        %v4336 = vsub.f32 0.0, %v4314
        %v4337 = vsub.f32 0.0, %v4317
        %v4338 = vsub.f32 0.0, %v4322
        %v4339 = vsub.f32 0.0, %v4325
        %v4340 = vsub.f32 0.0, %v4330
        %v4341 = vsub.f32 0.0, %v4333
        %v4342 = vmul.f32 %v4336, 1.442695
        %v4343 = vpow.pop %v4342
        %v4344 = vmul.f32 %v4337, 1.442695
        %v4345 = vpow.pop %v4344
        %v4346 = vmul.f32 %v4338, 1.442695
        %v4347 = vpow.pop %v4346
        %v4348 = vmul.f32 %v4339, 1.442695
        %v4349 = vpow.pop %v4348
        %v4350 = vmul.f32 %v4340, 1.442695
        %v4351 = vpow.pop %v4350
        %v4352 = vmul.f32 %v4341, 1.442695
        %v4353 = vpow.pop %v4352
        %v4354 = vadd.f32 %v4343, 1.0
        %v4355 = vadd.f32 %v4345, 1.0
        %v4356 = vadd.f32 %v4347, 1.0
        %v4357 = vadd.f32 %v4349, 1.0
        %v4358 = vadd.f32 %v4351, 1.0
        %v4359 = vadd.f32 %v4353, 1.0
        %v4360 = vrcp.pop %v4354
        %v4361 = vrcp.pop %v4355
        %v4362 = vrcp.pop %v4356
        %v4363 = vrcp.pop %v4357
        %v4364 = vrcp.pop %v4358
        %v4365 = vrcp.pop %v4359
        %v4366 = vmul.f32 %v2459, %v4360
        %v4367 = vmul.f32 %v2460, %v4361
        %v4368 = vmul.f32 %v2461, %v4362
        %v4369 = vmul.f32 %v2462, %v4363
        %v4370 = vmul.f32 %v2463, %v4364
        %v4371 = vmul.f32 %v2464, %v4365
        %v4372 = vpack.c.bf16 %v4367, %v4366
        %v4373 = vpack.c.bf16 %v4369, %v4368
        %v4374 = vpack.c.bf16 %v4371, %v4370
        %s4375 = scalar_lea.vmem [#allocation3], 736
        %v4376 = vld [vmem:[%s4375] sm:$0xf]
        %v4377 = vld [vmem:[%s4375 + $0x4] sm:$0xf]
        %v4378 = vld [vmem:[%s4375 + $0x8] sm:$0xf]
        %v4379 = vld [vmem:[%s4375 + $0xc] sm:$0xf]
        %v4380 = vld [vmem:[%s4375 + $0x10] sm:$0xf]
        %v4381 = vld [vmem:[%s4375 + $0x14] sm:$0xf]
        %v4382 = vld [vmem:[%s4375 + $0x18] sm:$0xf]
        %v4383 = vld [vmem:[%s4375 + $0x1c] sm:$0xf]
        %v4392 = vunpack.c.l.b16 %v4376
        %v4393 = vunpack.c.l.b16 %v4377
        %v4394 = vunpack.c.l.b16 %v4378
        %v4395 = vunpack.c.l.b16 %v4379
        %v4396 = vunpack.c.l.b16 %v4380
        %v4397 = vunpack.c.l.b16 %v4381
        %v4398 = vunpack.c.l.b16 %v4382
        %v4399 = vunpack.c.l.b16 %v4383
        %v4400 = vpack.c.b16 %v4393, %v4392
        %v4401 = vpack.c.b16 %v4395, %v4394
        %v4402 = vpack.c.b16 %v4397, %v4396
        %v4403 = vpack.c.b16 %v4399, %v4398
        %v4409 = vsel %vm612, %v4372, 0
        %v4412 = vsel %vm612, %v4373, 0
        %v4415 = vsel %vm612, %v4374, 0
        %4417 = vmatprep.subr.bf16.mxu0 0
        %4418 = vmatpush1.bf16.msra.mxu0 %v4400
        %4419 = vmatprep.subr.bf16.mxu0 0
        %4420 = vmatpush1.bf16.msra.mxu0 %v4401
        %4421 = vmatprep.subr.bf16.mxu0 0
        %4422 = vmatpush1.bf16.msra.mxu0 %v4402
        %4423 = vmatprep.subr.bf16.mxu0 0
        %4424 = vmatpush1.bf16.msra.mxu0 %v4403
        %4425 = vmatprep.subr.bf16.mxu0 0
        %4426 = vmatpush1.bf16.msra.mxu0 0
        %4427 = vmatprep.subr.bf16.mxu0 0
        %4428 = vmatpush1.bf16.msra.mxu0 0
        %4429 = vmatprep.subr.bf16.mxu0 0
        %4430 = vmatpush1.bf16.msra.mxu0 0
        %4431 = vmatprep.subr.bf16.mxu0 0
        %4432 = vmatpush1.bf16.msra.mxu0 0
        %4433 = vmatprep.subr.bf16.mxu0 0
        %4434 = vmatpush1.bf16.msra.mxu0 0
        %4435 = vmatprep.subr.bf16.mxu0 0
        %4436 = vmatpush1.bf16.msra.mxu0 0
        %4437 = vmatprep.subr.bf16.mxu0 0
        %4438 = vmatpush1.bf16.msra.mxu0 0
        %4439 = vmatprep.subr.bf16.mxu0 0
        %4440 = vmatpush1.bf16.msra.mxu0 0
        %4441 = vmatprep.subr.bf16.mxu0 0
        %4442 = vmatpush1.bf16.msra.mxu0 0
        %4443 = vmatprep.subr.bf16.mxu0 0
        %4444 = vmatpush1.bf16.msra.mxu0 0
        %4445 = vmatprep.subr.bf16.mxu0 0
        %4446 = vmatpush1.bf16.msra.mxu0 0
        %4447 = vmatprep.subr.bf16.mxu0 0
        %4448 = vmatpush1.bf16.msra.mxu0 0
        %4449 = vmatprep.mubr.bf16.mxu0 0
        %4450 = vmatmul.mubr.bf16.gmra.mrb[0].mxu0 %v4409
        %v4451 = vpop.f32.mrb[0].mxu0
        %v4452 = vadd.f32 0.0, %v4451
        %v4453 = vpop.f32.mrb[0].mxu0
        %v4454 = vpop.f32.mrb[0].mxu0
        %v4455 = vadd.f32 0.0, %v4454
        %v4456 = vpop.f32.mrb[0].mxu0
        %4457 = vmatprep.mubr.bf16.mxu0 0
        %4458 = vmatmul.mubr.bf16.gmra.mrb[0].mxu0 %v4412
        %v4459 = vpop.f32.mrb[0].mxu0
        %v4460 = vadd.f32 0.0, %v4459
        %v4461 = vpop.f32.mrb[0].mxu0
        %v4462 = vpop.f32.mrb[0].mxu0
        %v4463 = vadd.f32 0.0, %v4462
        %v4464 = vpop.f32.mrb[0].mxu0
        %4465 = vmatprep.mubr.bf16.mxu0 0
        %4466 = vmatmul.mubr.bf16.gmra.mrb[0].mxu0 %v4415
        %v4467 = vpop.f32.mrb[0].mxu0
        %v4468 = vadd.f32 0.0, %v4467
        %v4469 = vpop.f32.mrb[0].mxu0
        %v4470 = vpop.f32.mrb[0].mxu0
        %v4471 = vadd.f32 0.0, %v4470
        %v4472 = vpop.f32.mrb[0].mxu0
        %4473 = vdwg.mxu0
        %v4474 = vadd.f32 %v4235, %v4452
        %v4475 = vadd.f32 %v4236, %v4455
        %v4476 = vadd.f32 %v4237, %v4460
        %v4477 = vadd.f32 %v4238, %v4463
        %v4478 = vadd.f32 %v4239, %v4468
        %v4479 = vadd.f32 %v4240, %v4471
        %s4480 = scalar_lea.vmem [#allocation3], 480
        %v4481 = vld [vmem:[%s4480] sm:$0xf]
        %v4482 = vld [vmem:[%s4480 + $0x4] sm:$0xf]
        %v4483 = vld [vmem:[%s4480 + $0x8] sm:$0xf]
        %v4484 = vld [vmem:[%s4480 + $0xc] sm:$0xf]
        %v4485 = vld [vmem:[%s4480 + $0x10] sm:$0xf]
        %v4486 = vld [vmem:[%s4480 + $0x14] sm:$0xf]
        %v4487 = vld [vmem:[%s4480 + $0x18] sm:$0xf]
        %v4488 = vld [vmem:[%s4480 + $0x1c] sm:$0xf]
        %v4489 = vld [vmem:[%s8 + $0x6] sm:$0x1]
        %v4490 = vlaneseq
        %v4491 = vshrl.u32 %v4490, 7
        %v4492 = vsub.s32 0, %v4491
        %v4493 = vrot.slane %v4489, %v4492
        %v4502 = vunpack.c.l.b16 %v4481
        %v4503 = vunpack.c.l.b16 %v4482
        %v4504 = vunpack.c.l.b16 %v4483
        %v4505 = vunpack.c.l.b16 %v4484
        %v4506 = vunpack.c.l.b16 %v4485
        %v4507 = vunpack.c.l.b16 %v4486
        %v4508 = vunpack.c.l.b16 %v4487
        %v4509 = vunpack.c.l.b16 %v4488
        %v4510 = vpack.c.b16 %v4503, %v4502
        %v4511 = vpack.c.b16 %v4505, %v4504
        %v4512 = vpack.c.b16 %v4507, %v4506
        %v4513 = vpack.c.b16 %v4509, %v4508
        %4518 = vmatprep.subr.bf16.mxu0 0
        %4519 = vmatpush1.bf16.msra.mxu0 %v4510
        %4520 = vmatprep.subr.bf16.mxu0 0
        %4521 = vmatpush1.bf16.msra.mxu0 %v4511
        %4522 = vmatprep.subr.bf16.mxu0 0
        %4523 = vmatpush1.bf16.msra.mxu0 %v4512
        %4524 = vmatprep.subr.bf16.mxu0 0
        %4525 = vmatpush1.bf16.msra.mxu0 %v4513
        %4526 = vmatprep.subr.bf16.mxu0 0
        %4527 = vmatpush1.bf16.msra.mxu0 0
        %4528 = vmatprep.subr.bf16.mxu0 0
        %4529 = vmatpush1.bf16.msra.mxu0 0
        %4530 = vmatprep.subr.bf16.mxu0 0
        %4531 = vmatpush1.bf16.msra.mxu0 0
        %4532 = vmatprep.subr.bf16.mxu0 0
        %4533 = vmatpush1.bf16.msra.mxu0 0
        %4534 = vmatprep.subr.bf16.mxu0 0
        %4535 = vmatpush1.bf16.msra.mxu0 0
        %4536 = vmatprep.subr.bf16.mxu0 0
        %4537 = vmatpush1.bf16.msra.mxu0 0
        %4538 = vmatprep.subr.bf16.mxu0 0
        %4539 = vmatpush1.bf16.msra.mxu0 0
        %4540 = vmatprep.subr.bf16.mxu0 0
        %4541 = vmatpush1.bf16.msra.mxu0 0
        %4542 = vmatprep.subr.bf16.mxu0 0
        %4543 = vmatpush1.bf16.msra.mxu0 0
        %4544 = vmatprep.subr.bf16.mxu0 0
        %4545 = vmatpush1.bf16.msra.mxu0 0
        %4546 = vmatprep.subr.bf16.mxu0 0
        %4547 = vmatpush1.bf16.msra.mxu0 0
        %4548 = vmatprep.subr.bf16.mxu0 0
        %4549 = vmatpush1.bf16.msra.mxu0 0
        %4550 = vmatprep.mubr.bf16.mxu0 0
        %4551 = vmatmul.mubr.bf16.gmra.mrb[0].mxu0 %v3088
        %v4552 = vpop.f32.mrb[0].mxu0
        %v4553 = vadd.f32 %v4493, %v4552
        %v4554 = vpop.f32.mrb[0].mxu0
        %v4555 = vpop.f32.mrb[0].mxu0
        %v4556 = vadd.f32 %v4493, %v4555
        %v4557 = vpop.f32.mrb[0].mxu0
        %4558 = vmatprep.mubr.bf16.mxu0 0
        %4559 = vmatmul.mubr.bf16.gmra.mrb[0].mxu0 %v3091
        %v4560 = vpop.f32.mrb[0].mxu0
        %v4561 = vadd.f32 %v4493, %v4560
        %v4562 = vpop.f32.mrb[0].mxu0
        %v4563 = vpop.f32.mrb[0].mxu0
        %v4564 = vadd.f32 %v4493, %v4563
        %v4565 = vpop.f32.mrb[0].mxu0
        %4566 = vmatprep.mubr.bf16.mxu0 0
        %4567 = vmatmul.mubr.bf16.gmra.mrb[0].mxu0 %v3094
        %v4568 = vpop.f32.mrb[0].mxu0
        %v4569 = vadd.f32 %v4493, %v4568
        %v4570 = vpop.f32.mrb[0].mxu0
        %v4571 = vpop.f32.mrb[0].mxu0
        %v4572 = vadd.f32 %v4493, %v4571
        %v4573 = vpop.f32.mrb[0].mxu0
        %4574 = vdwg.mxu0
        %v4575 = vsub.f32 0.0, %v4553
        %v4576 = vsub.f32 0.0, %v4556
        %v4577 = vsub.f32 0.0, %v4561
        %v4578 = vsub.f32 0.0, %v4564
        %v4579 = vsub.f32 0.0, %v4569
        %v4580 = vsub.f32 0.0, %v4572
        %v4581 = vmul.f32 %v4575, 1.442695
        %v4582 = vpow.pop %v4581
        %v4583 = vmul.f32 %v4576, 1.442695
        %v4584 = vpow.pop %v4583
        %v4585 = vmul.f32 %v4577, 1.442695
        %v4586 = vpow.pop %v4585
        %v4587 = vmul.f32 %v4578, 1.442695
        %v4588 = vpow.pop %v4587
        %v4589 = vmul.f32 %v4579, 1.442695
        %v4590 = vpow.pop %v4589
        %v4591 = vmul.f32 %v4580, 1.442695
        %v4592 = vpow.pop %v4591
        %v4593 = vadd.f32 %v4582, 1.0
        %v4594 = vadd.f32 %v4584, 1.0
        %v4595 = vadd.f32 %v4586, 1.0
        %v4596 = vadd.f32 %v4588, 1.0
        %v4597 = vadd.f32 %v4590, 1.0
        %v4598 = vadd.f32 %v4592, 1.0
        %v4599 = vrcp.pop %v4593
        %v4600 = vrcp.pop %v4594
        %v4601 = vrcp.pop %v4595
        %v4602 = vrcp.pop %v4596
        %v4603 = vrcp.pop %v4597
        %v4604 = vrcp.pop %v4598
        %v4605 = vmul.f32 %v2627, %v4599
        %v4606 = vmul.f32 %v2628, %v4600
        %v4607 = vmul.f32 %v2629, %v4601
        %v4608 = vmul.f32 %v2630, %v4602
        %v4609 = vmul.f32 %v2631, %v4603
        %v4610 = vmul.f32 %v2632, %v4604
        %v4611 = vpack.c.bf16 %v4606, %v4605
        %v4612 = vpack.c.bf16 %v4608, %v4607
        %v4613 = vpack.c.bf16 %v4610, %v4609
        %s4614 = scalar_lea.vmem [#allocation3], 768
        %v4615 = vld [vmem:[%s4614] sm:$0xf]
        %v4616 = vld [vmem:[%s4614 + $0x4] sm:$0xf]
        %v4617 = vld [vmem:[%s4614 + $0x8] sm:$0xf]
        %v4618 = vld [vmem:[%s4614 + $0xc] sm:$0xf]
        %v4619 = vld [vmem:[%s4614 + $0x10] sm:$0xf]
        %v4620 = vld [vmem:[%s4614 + $0x14] sm:$0xf]
        %v4621 = vld [vmem:[%s4614 + $0x18] sm:$0xf]
        %v4622 = vld [vmem:[%s4614 + $0x1c] sm:$0xf]
        %v4631 = vunpack.c.l.b16 %v4615
        %v4632 = vunpack.c.l.b16 %v4616
        %v4633 = vunpack.c.l.b16 %v4617
        %v4634 = vunpack.c.l.b16 %v4618
        %v4635 = vunpack.c.l.b16 %v4619
        %v4636 = vunpack.c.l.b16 %v4620
        %v4637 = vunpack.c.l.b16 %v4621
        %v4638 = vunpack.c.l.b16 %v4622
        %v4639 = vpack.c.b16 %v4632, %v4631
        %v4640 = vpack.c.b16 %v4634, %v4633
        %v4641 = vpack.c.b16 %v4636, %v4635
        %v4642 = vpack.c.b16 %v4638, %v4637
        %v4648 = vsel %vm612, %v4611, 0
        %v4651 = vsel %vm612, %v4612, 0
        %v4654 = vsel %vm612, %v4613, 0
        %4656 = vmatprep.subr.bf16.mxu0 0
        %4657 = vmatpush1.bf16.msra.mxu0 %v4639
        %4658 = vmatprep.subr.bf16.mxu0 0
        %4659 = vmatpush1.bf16.msra.mxu0 %v4640
        %4660 = vmatprep.subr.bf16.mxu0 0
        %4661 = vmatpush1.bf16.msra.mxu0 %v4641
        %4662 = vmatprep.subr.bf16.mxu0 0
        %4663 = vmatpush1.bf16.msra.mxu0 %v4642
        %4664 = vmatprep.subr.bf16.mxu0 0
        %4665 = vmatpush1.bf16.msra.mxu0 0
        %4666 = vmatprep.subr.bf16.mxu0 0
        %4667 = vmatpush1.bf16.msra.mxu0 0
        %4668 = vmatprep.subr.bf16.mxu0 0
        %4669 = vmatpush1.bf16.msra.mxu0 0
        %4670 = vmatprep.subr.bf16.mxu0 0
        %4671 = vmatpush1.bf16.msra.mxu0 0
        %4672 = vmatprep.subr.bf16.mxu0 0
        %4673 = vmatpush1.bf16.msra.mxu0 0
        %4674 = vmatprep.subr.bf16.mxu0 0
        %4675 = vmatpush1.bf16.msra.mxu0 0
        %4676 = vmatprep.subr.bf16.mxu0 0
        %4677 = vmatpush1.bf16.msra.mxu0 0
        %4678 = vmatprep.subr.bf16.mxu0 0
        %4679 = vmatpush1.bf16.msra.mxu0 0
        %4680 = vmatprep.subr.bf16.mxu0 0
        %4681 = vmatpush1.bf16.msra.mxu0 0
        %4682 = vmatprep.subr.bf16.mxu0 0
        %4683 = vmatpush1.bf16.msra.mxu0 0
        %4684 = vmatprep.subr.bf16.mxu0 0
        %4685 = vmatpush1.bf16.msra.mxu0 0
        %4686 = vmatprep.subr.bf16.mxu0 0
        %4687 = vmatpush1.bf16.msra.mxu0 0
        %4688 = vmatprep.mubr.bf16.mxu0 0
        %4689 = vmatmul.mubr.bf16.gmra.mrb[0].mxu0 %v4648
        %v4690 = vpop.f32.mrb[0].mxu0
        %v4691 = vadd.f32 0.0, %v4690
        %v4692 = vpop.f32.mrb[0].mxu0
        %v4693 = vpop.f32.mrb[0].mxu0
        %v4694 = vadd.f32 0.0, %v4693
        %v4695 = vpop.f32.mrb[0].mxu0
        %4696 = vmatprep.mubr.bf16.mxu0 0
        %4697 = vmatmul.mubr.bf16.gmra.mrb[0].mxu0 %v4651
        %v4698 = vpop.f32.mrb[0].mxu0
        %v4699 = vadd.f32 0.0, %v4698
        %v4700 = vpop.f32.mrb[0].mxu0
        %v4701 = vpop.f32.mrb[0].mxu0
        %v4702 = vadd.f32 0.0, %v4701
        %v4703 = vpop.f32.mrb[0].mxu0
        %4704 = vmatprep.mubr.bf16.mxu0 0
        %4705 = vmatmul.mubr.bf16.gmra.mrb[0].mxu0 %v4654
        %v4706 = vpop.f32.mrb[0].mxu0
        %v4707 = vadd.f32 0.0, %v4706
        %v4708 = vpop.f32.mrb[0].mxu0
        %v4709 = vpop.f32.mrb[0].mxu0
        %v4710 = vadd.f32 0.0, %v4709
        %v4711 = vpop.f32.mrb[0].mxu0
        %4712 = vdwg.mxu0
        %v4713 = vadd.f32 %v4474, %v4691
        %v4714 = vadd.f32 %v4475, %v4694
        %v4715 = vadd.f32 %v4476, %v4699
        %v4716 = vadd.f32 %v4477, %v4702
        %v4717 = vadd.f32 %v4478, %v4707
        %v4718 = vadd.f32 %v4479, %v4710
        %s4719 = scalar_lea.vmem [#allocation3], 512
        %v4720 = vld [vmem:[%s4719] sm:$0xf]
        %v4721 = vld [vmem:[%s4719 + $0x4] sm:$0xf]
        %v4722 = vld [vmem:[%s4719 + $0x8] sm:$0xf]
        %v4723 = vld [vmem:[%s4719 + $0xc] sm:$0xf]
        %v4724 = vld [vmem:[%s4719 + $0x10] sm:$0xf]
        %v4725 = vld [vmem:[%s4719 + $0x14] sm:$0xf]
        %v4726 = vld [vmem:[%s4719 + $0x18] sm:$0xf]
        %v4727 = vld [vmem:[%s4719 + $0x1c] sm:$0xf]
        %v4728 = vld [vmem:[%s8 + $0x7] sm:$0x1]
        %v4729 = vlaneseq
        %v4730 = vshrl.u32 %v4729, 7
        %v4731 = vsub.s32 0, %v4730
        %v4732 = vrot.slane %v4728, %v4731
        %v4741 = vunpack.c.l.b16 %v4720
        %v4742 = vunpack.c.l.b16 %v4721
        %v4743 = vunpack.c.l.b16 %v4722
        %v4744 = vunpack.c.l.b16 %v4723
        %v4745 = vunpack.c.l.b16 %v4724
        %v4746 = vunpack.c.l.b16 %v4725
        %v4747 = vunpack.c.l.b16 %v4726
        %v4748 = vunpack.c.l.b16 %v4727
        %v4749 = vpack.c.b16 %v4742, %v4741
        %v4750 = vpack.c.b16 %v4744, %v4743
        %v4751 = vpack.c.b16 %v4746, %v4745
        %v4752 = vpack.c.b16 %v4748, %v4747
        %4757 = vmatprep.subr.bf16.mxu0 0
        %4758 = vmatpush1.bf16.msra.mxu0 %v4749
        %4759 = vmatprep.subr.bf16.mxu0 0
        %4760 = vmatpush1.bf16.msra.mxu0 %v4750
        %4761 = vmatprep.subr.bf16.mxu0 0
        %4762 = vmatpush1.bf16.msra.mxu0 %v4751
        %4763 = vmatprep.subr.bf16.mxu0 0
        %4764 = vmatpush1.bf16.msra.mxu0 %v4752
        %4765 = vmatprep.subr.bf16.mxu0 0
        %4766 = vmatpush1.bf16.msra.mxu0 0
        %4767 = vmatprep.subr.bf16.mxu0 0
        %4768 = vmatpush1.bf16.msra.mxu0 0
        %4769 = vmatprep.subr.bf16.mxu0 0
        %4770 = vmatpush1.bf16.msra.mxu0 0
        %4771 = vmatprep.subr.bf16.mxu0 0
        %4772 = vmatpush1.bf16.msra.mxu0 0
        %4773 = vmatprep.subr.bf16.mxu0 0
        %4774 = vmatpush1.bf16.msra.mxu0 0
        %4775 = vmatprep.subr.bf16.mxu0 0
        %4776 = vmatpush1.bf16.msra.mxu0 0
        %4777 = vmatprep.subr.bf16.mxu0 0
        %4778 = vmatpush1.bf16.msra.mxu0 0
        %4779 = vmatprep.subr.bf16.mxu0 0
        %4780 = vmatpush1.bf16.msra.mxu0 0
        %4781 = vmatprep.subr.bf16.mxu0 0
        %4782 = vmatpush1.bf16.msra.mxu0 0
        %4783 = vmatprep.subr.bf16.mxu0 0
        %4784 = vmatpush1.bf16.msra.mxu0 0
        %4785 = vmatprep.subr.bf16.mxu0 0
        %4786 = vmatpush1.bf16.msra.mxu0 0
        %4787 = vmatprep.subr.bf16.mxu0 0
        %4788 = vmatpush1.bf16.msra.mxu0 0
        %4789 = vmatprep.mubr.bf16.mxu0 0
        %4790 = vmatmul.mubr.bf16.gmra.mrb[0].mxu0 %v3088
        %v4791 = vpop.f32.mrb[0].mxu0
        %v4792 = vadd.f32 %v4732, %v4791
        %v4793 = vpop.f32.mrb[0].mxu0
        %v4794 = vpop.f32.mrb[0].mxu0
        %v4795 = vadd.f32 %v4732, %v4794
        %v4796 = vpop.f32.mrb[0].mxu0
        %4797 = vmatprep.mubr.bf16.mxu0 0
        %4798 = vmatmul.mubr.bf16.gmra.mrb[0].mxu0 %v3091
        %v4799 = vpop.f32.mrb[0].mxu0
        %v4800 = vadd.f32 %v4732, %v4799
        %v4801 = vpop.f32.mrb[0].mxu0
        %v4802 = vpop.f32.mrb[0].mxu0
        %v4803 = vadd.f32 %v4732, %v4802
        %v4804 = vpop.f32.mrb[0].mxu0
        %4805 = vmatprep.mubr.bf16.mxu0 0
        %4806 = vmatmul.mubr.bf16.gmra.mrb[0].mxu0 %v3094
        %v4807 = vpop.f32.mrb[0].mxu0
        %v4808 = vadd.f32 %v4732, %v4807
        %v4809 = vpop.f32.mrb[0].mxu0
        %v4810 = vpop.f32.mrb[0].mxu0
        %v4811 = vadd.f32 %v4732, %v4810
        %v4812 = vpop.f32.mrb[0].mxu0
        %4813 = vdwg.mxu0
        %v4814 = vsub.f32 0.0, %v4792
        %v4815 = vsub.f32 0.0, %v4795
        %v4816 = vsub.f32 0.0, %v4800
        %v4817 = vsub.f32 0.0, %v4803
        %v4818 = vsub.f32 0.0, %v4808
        %v4819 = vsub.f32 0.0, %v4811
        %v4820 = vmul.f32 %v4814, 1.442695
        %v4821 = vpow.pop %v4820
        %v4822 = vmul.f32 %v4815, 1.442695
        %v4823 = vpow.pop %v4822
        %v4824 = vmul.f32 %v4816, 1.442695
        %v4825 = vpow.pop %v4824
        %v4826 = vmul.f32 %v4817, 1.442695
        %v4827 = vpow.pop %v4826
        %v4828 = vmul.f32 %v4818, 1.442695
        %v4829 = vpow.pop %v4828
        %v4830 = vmul.f32 %v4819, 1.442695
        %v4831 = vpow.pop %v4830
        %v4832 = vadd.f32 %v4821, 1.0
        %v4833 = vadd.f32 %v4823, 1.0
        %v4834 = vadd.f32 %v4825, 1.0
        %v4835 = vadd.f32 %v4827, 1.0
        %v4836 = vadd.f32 %v4829, 1.0
        %v4837 = vadd.f32 %v4831, 1.0
        %v4838 = vrcp.pop %v4832
        %v4839 = vrcp.pop %v4833
        %v4840 = vrcp.pop %v4834
        %v4841 = vrcp.pop %v4835
        %v4842 = vrcp.pop %v4836
        %v4843 = vrcp.pop %v4837
        %v4844 = vmul.f32 %v2771, %v4838
        %v4845 = vmul.f32 %v2772, %v4839
        %v4846 = vmul.f32 %v2773, %v4840
        %v4847 = vmul.f32 %v2774, %v4841
        %v4848 = vmul.f32 %v2775, %v4842
        %v4849 = vmul.f32 %v2776, %v4843
        %v4850 = vpack.c.bf16 %v4845, %v4844
        %v4851 = vpack.c.bf16 %v4847, %v4846
        %v4852 = vpack.c.bf16 %v4849, %v4848
        %s4853 = scalar_lea.vmem [#allocation3], 800
        %v4854 = vld [vmem:[%s4853] sm:$0xf]
        %v4855 = vld [vmem:[%s4853 + $0x4] sm:$0xf]
        %v4856 = vld [vmem:[%s4853 + $0x8] sm:$0xf]
        %v4857 = vld [vmem:[%s4853 + $0xc] sm:$0xf]
        %v4858 = vld [vmem:[%s4853 + $0x10] sm:$0xf]
        %v4859 = vld [vmem:[%s4853 + $0x14] sm:$0xf]
        %v4860 = vld [vmem:[%s4853 + $0x18] sm:$0xf]
        %v4861 = vld [vmem:[%s4853 + $0x1c] sm:$0xf]
        %v4870 = vunpack.c.l.b16 %v4854
        %v4871 = vunpack.c.l.b16 %v4855
        %v4872 = vunpack.c.l.b16 %v4856
        %v4873 = vunpack.c.l.b16 %v4857
        %v4874 = vunpack.c.l.b16 %v4858
        %v4875 = vunpack.c.l.b16 %v4859
        %v4876 = vunpack.c.l.b16 %v4860
        %v4877 = vunpack.c.l.b16 %v4861
        %v4878 = vpack.c.b16 %v4871, %v4870
        %v4879 = vpack.c.b16 %v4873, %v4872
        %v4880 = vpack.c.b16 %v4875, %v4874
        %v4881 = vpack.c.b16 %v4877, %v4876
        %v4887 = vsel %vm612, %v4850, 0
        %v4890 = vsel %vm612, %v4851, 0
        %v4893 = vsel %vm612, %v4852, 0
        %4895 = vmatprep.subr.bf16.mxu0 0
        %4896 = vmatpush1.bf16.msra.mxu0 %v4878
        %4897 = vmatprep.subr.bf16.mxu0 0
        %4898 = vmatpush1.bf16.msra.mxu0 %v4879
        %4899 = vmatprep.subr.bf16.mxu0 0
        %4900 = vmatpush1.bf16.msra.mxu0 %v4880
        %4901 = vmatprep.subr.bf16.mxu0 0
        %4902 = vmatpush1.bf16.msra.mxu0 %v4881
        %4903 = vmatprep.subr.bf16.mxu0 0
        %4904 = vmatpush1.bf16.msra.mxu0 0
        %4905 = vmatprep.subr.bf16.mxu0 0
        %4906 = vmatpush1.bf16.msra.mxu0 0
        %4907 = vmatprep.subr.bf16.mxu0 0
        %4908 = vmatpush1.bf16.msra.mxu0 0
        %4909 = vmatprep.subr.bf16.mxu0 0
        %4910 = vmatpush1.bf16.msra.mxu0 0
        %4911 = vmatprep.subr.bf16.mxu0 0
        %4912 = vmatpush1.bf16.msra.mxu0 0
        %4913 = vmatprep.subr.bf16.mxu0 0
        %4914 = vmatpush1.bf16.msra.mxu0 0
        %4915 = vmatprep.subr.bf16.mxu0 0
        %4916 = vmatpush1.bf16.msra.mxu0 0
        %4917 = vmatprep.subr.bf16.mxu0 0
        %4918 = vmatpush1.bf16.msra.mxu0 0
        %4919 = vmatprep.subr.bf16.mxu0 0
        %4920 = vmatpush1.bf16.msra.mxu0 0
        %4921 = vmatprep.subr.bf16.mxu0 0
        %4922 = vmatpush1.bf16.msra.mxu0 0
        %4923 = vmatprep.subr.bf16.mxu0 0
        %4924 = vmatpush1.bf16.msra.mxu0 0
        %4925 = vmatprep.subr.bf16.mxu0 0
        %4926 = vmatpush1.bf16.msra.mxu0 0
        %4927 = vmatprep.mubr.bf16.mxu0 0
        %4928 = vmatmul.mubr.bf16.gmra.mrb[0].mxu0 %v4887
        %v4929 = vpop.f32.mrb[0].mxu0
        %v4930 = vadd.f32 0.0, %v4929
        %v4931 = vpop.f32.mrb[0].mxu0
        %v4932 = vpop.f32.mrb[0].mxu0
        %v4933 = vadd.f32 0.0, %v4932
        %v4934 = vpop.f32.mrb[0].mxu0
        %4935 = vmatprep.mubr.bf16.mxu0 0
        %4936 = vmatmul.mubr.bf16.gmra.mrb[0].mxu0 %v4890
        %v4937 = vpop.f32.mrb[0].mxu0
        %v4938 = vadd.f32 0.0, %v4937
        %v4939 = vpop.f32.mrb[0].mxu0
        %v4940 = vpop.f32.mrb[0].mxu0
        %v4941 = vadd.f32 0.0, %v4940
        %v4942 = vpop.f32.mrb[0].mxu0
        %4943 = vmatprep.mubr.bf16.mxu0 0
        %4944 = vmatmul.mubr.bf16.gmra.mrb[0].mxu0 %v4893
        %v4945 = vpop.f32.mrb[0].mxu0
        %v4946 = vadd.f32 0.0, %v4945
        %v4947 = vpop.f32.mrb[0].mxu0
        %v4948 = vpop.f32.mrb[0].mxu0
        %v4949 = vadd.f32 0.0, %v4948
        %v4950 = vpop.f32.mrb[0].mxu0
        %4951 = vdwg.mxu0
        %v4952 = vadd.f32 %v4713, %v4930
        %v4953 = vadd.f32 %v4714, %v4933
        %v4954 = vadd.f32 %v4715, %v4938
        %v4955 = vadd.f32 %v4716, %v4941
        %v4956 = vadd.f32 %v4717, %v4946
        %v4957 = vadd.f32 %v4718, %v4949
        %s4958 = scalar_lea.vmem [#allocation3], 544
        %v4959 = vld [vmem:[%s4958] sm:$0xf]
        %v4960 = vld [vmem:[%s4958 + $0x4] sm:$0xf]
        %v4961 = vld [vmem:[%s4958 + $0x8] sm:$0xf]
        %v4962 = vld [vmem:[%s4958 + $0xc] sm:$0xf]
        %v4963 = vld [vmem:[%s4958 + $0x10] sm:$0xf]
        %v4964 = vld [vmem:[%s4958 + $0x14] sm:$0xf]
        %v4965 = vld [vmem:[%s4958 + $0x18] sm:$0xf]
        %v4966 = vld [vmem:[%s4958 + $0x1c] sm:$0xf]
        %v4967 = vld [vmem:[%s8 + $0x8] sm:$0x1]
        %v4968 = vlaneseq
        %v4969 = vshrl.u32 %v4968, 7
        %v4970 = vsub.s32 0, %v4969
        %v4971 = vrot.slane %v4967, %v4970
        %v4980 = vunpack.c.l.b16 %v4959
        %v4981 = vunpack.c.l.b16 %v4960
        %v4982 = vunpack.c.l.b16 %v4961
        %v4983 = vunpack.c.l.b16 %v4962
        %v4984 = vunpack.c.l.b16 %v4963
        %v4985 = vunpack.c.l.b16 %v4964
        %v4986 = vunpack.c.l.b16 %v4965
        %v4987 = vunpack.c.l.b16 %v4966
        %v4988 = vpack.c.b16 %v4981, %v4980
        %v4989 = vpack.c.b16 %v4983, %v4982
        %v4990 = vpack.c.b16 %v4985, %v4984
        %v4991 = vpack.c.b16 %v4987, %v4986
        %4996 = vmatprep.subr.bf16.mxu0 0
        %4997 = vmatpush1.bf16.msra.mxu0 %v4988
        %4998 = vmatprep.subr.bf16.mxu0 0
        %4999 = vmatpush1.bf16.msra.mxu0 %v4989
        %5000 = vmatprep.subr.bf16.mxu0 0
        %5001 = vmatpush1.bf16.msra.mxu0 %v4990
        %5002 = vmatprep.subr.bf16.mxu0 0
        %5003 = vmatpush1.bf16.msra.mxu0 %v4991
        %5004 = vmatprep.subr.bf16.mxu0 0
        %5005 = vmatpush1.bf16.msra.mxu0 0
        %5006 = vmatprep.subr.bf16.mxu0 0
        %5007 = vmatpush1.bf16.msra.mxu0 0
        %5008 = vmatprep.subr.bf16.mxu0 0
        %5009 = vmatpush1.bf16.msra.mxu0 0
        %5010 = vmatprep.subr.bf16.mxu0 0
        %5011 = vmatpush1.bf16.msra.mxu0 0
        %5012 = vmatprep.subr.bf16.mxu0 0
        %5013 = vmatpush1.bf16.msra.mxu0 0
        %5014 = vmatprep.subr.bf16.mxu0 0
        %5015 = vmatpush1.bf16.msra.mxu0 0
        %5016 = vmatprep.subr.bf16.mxu0 0
        %5017 = vmatpush1.bf16.msra.mxu0 0
        %5018 = vmatprep.subr.bf16.mxu0 0
        %5019 = vmatpush1.bf16.msra.mxu0 0
        %5020 = vmatprep.subr.bf16.mxu0 0
        %5021 = vmatpush1.bf16.msra.mxu0 0
        %5022 = vmatprep.subr.bf16.mxu0 0
        %5023 = vmatpush1.bf16.msra.mxu0 0
        %5024 = vmatprep.subr.bf16.mxu0 0
        %5025 = vmatpush1.bf16.msra.mxu0 0
        %5026 = vmatprep.subr.bf16.mxu0 0
        %5027 = vmatpush1.bf16.msra.mxu0 0
        %5028 = vmatprep.mubr.bf16.mxu0 0
        %5029 = vmatmul.mubr.bf16.gmra.mrb[0].mxu0 %v3088
        %v5030 = vpop.f32.mrb[0].mxu0
        %v5031 = vadd.f32 %v4971, %v5030
        %v5032 = vpop.f32.mrb[0].mxu0
        %v5033 = vpop.f32.mrb[0].mxu0
        %v5034 = vadd.f32 %v4971, %v5033
        %v5035 = vpop.f32.mrb[0].mxu0
        %5036 = vmatprep.mubr.bf16.mxu0 0
        %5037 = vmatmul.mubr.bf16.gmra.mrb[0].mxu0 %v3091
        %v5038 = vpop.f32.mrb[0].mxu0
        %v5039 = vadd.f32 %v4971, %v5038
        %v5040 = vpop.f32.mrb[0].mxu0
        %v5041 = vpop.f32.mrb[0].mxu0
        %v5042 = vadd.f32 %v4971, %v5041
        %v5043 = vpop.f32.mrb[0].mxu0
        %5044 = vmatprep.mubr.bf16.mxu0 0
        %5045 = vmatmul.mubr.bf16.gmra.mrb[0].mxu0 %v3094
        %v5046 = vpop.f32.mrb[0].mxu0
        %v5047 = vadd.f32 %v4971, %v5046
        %v5048 = vpop.f32.mrb[0].mxu0
        %v5049 = vpop.f32.mrb[0].mxu0
        %v5050 = vadd.f32 %v4971, %v5049
        %v5051 = vpop.f32.mrb[0].mxu0
        %5052 = vdwg.mxu0
        %v5053 = vsub.f32 0.0, %v5031
        %v5054 = vsub.f32 0.0, %v5034
        %v5055 = vsub.f32 0.0, %v5039
        %v5056 = vsub.f32 0.0, %v5042
        %v5057 = vsub.f32 0.0, %v5047
        %v5058 = vsub.f32 0.0, %v5050
        %v5059 = vmul.f32 %v5053, 1.442695
        %v5060 = vpow.pop %v5059
        %v5061 = vmul.f32 %v5054, 1.442695
        %v5062 = vpow.pop %v5061
        %v5063 = vmul.f32 %v5055, 1.442695
        %v5064 = vpow.pop %v5063
        %v5065 = vmul.f32 %v5056, 1.442695
        %v5066 = vpow.pop %v5065
        %v5067 = vmul.f32 %v5057, 1.442695
        %v5068 = vpow.pop %v5067
        %v5069 = vmul.f32 %v5058, 1.442695
        %v5070 = vpow.pop %v5069
        %v5071 = vadd.f32 %v5060, 1.0
        %v5072 = vadd.f32 %v5062, 1.0
        %v5073 = vadd.f32 %v5064, 1.0
        %v5074 = vadd.f32 %v5066, 1.0
        %v5075 = vadd.f32 %v5068, 1.0
        %v5076 = vadd.f32 %v5070, 1.0
        %v5077 = vrcp.pop %v5071
        %v5078 = vrcp.pop %v5072
        %v5079 = vrcp.pop %v5073
        %v5080 = vrcp.pop %v5074
        %v5081 = vrcp.pop %v5075
        %v5082 = vrcp.pop %v5076
        %v5083 = vmul.f32 %v2915, %v5077
        %v5084 = vmul.f32 %v2916, %v5078
        %v5085 = vmul.f32 %v2917, %v5079
        %v5086 = vmul.f32 %v2918, %v5080
        %v5087 = vmul.f32 %v2919, %v5081
        %v5088 = vmul.f32 %v2920, %v5082
        %v5089 = vpack.c.bf16 %v5084, %v5083
        %v5090 = vpack.c.bf16 %v5086, %v5085
        %v5091 = vpack.c.bf16 %v5088, %v5087
        %s5092 = scalar_lea.vmem [#allocation3], 832
        %v5093 = vld [vmem:[%s5092] sm:$0xf]
        %v5094 = vld [vmem:[%s5092 + $0x4] sm:$0xf]
        %v5095 = vld [vmem:[%s5092 + $0x8] sm:$0xf]
        %v5096 = vld [vmem:[%s5092 + $0xc] sm:$0xf]
        %v5097 = vld [vmem:[%s5092 + $0x10] sm:$0xf]
        %v5098 = vld [vmem:[%s5092 + $0x14] sm:$0xf]
        %v5099 = vld [vmem:[%s5092 + $0x18] sm:$0xf]
        %v5100 = vld [vmem:[%s5092 + $0x1c] sm:$0xf]
        %v5109 = vunpack.c.l.b16 %v5093
        %v5110 = vunpack.c.l.b16 %v5094
        %v5111 = vunpack.c.l.b16 %v5095
        %v5112 = vunpack.c.l.b16 %v5096
        %v5113 = vunpack.c.l.b16 %v5097
        %v5114 = vunpack.c.l.b16 %v5098
        %v5115 = vunpack.c.l.b16 %v5099
        %v5116 = vunpack.c.l.b16 %v5100
        %v5117 = vpack.c.b16 %v5110, %v5109
        %v5118 = vpack.c.b16 %v5112, %v5111
        %v5119 = vpack.c.b16 %v5114, %v5113
        %v5120 = vpack.c.b16 %v5116, %v5115
        %v5126 = vsel %vm612, %v5089, 0
        %v5129 = vsel %vm612, %v5090, 0
        %v5132 = vsel %vm612, %v5091, 0
        %5134 = vmatprep.subr.bf16.mxu0 0
        %5135 = vmatpush1.bf16.msra.mxu0 %v5117
        %5136 = vmatprep.subr.bf16.mxu0 0
        %5137 = vmatpush1.bf16.msra.mxu0 %v5118
        %5138 = vmatprep.subr.bf16.mxu0 0
        %5139 = vmatpush1.bf16.msra.mxu0 %v5119
        %5140 = vmatprep.subr.bf16.mxu0 0
        %5141 = vmatpush1.bf16.msra.mxu0 %v5120
        %5142 = vmatprep.subr.bf16.mxu0 0
        %5143 = vmatpush1.bf16.msra.mxu0 0
        %5144 = vmatprep.subr.bf16.mxu0 0
        %5145 = vmatpush1.bf16.msra.mxu0 0
        %5146 = vmatprep.subr.bf16.mxu0 0
        %5147 = vmatpush1.bf16.msra.mxu0 0
        %5148 = vmatprep.subr.bf16.mxu0 0
        %5149 = vmatpush1.bf16.msra.mxu0 0
        %5150 = vmatprep.subr.bf16.mxu0 0
        %5151 = vmatpush1.bf16.msra.mxu0 0
        %5152 = vmatprep.subr.bf16.mxu0 0
        %5153 = vmatpush1.bf16.msra.mxu0 0
        %5154 = vmatprep.subr.bf16.mxu0 0
        %5155 = vmatpush1.bf16.msra.mxu0 0
        %5156 = vmatprep.subr.bf16.mxu0 0
        %5157 = vmatpush1.bf16.msra.mxu0 0
        %5158 = vmatprep.subr.bf16.mxu0 0
        %5159 = vmatpush1.bf16.msra.mxu0 0
        %5160 = vmatprep.subr.bf16.mxu0 0
        %5161 = vmatpush1.bf16.msra.mxu0 0
        %5162 = vmatprep.subr.bf16.mxu0 0
        %5163 = vmatpush1.bf16.msra.mxu0 0
        %5164 = vmatprep.subr.bf16.mxu0 0
        %5165 = vmatpush1.bf16.msra.mxu0 0
        %5166 = vmatprep.mubr.bf16.mxu0 0
        %5167 = vmatmul.mubr.bf16.gmra.mrb[0].mxu0 %v5126
        %v5168 = vpop.f32.mrb[0].mxu0
        %v5169 = vadd.f32 0.0, %v5168
        %v5170 = vpop.f32.mrb[0].mxu0
        %v5171 = vpop.f32.mrb[0].mxu0
        %v5172 = vadd.f32 0.0, %v5171
        %v5173 = vpop.f32.mrb[0].mxu0
        %5174 = vmatprep.mubr.bf16.mxu0 0
        %5175 = vmatmul.mubr.bf16.gmra.mrb[0].mxu0 %v5129
        %v5176 = vpop.f32.mrb[0].mxu0
        %v5177 = vadd.f32 0.0, %v5176
        %v5178 = vpop.f32.mrb[0].mxu0
        %v5179 = vpop.f32.mrb[0].mxu0
        %v5180 = vadd.f32 0.0, %v5179
        %v5181 = vpop.f32.mrb[0].mxu0
        %5182 = vmatprep.mubr.bf16.mxu0 0
        %5183 = vmatmul.mubr.bf16.gmra.mrb[0].mxu0 %v5132
        %v5184 = vpop.f32.mrb[0].mxu0
        %v5185 = vadd.f32 0.0, %v5184
        %v5186 = vpop.f32.mrb[0].mxu0
        %v5187 = vpop.f32.mrb[0].mxu0
        %v5188 = vadd.f32 0.0, %v5187
        %v5189 = vpop.f32.mrb[0].mxu0
        %5190 = vdwg.mxu0
        %v5191 = vadd.f32 %v4952, %v5169
        %v5192 = vadd.f32 %v4953, %v5172
        %v5193 = vadd.f32 %v4954, %v5177
        %v5194 = vadd.f32 %v4955, %v5180
        %v5195 = vadd.f32 %v4956, %v5185
        %v5196 = vadd.f32 %v4957, %v5188
        %v5197 = vld [vmem:[%s8 + $0xa] sm:$0x1]
        %v5198 = vlaneseq
        %v5199 = vshrl.u32 %v5198, 7
        %v5200 = vsub.s32 0, %v5199
        %v5201 = vrot.slane %v5197, %v5200
        %v5202 = vadd.f32 %v5191, %v5201
        %v5203 = vadd.f32 %v5192, %v5201
        %v5204 = vadd.f32 %v5193, %v5201
        %v5205 = vadd.f32 %v5194, %v5201
        %v5206 = vadd.f32 %v5195, %v5201
        %v5207 = vadd.f32 %v5196, %v5201
        %5208 = vxpose.xlu0.b32.start [1/16] %v5202, 128
        %5209 = vxpose.xlu0.b32.cont [2/16] %v5203, 128
        %5210 = vxpose.xlu0.b32.cont [3/16] %v5204, 128
        %5211 = vxpose.xlu0.b32.cont [4/16] %v5205, 128
        %5212 = vxpose.xlu0.b32.cont [5/16] %v5206, 128
        %5213 = vxpose.xlu0.b32.cont [6/16] %v5207, 128
        %5214 = vxpose.xlu0.b32.cont [7/16] 0.0, 128
        %5215 = vxpose.xlu0.b32.cont [8/16] 0.0, 128
        %5216 = vxpose.xlu0.b32.cont [9/16] 0.0, 128
        %5217 = vxpose.xlu0.b32.cont [10/16] 0.0, 128
        %5218 = vxpose.xlu0.b32.cont [11/16] 0.0, 128
        %5219 = vxpose.xlu0.b32.cont [12/16] 0.0, 128
        %5220 = vxpose.xlu0.b32.cont [13/16] 0.0, 128
        %5221 = vxpose.xlu0.b32.cont [14/16] 0.0, 128
        %5222 = vxpose.xlu0.b32.cont [15/16] 0.0, 128
        %5223 = vxpose.xlu0.b32.end [16/16] 0.0, 128
        %v5224 = vpop.trf.xlu0
        %v5225 = vpop.trf.xlu0
        %v5226 = vpop.trf.xlu0
        %v5227 = vpop.trf.xlu0
        %v5228 = vpop.trf.xlu0
        %v5229 = vpop.trf.xlu0
        %v5230 = vpop.trf.xlu0
        %v5231 = vpop.trf.xlu0
        %v5232 = vpop.trf.xlu0
        %v5233 = vpop.trf.xlu0
        %v5234 = vpop.trf.xlu0
        %v5235 = vpop.trf.xlu0
        %v5236 = vpop.trf.xlu0
        %v5237 = vpop.trf.xlu0
        %v5238 = vpop.trf.xlu0
        %v5239 = vpop.trf.xlu0
        %5240 = vst.msk [vmem:[%s347] sm:$0xff] %vm925, %v5224
        %5241 = vst.msk [vmem:[%s347 + $0x8] sm:$0xff] %vm925, %v5225
        %5242 = vst.msk [vmem:[%s347 + $0x10] sm:$0xff] %vm925, %v5226
        %5243 = vst.msk [vmem:[%s347 + $0x18] sm:$0xff] %vm925, %v5227
        %5244 = vst.msk [vmem:[%s347 + $0x20] sm:$0xff] %vm925, %v5228
        %5245 = vst.msk [vmem:[%s347 + $0x28] sm:$0xff] %vm925, %v5229
        %5246 = vst.msk [vmem:[%s347 + $0x30] sm:$0xff] %vm925, %v5230
        %5247 = vst.msk [vmem:[%s347 + $0x38] sm:$0xff] %vm925, %v5231
        %p5248 = scmp.lt.s32.totalorder %s21, 1
        %s5249 = scalar_select %p5248, %s21, 1
        %s5250 = smul.addr %s5249, 8
        %s5251 = smul.addr %s5250, 8
        %s5252 = scalar_lea.vmem %s9, %s5251
        // Predicated region
        $region61: #{tpu_custom_call.1} parent=55 // pred_check
          %p5253 = pneg %p233
        $region62: #{tpu_custom_call.1} parent=55 // pred_check_branch
          %5255 = sbr.rel (%p5253) target = $region64
        $region63: #{tpu_custom_call.1} parent=55 // pred_region
          _
        $region64: #{tpu_custom_call.1} parent=55 // pred_fallthru
          _
      $region56: #{tpu_custom_call.1} parent=5 // pred_fallthru
        _
      %p5256 = scmp.le.s32.totalorder 2, %s16
      // Predicated region
      $region65: #{tpu_custom_call.1} parent=5 // pred_check
        %p5257 = pneg %p5256
      $region66: #{tpu_custom_call.1} parent=5 // pred_check_branch
        %5259 = sbr.rel (%p5257) target = $region68
      $region67: #{tpu_custom_call.1} parent=5 // pred_region
        %s5260 = ssub.s32 %s16, 2
        // Predicated region
        $region69: #{tpu_custom_call.1} parent=67 // pred_check
          %p5261 = pneg %p239
        $region70: #{tpu_custom_call.1} parent=67 // pred_check_branch
          %5263 = sbr.rel (%p5261) target = $region72
        $region71: #{tpu_custom_call.1} parent=67 // pred_region
          %p5264 = scmp.lt.s32.totalorder %s22, 1
          %s5265 = scalar_select %p5264, %s22, 1
          %s5266 = smul.addr %s5265, 8
          %s5267 = smul.addr %s5266, 8
          %s5268 = scalar_lea.vmem %s9, %s5267
        $region72: #{tpu_custom_call.1} parent=67 // pred_fallthru
          _
      $region68: #{tpu_custom_call.1} parent=5 // pred_fallthru
        _
    $region6: #{tpu_custom_call.1} parent=1 // loop_footer
      %s20 = sadd.s32 1, %s16
    $region7: #{tpu_custom_call.1} parent=1 // loop_footer_branch
      %15 = sbr.rel target = $region3
    $region8: #{tpu_custom_call.1} parent=1 // loop_exit
      _
    %5269 = vsyncpa [#allocation4], 1
    %s5270 = scalar_lea.sflag [#allocation4], 1
    %5271 = vsyncpa %s5270, 1

</llo_original>
